<compile_context>
chip_gen: v7x
topology: tpu7x:2x2x1
jax: 0.10.0
libtpu: 0.0.40
codegen_flags: <defaults>
</compile_context>

<pallas_src>
import functools

import jax
import jax.numpy as jnp
from jax.experimental import pallas as pl
from jax.experimental.pallas import tpu as pltpu


_VMEM_TILING_BUDGET = 40 * 1024 * 1024   # per-step working-set target
_VMEM_LIMIT_BYTES = 48 * 1024 * 1024     # explicit scoped-VMEM limit (<= v7x 64 MiB)


def _round_up(a, b):
    return ((a + b - 1) // b) * b


def _vmem_footprint(tile_d, d_pad, b_pad, nc_pad):
    """Conservative per-step VMEM bytes (inputs double-buffered)."""
    bf16, f32 = 2, 4
    x_in = 2 * b_pad * tile_d * f32
    w1 = 2 * tile_d * nc_pad * bf16
    b1 = 2 * nc_pad * f32
    wb = 2 * nc_pad * nc_pad * bf16
    bb = 2 * nc_pad * f32
    w2 = 2 * nc_pad * tile_d * bf16
    b2 = 2 * tile_d * f32
    out = 2 * b_pad * d_pad * f32        # resident output (conservative x2)
    h = b_pad * nc_pad * f32             # scratch accumulator
    return x_in + w1 + b1 + wb + bb + w2 + b2 + out + h


def _choose_tiling(d, b_pad, nc_pad, budget):
    """Smallest n_tiles whose footprint fits `budget`; tile_d multiple of 128."""
    max_tiles = -(-d // 128)
    for n in range(1, max_tiles + 1):
        tile_d = _round_up(-(-d // n), 128)
        d_pad = n * tile_d
        if _vmem_footprint(tile_d, d_pad, b_pad, nc_pad) <= budget:
            return n, tile_d, d_pad
    return max_tiles, 128, max_tiles * 128


def prn_kernel(x_ref, w1_ref, b1_ref, wb_ref, bb_ref, w2_ref, b2_ref,
               o_ref, h_ref, *, n_tiles, tile_d):
    p = pl.program_id(0)   # phase: 0 = dens1 accumulation (+bneck), 1 = dens2/softmax
    t = pl.program_id(1)   # tile index along the flattened feature dim
    last = n_tiles - 1
    col = pl.ds(pl.multiple_of(t * tile_d, tile_d), tile_d)

    # ------------- phase 0: h = x @ w1 (K-tiled), then b1/ReLU + bottleneck -------------
    @pl.when(jnp.logical_and(p == 0, t == 0))
    def _init():
        h_ref[...] = jnp.zeros_like(h_ref)

    @pl.when(p == 0)
    def _accumulate():
        x_tile = x_ref[...]
        # Stage the f32 residual into the resident output block (read in phase 1);
        # this is the only HBM fetch of x.
        o_ref[:, col] = x_tile
        h_ref[...] += jnp.dot(x_tile.astype(jnp.bfloat16), w1_ref[...],
                              preferred_element_type=jnp.float32)

    @pl.when(jnp.logical_and(p == 0, t == last))
    def _bottleneck():
        h1 = jnp.maximum(h_ref[...] + b1_ref[...], 0.0)            # dens1 + ReLU
        h2 = jnp.dot(h1.astype(jnp.bfloat16), wb_ref[...],
                     preferred_element_type=jnp.float32) + bb_ref[...]
        h_ref[...] = jnp.maximum(h2, 0.0)                          # bneck + ReLU

    # ------------- phase 1: stream w2 tiles, residual add, softmax epilogue -------------
    @pl.when(p == 1)
    def _dens2():
        y = jnp.dot(h_ref[...].astype(jnp.bfloat16), w2_ref[...],
                    preferred_element_type=jnp.float32) + b2_ref[...]
        o_ref[:, col] = jnp.maximum(y, 0.0) + o_ref[:, col]        # dens2+ReLU+res

    @pl.when(jnp.logical_and(p == 1, t == last))
    def _softmax():
        out = o_ref[...]                                           # (b_pad, d_pad)
        m = jnp.max(out, axis=1, keepdims=True)
        e = jnp.exp(out - m)        # padded cols were -1e30 -> exp underflows to 0
        s = jnp.sum(e, axis=1, keepdims=True)
        o_ref[...] = e * (1.0 / s)                                 # exact reciprocal


@functools.partial(jax.jit, static_argnames=("height", "width"))
def prn_forward(x, params, *, height, width):
    """x: (B, height, width, 17) float32. Returns (B, height, width, 17) float32."""
    B = x.shape[0]
    D = height * width * 17
    w1, b1, wb, bb, w2, b2 = params
    NC = w1.shape[1]

    b_pad = _round_up(max(B, 8), 8)
    nc_pad = _round_up(NC, 128)
    n_tiles, tile_d, d_pad = _choose_tiling(D, b_pad, nc_pad, _VMEM_TILING_BUDGET)

    x2d = x.reshape(B, D).astype(jnp.float32)
    # Pad feature columns with a large FINITE negative: padded logits vanish in the
    # softmax (exp underflows to 0) with no explicit mask, and -1e30 * 0-padded w1
    # rows is exactly 0 in the phase-0 matmul (-inf would give NaN).
    x2d = jnp.pad(x2d, ((0, 0), (0, d_pad - D)), constant_values=-1e30)
    x2d = jnp.pad(x2d, ((0, b_pad - B), (0, 0)))                   # batch rows: zeros

    w1p = jnp.pad(w1.astype(jnp.bfloat16), ((0, d_pad - D), (0, nc_pad - NC)))
    b1p = jnp.pad(b1.astype(jnp.float32), ((0, 0), (0, nc_pad - NC)))
    wbp = jnp.pad(wb.astype(jnp.bfloat16), ((0, nc_pad - NC), (0, nc_pad - NC)))
    bbp = jnp.pad(bb.astype(jnp.float32), ((0, 0), (0, nc_pad - NC)))
    w2p = jnp.pad(w2.astype(jnp.bfloat16), ((0, nc_pad - NC), (0, d_pad - D)))
    b2p = jnp.pad(b2.astype(jnp.float32), ((0, 0), (0, d_pad - D)))

    last = n_tiles - 1
    in_specs = [
        # x: streamed in phase 0, pinned (no re-DMA) in phase 1.
        pl.BlockSpec((b_pad, tile_d), lambda p, t: (0, jnp.where(p == 0, t, last))),
        # w1: K-tiles in phase 0, pinned in phase 1.
        pl.BlockSpec((tile_d, nc_pad), lambda p, t: (jnp.where(p == 0, t, last), 0)),
        pl.BlockSpec((1, nc_pad), lambda p, t: (0, 0)),            # b1
        pl.BlockSpec((nc_pad, nc_pad), lambda p, t: (0, 0)),       # wb
        pl.BlockSpec((1, nc_pad), lambda p, t: (0, 0)),            # bb
        # w2 / b2: first tile prefetched during phase 0, streamed in phase 1.
        pl.BlockSpec((nc_pad, tile_d), lambda p, t: (0, jnp.where(p == 0, 0, t))),
        pl.BlockSpec((1, tile_d), lambda p, t: (0, jnp.where(p == 0, 0, t))),
    ]
    out_specs = pl.BlockSpec((b_pad, d_pad), lambda p, t: (0, 0))  # resident output

    flops = 2 * b_pad * d_pad * nc_pad * 2 + 2 * b_pad * nc_pad * nc_pad
    bytes_accessed = (2 * (w1p.size + wbp.size + w2p.size)         # bf16 weights
                      + 4 * (x2d.size + b1p.size + bbp.size + b2p.size)
                      + 4 * b_pad * d_pad)                         # output write
    cost = pl.CostEstimate(flops=flops, transcendentals=b_pad * d_pad,
                           bytes_accessed=bytes_accessed)

    kernel = functools.partial(prn_kernel, n_tiles=n_tiles, tile_d=tile_d)
    out2d = pl.pallas_call(
        kernel,
        out_shape=jax.ShapeDtypeStruct((b_pad, d_pad), jnp.float32),
        grid=(2, n_tiles),
        in_specs=in_specs,
        out_specs=out_specs,
        scratch_shapes=[pltpu.VMEM((b_pad, nc_pad), jnp.float32)],  # h accumulator / h2
        compiler_params=pltpu.CompilerParams(
            dimension_semantics=("arbitrary", "arbitrary"),
            vmem_limit_bytes=_VMEM_LIMIT_BYTES),
        cost_estimate=cost,
    )(x2d, w1p, b1p, wbp, bbp, w2p, b2p)

    return out2d[:B, :D].reshape(B, height, width, 17)


def prn_reference(x, params, *, height, width):
    """Pure-JAX reference with the same bf16-weight / f32-accumulate recipe."""
    B = x.shape[0]
    D = height * width * 17
    w1, b1, wb, bb, w2, b2 = params
    res = x.reshape(B, D).astype(jnp.float32)
    h = jnp.dot(res.astype(jnp.bfloat16), w1, preferred_element_type=jnp.float32) + b1
    h = jnp.maximum(h, 0.0)
    h = jnp.dot(h.astype(jnp.bfloat16), wb, preferred_element_type=jnp.float32) + bb
    h = jnp.maximum(h, 0.0)
    h = jnp.dot(h.astype(jnp.bfloat16), w2, preferred_element_type=jnp.float32) + b2
    h = jnp.maximum(h, 0.0)
    out = jax.nn.softmax(h + res, axis=1)
    return out.reshape(B, height, width, 17)


def init_params(key, in_dim, node_count):
    """Deterministic synthetic params; Linear weights stored as (in, out), bf16."""
    k1, k2, k3, k4, k5, k6 = jax.random.split(key, 6)
    scale = 0.02
    w1 = (scale * jax.random.normal(k1, (in_dim, node_count), jnp.float32)).astype(jnp.bfloat16)
    b1 = scale * jax.random.normal(k2, (1, node_count), jnp.float32)
    wb = (scale * jax.random.normal(k3, (node_count, node_count), jnp.float32)).astype(jnp.bfloat16)
    bb = scale * jax.random.normal(k4, (1, node_count), jnp.float32)
    w2 = (scale * jax.random.normal(k5, (node_count, in_dim), jnp.float32)).astype(jnp.bfloat16)
    b2 = scale * jax.random.normal(k6, (1, in_dim), jnp.float32)
    return (w1, b1, wb, bb, w2, b2)


if __name__ == "__main__":
    # Small config consistent with the module: coeff=1 -> H=28, W=18, 17 joints.
    coeff = 1
    node_count = 128
    height = coeff * 28
    width = coeff * 18
    B = 2
    D = height * width * 17  # 8568

    key = jax.random.PRNGKey(0)
    kx, kp = jax.random.split(key)
    x = jax.random.uniform(kx, (B, height, width, 17), jnp.float32)
    params = init_params(kp, D, node_count)

    out = prn_forward(x, params, height=height, width=width)
    out = jax.block_until_ready(out)

    assert out.shape == (B, height, width, 17), out.shape
    # softmax over the flattened feature axis -> each batch row sums to 1
    row_sums = out.reshape(B, -1).sum(axis=1)
    assert jnp.allclose(row_sums, 1.0, atol=1e-3), row_sums

    # numerical check against the pure-JAX reference (same bf16 weights)
    ref = jax.block_until_ready(prn_reference(x, params, height=height, width=width))
    assert jnp.allclose(out, ref, rtol=5e-2, atol=2e-6), float(jnp.max(jnp.abs(out - ref)))

    print("KERNEL_OK")
</pallas_src>

<mosaic_0001>
module attributes {stable_mosaic.version = 11 : i64} {
  func.func @prn_kernel(%arg0: i32, %arg1: i32, %arg2: memref<8x8576xf32, #tpu.memory_space<vmem>>, %arg3: memref<8576x128xbf16, #tpu.memory_space<vmem>>, %arg4: memref<1x128xf32, #tpu.memory_space<vmem>>, %arg5: memref<128x128xbf16, #tpu.memory_space<vmem>>, %arg6: memref<1x128xf32, #tpu.memory_space<vmem>>, %arg7: memref<128x8576xbf16, #tpu.memory_space<vmem>>, %arg8: memref<1x8576xf32, #tpu.memory_space<vmem>>, %arg9: memref<8x8576xf32, #tpu.memory_space<vmem>>, %arg10: memref<8x128xf32, #tpu.memory_space<vmem>>) attributes {dimension_semantics = [#tpu.dimension_semantics<arbitrary>, #tpu.dimension_semantics<arbitrary>], iteration_bounds = array<i64: 2, 1>, scalar_prefetch = 0 : i64, scratch_operands = 1 : i64, tpu.core_type = #tpu.core_type<tc>, window_params = [{transform_indices = @transform_0, window_bounds = array<i64: 8, 8576>}, {transform_indices = @transform_1, window_bounds = array<i64: 8576, 128>}, {pipeline_mode = #tpu.pipeline_mode<synchronous>, transform_indices = @transform_2, window_bounds = array<i64: 1, 128>}, {pipeline_mode = #tpu.pipeline_mode<synchronous>, transform_indices = @transform_3, window_bounds = array<i64: 128, 128>}, {pipeline_mode = #tpu.pipeline_mode<synchronous>, transform_indices = @transform_4, window_bounds = array<i64: 1, 128>}, {transform_indices = @transform_5, window_bounds = array<i64: 128, 8576>}, {transform_indices = @transform_6, window_bounds = array<i64: 1, 8576>}, {pipeline_mode = #tpu.pipeline_mode<synchronous>, transform_indices = @transform_7, window_bounds = array<i64: 8, 8576>}]} {
    %c8576_i32 = arith.constant 8576 : i32
    %0 = arith.muli %arg1, %c8576_i32 : i32
    %1 = tpu.assume_multiple %0, 8576 : i32
    %c0_i32 = arith.constant 0 : i32
    %2 = arith.cmpi eq, %arg0, %c0_i32 : i32
    %c0_i32_0 = arith.constant 0 : i32
    %3 = arith.cmpi eq, %arg1, %c0_i32_0 : i32
    %4 = arith.andi %2, %3 : i1
    %5 = arith.extui %4 : i1 to i32
    %c0_i32_1 = arith.constant 0 : i32
    %6 = arith.cmpi ne, %5, %c0_i32_1 : i32
    scf.if %6 {
      %cst = arith.constant 0.000000e+00 : f32
      %23 = vector.broadcast %cst : f32 to vector<8x128xf32>
      %c0 = arith.constant 0 : index
      %c0_11 = arith.constant 0 : index
      %24 = vector.load %arg10[%c0, %c0_11] : memref<8x128xf32, #tpu.memory_space<vmem>>, vector<8x128xf32>
      tpu.vector_store %arg10[%c0, %c0_11], %23 {strides = array<i32>} : memref<8x128xf32, #tpu.memory_space<vmem>>, vector<8x128xf32>,
    } else {
    }
    %c0_i32_2 = arith.constant 0 : i32
    %7 = arith.cmpi eq, %arg0, %c0_i32_2 : i32
    %8 = arith.extui %7 : i1 to i32
    %c0_i32_3 = arith.constant 0 : i32
    %9 = arith.cmpi ne, %8, %c0_i32_3 : i32
    scf.if %9 {
      %c0 = arith.constant 0 : index
      %c0_11 = arith.constant 0 : index
      %23 = vector.load %arg2[%c0, %c0_11] : memref<8x8576xf32, #tpu.memory_space<vmem>>, vector<8x8576xf32>
      %c0_12 = arith.constant 0 : index
      %24 = arith.index_cast %1 : i32 to index
      %25 = vector.load %arg9[%c0_12, %24] : memref<8x8576xf32, #tpu.memory_space<vmem>>, vector<8x8576xf32>
      tpu.vector_store %arg9[%c0_12, %24], %23 {strides = array<i32>} : memref<8x8576xf32, #tpu.memory_space<vmem>>, vector<8x8576xf32>,
      %c0_13 = arith.constant 0 : index
      %c0_14 = arith.constant 0 : index
      %26 = vector.load %arg10[%c0_13, %c0_14] : memref<8x128xf32, #tpu.memory_space<vmem>>, vector<8x128xf32>
      %27 = arith.truncf %23 : vector<8x8576xf32> to vector<8x8576xbf16>
      %c0_15 = arith.constant 0 : index
      %c0_16 = arith.constant 0 : index
      %28 = vector.load %arg3[%c0_15, %c0_16] : memref<8576x128xbf16, #tpu.memory_space<vmem>>, vector<8576x128xbf16>
      %cst = arith.constant dense<0.000000e+00> : vector<8x128xf32>
      %29 = tpu.matmul %27, %28, %cst {dimension_numbers = #tpu.dot_dimension_numbers<[1], [0], [0], [1], [0, 0, 1, 1], [], []>} : vector<8x8576xbf16>, vector<8576x128xbf16>, vector<8x128xf32> -> vector<8x128xf32>
      %30 = arith.addf %26, %29 : vector<8x128xf32>
      %c0_17 = arith.constant 0 : index
      %c0_18 = arith.constant 0 : index
      %31 = vector.load %arg10[%c0_17, %c0_18] : memref<8x128xf32, #tpu.memory_space<vmem>>, vector<8x128xf32>
      tpu.vector_store %arg10[%c0_17, %c0_18], %30 {strides = array<i32>} : memref<8x128xf32, #tpu.memory_space<vmem>>, vector<8x128xf32>,
    } else {
    }
    %c0_i32_4 = arith.constant 0 : i32
    %10 = arith.cmpi eq, %arg0, %c0_i32_4 : i32
    %c0_i32_5 = arith.constant 0 : i32
    %11 = arith.cmpi eq, %arg1, %c0_i32_5 : i32
    %12 = arith.andi %10, %11 : i1
    %13 = arith.extui %12 : i1 to i32
    %c0_i32_6 = arith.constant 0 : i32
    %14 = arith.cmpi ne, %13, %c0_i32_6 : i32
    scf.if %14 {
      %c0 = arith.constant 0 : index
      %c0_11 = arith.constant 0 : index
      %23 = vector.load %arg10[%c0, %c0_11] : memref<8x128xf32, #tpu.memory_space<vmem>>, vector<8x128xf32>
      %c0_12 = arith.constant 0 : index
      %c0_13 = arith.constant 0 : index
      %24 = vector.load %arg4[%c0_12, %c0_13] : memref<1x128xf32, #tpu.memory_space<vmem>>, vector<1x128xf32>
      %25 = vector.broadcast %24 : vector<1x128xf32> to vector<8x128xf32>
      %26 = arith.addf %23, %25 : vector<8x128xf32>
      %cst = arith.constant 0.000000e+00 : f32
      %27 = vector.broadcast %cst : f32 to vector<8x128xf32>
      %28 = arith.maximumf %26, %27 : vector<8x128xf32>
      %29 = arith.truncf %28 : vector<8x128xf32> to vector<8x128xbf16>
      %c0_14 = arith.constant 0 : index
      %c0_15 = arith.constant 0 : index
      %30 = vector.load %arg5[%c0_14, %c0_15] : memref<128x128xbf16, #tpu.memory_space<vmem>>, vector<128x128xbf16>
      %cst_16 = arith.constant dense<0.000000e+00> : vector<8x128xf32>
      %31 = tpu.matmul %29, %30, %cst_16 {dimension_numbers = #tpu.dot_dimension_numbers<[1], [0], [0], [1], [0, 0, 1, 1], [], []>} : vector<8x128xbf16>, vector<128x128xbf16>, vector<8x128xf32> -> vector<8x128xf32>
      %c0_17 = arith.constant 0 : index
      %c0_18 = arith.constant 0 : index
      %32 = vector.load %arg6[%c0_17, %c0_18] : memref<1x128xf32, #tpu.memory_space<vmem>>, vector<1x128xf32>
      %33 = vector.broadcast %32 : vector<1x128xf32> to vector<8x128xf32>
      %34 = arith.addf %31, %33 : vector<8x128xf32>
      %cst_19 = arith.constant 0.000000e+00 : f32
      %35 = vector.broadcast %cst_19 : f32 to vector<8x128xf32>
      %36 = arith.maximumf %34, %35 : vector<8x128xf32>
      %c0_20 = arith.constant 0 : index
      %c0_21 = arith.constant 0 : index
      %37 = vector.load %arg10[%c0_20, %c0_21] : memref<8x128xf32, #tpu.memory_space<vmem>>, vector<8x128xf32>
      tpu.vector_store %arg10[%c0_20, %c0_21], %36 {strides = array<i32>} : memref<8x128xf32, #tpu.memory_space<vmem>>, vector<8x128xf32>,
    } else {
    }
    %c1_i32 = arith.constant 1 : i32
    %15 = arith.cmpi eq, %arg0, %c1_i32 : i32
    %16 = arith.extui %15 : i1 to i32
    %c0_i32_7 = arith.constant 0 : i32
    %17 = arith.cmpi ne, %16, %c0_i32_7 : i32
    scf.if %17 {
      %c0 = arith.constant 0 : index
      %c0_11 = arith.constant 0 : index
      %23 = vector.load %arg10[%c0, %c0_11] : memref<8x128xf32, #tpu.memory_space<vmem>>, vector<8x128xf32>
      %24 = arith.truncf %23 : vector<8x128xf32> to vector<8x128xbf16>
      %c0_12 = arith.constant 0 : index
      %c0_13 = arith.constant 0 : index
      %25 = vector.load %arg7[%c0_12, %c0_13] : memref<128x8576xbf16, #tpu.memory_space<vmem>>, vector<128x8576xbf16>
      %cst = arith.constant dense<0.000000e+00> : vector<8x8576xf32>
      %26 = tpu.matmul %24, %25, %cst {dimension_numbers = #tpu.dot_dimension_numbers<[1], [0], [0], [1], [0, 0, 1, 1], [], []>} : vector<8x128xbf16>, vector<128x8576xbf16>, vector<8x8576xf32> -> vector<8x8576xf32>
      %c0_14 = arith.constant 0 : index
      %c0_15 = arith.constant 0 : index
      %27 = vector.load %arg8[%c0_14, %c0_15] : memref<1x8576xf32, #tpu.memory_space<vmem>>, vector<1x8576xf32>
      %28 = vector.broadcast %27 : vector<1x8576xf32> to vector<8x8576xf32>
      %29 = arith.addf %26, %28 : vector<8x8576xf32>
      %cst_16 = arith.constant 0.000000e+00 : f32
      %30 = vector.broadcast %cst_16 : f32 to vector<8x8576xf32>
      %31 = arith.maximumf %29, %30 : vector<8x8576xf32>
      %c0_17 = arith.constant 0 : index
      %32 = arith.index_cast %1 : i32 to index
      %33 = vector.load %arg9[%c0_17, %32] : memref<8x8576xf32, #tpu.memory_space<vmem>>, vector<8x8576xf32>
      %34 = arith.addf %31, %33 : vector<8x8576xf32>
      %c0_18 = arith.constant 0 : index
      %35 = arith.index_cast %1 : i32 to index
      %36 = vector.load %arg9[%c0_18, %35] : memref<8x8576xf32, #tpu.memory_space<vmem>>, vector<8x8576xf32>
      tpu.vector_store %arg9[%c0_18, %35], %34 {strides = array<i32>} : memref<8x8576xf32, #tpu.memory_space<vmem>>, vector<8x8576xf32>,
    } else {
    }
    %c1_i32_8 = arith.constant 1 : i32
    %18 = arith.cmpi eq, %arg0, %c1_i32_8 : i32
    %c0_i32_9 = arith.constant 0 : i32
    %19 = arith.cmpi eq, %arg1, %c0_i32_9 : i32
    %20 = arith.andi %18, %19 : i1
    %21 = arith.extui %20 : i1 to i32
    %c0_i32_10 = arith.constant 0 : i32
    %22 = arith.cmpi ne, %21, %c0_i32_10 : i32
    scf.if %22 {
      %c0 = arith.constant 0 : index
      %c0_11 = arith.constant 0 : index
      %23 = vector.load %arg9[%c0, %c0_11] : memref<8x8576xf32, #tpu.memory_space<vmem>>, vector<8x8576xf32>
      %cst = arith.constant dense<0xFF800000> : vector<8xf32>
      %24 = vector.multi_reduction <maximumf>, %23, %cst [1] : vector<8x8576xf32> to vector<8xf32>
      %25 = vector.shape_cast %24 : vector<8xf32> to vector<8x1xf32>
      %26 = vector.broadcast %25 : vector<8x1xf32> to vector<8x8576xf32>
      %27 = arith.subf %23, %26 : vector<8x8576xf32>
      %28 = math.exp %27 : vector<8x8576xf32>
      %cst_12 = arith.constant dense<0.000000e+00> : vector<8xf32>
      %29 = vector.multi_reduction <add>, %28, %cst_12 [1] : vector<8x8576xf32> to vector<8xf32>
      %30 = vector.shape_cast %29 : vector<8xf32> to vector<8x1xf32>
      %cst_13 = arith.constant 1.000000e+00 : f32
      %31 = vector.broadcast %cst_13 : f32 to vector<8x1xf32>
      %32 = arith.divf %31, %30 : vector<8x1xf32>
      %33 = vector.broadcast %32 : vector<8x1xf32> to vector<8x8576xf32>
      %34 = arith.mulf %28, %33 : vector<8x8576xf32>
      %c0_14 = arith.constant 0 : index
      %c0_15 = arith.constant 0 : index
      %35 = vector.load %arg9[%c0_14, %c0_15] : memref<8x8576xf32, #tpu.memory_space<vmem>>, vector<8x8576xf32>
      tpu.vector_store %arg9[%c0_14, %c0_15], %34 {strides = array<i32>} : memref<8x8576xf32, #tpu.memory_space<vmem>>, vector<8x8576xf32>,
    } else {
    }
    return
  }
  func.func @transform_0(%arg0: i32, %arg1: i32) -> (i32, i32) {
    %c0_i32 = arith.constant 0 : i32
    %0 = arith.cmpi eq, %arg0, %c0_i32 : i32
    %c0_i32_0 = arith.constant 0 : i32
    %1 = arith.select %0, %arg1, %c0_i32_0 : i32
    %c0_i32_1 = arith.constant 0 : i32
    %c0_i32_2 = arith.constant 0 : i32
    return %c0_i32_1, %1 : i32, i32
  }
  func.func @transform_1(%arg0: i32, %arg1: i32) -> (i32, i32) {
    %c0_i32 = arith.constant 0 : i32
    %0 = arith.cmpi eq, %arg0, %c0_i32 : i32
    %c0_i32_0 = arith.constant 0 : i32
    %1 = arith.select %0, %arg1, %c0_i32_0 : i32
    %c0_i32_1 = arith.constant 0 : i32
    %c0_i32_2 = arith.constant 0 : i32
    return %1, %c0_i32_1 : i32, i32
  }
  func.func @transform_2(%arg0: i32, %arg1: i32) -> (i32, i32) {
    %c0_i32 = arith.constant 0 : i32
    %c0_i32_0 = arith.constant 0 : i32
    %c0_i32_1 = arith.constant 0 : i32
    return %c0_i32, %c0_i32_0 : i32, i32
  }
  func.func @transform_3(%arg0: i32, %arg1: i32) -> (i32, i32) {
    %c0_i32 = arith.constant 0 : i32
    %c0_i32_0 = arith.constant 0 : i32
    %c0_i32_1 = arith.constant 0 : i32
    return %c0_i32, %c0_i32_0 : i32, i32
  }
  func.func @transform_4(%arg0: i32, %arg1: i32) -> (i32, i32) {
    %c0_i32 = arith.constant 0 : i32
    %c0_i32_0 = arith.constant 0 : i32
    %c0_i32_1 = arith.constant 0 : i32
    return %c0_i32, %c0_i32_0 : i32, i32
  }
  func.func @transform_5(%arg0: i32, %arg1: i32) -> (i32, i32) {
    %c0_i32 = arith.constant 0 : i32
    %0 = arith.cmpi eq, %arg0, %c0_i32 : i32
    %c0_i32_0 = arith.constant 0 : i32
    %1 = arith.select %0, %c0_i32_0, %arg1 : i32
    %c0_i32_1 = arith.constant 0 : i32
    %c0_i32_2 = arith.constant 0 : i32
    return %c0_i32_1, %1 : i32, i32
  }
  func.func @transform_6(%arg0: i32, %arg1: i32) -> (i32, i32) {
    %c0_i32 = arith.constant 0 : i32
    %0 = arith.cmpi eq, %arg0, %c0_i32 : i32
    %c0_i32_0 = arith.constant 0 : i32
    %1 = arith.select %0, %c0_i32_0, %arg1 : i32
    %c0_i32_1 = arith.constant 0 : i32
    %c0_i32_2 = arith.constant 0 : i32
    return %c0_i32_1, %1 : i32, i32
  }
  func.func @transform_7(%arg0: i32, %arg1: i32) -> (i32, i32) {
    %c0_i32 = arith.constant 0 : i32
    %c0_i32_0 = arith.constant 0 : i32
    %c0_i32_1 = arith.constant 0 : i32
    return %c0_i32, %c0_i32_0 : i32, i32
  }
}

</mosaic_0001>

<llo_original>
// kernel: prn_forward.1
$region0: #{prn_forward.1}
  #allocation0 [shape = 'u32[]', space=smem, size = 0x4, offset = 0x4, fixed_abs, tag = 'smem constant byte address 0x4 - core index']
  #allocation1 [shape = 'u32[144,128]{1,0:T(1,128)}', space=vmem, size = 0x12000, scoped, tag = 'internal scratch']
  #allocation2 [shape = 'f32[8,128]{1,0:T(8,128)}', space=vmem, size = 0x1000, scoped, tag = 'scratch operand']
  %s0 = inlined_call_operand.vmem [shape: f32[8,8576], index: 0, kind: input, shape index: {}]
  %s1 = inlined_call_operand.vmem [shape: bf16[8576,128], index: 1, kind: input, shape index: {}]
  %s2 = inlined_call_operand.vmem [shape: f32[1,128], index: 2, kind: input, shape index: {}]
  %s3 = inlined_call_operand.vmem [shape: bf16[128,128], index: 3, kind: input, shape index: {}]
  %s4 = inlined_call_operand.vmem [shape: f32[1,128], index: 4, kind: input, shape index: {}]
  %s5 = inlined_call_operand.vmem [shape: bf16[128,8576], index: 5, kind: input, shape index: {}]
  %s6 = inlined_call_operand.vmem [shape: f32[1,8576], index: 6, kind: input, shape index: {}]
  %s7 = inlined_call_operand.vmem [shape: f32[8,8576], index: 7, kind: output, shape index: {}]
  %s8 = sld [smem:[#allocation0]]
  $region81: #{prn_forward.1} parent=0
    _
  %s10 = ssub.s32 1, %s8
  %s11 = scalar_select 0, %s10, %s8
  loop: start=0, step=1, limit=4
  $region2: #{prn_forward.1} parent=0 // loop_pre_header
    _
  $region3: #{prn_forward.1} parent=0 // loop_header
    %s13 = sphi 0, %s17
    %p14 = scmp.ge.s32.totalorder %s13, 4
    %s20 = sphi 0, %s32
    %s21 = sphi 0, %s28
    %s22 = sphi 0, %s20
    %s23 = sphi 0, %s21
    %s24 = sphi 0, %s22
    %s25 = sphi 0, %s23
    %s39 = sphi 0, %s41
    %s42 = sphi 0, %s39
    %s43 = sphi 0, %s42
    %s59 = sphi 0, %s43
    %s69 = sphi 0, %s71
    %s72 = sphi 0, %s69
    %s73 = sphi 0, %s72
    %s89 = sphi 0, %s73
    %s93 = sphi 0, %s93
    %s95 = sphi 0, %s93
    %s96 = sphi 0, %s95
    %s110 = sphi 0, %s96
    %s114 = sphi 0, %s114
    %s116 = sphi 0, %s114
    %s117 = sphi 0, %s116
    %s131 = sphi 0, %s117
    %s135 = sphi 0, %s135
    %s137 = sphi 0, %s135
    %s138 = sphi 0, %s137
    %s152 = sphi 0, %s138
    %s162 = sphi 0, %s164
    %s165 = sphi 0, %s162
    %s166 = sphi 0, %s165
    %s182 = sphi 0, %s166
    %s192 = sphi 0, %s194
    %s195 = sphi 0, %s192
    %s196 = sphi 0, %s195
    %s212 = sphi 0, %s196
    %s216 = sphi 0, %s216
    %s218 = sphi 0, %s216
    %s219 = sphi 0, %s218
    %s233 = sphi 0, %s219
  $region4: #{prn_forward.1} parent=0 // loop_header_branch
    %16 = sbr.rel (%p14) target = $region8
  $region5: #{prn_forward.1} parent=0 // loop_body
    %s18 = ssub.s32 %s13, 1
    %s19 = ssub.s32 %s13, 2
    %s26 = sadd.s32 1, %s21
    %p27 = scmp.ge.s32.totalorder %s26, 1
    %s28 = scalar_select %p27, 0, %s26
    %s29 = sadd.s32 1, %s20
    %s30 = scalar_select %p27, %s29, %s20
    %p31 = scmp.ge.s32.totalorder %s30, 2
    %s32 = scalar_select %p31, 0, %s30
    %p33 = scmp.eq.s32.totalorder %s20, 0
    %s34 = scalar_select %p33, %s21, 0
    %p35 = scmp.eq.s32.totalorder %s32, 0
    %s36 = scalar_select %p35, %s28, 0
    %s37 = ssub.s32 %s34, %s36
    %p38 = scmp.eq.s32.totalorder %s37, 0
    %s40 = sadd.s32 %s39, 1
    %s41 = scalar_select %p38, %s39, %s40
    %p44 = pneg %p38
    %p45 = scmp.eq.s32.totalorder %s13, 1
    %p46 = por %p44, %p45
    %p47 = scmp.ne.s32.totalorder %s39, %s42
    %p48 = scmp.eq.s32.totalorder %s13, 0
    %p49 = por %p47, %p48
    %p50 = scmp.ne.s32.totalorder %s39, %s42
    %p51 = scmp.eq.s32.totalorder %s18, 1
    %p52 = por %p50, %p51
    %p53 = scmp.ne.s32.totalorder %s42, %s43
    %p54 = scmp.eq.s32.totalorder %s18, 0
    %p55 = por %p53, %p54
    %p56 = scmp.ne.s32.totalorder %s42, %s43
    %p57 = scmp.eq.s32.totalorder %s19, 1
    %p58 = por %p56, %p57
    %p60 = scmp.ne.s32.totalorder %s43, %s59
    %p61 = scmp.eq.s32.totalorder %s19, 0
    %p62 = por %p60, %p61
    %p63 = scmp.eq.s32.totalorder %s20, 0
    %s64 = scalar_select %p63, %s21, 0
    %p65 = scmp.eq.s32.totalorder %s32, 0
    %s66 = scalar_select %p65, %s28, 0
    %s67 = ssub.s32 %s64, %s66
    %p68 = scmp.eq.s32.totalorder %s67, 0
    %s70 = sadd.s32 %s69, 1
    %s71 = scalar_select %p68, %s69, %s70
    %p74 = pneg %p68
    %p75 = scmp.eq.s32.totalorder %s13, 1
    %p76 = por %p74, %p75
    %p77 = scmp.ne.s32.totalorder %s69, %s72
    %p78 = scmp.eq.s32.totalorder %s13, 0
    %p79 = por %p77, %p78
    %p80 = scmp.ne.s32.totalorder %s69, %s72
    %p81 = scmp.eq.s32.totalorder %s18, 1
    %p82 = por %p80, %p81
    %p83 = scmp.ne.s32.totalorder %s72, %s73
    %p84 = scmp.eq.s32.totalorder %s18, 0
    %p85 = por %p83, %p84
    %p86 = scmp.ne.s32.totalorder %s72, %s73
    %p87 = scmp.eq.s32.totalorder %s19, 1
    %p88 = por %p86, %p87
    %p90 = scmp.ne.s32.totalorder %s73, %s89
    %p91 = scmp.eq.s32.totalorder %s19, 0
    %p92 = por %p90, %p91
    %s94 = sadd.s32 %s93, 1
    %p97 = scmp.eq.s32.totalorder %s13, 1
    %p98 = scmp.ne.s32.totalorder %s93, %s95
    %p99 = scmp.eq.s32.totalorder %s13, 0
    %p100 = por %p98, %p99
    %p101 = scmp.ne.s32.totalorder %s93, %s95
    %p102 = scmp.eq.s32.totalorder %s18, 1
    %p103 = por %p101, %p102
    %p104 = scmp.ne.s32.totalorder %s95, %s96
    %p105 = scmp.eq.s32.totalorder %s18, 0
    %p106 = por %p104, %p105
    %p107 = scmp.ne.s32.totalorder %s95, %s96
    %p108 = scmp.eq.s32.totalorder %s19, 1
    %p109 = por %p107, %p108
    %p111 = scmp.ne.s32.totalorder %s96, %s110
    %p112 = scmp.eq.s32.totalorder %s19, 0
    %p113 = por %p111, %p112
    %s115 = sadd.s32 %s114, 1
    %p118 = scmp.eq.s32.totalorder %s13, 1
    %p119 = scmp.ne.s32.totalorder %s114, %s116
    %p120 = scmp.eq.s32.totalorder %s13, 0
    %p121 = por %p119, %p120
    %p122 = scmp.ne.s32.totalorder %s114, %s116
    %p123 = scmp.eq.s32.totalorder %s18, 1
    %p124 = por %p122, %p123
    %p125 = scmp.ne.s32.totalorder %s116, %s117
    %p126 = scmp.eq.s32.totalorder %s18, 0
    %p127 = por %p125, %p126
    %p128 = scmp.ne.s32.totalorder %s116, %s117
    %p129 = scmp.eq.s32.totalorder %s19, 1
    %p130 = por %p128, %p129
    %p132 = scmp.ne.s32.totalorder %s117, %s131
    %p133 = scmp.eq.s32.totalorder %s19, 0
    %p134 = por %p132, %p133
    %s136 = sadd.s32 %s135, 1
    %p139 = scmp.eq.s32.totalorder %s13, 1
    %p140 = scmp.ne.s32.totalorder %s135, %s137
    %p141 = scmp.eq.s32.totalorder %s13, 0
    %p142 = por %p140, %p141
    %p143 = scmp.ne.s32.totalorder %s135, %s137
    %p144 = scmp.eq.s32.totalorder %s18, 1
    %p145 = por %p143, %p144
    %p146 = scmp.ne.s32.totalorder %s137, %s138
    %p147 = scmp.eq.s32.totalorder %s18, 0
    %p148 = por %p146, %p147
    %p149 = scmp.ne.s32.totalorder %s137, %s138
    %p150 = scmp.eq.s32.totalorder %s19, 1
    %p151 = por %p149, %p150
    %p153 = scmp.ne.s32.totalorder %s138, %s152
    %p154 = scmp.eq.s32.totalorder %s19, 0
    %p155 = por %p153, %p154
    %p156 = scmp.eq.s32.totalorder %s20, 0
    %s157 = scalar_select %p156, 0, %s21
    %p158 = scmp.eq.s32.totalorder %s32, 0
    %s159 = scalar_select %p158, 0, %s28
    %s160 = ssub.s32 %s157, %s159
    %p161 = scmp.eq.s32.totalorder %s160, 0
    %s163 = sadd.s32 %s162, 1
    %s164 = scalar_select %p161, %s162, %s163
    %p167 = pneg %p161
    %p168 = scmp.eq.s32.totalorder %s13, 1
    %p169 = por %p167, %p168
    %p170 = scmp.ne.s32.totalorder %s162, %s165
    %p171 = scmp.eq.s32.totalorder %s13, 0
    %p172 = por %p170, %p171
    %p173 = scmp.ne.s32.totalorder %s162, %s165
    %p174 = scmp.eq.s32.totalorder %s18, 1
    %p175 = por %p173, %p174
    %p176 = scmp.ne.s32.totalorder %s165, %s166
    %p177 = scmp.eq.s32.totalorder %s18, 0
    %p178 = por %p176, %p177
    %p179 = scmp.ne.s32.totalorder %s165, %s166
    %p180 = scmp.eq.s32.totalorder %s19, 1
    %p181 = por %p179, %p180
    %p183 = scmp.ne.s32.totalorder %s166, %s182
    %p184 = scmp.eq.s32.totalorder %s19, 0
    %p185 = por %p183, %p184
    %p186 = scmp.eq.s32.totalorder %s20, 0
    %s187 = scalar_select %p186, 0, %s21
    %p188 = scmp.eq.s32.totalorder %s32, 0
    %s189 = scalar_select %p188, 0, %s28
    %s190 = ssub.s32 %s187, %s189
    %p191 = scmp.eq.s32.totalorder %s190, 0
    %s193 = sadd.s32 %s192, 1
    %s194 = scalar_select %p191, %s192, %s193
    %p197 = pneg %p191
    %p198 = scmp.eq.s32.totalorder %s13, 1
    %p199 = por %p197, %p198
    %p200 = scmp.ne.s32.totalorder %s192, %s195
    %p201 = scmp.eq.s32.totalorder %s13, 0
    %p202 = por %p200, %p201
    %p203 = scmp.ne.s32.totalorder %s192, %s195
    %p204 = scmp.eq.s32.totalorder %s18, 1
    %p205 = por %p203, %p204
    %p206 = scmp.ne.s32.totalorder %s195, %s196
    %p207 = scmp.eq.s32.totalorder %s18, 0
    %p208 = por %p206, %p207
    %p209 = scmp.ne.s32.totalorder %s195, %s196
    %p210 = scmp.eq.s32.totalorder %s19, 1
    %p211 = por %p209, %p210
    %p213 = scmp.ne.s32.totalorder %s196, %s212
    %p214 = scmp.eq.s32.totalorder %s19, 0
    %p215 = por %p213, %p214
    %s217 = sadd.s32 %s216, 1
    %p220 = scmp.eq.s32.totalorder %s13, 1
    %p221 = scmp.ne.s32.totalorder %s216, %s218
    %p222 = scmp.eq.s32.totalorder %s13, 0
    %p223 = por %p221, %p222
    %p224 = scmp.ne.s32.totalorder %s216, %s218
    %p225 = scmp.eq.s32.totalorder %s18, 1
    %p226 = por %p224, %p225
    %p227 = scmp.ne.s32.totalorder %s218, %s219
    %p228 = scmp.eq.s32.totalorder %s18, 0
    %p229 = por %p227, %p228
    %p230 = scmp.ne.s32.totalorder %s218, %s219
    %p231 = scmp.eq.s32.totalorder %s19, 1
    %p232 = por %p230, %p231
    %p234 = scmp.ne.s32.totalorder %s219, %s233
    %p235 = scmp.eq.s32.totalorder %s19, 0
    %p236 = por %p234, %p235
    %p237 = scmp.le.s32.totalorder 1, %s13
    %p238 = scmp.lt.s32.totalorder %s13, 3
    %p239 = pnand %p237, %p238
    %p240 = pneg %p239
    // Predicated region
    $region9: #{prn_forward.1} parent=5 // pred_check
      _
    $region10: #{prn_forward.1} parent=5 // pred_check_branch
      %242 = sbr.rel (%p239) target = $region12
    $region11: #{prn_forward.1} parent=5 // pred_region
      %s243 = ssub.s32 %s13, 1
      // Predicated region
      $region13: #{prn_forward.1} parent=11 // pred_check
        %p244 = pneg %p106
      $region14: #{prn_forward.1} parent=11 // pred_check_branch
        %246 = sbr.rel (%p244) target = $region16
      $region15: #{prn_forward.1} parent=11 // pred_region
        _
      $region16: #{prn_forward.1} parent=11 // pred_fallthru
        _
      // Predicated region
      $region17: #{prn_forward.1} parent=11 // pred_check
        %p247 = pneg %p127
      $region18: #{prn_forward.1} parent=11 // pred_check_branch
        %249 = sbr.rel (%p247) target = $region20
      $region19: #{prn_forward.1} parent=11 // pred_region
        _
      $region20: #{prn_forward.1} parent=11 // pred_fallthru
        _
      // Predicated region
      $region21: #{prn_forward.1} parent=11 // pred_check
        %p250 = pneg %p148
      $region22: #{prn_forward.1} parent=11 // pred_check_branch
        %252 = sbr.rel (%p250) target = $region24
      $region23: #{prn_forward.1} parent=11 // pred_region
        _
      $region24: #{prn_forward.1} parent=11 // pred_fallthru
        _
    $region12: #{prn_forward.1} parent=5 // pred_fallthru
      _
    %p253 = scmp.lt.s32.totalorder %s13, 2
    // Predicated region
    $region25: #{prn_forward.1} parent=5 // pred_check
      %p254 = pneg %p253
    $region26: #{prn_forward.1} parent=5 // pred_check_branch
      %256 = sbr.rel (%p254) target = $region28
    $region27: #{prn_forward.1} parent=5 // pred_region
      // Predicated region
      $region29: #{prn_forward.1} parent=27 // pred_check
        %p257 = pneg %p49
      $region30: #{prn_forward.1} parent=27 // pred_check_branch
        %259 = sbr.rel (%p257) target = $region32
      $region31: #{prn_forward.1} parent=27 // pred_region
        %p260 = scmp.eq.s32.totalorder %s20, 0
        %s261 = scalar_select %p260, %s21, 0
        %s262 = smul.u32 67, %s261
        %p263 = scmp.lt.s32.totalorder %s262, 66
        %s264 = scalar_select %p263, %s262, 66
        %s265 = smul.addr %s264, 8
        %s266 = scalar_lea.vmem %s0, %s265
        %p267 = scmp.eq.s32.totalorder %s20, 0
        %s268 = scalar_select %p267, %s21, 0
        %s269 = smul.u32 67, %s268
      $region32: #{prn_forward.1} parent=27 // pred_fallthru
        _
      // Predicated region
      $region33: #{prn_forward.1} parent=27 // pred_check
        %p270 = pneg %p79
      $region34: #{prn_forward.1} parent=27 // pred_check_branch
        %272 = sbr.rel (%p270) target = $region36
      $region35: #{prn_forward.1} parent=27 // pred_region
        %p273 = scmp.eq.s32.totalorder %s20, 0
        %s274 = scalar_select %p273, %s21, 0
        %s275 = smul.u32 1072, %s274
        %p276 = scmp.lt.s32.totalorder %s275, 1071
        %s277 = scalar_select %p276, %s275, 1071
        %s278 = smul.addr %s277, 4
        %s279 = scalar_lea.vmem %s1, %s278
        %p280 = scmp.eq.s32.totalorder %s20, 0
        %s281 = scalar_select %p280, %s21, 0
        %s282 = smul.u32 1072, %s281
      $region36: #{prn_forward.1} parent=27 // pred_fallthru
        _
      // Predicated region
      $region37: #{prn_forward.1} parent=27 // pred_check
        %p283 = pneg %p172
      $region38: #{prn_forward.1} parent=27 // pred_check_branch
        %285 = sbr.rel (%p283) target = $region40
      $region39: #{prn_forward.1} parent=27 // pred_region
        %p286 = scmp.eq.s32.totalorder %s20, 0
        %s287 = scalar_select %p286, 0, %s21
        %s288 = smul.u32 67, %s287
        %p289 = scmp.lt.s32.totalorder %s288, 66
        %s290 = scalar_select %p289, %s288, 66
        %s291 = smul.addr %s290, 4
        %s292 = scalar_lea.vmem %s5, %s291
        %p293 = scmp.eq.s32.totalorder %s20, 0
        %s294 = scalar_select %p293, 0, %s21
        %s295 = smul.u32 67, %s294
      $region40: #{prn_forward.1} parent=27 // pred_fallthru
        _
      // Predicated region
      $region41: #{prn_forward.1} parent=27 // pred_check
        %p296 = pneg %p202
      $region42: #{prn_forward.1} parent=27 // pred_check_branch
        %298 = sbr.rel (%p296) target = $region44
      $region43: #{prn_forward.1} parent=27 // pred_region
        %p299 = scmp.eq.s32.totalorder %s20, 0
        %s300 = scalar_select %p299, 0, %s21
        %s301 = smul.u32 67, %s300
        %p302 = scmp.lt.s32.totalorder %s301, 66
        %s303 = scalar_select %p302, %s301, 66
        %s304 = scalar_lea.vmem %s6, %s303
        %p305 = scmp.eq.s32.totalorder %s20, 0
        %s306 = scalar_select %p305, 0, %s21
        %s307 = smul.u32 67, %s306
      $region44: #{prn_forward.1} parent=27 // pred_fallthru
        _
    $region28: #{prn_forward.1} parent=5 // pred_fallthru
      _
    %p308 = scmp.le.s32.totalorder 1, %s13
    %p309 = scmp.lt.s32.totalorder %s13, 3
    %p310 = pnand %p308, %p309
    %p311 = pneg %p310
    // Predicated region
    $region45: #{prn_forward.1} parent=5 // pred_check
      _
    $region46: #{prn_forward.1} parent=5 // pred_check_branch
      %313 = sbr.rel (%p310) target = $region48
    $region47: #{prn_forward.1} parent=5 // pred_region
      %s314 = ssub.s32 %s13, 1
      %p315 = scmp.eq.s32.totalorder %s22, 0
      %s316 = scalar_select %p315, %s23, 0
      %s317 = smul.u32 67, %s316
      %p318 = scmp.lt.s32.totalorder %s317, 66
      %s319 = scalar_select %p318, %s317, 66
      %s320 = smul.addr %s319, 8
      %s321 = scalar_lea.vmem %s0, %s320
      %p322 = pneg %p55
      %p323 = pneg %p52
      %p324 = scmp.eq.s32.totalorder %s22, 0
      %s325 = scalar_select %p324, %s23, 0
      %s326 = smul.u32 1072, %s325
      %p327 = scmp.lt.s32.totalorder %s326, 1071
      %s328 = scalar_select %p327, %s326, 1071
      %s329 = smul.addr %s328, 4
      %s330 = scalar_lea.vmem %s1, %s329
      %p331 = pneg %p85
      %p332 = pneg %p82
      %p333 = pneg %p106
      %p334 = pneg %p103
      %p335 = pneg %p127
      %p336 = pneg %p124
      %p337 = pneg %p148
      %p338 = pneg %p145
      %p339 = scmp.eq.s32.totalorder %s22, 0
      %s340 = scalar_select %p339, 0, %s23
      %s341 = smul.u32 67, %s340
      %p342 = scmp.lt.s32.totalorder %s341, 66
      %s343 = scalar_select %p342, %s341, 66
      %s344 = smul.addr %s343, 4
      %s345 = scalar_lea.vmem %s5, %s344
      %p346 = pneg %p178
      %p347 = pneg %p175
      %p348 = scmp.eq.s32.totalorder %s22, 0
      %s349 = scalar_select %p348, 0, %s23
      %s350 = smul.u32 67, %s349
      %p351 = scmp.lt.s32.totalorder %s350, 66
      %s352 = scalar_select %p351, %s350, 66
      %s353 = scalar_lea.vmem %s6, %s352
      %p354 = pneg %p208
      %p355 = pneg %p205
      %p356 = pneg %p229
      %p357 = pneg %p226
      %p358 = scmp.eq.s32.totalorder %s22, 0
      %s359 = scalar_select %p358, %s23, 0
      %s360 = smul.u32 67, %s359
      %p361 = scmp.lt.s32.totalorder %s360, 66
      %s362 = scalar_select %p361, %s360, 66
      %s363 = smul.addr %s362, 8
      %s364 = scalar_lea.vmem %s0, %s363
      %p365 = scmp.eq.s32.totalorder %s22, 0
      %s366 = scalar_select %p365, %s23, 0
      %s367 = smul.u32 67, %s366
      %p368 = scmp.eq.s32.totalorder %s22, 0
      %s369 = scalar_select %p368, %s23, 0
      %s370 = smul.u32 1072, %s369
      %p371 = scmp.lt.s32.totalorder %s370, 1071
      %s372 = scalar_select %p371, %s370, 1071
      %s373 = smul.addr %s372, 4
      %s374 = scalar_lea.vmem %s1, %s373
      %p375 = scmp.eq.s32.totalorder %s22, 0
      %s376 = scalar_select %p375, %s23, 0
      %s377 = smul.u32 1072, %s376
      %p378 = scmp.eq.s32.totalorder %s22, 0
      %s379 = scalar_select %p378, 0, %s23
      %s380 = smul.u32 67, %s379
      %p381 = scmp.lt.s32.totalorder %s380, 66
      %s382 = scalar_select %p381, %s380, 66
      %s383 = smul.addr %s382, 4
      %s384 = scalar_lea.vmem %s5, %s383
      %p385 = scmp.eq.s32.totalorder %s22, 0
      %s386 = scalar_select %p385, 0, %s23
      %s387 = smul.u32 67, %s386
      %p388 = scmp.eq.s32.totalorder %s22, 0
      %s389 = scalar_select %p388, 0, %s23
      %s390 = smul.u32 67, %s389
      %p391 = scmp.lt.s32.totalorder %s390, 66
      %s392 = scalar_select %p391, %s390, 66
      %s393 = scalar_lea.vmem %s6, %s392
      %p394 = scmp.eq.s32.totalorder %s22, 0
      %s395 = scalar_select %p394, 0, %s23
      %s396 = smul.u32 67, %s395
      %s398 = smul.u32 %s23, 8576
      %p399 = scmp.eq.s32.totalorder %s22, 0
      %p400 = scmp.eq.s32.totalorder %s23, 0
      %p401 = pnand %p399, %p400
      %p402 = pneg %p401
      // Predicated region
      $region49: #{prn_forward.1} parent=47 // pred_check
        _
      $region50: #{prn_forward.1} parent=47 // pred_check_branch
        %404 = sbr.rel (%p401) target = $region52
      $region51: #{prn_forward.1} parent=47 // pred_region
        %405 = vst [vmem:[#allocation2] sm:$0xff] 0.0
      $region52: #{prn_forward.1} parent=47 // pred_fallthru
        _
      // Predicated region
      $region53: #{prn_forward.1} parent=47 // pred_check
        %p406 = pneg %p399
      $region54: #{prn_forward.1} parent=47 // pred_check_branch
        %408 = sbr.rel (%p406) target = $region56
      $region55: #{prn_forward.1} parent=47 // pred_region
        %v409 = vld [vmem:[%s364] sm:$0xff]
        %v410 = vld [vmem:[%s364 + $0x8] sm:$0xff]
        %v411 = vld [vmem:[%s364 + $0x10] sm:$0xff]
        %v412 = vld [vmem:[%s364 + $0x18] sm:$0xff]
        %v413 = vld [vmem:[%s364 + $0x20] sm:$0xff]
        %v414 = vld [vmem:[%s364 + $0x28] sm:$0xff]
        %v415 = vld [vmem:[%s364 + $0x30] sm:$0xff]
        %v416 = vld [vmem:[%s364 + $0x38] sm:$0xff]
        %v417 = vld [vmem:[%s364 + $0x40] sm:$0xff]
        %v418 = vld [vmem:[%s364 + $0x48] sm:$0xff]
        %v419 = vld [vmem:[%s364 + $0x50] sm:$0xff]
        %v420 = vld [vmem:[%s364 + $0x58] sm:$0xff]
        %v421 = vld [vmem:[%s364 + $0x60] sm:$0xff]
        %v422 = vld [vmem:[%s364 + $0x68] sm:$0xff]
        %v423 = vld [vmem:[%s364 + $0x70] sm:$0xff]
        %v424 = vld [vmem:[%s364 + $0x78] sm:$0xff]
        %v425 = vld [vmem:[%s364 + $0x80] sm:$0xff]
        %v426 = vld [vmem:[%s364 + $0x88] sm:$0xff]
        %v427 = vld [vmem:[%s364 + $0x90] sm:$0xff]
        %v428 = vld [vmem:[%s364 + $0x98] sm:$0xff]
        %v429 = vld [vmem:[%s364 + $0xa0] sm:$0xff]
        %v430 = vld [vmem:[%s364 + $0xa8] sm:$0xff]
        %v431 = vld [vmem:[%s364 + $0xb0] sm:$0xff]
        %v432 = vld [vmem:[%s364 + $0xb8] sm:$0xff]
        %v433 = vld [vmem:[%s364 + $0xc0] sm:$0xff]
        %v434 = vld [vmem:[%s364 + $0xc8] sm:$0xff]
        %v435 = vld [vmem:[%s364 + $0xd0] sm:$0xff]
        %v436 = vld [vmem:[%s364 + $0xd8] sm:$0xff]
        %v437 = vld [vmem:[%s364 + $0xe0] sm:$0xff]
        %v438 = vld [vmem:[%s364 + $0xe8] sm:$0xff]
        %v439 = vld [vmem:[%s364 + $0xf0] sm:$0xff]
        %v440 = vld [vmem:[%s364 + $0xf8] sm:$0xff]
        %v441 = vld [vmem:[%s364 + $0x100] sm:$0xff]
        %v442 = vld [vmem:[%s364 + $0x108] sm:$0xff]
        %v443 = vld [vmem:[%s364 + $0x110] sm:$0xff]
        %v444 = vld [vmem:[%s364 + $0x118] sm:$0xff]
        %v445 = vld [vmem:[%s364 + $0x120] sm:$0xff]
        %v446 = vld [vmem:[%s364 + $0x128] sm:$0xff]
        %v447 = vld [vmem:[%s364 + $0x130] sm:$0xff]
        %v448 = vld [vmem:[%s364 + $0x138] sm:$0xff]
        %v449 = vld [vmem:[%s364 + $0x140] sm:$0xff]
        %v450 = vld [vmem:[%s364 + $0x148] sm:$0xff]
        %v451 = vld [vmem:[%s364 + $0x150] sm:$0xff]
        %v452 = vld [vmem:[%s364 + $0x158] sm:$0xff]
        %v453 = vld [vmem:[%s364 + $0x160] sm:$0xff]
        %v454 = vld [vmem:[%s364 + $0x168] sm:$0xff]
        %v455 = vld [vmem:[%s364 + $0x170] sm:$0xff]
        %v456 = vld [vmem:[%s364 + $0x178] sm:$0xff]
        %v457 = vld [vmem:[%s364 + $0x180] sm:$0xff]
        %v458 = vld [vmem:[%s364 + $0x188] sm:$0xff]
        %v459 = vld [vmem:[%s364 + $0x190] sm:$0xff]
        %v460 = vld [vmem:[%s364 + $0x198] sm:$0xff]
        %v461 = vld [vmem:[%s364 + $0x1a0] sm:$0xff]
        %v462 = vld [vmem:[%s364 + $0x1a8] sm:$0xff]
        %v463 = vld [vmem:[%s364 + $0x1b0] sm:$0xff]
        %v464 = vld [vmem:[%s364 + $0x1b8] sm:$0xff]
        %v465 = vld [vmem:[%s364 + $0x1c0] sm:$0xff]
        %v466 = vld [vmem:[%s364 + $0x1c8] sm:$0xff]
        %v467 = vld [vmem:[%s364 + $0x1d0] sm:$0xff]
        %v468 = vld [vmem:[%s364 + $0x1d8] sm:$0xff]
        %v469 = vld [vmem:[%s364 + $0x1e0] sm:$0xff]
        %v470 = vld [vmem:[%s364 + $0x1e8] sm:$0xff]
        %v471 = vld [vmem:[%s364 + $0x1f0] sm:$0xff]
        %v472 = vld [vmem:[%s364 + $0x1f8] sm:$0xff]
        %v473 = vld [vmem:[%s364 + $0x200] sm:$0xff]
        %v474 = vld [vmem:[%s364 + $0x208] sm:$0xff]
        %v475 = vld [vmem:[%s364 + $0x210] sm:$0xff]
        %s476 = sshra.s32 %s398, 7
        %s477 = sand.u32 %s398, 127
        %s478 = smul.addr %s476, 8
        %s479 = scalar_lea.vmem %s7, %s478
        %480 = vst [vmem:[%s479] sm:$0xff] %v409
        %481 = vst [vmem:[%s479 + $0x8] sm:$0xff] %v410
        %482 = vst [vmem:[%s479 + $0x10] sm:$0xff] %v411
        %483 = vst [vmem:[%s479 + $0x18] sm:$0xff] %v412
        %484 = vst [vmem:[%s479 + $0x20] sm:$0xff] %v413
        %485 = vst [vmem:[%s479 + $0x28] sm:$0xff] %v414
        %486 = vst [vmem:[%s479 + $0x30] sm:$0xff] %v415
        %487 = vst [vmem:[%s479 + $0x38] sm:$0xff] %v416
        %488 = vst [vmem:[%s479 + $0x40] sm:$0xff] %v417
        %489 = vst [vmem:[%s479 + $0x48] sm:$0xff] %v418
        %490 = vst [vmem:[%s479 + $0x50] sm:$0xff] %v419
        %491 = vst [vmem:[%s479 + $0x58] sm:$0xff] %v420
        %492 = vst [vmem:[%s479 + $0x60] sm:$0xff] %v421
        %493 = vst [vmem:[%s479 + $0x68] sm:$0xff] %v422
        %494 = vst [vmem:[%s479 + $0x70] sm:$0xff] %v423
        %495 = vst [vmem:[%s479 + $0x78] sm:$0xff] %v424
        %496 = vst [vmem:[%s479 + $0x80] sm:$0xff] %v425
        %497 = vst [vmem:[%s479 + $0x88] sm:$0xff] %v426
        %498 = vst [vmem:[%s479 + $0x90] sm:$0xff] %v427
        %499 = vst [vmem:[%s479 + $0x98] sm:$0xff] %v428
        %500 = vst [vmem:[%s479 + $0xa0] sm:$0xff] %v429
        %501 = vst [vmem:[%s479 + $0xa8] sm:$0xff] %v430
        %502 = vst [vmem:[%s479 + $0xb0] sm:$0xff] %v431
        %503 = vst [vmem:[%s479 + $0xb8] sm:$0xff] %v432
        %504 = vst [vmem:[%s479 + $0xc0] sm:$0xff] %v433
        %505 = vst [vmem:[%s479 + $0xc8] sm:$0xff] %v434
        %506 = vst [vmem:[%s479 + $0xd0] sm:$0xff] %v435
        %507 = vst [vmem:[%s479 + $0xd8] sm:$0xff] %v436
        %508 = vst [vmem:[%s479 + $0xe0] sm:$0xff] %v437
        %509 = vst [vmem:[%s479 + $0xe8] sm:$0xff] %v438
        %510 = vst [vmem:[%s479 + $0xf0] sm:$0xff] %v439
        %511 = vst [vmem:[%s479 + $0xf8] sm:$0xff] %v440
        %512 = vst [vmem:[%s479 + $0x100] sm:$0xff] %v441
        %513 = vst [vmem:[%s479 + $0x108] sm:$0xff] %v442
        %514 = vst [vmem:[%s479 + $0x110] sm:$0xff] %v443
        %515 = vst [vmem:[%s479 + $0x118] sm:$0xff] %v444
        %516 = vst [vmem:[%s479 + $0x120] sm:$0xff] %v445
        %517 = vst [vmem:[%s479 + $0x128] sm:$0xff] %v446
        %518 = vst [vmem:[%s479 + $0x130] sm:$0xff] %v447
        %519 = vst [vmem:[%s479 + $0x138] sm:$0xff] %v448
        %520 = vst [vmem:[%s479 + $0x140] sm:$0xff] %v449
        %521 = vst [vmem:[%s479 + $0x148] sm:$0xff] %v450
        %522 = vst [vmem:[%s479 + $0x150] sm:$0xff] %v451
        %523 = vst [vmem:[%s479 + $0x158] sm:$0xff] %v452
        %524 = vst [vmem:[%s479 + $0x160] sm:$0xff] %v453
        %525 = vst [vmem:[%s479 + $0x168] sm:$0xff] %v454
        %526 = vst [vmem:[%s479 + $0x170] sm:$0xff] %v455
        %527 = vst [vmem:[%s479 + $0x178] sm:$0xff] %v456
        %528 = vst [vmem:[%s479 + $0x180] sm:$0xff] %v457
        %529 = vst [vmem:[%s479 + $0x188] sm:$0xff] %v458
        %530 = vst [vmem:[%s479 + $0x190] sm:$0xff] %v459
        %531 = vst [vmem:[%s479 + $0x198] sm:$0xff] %v460
        %532 = vst [vmem:[%s479 + $0x1a0] sm:$0xff] %v461
        %533 = vst [vmem:[%s479 + $0x1a8] sm:$0xff] %v462
        %534 = vst [vmem:[%s479 + $0x1b0] sm:$0xff] %v463
        %535 = vst [vmem:[%s479 + $0x1b8] sm:$0xff] %v464
        %536 = vst [vmem:[%s479 + $0x1c0] sm:$0xff] %v465
        %537 = vst [vmem:[%s479 + $0x1c8] sm:$0xff] %v466
        %538 = vst [vmem:[%s479 + $0x1d0] sm:$0xff] %v467
        %539 = vst [vmem:[%s479 + $0x1d8] sm:$0xff] %v468
        %540 = vst [vmem:[%s479 + $0x1e0] sm:$0xff] %v469
        %541 = vst [vmem:[%s479 + $0x1e8] sm:$0xff] %v470
        %542 = vst [vmem:[%s479 + $0x1f0] sm:$0xff] %v471
        %543 = vst [vmem:[%s479 + $0x1f8] sm:$0xff] %v472
        %544 = vst [vmem:[%s479 + $0x200] sm:$0xff] %v473
        %545 = vst [vmem:[%s479 + $0x208] sm:$0xff] %v474
        %546 = vst [vmem:[%s479 + $0x210] sm:$0xff] %v475
        %v547 = vld [vmem:[#allocation2] sm:$0xff]
        %v548 = vpack.c.bf16 %v409, %v409
        %v549 = vpack.c.bf16 %v410, %v410
        %v550 = vpack.c.bf16 %v411, %v411
        %v551 = vpack.c.bf16 %v412, %v412
        %v552 = vpack.c.bf16 %v413, %v413
        %v553 = vpack.c.bf16 %v414, %v414
        %v554 = vpack.c.bf16 %v415, %v415
        %v555 = vpack.c.bf16 %v416, %v416
        %v556 = vpack.c.bf16 %v417, %v417
        %v557 = vpack.c.bf16 %v418, %v418
        %v558 = vpack.c.bf16 %v419, %v419
        %v559 = vpack.c.bf16 %v420, %v420
        %v560 = vpack.c.bf16 %v421, %v421
        %v561 = vpack.c.bf16 %v422, %v422
        %v562 = vpack.c.bf16 %v423, %v423
        %v563 = vpack.c.bf16 %v424, %v424
        %v564 = vpack.c.bf16 %v425, %v425
        %v565 = vpack.c.bf16 %v426, %v426
        %v566 = vpack.c.bf16 %v427, %v427
        %v567 = vpack.c.bf16 %v428, %v428
        %v568 = vpack.c.bf16 %v429, %v429
        %v569 = vpack.c.bf16 %v430, %v430
        %v570 = vpack.c.bf16 %v431, %v431
        %v571 = vpack.c.bf16 %v432, %v432
        %v572 = vpack.c.bf16 %v433, %v433
        %v573 = vpack.c.bf16 %v434, %v434
        %v574 = vpack.c.bf16 %v435, %v435
        %v575 = vpack.c.bf16 %v436, %v436
        %v576 = vpack.c.bf16 %v437, %v437
        %v577 = vpack.c.bf16 %v438, %v438
        %v578 = vpack.c.bf16 %v439, %v439
        %v579 = vpack.c.bf16 %v440, %v440
        %v580 = vpack.c.bf16 %v441, %v441
        %v581 = vpack.c.bf16 %v442, %v442
        %v582 = vpack.c.bf16 %v443, %v443
        %v583 = vpack.c.bf16 %v444, %v444
        %v584 = vpack.c.bf16 %v445, %v445
        %v585 = vpack.c.bf16 %v446, %v446
        %v586 = vpack.c.bf16 %v447, %v447
        %v587 = vpack.c.bf16 %v448, %v448
        %v588 = vpack.c.bf16 %v449, %v449
        %v589 = vpack.c.bf16 %v450, %v450
        %v590 = vpack.c.bf16 %v451, %v451
        %v591 = vpack.c.bf16 %v452, %v452
        %v592 = vpack.c.bf16 %v453, %v453
        %v593 = vpack.c.bf16 %v454, %v454
        %v594 = vpack.c.bf16 %v455, %v455
        %v595 = vpack.c.bf16 %v456, %v456
        %v596 = vpack.c.bf16 %v457, %v457
        %v597 = vpack.c.bf16 %v458, %v458
        %v598 = vpack.c.bf16 %v459, %v459
        %v599 = vpack.c.bf16 %v460, %v460
        %v600 = vpack.c.bf16 %v461, %v461
        %v601 = vpack.c.bf16 %v462, %v462
        %v602 = vpack.c.bf16 %v463, %v463
        %v603 = vpack.c.bf16 %v464, %v464
        %v604 = vpack.c.bf16 %v465, %v465
        %v605 = vpack.c.bf16 %v466, %v466
        %v606 = vpack.c.bf16 %v467, %v467
        %v607 = vpack.c.bf16 %v468, %v468
        %v608 = vpack.c.bf16 %v469, %v469
        %v609 = vpack.c.bf16 %v470, %v470
        %v610 = vpack.c.bf16 %v471, %v471
        %v611 = vpack.c.bf16 %v472, %v472
        %v612 = vpack.c.bf16 %v473, %v473
        %v613 = vpack.c.bf16 %v474, %v474
        %v614 = vpack.c.bf16 %v475, %v475
        %v615 = vld [vmem:[%s374] sm:$0xf]
        %v616 = vld [vmem:[%s374 + $0x4] sm:$0xf]
        %v617 = vld [vmem:[%s374 + $0x8] sm:$0xf]
        %v618 = vld [vmem:[%s374 + $0xc] sm:$0xf]
        %v619 = vld [vmem:[%s374 + $0x10] sm:$0xf]
        %v620 = vld [vmem:[%s374 + $0x14] sm:$0xf]
        %v621 = vld [vmem:[%s374 + $0x18] sm:$0xf]
        %v622 = vld [vmem:[%s374 + $0x1c] sm:$0xf]
        %v623 = vld [vmem:[%s374 + $0x20] sm:$0xf]
        %v624 = vld [vmem:[%s374 + $0x24] sm:$0xf]
        %v625 = vld [vmem:[%s374 + $0x28] sm:$0xf]
        %v626 = vld [vmem:[%s374 + $0x2c] sm:$0xf]
        %v627 = vld [vmem:[%s374 + $0x30] sm:$0xf]
        %v628 = vld [vmem:[%s374 + $0x34] sm:$0xf]
        %v629 = vld [vmem:[%s374 + $0x38] sm:$0xf]
        %v630 = vld [vmem:[%s374 + $0x3c] sm:$0xf]
        %v631 = vld [vmem:[%s374 + $0x40] sm:$0xf]
        %v632 = vld [vmem:[%s374 + $0x44] sm:$0xf]
        %v633 = vld [vmem:[%s374 + $0x48] sm:$0xf]
        %v634 = vld [vmem:[%s374 + $0x4c] sm:$0xf]
        %v635 = vld [vmem:[%s374 + $0x50] sm:$0xf]
        %v636 = vld [vmem:[%s374 + $0x54] sm:$0xf]
        %v637 = vld [vmem:[%s374 + $0x58] sm:$0xf]
        %v638 = vld [vmem:[%s374 + $0x5c] sm:$0xf]
        %v639 = vld [vmem:[%s374 + $0x60] sm:$0xf]
        %v640 = vld [vmem:[%s374 + $0x64] sm:$0xf]
        %v641 = vld [vmem:[%s374 + $0x68] sm:$0xf]
        %v642 = vld [vmem:[%s374 + $0x6c] sm:$0xf]
        %v643 = vld [vmem:[%s374 + $0x70] sm:$0xf]
        %v644 = vld [vmem:[%s374 + $0x74] sm:$0xf]
        %v645 = vld [vmem:[%s374 + $0x78] sm:$0xf]
        %v646 = vld [vmem:[%s374 + $0x7c] sm:$0xf]
        %v647 = vld [vmem:[%s374 + $0x80] sm:$0xf]
        %v648 = vld [vmem:[%s374 + $0x84] sm:$0xf]
        %v649 = vld [vmem:[%s374 + $0x88] sm:$0xf]
        %v650 = vld [vmem:[%s374 + $0x8c] sm:$0xf]
        %v651 = vld [vmem:[%s374 + $0x90] sm:$0xf]
        %v652 = vld [vmem:[%s374 + $0x94] sm:$0xf]
        %v653 = vld [vmem:[%s374 + $0x98] sm:$0xf]
        %v654 = vld [vmem:[%s374 + $0x9c] sm:$0xf]
        %v655 = vld [vmem:[%s374 + $0xa0] sm:$0xf]
        %v656 = vld [vmem:[%s374 + $0xa4] sm:$0xf]
        %v657 = vld [vmem:[%s374 + $0xa8] sm:$0xf]
        %v658 = vld [vmem:[%s374 + $0xac] sm:$0xf]
        %v659 = vld [vmem:[%s374 + $0xb0] sm:$0xf]
        %v660 = vld [vmem:[%s374 + $0xb4] sm:$0xf]
        %v661 = vld [vmem:[%s374 + $0xb8] sm:$0xf]
        %v662 = vld [vmem:[%s374 + $0xbc] sm:$0xf]
        %v663 = vld [vmem:[%s374 + $0xc0] sm:$0xf]
        %v664 = vld [vmem:[%s374 + $0xc4] sm:$0xf]
        %v665 = vld [vmem:[%s374 + $0xc8] sm:$0xf]
        %v666 = vld [vmem:[%s374 + $0xcc] sm:$0xf]
        %v667 = vld [vmem:[%s374 + $0xd0] sm:$0xf]
        %v668 = vld [vmem:[%s374 + $0xd4] sm:$0xf]
        %v669 = vld [vmem:[%s374 + $0xd8] sm:$0xf]
        %v670 = vld [vmem:[%s374 + $0xdc] sm:$0xf]
        %v671 = vld [vmem:[%s374 + $0xe0] sm:$0xf]
        %v672 = vld [vmem:[%s374 + $0xe4] sm:$0xf]
        %v673 = vld [vmem:[%s374 + $0xe8] sm:$0xf]
        %v674 = vld [vmem:[%s374 + $0xec] sm:$0xf]
        %v675 = vld [vmem:[%s374 + $0xf0] sm:$0xf]
        %v676 = vld [vmem:[%s374 + $0xf4] sm:$0xf]
        %v677 = vld [vmem:[%s374 + $0xf8] sm:$0xf]
        %v678 = vld [vmem:[%s374 + $0xfc] sm:$0xf]
        %v679 = vld [vmem:[%s374 + $0x100] sm:$0xf]
        %v680 = vld [vmem:[%s374 + $0x104] sm:$0xf]
        %v681 = vld [vmem:[%s374 + $0x108] sm:$0xf]
        %v682 = vld [vmem:[%s374 + $0x10c] sm:$0xf]
        %v683 = vld [vmem:[%s374 + $0x110] sm:$0xf]
        %v684 = vld [vmem:[%s374 + $0x114] sm:$0xf]
        %v685 = vld [vmem:[%s374 + $0x118] sm:$0xf]
        %v686 = vld [vmem:[%s374 + $0x11c] sm:$0xf]
        %v687 = vld [vmem:[%s374 + $0x120] sm:$0xf]
        %v688 = vld [vmem:[%s374 + $0x124] sm:$0xf]
        %v689 = vld [vmem:[%s374 + $0x128] sm:$0xf]
        %v690 = vld [vmem:[%s374 + $0x12c] sm:$0xf]
        %v691 = vld [vmem:[%s374 + $0x130] sm:$0xf]
        %v692 = vld [vmem:[%s374 + $0x134] sm:$0xf]
        %v693 = vld [vmem:[%s374 + $0x138] sm:$0xf]
        %v694 = vld [vmem:[%s374 + $0x13c] sm:$0xf]
        %v695 = vld [vmem:[%s374 + $0x140] sm:$0xf]
        %v696 = vld [vmem:[%s374 + $0x144] sm:$0xf]
        %v697 = vld [vmem:[%s374 + $0x148] sm:$0xf]
        %v698 = vld [vmem:[%s374 + $0x14c] sm:$0xf]
        %v699 = vld [vmem:[%s374 + $0x150] sm:$0xf]
        %v700 = vld [vmem:[%s374 + $0x154] sm:$0xf]
        %v701 = vld [vmem:[%s374 + $0x158] sm:$0xf]
        %v702 = vld [vmem:[%s374 + $0x15c] sm:$0xf]
        %v703 = vld [vmem:[%s374 + $0x160] sm:$0xf]
        %v704 = vld [vmem:[%s374 + $0x164] sm:$0xf]
        %v705 = vld [vmem:[%s374 + $0x168] sm:$0xf]
        %v706 = vld [vmem:[%s374 + $0x16c] sm:$0xf]
        %v707 = vld [vmem:[%s374 + $0x170] sm:$0xf]
        %v708 = vld [vmem:[%s374 + $0x174] sm:$0xf]
        %v709 = vld [vmem:[%s374 + $0x178] sm:$0xf]
        %v710 = vld [vmem:[%s374 + $0x17c] sm:$0xf]
        %v711 = vld [vmem:[%s374 + $0x180] sm:$0xf]
        %v712 = vld [vmem:[%s374 + $0x184] sm:$0xf]
        %v713 = vld [vmem:[%s374 + $0x188] sm:$0xf]
        %v714 = vld [vmem:[%s374 + $0x18c] sm:$0xf]
        %v715 = vld [vmem:[%s374 + $0x190] sm:$0xf]
        %v716 = vld [vmem:[%s374 + $0x194] sm:$0xf]
        %v717 = vld [vmem:[%s374 + $0x198] sm:$0xf]
        %v718 = vld [vmem:[%s374 + $0x19c] sm:$0xf]
        %v719 = vld [vmem:[%s374 + $0x1a0] sm:$0xf]
        %v720 = vld [vmem:[%s374 + $0x1a4] sm:$0xf]
        %v721 = vld [vmem:[%s374 + $0x1a8] sm:$0xf]
        %v722 = vld [vmem:[%s374 + $0x1ac] sm:$0xf]
        %v723 = vld [vmem:[%s374 + $0x1b0] sm:$0xf]
        %v724 = vld [vmem:[%s374 + $0x1b4] sm:$0xf]
        %v725 = vld [vmem:[%s374 + $0x1b8] sm:$0xf]
        %v726 = vld [vmem:[%s374 + $0x1bc] sm:$0xf]
        %v727 = vld [vmem:[%s374 + $0x1c0] sm:$0xf]
        %v728 = vld [vmem:[%s374 + $0x1c4] sm:$0xf]
        %v729 = vld [vmem:[%s374 + $0x1c8] sm:$0xf]
        %v730 = vld [vmem:[%s374 + $0x1cc] sm:$0xf]
        %v731 = vld [vmem:[%s374 + $0x1d0] sm:$0xf]
        %v732 = vld [vmem:[%s374 + $0x1d4] sm:$0xf]
        %v733 = vld [vmem:[%s374 + $0x1d8] sm:$0xf]
        %v734 = vld [vmem:[%s374 + $0x1dc] sm:$0xf]
        %v735 = vld [vmem:[%s374 + $0x1e0] sm:$0xf]
        %v736 = vld [vmem:[%s374 + $0x1e4] sm:$0xf]
        %v737 = vld [vmem:[%s374 + $0x1e8] sm:$0xf]
        %v738 = vld [vmem:[%s374 + $0x1ec] sm:$0xf]
        %v739 = vld [vmem:[%s374 + $0x1f0] sm:$0xf]
        %v740 = vld [vmem:[%s374 + $0x1f4] sm:$0xf]
        %v741 = vld [vmem:[%s374 + $0x1f8] sm:$0xf]
        %v742 = vld [vmem:[%s374 + $0x1fc] sm:$0xf]
        %v743 = vld [vmem:[%s374 + $0x200] sm:$0xf]
        %v744 = vld [vmem:[%s374 + $0x204] sm:$0xf]
        %v745 = vld [vmem:[%s374 + $0x208] sm:$0xf]
        %v746 = vld [vmem:[%s374 + $0x20c] sm:$0xf]
        %v747 = vld [vmem:[%s374 + $0x210] sm:$0xf]
        %v748 = vld [vmem:[%s374 + $0x214] sm:$0xf]
        %v749 = vld [vmem:[%s374 + $0x218] sm:$0xf]
        %v750 = vld [vmem:[%s374 + $0x21c] sm:$0xf]
        %v751 = vld [vmem:[%s374 + $0x220] sm:$0xf]
        %v752 = vld [vmem:[%s374 + $0x224] sm:$0xf]
        %v753 = vld [vmem:[%s374 + $0x228] sm:$0xf]
        %v754 = vld [vmem:[%s374 + $0x22c] sm:$0xf]
        %v755 = vld [vmem:[%s374 + $0x230] sm:$0xf]
        %v756 = vld [vmem:[%s374 + $0x234] sm:$0xf]
        %v757 = vld [vmem:[%s374 + $0x238] sm:$0xf]
        %v758 = vld [vmem:[%s374 + $0x23c] sm:$0xf]
        %v759 = vld [vmem:[%s374 + $0x240] sm:$0xf]
        %v760 = vld [vmem:[%s374 + $0x244] sm:$0xf]
        %v761 = vld [vmem:[%s374 + $0x248] sm:$0xf]
        %v762 = vld [vmem:[%s374 + $0x24c] sm:$0xf]
        %v763 = vld [vmem:[%s374 + $0x250] sm:$0xf]
        %v764 = vld [vmem:[%s374 + $0x254] sm:$0xf]
        %v765 = vld [vmem:[%s374 + $0x258] sm:$0xf]
        %v766 = vld [vmem:[%s374 + $0x25c] sm:$0xf]
        %v767 = vld [vmem:[%s374 + $0x260] sm:$0xf]
        %v768 = vld [vmem:[%s374 + $0x264] sm:$0xf]
        %v769 = vld [vmem:[%s374 + $0x268] sm:$0xf]
        %v770 = vld [vmem:[%s374 + $0x26c] sm:$0xf]
        %v771 = vld [vmem:[%s374 + $0x270] sm:$0xf]
        %v772 = vld [vmem:[%s374 + $0x274] sm:$0xf]
        %v773 = vld [vmem:[%s374 + $0x278] sm:$0xf]
        %v774 = vld [vmem:[%s374 + $0x27c] sm:$0xf]
        %v775 = vld [vmem:[%s374 + $0x280] sm:$0xf]
        %v776 = vld [vmem:[%s374 + $0x284] sm:$0xf]
        %v777 = vld [vmem:[%s374 + $0x288] sm:$0xf]
        %v778 = vld [vmem:[%s374 + $0x28c] sm:$0xf]
        %v779 = vld [vmem:[%s374 + $0x290] sm:$0xf]
        %v780 = vld [vmem:[%s374 + $0x294] sm:$0xf]
        %v781 = vld [vmem:[%s374 + $0x298] sm:$0xf]
        %v782 = vld [vmem:[%s374 + $0x29c] sm:$0xf]
        %v783 = vld [vmem:[%s374 + $0x2a0] sm:$0xf]
        %v784 = vld [vmem:[%s374 + $0x2a4] sm:$0xf]
        %v785 = vld [vmem:[%s374 + $0x2a8] sm:$0xf]
        %v786 = vld [vmem:[%s374 + $0x2ac] sm:$0xf]
        %v787 = vld [vmem:[%s374 + $0x2b0] sm:$0xf]
        %v788 = vld [vmem:[%s374 + $0x2b4] sm:$0xf]
        %v789 = vld [vmem:[%s374 + $0x2b8] sm:$0xf]
        %v790 = vld [vmem:[%s374 + $0x2bc] sm:$0xf]
        %v791 = vld [vmem:[%s374 + $0x2c0] sm:$0xf]
        %v792 = vld [vmem:[%s374 + $0x2c4] sm:$0xf]
        %v793 = vld [vmem:[%s374 + $0x2c8] sm:$0xf]
        %v794 = vld [vmem:[%s374 + $0x2cc] sm:$0xf]
        %v795 = vld [vmem:[%s374 + $0x2d0] sm:$0xf]
        %v796 = vld [vmem:[%s374 + $0x2d4] sm:$0xf]
        %v797 = vld [vmem:[%s374 + $0x2d8] sm:$0xf]
        %v798 = vld [vmem:[%s374 + $0x2dc] sm:$0xf]
        %v799 = vld [vmem:[%s374 + $0x2e0] sm:$0xf]
        %v800 = vld [vmem:[%s374 + $0x2e4] sm:$0xf]
        %v801 = vld [vmem:[%s374 + $0x2e8] sm:$0xf]
        %v802 = vld [vmem:[%s374 + $0x2ec] sm:$0xf]
        %v803 = vld [vmem:[%s374 + $0x2f0] sm:$0xf]
        %v804 = vld [vmem:[%s374 + $0x2f4] sm:$0xf]
        %v805 = vld [vmem:[%s374 + $0x2f8] sm:$0xf]
        %v806 = vld [vmem:[%s374 + $0x2fc] sm:$0xf]
        %v807 = vld [vmem:[%s374 + $0x300] sm:$0xf]
        %v808 = vld [vmem:[%s374 + $0x304] sm:$0xf]
        %v809 = vld [vmem:[%s374 + $0x308] sm:$0xf]
        %v810 = vld [vmem:[%s374 + $0x30c] sm:$0xf]
        %v811 = vld [vmem:[%s374 + $0x310] sm:$0xf]
        %v812 = vld [vmem:[%s374 + $0x314] sm:$0xf]
        %v813 = vld [vmem:[%s374 + $0x318] sm:$0xf]
        %v814 = vld [vmem:[%s374 + $0x31c] sm:$0xf]
        %v815 = vld [vmem:[%s374 + $0x320] sm:$0xf]
        %v816 = vld [vmem:[%s374 + $0x324] sm:$0xf]
        %v817 = vld [vmem:[%s374 + $0x328] sm:$0xf]
        %v818 = vld [vmem:[%s374 + $0x32c] sm:$0xf]
        %v819 = vld [vmem:[%s374 + $0x330] sm:$0xf]
        %v820 = vld [vmem:[%s374 + $0x334] sm:$0xf]
        %v821 = vld [vmem:[%s374 + $0x338] sm:$0xf]
        %v822 = vld [vmem:[%s374 + $0x33c] sm:$0xf]
        %v823 = vld [vmem:[%s374 + $0x340] sm:$0xf]
        %v824 = vld [vmem:[%s374 + $0x344] sm:$0xf]
        %v825 = vld [vmem:[%s374 + $0x348] sm:$0xf]
        %v826 = vld [vmem:[%s374 + $0x34c] sm:$0xf]
        %v827 = vld [vmem:[%s374 + $0x350] sm:$0xf]
        %v828 = vld [vmem:[%s374 + $0x354] sm:$0xf]
        %v829 = vld [vmem:[%s374 + $0x358] sm:$0xf]
        %v830 = vld [vmem:[%s374 + $0x35c] sm:$0xf]
        %v831 = vld [vmem:[%s374 + $0x360] sm:$0xf]
        %v832 = vld [vmem:[%s374 + $0x364] sm:$0xf]
        %v833 = vld [vmem:[%s374 + $0x368] sm:$0xf]
        %v834 = vld [vmem:[%s374 + $0x36c] sm:$0xf]
        %v835 = vld [vmem:[%s374 + $0x370] sm:$0xf]
        %v836 = vld [vmem:[%s374 + $0x374] sm:$0xf]
        %v837 = vld [vmem:[%s374 + $0x378] sm:$0xf]
        %v838 = vld [vmem:[%s374 + $0x37c] sm:$0xf]
        %v839 = vld [vmem:[%s374 + $0x380] sm:$0xf]
        %v840 = vld [vmem:[%s374 + $0x384] sm:$0xf]
        %v841 = vld [vmem:[%s374 + $0x388] sm:$0xf]
        %v842 = vld [vmem:[%s374 + $0x38c] sm:$0xf]
        %v843 = vld [vmem:[%s374 + $0x390] sm:$0xf]
        %v844 = vld [vmem:[%s374 + $0x394] sm:$0xf]
        %v845 = vld [vmem:[%s374 + $0x398] sm:$0xf]
        %v846 = vld [vmem:[%s374 + $0x39c] sm:$0xf]
        %v847 = vld [vmem:[%s374 + $0x3a0] sm:$0xf]
        %v848 = vld [vmem:[%s374 + $0x3a4] sm:$0xf]
        %v849 = vld [vmem:[%s374 + $0x3a8] sm:$0xf]
        %v850 = vld [vmem:[%s374 + $0x3ac] sm:$0xf]
        %v851 = vld [vmem:[%s374 + $0x3b0] sm:$0xf]
        %v852 = vld [vmem:[%s374 + $0x3b4] sm:$0xf]
        %v853 = vld [vmem:[%s374 + $0x3b8] sm:$0xf]
        %v854 = vld [vmem:[%s374 + $0x3bc] sm:$0xf]
        %v855 = vld [vmem:[%s374 + $0x3c0] sm:$0xf]
        %v856 = vld [vmem:[%s374 + $0x3c4] sm:$0xf]
        %v857 = vld [vmem:[%s374 + $0x3c8] sm:$0xf]
        %v858 = vld [vmem:[%s374 + $0x3cc] sm:$0xf]
        %v859 = vld [vmem:[%s374 + $0x3d0] sm:$0xf]
        %v860 = vld [vmem:[%s374 + $0x3d4] sm:$0xf]
        %v861 = vld [vmem:[%s374 + $0x3d8] sm:$0xf]
        %v862 = vld [vmem:[%s374 + $0x3dc] sm:$0xf]
        %v863 = vld [vmem:[%s374 + $0x3e0] sm:$0xf]
        %v864 = vld [vmem:[%s374 + $0x3e4] sm:$0xf]
        %v865 = vld [vmem:[%s374 + $0x3e8] sm:$0xf]
        %v866 = vld [vmem:[%s374 + $0x3ec] sm:$0xf]
        %v867 = vld [vmem:[%s374 + $0x3f0] sm:$0xf]
        %v868 = vld [vmem:[%s374 + $0x3f4] sm:$0xf]
        %v869 = vld [vmem:[%s374 + $0x3f8] sm:$0xf]
        %v870 = vld [vmem:[%s374 + $0x3fc] sm:$0xf]
        %v871 = vld [vmem:[%s374 + $0x400] sm:$0xf]
        %v872 = vld [vmem:[%s374 + $0x404] sm:$0xf]
        %v873 = vld [vmem:[%s374 + $0x408] sm:$0xf]
        %v874 = vld [vmem:[%s374 + $0x40c] sm:$0xf]
        %v875 = vld [vmem:[%s374 + $0x410] sm:$0xf]
        %v876 = vld [vmem:[%s374 + $0x414] sm:$0xf]
        %v877 = vld [vmem:[%s374 + $0x418] sm:$0xf]
        %v878 = vld [vmem:[%s374 + $0x41c] sm:$0xf]
        %v879 = vld [vmem:[%s374 + $0x420] sm:$0xf]
        %v880 = vld [vmem:[%s374 + $0x424] sm:$0xf]
        %v881 = vld [vmem:[%s374 + $0x428] sm:$0xf]
        %v882 = vld [vmem:[%s374 + $0x42c] sm:$0xf]
        %v883 = vld [vmem:[%s374 + $0x430] sm:$0xf]
        %v884 = vld [vmem:[%s374 + $0x434] sm:$0xf]
        %v885 = vld [vmem:[%s374 + $0x438] sm:$0xf]
        %v886 = vld [vmem:[%s374 + $0x43c] sm:$0xf]
        %v887 = vld [vmem:[%s374 + $0x440] sm:$0xf]
        %v888 = vld [vmem:[%s374 + $0x444] sm:$0xf]
        %v889 = vld [vmem:[%s374 + $0x448] sm:$0xf]
        %v890 = vld [vmem:[%s374 + $0x44c] sm:$0xf]
        %v891 = vld [vmem:[%s374 + $0x450] sm:$0xf]
        %v892 = vld [vmem:[%s374 + $0x454] sm:$0xf]
        %v893 = vld [vmem:[%s374 + $0x458] sm:$0xf]
        %v894 = vld [vmem:[%s374 + $0x45c] sm:$0xf]
        %v895 = vld [vmem:[%s374 + $0x460] sm:$0xf]
        %v896 = vld [vmem:[%s374 + $0x464] sm:$0xf]
        %v897 = vld [vmem:[%s374 + $0x468] sm:$0xf]
        %v898 = vld [vmem:[%s374 + $0x46c] sm:$0xf]
        %v899 = vld [vmem:[%s374 + $0x470] sm:$0xf]
        %v900 = vld [vmem:[%s374 + $0x474] sm:$0xf]
        %v901 = vld [vmem:[%s374 + $0x478] sm:$0xf]
        %v902 = vld [vmem:[%s374 + $0x47c] sm:$0xf]
        %v903 = vld [vmem:[%s374 + $0x480] sm:$0xf]
        %v904 = vld [vmem:[%s374 + $0x484] sm:$0xf]
        %v905 = vld [vmem:[%s374 + $0x488] sm:$0xf]
        %v906 = vld [vmem:[%s374 + $0x48c] sm:$0xf]
        %v907 = vld [vmem:[%s374 + $0x490] sm:$0xf]
        %v908 = vld [vmem:[%s374 + $0x494] sm:$0xf]
        %v909 = vld [vmem:[%s374 + $0x498] sm:$0xf]
        %v910 = vld [vmem:[%s374 + $0x49c] sm:$0xf]
        %v911 = vld [vmem:[%s374 + $0x4a0] sm:$0xf]
        %v912 = vld [vmem:[%s374 + $0x4a4] sm:$0xf]
        %v913 = vld [vmem:[%s374 + $0x4a8] sm:$0xf]
        %v914 = vld [vmem:[%s374 + $0x4ac] sm:$0xf]
        %v915 = vld [vmem:[%s374 + $0x4b0] sm:$0xf]
        %v916 = vld [vmem:[%s374 + $0x4b4] sm:$0xf]
        %v917 = vld [vmem:[%s374 + $0x4b8] sm:$0xf]
        %v918 = vld [vmem:[%s374 + $0x4bc] sm:$0xf]
        %v919 = vld [vmem:[%s374 + $0x4c0] sm:$0xf]
        %v920 = vld [vmem:[%s374 + $0x4c4] sm:$0xf]
        %v921 = vld [vmem:[%s374 + $0x4c8] sm:$0xf]
        %v922 = vld [vmem:[%s374 + $0x4cc] sm:$0xf]
        %v923 = vld [vmem:[%s374 + $0x4d0] sm:$0xf]
        %v924 = vld [vmem:[%s374 + $0x4d4] sm:$0xf]
        %v925 = vld [vmem:[%s374 + $0x4d8] sm:$0xf]
        %v926 = vld [vmem:[%s374 + $0x4dc] sm:$0xf]
        %v927 = vld [vmem:[%s374 + $0x4e0] sm:$0xf]
        %v928 = vld [vmem:[%s374 + $0x4e4] sm:$0xf]
        %v929 = vld [vmem:[%s374 + $0x4e8] sm:$0xf]
        %v930 = vld [vmem:[%s374 + $0x4ec] sm:$0xf]
        %v931 = vld [vmem:[%s374 + $0x4f0] sm:$0xf]
        %v932 = vld [vmem:[%s374 + $0x4f4] sm:$0xf]
        %v933 = vld [vmem:[%s374 + $0x4f8] sm:$0xf]
        %v934 = vld [vmem:[%s374 + $0x4fc] sm:$0xf]
        %v935 = vld [vmem:[%s374 + $0x500] sm:$0xf]
        %v936 = vld [vmem:[%s374 + $0x504] sm:$0xf]
        %v937 = vld [vmem:[%s374 + $0x508] sm:$0xf]
        %v938 = vld [vmem:[%s374 + $0x50c] sm:$0xf]
        %v939 = vld [vmem:[%s374 + $0x510] sm:$0xf]
        %v940 = vld [vmem:[%s374 + $0x514] sm:$0xf]
        %v941 = vld [vmem:[%s374 + $0x518] sm:$0xf]
        %v942 = vld [vmem:[%s374 + $0x51c] sm:$0xf]
        %v943 = vld [vmem:[%s374 + $0x520] sm:$0xf]
        %v944 = vld [vmem:[%s374 + $0x524] sm:$0xf]
        %v945 = vld [vmem:[%s374 + $0x528] sm:$0xf]
        %v946 = vld [vmem:[%s374 + $0x52c] sm:$0xf]
        %v947 = vld [vmem:[%s374 + $0x530] sm:$0xf]
        %v948 = vld [vmem:[%s374 + $0x534] sm:$0xf]
        %v949 = vld [vmem:[%s374 + $0x538] sm:$0xf]
        %v950 = vld [vmem:[%s374 + $0x53c] sm:$0xf]
        %v951 = vld [vmem:[%s374 + $0x540] sm:$0xf]
        %v952 = vld [vmem:[%s374 + $0x544] sm:$0xf]
        %v953 = vld [vmem:[%s374 + $0x548] sm:$0xf]
        %v954 = vld [vmem:[%s374 + $0x54c] sm:$0xf]
        %v955 = vld [vmem:[%s374 + $0x550] sm:$0xf]
        %v956 = vld [vmem:[%s374 + $0x554] sm:$0xf]
        %v957 = vld [vmem:[%s374 + $0x558] sm:$0xf]
        %v958 = vld [vmem:[%s374 + $0x55c] sm:$0xf]
        %v959 = vld [vmem:[%s374 + $0x560] sm:$0xf]
        %v960 = vld [vmem:[%s374 + $0x564] sm:$0xf]
        %v961 = vld [vmem:[%s374 + $0x568] sm:$0xf]
        %v962 = vld [vmem:[%s374 + $0x56c] sm:$0xf]
        %v963 = vld [vmem:[%s374 + $0x570] sm:$0xf]
        %v964 = vld [vmem:[%s374 + $0x574] sm:$0xf]
        %v965 = vld [vmem:[%s374 + $0x578] sm:$0xf]
        %v966 = vld [vmem:[%s374 + $0x57c] sm:$0xf]
        %v967 = vld [vmem:[%s374 + $0x580] sm:$0xf]
        %v968 = vld [vmem:[%s374 + $0x584] sm:$0xf]
        %v969 = vld [vmem:[%s374 + $0x588] sm:$0xf]
        %v970 = vld [vmem:[%s374 + $0x58c] sm:$0xf]
        %v971 = vld [vmem:[%s374 + $0x590] sm:$0xf]
        %v972 = vld [vmem:[%s374 + $0x594] sm:$0xf]
        %v973 = vld [vmem:[%s374 + $0x598] sm:$0xf]
        %v974 = vld [vmem:[%s374 + $0x59c] sm:$0xf]
        %v975 = vld [vmem:[%s374 + $0x5a0] sm:$0xf]
        %v976 = vld [vmem:[%s374 + $0x5a4] sm:$0xf]
        %v977 = vld [vmem:[%s374 + $0x5a8] sm:$0xf]
        %v978 = vld [vmem:[%s374 + $0x5ac] sm:$0xf]
        %v979 = vld [vmem:[%s374 + $0x5b0] sm:$0xf]
        %v980 = vld [vmem:[%s374 + $0x5b4] sm:$0xf]
        %v981 = vld [vmem:[%s374 + $0x5b8] sm:$0xf]
        %v982 = vld [vmem:[%s374 + $0x5bc] sm:$0xf]
        %v983 = vld [vmem:[%s374 + $0x5c0] sm:$0xf]
        %v984 = vld [vmem:[%s374 + $0x5c4] sm:$0xf]
        %v985 = vld [vmem:[%s374 + $0x5c8] sm:$0xf]
        %v986 = vld [vmem:[%s374 + $0x5cc] sm:$0xf]
        %v987 = vld [vmem:[%s374 + $0x5d0] sm:$0xf]
        %v988 = vld [vmem:[%s374 + $0x5d4] sm:$0xf]
        %v989 = vld [vmem:[%s374 + $0x5d8] sm:$0xf]
        %v990 = vld [vmem:[%s374 + $0x5dc] sm:$0xf]
        %v991 = vld [vmem:[%s374 + $0x5e0] sm:$0xf]
        %v992 = vld [vmem:[%s374 + $0x5e4] sm:$0xf]
        %v993 = vld [vmem:[%s374 + $0x5e8] sm:$0xf]
        %v994 = vld [vmem:[%s374 + $0x5ec] sm:$0xf]
        %v995 = vld [vmem:[%s374 + $0x5f0] sm:$0xf]
        %v996 = vld [vmem:[%s374 + $0x5f4] sm:$0xf]
        %v997 = vld [vmem:[%s374 + $0x5f8] sm:$0xf]
        %v998 = vld [vmem:[%s374 + $0x5fc] sm:$0xf]
        %v999 = vld [vmem:[%s374 + $0x600] sm:$0xf]
        %v1000 = vld [vmem:[%s374 + $0x604] sm:$0xf]
        %v1001 = vld [vmem:[%s374 + $0x608] sm:$0xf]
        %v1002 = vld [vmem:[%s374 + $0x60c] sm:$0xf]
        %v1003 = vld [vmem:[%s374 + $0x610] sm:$0xf]
        %v1004 = vld [vmem:[%s374 + $0x614] sm:$0xf]
        %v1005 = vld [vmem:[%s374 + $0x618] sm:$0xf]
        %v1006 = vld [vmem:[%s374 + $0x61c] sm:$0xf]
        %v1007 = vld [vmem:[%s374 + $0x620] sm:$0xf]
        %v1008 = vld [vmem:[%s374 + $0x624] sm:$0xf]
        %v1009 = vld [vmem:[%s374 + $0x628] sm:$0xf]
        %v1010 = vld [vmem:[%s374 + $0x62c] sm:$0xf]
        %v1011 = vld [vmem:[%s374 + $0x630] sm:$0xf]
        %v1012 = vld [vmem:[%s374 + $0x634] sm:$0xf]
        %v1013 = vld [vmem:[%s374 + $0x638] sm:$0xf]
        %v1014 = vld [vmem:[%s374 + $0x63c] sm:$0xf]
        %v1015 = vld [vmem:[%s374 + $0x640] sm:$0xf]
        %v1016 = vld [vmem:[%s374 + $0x644] sm:$0xf]
        %v1017 = vld [vmem:[%s374 + $0x648] sm:$0xf]
        %v1018 = vld [vmem:[%s374 + $0x64c] sm:$0xf]
        %v1019 = vld [vmem:[%s374 + $0x650] sm:$0xf]
        %v1020 = vld [vmem:[%s374 + $0x654] sm:$0xf]
        %v1021 = vld [vmem:[%s374 + $0x658] sm:$0xf]
        %v1022 = vld [vmem:[%s374 + $0x65c] sm:$0xf]
        %v1023 = vld [vmem:[%s374 + $0x660] sm:$0xf]
        %v1024 = vld [vmem:[%s374 + $0x664] sm:$0xf]
        %v1025 = vld [vmem:[%s374 + $0x668] sm:$0xf]
        %v1026 = vld [vmem:[%s374 + $0x66c] sm:$0xf]
        %v1027 = vld [vmem:[%s374 + $0x670] sm:$0xf]
        %v1028 = vld [vmem:[%s374 + $0x674] sm:$0xf]
        %v1029 = vld [vmem:[%s374 + $0x678] sm:$0xf]
        %v1030 = vld [vmem:[%s374 + $0x67c] sm:$0xf]
        %v1031 = vld [vmem:[%s374 + $0x680] sm:$0xf]
        %v1032 = vld [vmem:[%s374 + $0x684] sm:$0xf]
        %v1033 = vld [vmem:[%s374 + $0x688] sm:$0xf]
        %v1034 = vld [vmem:[%s374 + $0x68c] sm:$0xf]
        %v1035 = vld [vmem:[%s374 + $0x690] sm:$0xf]
        %v1036 = vld [vmem:[%s374 + $0x694] sm:$0xf]
        %v1037 = vld [vmem:[%s374 + $0x698] sm:$0xf]
        %v1038 = vld [vmem:[%s374 + $0x69c] sm:$0xf]
        %v1039 = vld [vmem:[%s374 + $0x6a0] sm:$0xf]
        %v1040 = vld [vmem:[%s374 + $0x6a4] sm:$0xf]
        %v1041 = vld [vmem:[%s374 + $0x6a8] sm:$0xf]
        %v1042 = vld [vmem:[%s374 + $0x6ac] sm:$0xf]
        %v1043 = vld [vmem:[%s374 + $0x6b0] sm:$0xf]
        %v1044 = vld [vmem:[%s374 + $0x6b4] sm:$0xf]
        %v1045 = vld [vmem:[%s374 + $0x6b8] sm:$0xf]
        %v1046 = vld [vmem:[%s374 + $0x6bc] sm:$0xf]
        %v1047 = vld [vmem:[%s374 + $0x6c0] sm:$0xf]
        %v1048 = vld [vmem:[%s374 + $0x6c4] sm:$0xf]
        %v1049 = vld [vmem:[%s374 + $0x6c8] sm:$0xf]
        %v1050 = vld [vmem:[%s374 + $0x6cc] sm:$0xf]
        %v1051 = vld [vmem:[%s374 + $0x6d0] sm:$0xf]
        %v1052 = vld [vmem:[%s374 + $0x6d4] sm:$0xf]
        %v1053 = vld [vmem:[%s374 + $0x6d8] sm:$0xf]
        %v1054 = vld [vmem:[%s374 + $0x6dc] sm:$0xf]
        %v1055 = vld [vmem:[%s374 + $0x6e0] sm:$0xf]
        %v1056 = vld [vmem:[%s374 + $0x6e4] sm:$0xf]
        %v1057 = vld [vmem:[%s374 + $0x6e8] sm:$0xf]
        %v1058 = vld [vmem:[%s374 + $0x6ec] sm:$0xf]
        %v1059 = vld [vmem:[%s374 + $0x6f0] sm:$0xf]
        %v1060 = vld [vmem:[%s374 + $0x6f4] sm:$0xf]
        %v1061 = vld [vmem:[%s374 + $0x6f8] sm:$0xf]
        %v1062 = vld [vmem:[%s374 + $0x6fc] sm:$0xf]
        %v1063 = vld [vmem:[%s374 + $0x700] sm:$0xf]
        %v1064 = vld [vmem:[%s374 + $0x704] sm:$0xf]
        %v1065 = vld [vmem:[%s374 + $0x708] sm:$0xf]
        %v1066 = vld [vmem:[%s374 + $0x70c] sm:$0xf]
        %v1067 = vld [vmem:[%s374 + $0x710] sm:$0xf]
        %v1068 = vld [vmem:[%s374 + $0x714] sm:$0xf]
        %v1069 = vld [vmem:[%s374 + $0x718] sm:$0xf]
        %v1070 = vld [vmem:[%s374 + $0x71c] sm:$0xf]
        %v1071 = vld [vmem:[%s374 + $0x720] sm:$0xf]
        %v1072 = vld [vmem:[%s374 + $0x724] sm:$0xf]
        %v1073 = vld [vmem:[%s374 + $0x728] sm:$0xf]
        %v1074 = vld [vmem:[%s374 + $0x72c] sm:$0xf]
        %v1075 = vld [vmem:[%s374 + $0x730] sm:$0xf]
        %v1076 = vld [vmem:[%s374 + $0x734] sm:$0xf]
        %v1077 = vld [vmem:[%s374 + $0x738] sm:$0xf]
        %v1078 = vld [vmem:[%s374 + $0x73c] sm:$0xf]
        %v1079 = vld [vmem:[%s374 + $0x740] sm:$0xf]
        %v1080 = vld [vmem:[%s374 + $0x744] sm:$0xf]
        %v1081 = vld [vmem:[%s374 + $0x748] sm:$0xf]
        %v1082 = vld [vmem:[%s374 + $0x74c] sm:$0xf]
        %v1083 = vld [vmem:[%s374 + $0x750] sm:$0xf]
        %v1084 = vld [vmem:[%s374 + $0x754] sm:$0xf]
        %v1085 = vld [vmem:[%s374 + $0x758] sm:$0xf]
        %v1086 = vld [vmem:[%s374 + $0x75c] sm:$0xf]
        %v1087 = vld [vmem:[%s374 + $0x760] sm:$0xf]
        %v1088 = vld [vmem:[%s374 + $0x764] sm:$0xf]
        %v1089 = vld [vmem:[%s374 + $0x768] sm:$0xf]
        %v1090 = vld [vmem:[%s374 + $0x76c] sm:$0xf]
        %v1091 = vld [vmem:[%s374 + $0x770] sm:$0xf]
        %v1092 = vld [vmem:[%s374 + $0x774] sm:$0xf]
        %v1093 = vld [vmem:[%s374 + $0x778] sm:$0xf]
        %v1094 = vld [vmem:[%s374 + $0x77c] sm:$0xf]
        %v1095 = vld [vmem:[%s374 + $0x780] sm:$0xf]
        %v1096 = vld [vmem:[%s374 + $0x784] sm:$0xf]
        %v1097 = vld [vmem:[%s374 + $0x788] sm:$0xf]
        %v1098 = vld [vmem:[%s374 + $0x78c] sm:$0xf]
        %v1099 = vld [vmem:[%s374 + $0x790] sm:$0xf]
        %v1100 = vld [vmem:[%s374 + $0x794] sm:$0xf]
        %v1101 = vld [vmem:[%s374 + $0x798] sm:$0xf]
        %v1102 = vld [vmem:[%s374 + $0x79c] sm:$0xf]
        %v1103 = vld [vmem:[%s374 + $0x7a0] sm:$0xf]
        %v1104 = vld [vmem:[%s374 + $0x7a4] sm:$0xf]
        %v1105 = vld [vmem:[%s374 + $0x7a8] sm:$0xf]
        %v1106 = vld [vmem:[%s374 + $0x7ac] sm:$0xf]
        %v1107 = vld [vmem:[%s374 + $0x7b0] sm:$0xf]
        %v1108 = vld [vmem:[%s374 + $0x7b4] sm:$0xf]
        %v1109 = vld [vmem:[%s374 + $0x7b8] sm:$0xf]
        %v1110 = vld [vmem:[%s374 + $0x7bc] sm:$0xf]
        %v1111 = vld [vmem:[%s374 + $0x7c0] sm:$0xf]
        %v1112 = vld [vmem:[%s374 + $0x7c4] sm:$0xf]
        %v1113 = vld [vmem:[%s374 + $0x7c8] sm:$0xf]
        %v1114 = vld [vmem:[%s374 + $0x7cc] sm:$0xf]
        %v1115 = vld [vmem:[%s374 + $0x7d0] sm:$0xf]
        %v1116 = vld [vmem:[%s374 + $0x7d4] sm:$0xf]
        %v1117 = vld [vmem:[%s374 + $0x7d8] sm:$0xf]
        %v1118 = vld [vmem:[%s374 + $0x7dc] sm:$0xf]
        %v1119 = vld [vmem:[%s374 + $0x7e0] sm:$0xf]
        %v1120 = vld [vmem:[%s374 + $0x7e4] sm:$0xf]
        %v1121 = vld [vmem:[%s374 + $0x7e8] sm:$0xf]
        %v1122 = vld [vmem:[%s374 + $0x7ec] sm:$0xf]
        %v1123 = vld [vmem:[%s374 + $0x7f0] sm:$0xf]
        %v1124 = vld [vmem:[%s374 + $0x7f4] sm:$0xf]
        %v1125 = vld [vmem:[%s374 + $0x7f8] sm:$0xf]
        %v1126 = vld [vmem:[%s374 + $0x7fc] sm:$0xf]
        %v1127 = vld [vmem:[%s374 + $0x800] sm:$0xf]
        %v1128 = vld [vmem:[%s374 + $0x804] sm:$0xf]
        %v1129 = vld [vmem:[%s374 + $0x808] sm:$0xf]
        %v1130 = vld [vmem:[%s374 + $0x80c] sm:$0xf]
        %v1131 = vld [vmem:[%s374 + $0x810] sm:$0xf]
        %v1132 = vld [vmem:[%s374 + $0x814] sm:$0xf]
        %v1133 = vld [vmem:[%s374 + $0x818] sm:$0xf]
        %v1134 = vld [vmem:[%s374 + $0x81c] sm:$0xf]
        %v1135 = vld [vmem:[%s374 + $0x820] sm:$0xf]
        %v1136 = vld [vmem:[%s374 + $0x824] sm:$0xf]
        %v1137 = vld [vmem:[%s374 + $0x828] sm:$0xf]
        %v1138 = vld [vmem:[%s374 + $0x82c] sm:$0xf]
        %v1139 = vld [vmem:[%s374 + $0x830] sm:$0xf]
        %v1140 = vld [vmem:[%s374 + $0x834] sm:$0xf]
        %v1141 = vld [vmem:[%s374 + $0x838] sm:$0xf]
        %v1142 = vld [vmem:[%s374 + $0x83c] sm:$0xf]
        %v1143 = vld [vmem:[%s374 + $0x840] sm:$0xf]
        %v1144 = vld [vmem:[%s374 + $0x844] sm:$0xf]
        %v1145 = vld [vmem:[%s374 + $0x848] sm:$0xf]
        %v1146 = vld [vmem:[%s374 + $0x84c] sm:$0xf]
        %v1147 = vld [vmem:[%s374 + $0x850] sm:$0xf]
        %v1148 = vld [vmem:[%s374 + $0x854] sm:$0xf]
        %v1149 = vld [vmem:[%s374 + $0x858] sm:$0xf]
        %v1150 = vld [vmem:[%s374 + $0x85c] sm:$0xf]
        %v1151 = vld [vmem:[%s374 + $0x860] sm:$0xf]
        %v1152 = vld [vmem:[%s374 + $0x864] sm:$0xf]
        %v1153 = vld [vmem:[%s374 + $0x868] sm:$0xf]
        %v1154 = vld [vmem:[%s374 + $0x86c] sm:$0xf]
        %v1155 = vld [vmem:[%s374 + $0x870] sm:$0xf]
        %v1156 = vld [vmem:[%s374 + $0x874] sm:$0xf]
        %v1157 = vld [vmem:[%s374 + $0x878] sm:$0xf]
        %v1158 = vld [vmem:[%s374 + $0x87c] sm:$0xf]
        %v1159 = vld [vmem:[%s374 + $0x880] sm:$0xf]
        %v1160 = vld [vmem:[%s374 + $0x884] sm:$0xf]
        %v1161 = vld [vmem:[%s374 + $0x888] sm:$0xf]
        %v1162 = vld [vmem:[%s374 + $0x88c] sm:$0xf]
        %v1163 = vld [vmem:[%s374 + $0x890] sm:$0xf]
        %v1164 = vld [vmem:[%s374 + $0x894] sm:$0xf]
        %v1165 = vld [vmem:[%s374 + $0x898] sm:$0xf]
        %v1166 = vld [vmem:[%s374 + $0x89c] sm:$0xf]
        %v1167 = vld [vmem:[%s374 + $0x8a0] sm:$0xf]
        %v1168 = vld [vmem:[%s374 + $0x8a4] sm:$0xf]
        %v1169 = vld [vmem:[%s374 + $0x8a8] sm:$0xf]
        %v1170 = vld [vmem:[%s374 + $0x8ac] sm:$0xf]
        %v1171 = vld [vmem:[%s374 + $0x8b0] sm:$0xf]
        %v1172 = vld [vmem:[%s374 + $0x8b4] sm:$0xf]
        %v1173 = vld [vmem:[%s374 + $0x8b8] sm:$0xf]
        %v1174 = vld [vmem:[%s374 + $0x8bc] sm:$0xf]
        %v1175 = vld [vmem:[%s374 + $0x8c0] sm:$0xf]
        %v1176 = vld [vmem:[%s374 + $0x8c4] sm:$0xf]
        %v1177 = vld [vmem:[%s374 + $0x8c8] sm:$0xf]
        %v1178 = vld [vmem:[%s374 + $0x8cc] sm:$0xf]
        %v1179 = vld [vmem:[%s374 + $0x8d0] sm:$0xf]
        %v1180 = vld [vmem:[%s374 + $0x8d4] sm:$0xf]
        %v1181 = vld [vmem:[%s374 + $0x8d8] sm:$0xf]
        %v1182 = vld [vmem:[%s374 + $0x8dc] sm:$0xf]
        %v1183 = vld [vmem:[%s374 + $0x8e0] sm:$0xf]
        %v1184 = vld [vmem:[%s374 + $0x8e4] sm:$0xf]
        %v1185 = vld [vmem:[%s374 + $0x8e8] sm:$0xf]
        %v1186 = vld [vmem:[%s374 + $0x8ec] sm:$0xf]
        %v1187 = vld [vmem:[%s374 + $0x8f0] sm:$0xf]
        %v1188 = vld [vmem:[%s374 + $0x8f4] sm:$0xf]
        %v1189 = vld [vmem:[%s374 + $0x8f8] sm:$0xf]
        %v1190 = vld [vmem:[%s374 + $0x8fc] sm:$0xf]
        %v1191 = vld [vmem:[%s374 + $0x900] sm:$0xf]
        %v1192 = vld [vmem:[%s374 + $0x904] sm:$0xf]
        %v1193 = vld [vmem:[%s374 + $0x908] sm:$0xf]
        %v1194 = vld [vmem:[%s374 + $0x90c] sm:$0xf]
        %v1195 = vld [vmem:[%s374 + $0x910] sm:$0xf]
        %v1196 = vld [vmem:[%s374 + $0x914] sm:$0xf]
        %v1197 = vld [vmem:[%s374 + $0x918] sm:$0xf]
        %v1198 = vld [vmem:[%s374 + $0x91c] sm:$0xf]
        %v1199 = vld [vmem:[%s374 + $0x920] sm:$0xf]
        %v1200 = vld [vmem:[%s374 + $0x924] sm:$0xf]
        %v1201 = vld [vmem:[%s374 + $0x928] sm:$0xf]
        %v1202 = vld [vmem:[%s374 + $0x92c] sm:$0xf]
        %v1203 = vld [vmem:[%s374 + $0x930] sm:$0xf]
        %v1204 = vld [vmem:[%s374 + $0x934] sm:$0xf]
        %v1205 = vld [vmem:[%s374 + $0x938] sm:$0xf]
        %v1206 = vld [vmem:[%s374 + $0x93c] sm:$0xf]
        %v1207 = vld [vmem:[%s374 + $0x940] sm:$0xf]
        %v1208 = vld [vmem:[%s374 + $0x944] sm:$0xf]
        %v1209 = vld [vmem:[%s374 + $0x948] sm:$0xf]
        %v1210 = vld [vmem:[%s374 + $0x94c] sm:$0xf]
        %v1211 = vld [vmem:[%s374 + $0x950] sm:$0xf]
        %v1212 = vld [vmem:[%s374 + $0x954] sm:$0xf]
        %v1213 = vld [vmem:[%s374 + $0x958] sm:$0xf]
        %v1214 = vld [vmem:[%s374 + $0x95c] sm:$0xf]
        %v1215 = vld [vmem:[%s374 + $0x960] sm:$0xf]
        %v1216 = vld [vmem:[%s374 + $0x964] sm:$0xf]
        %v1217 = vld [vmem:[%s374 + $0x968] sm:$0xf]
        %v1218 = vld [vmem:[%s374 + $0x96c] sm:$0xf]
        %v1219 = vld [vmem:[%s374 + $0x970] sm:$0xf]
        %v1220 = vld [vmem:[%s374 + $0x974] sm:$0xf]
        %v1221 = vld [vmem:[%s374 + $0x978] sm:$0xf]
        %v1222 = vld [vmem:[%s374 + $0x97c] sm:$0xf]
        %v1223 = vld [vmem:[%s374 + $0x980] sm:$0xf]
        %v1224 = vld [vmem:[%s374 + $0x984] sm:$0xf]
        %v1225 = vld [vmem:[%s374 + $0x988] sm:$0xf]
        %v1226 = vld [vmem:[%s374 + $0x98c] sm:$0xf]
        %v1227 = vld [vmem:[%s374 + $0x990] sm:$0xf]
        %v1228 = vld [vmem:[%s374 + $0x994] sm:$0xf]
        %v1229 = vld [vmem:[%s374 + $0x998] sm:$0xf]
        %v1230 = vld [vmem:[%s374 + $0x99c] sm:$0xf]
        %v1231 = vld [vmem:[%s374 + $0x9a0] sm:$0xf]
        %v1232 = vld [vmem:[%s374 + $0x9a4] sm:$0xf]
        %v1233 = vld [vmem:[%s374 + $0x9a8] sm:$0xf]
        %v1234 = vld [vmem:[%s374 + $0x9ac] sm:$0xf]
        %v1235 = vld [vmem:[%s374 + $0x9b0] sm:$0xf]
        %v1236 = vld [vmem:[%s374 + $0x9b4] sm:$0xf]
        %v1237 = vld [vmem:[%s374 + $0x9b8] sm:$0xf]
        %v1238 = vld [vmem:[%s374 + $0x9bc] sm:$0xf]
        %v1239 = vld [vmem:[%s374 + $0x9c0] sm:$0xf]
        %v1240 = vld [vmem:[%s374 + $0x9c4] sm:$0xf]
        %v1241 = vld [vmem:[%s374 + $0x9c8] sm:$0xf]
        %v1242 = vld [vmem:[%s374 + $0x9cc] sm:$0xf]
        %v1243 = vld [vmem:[%s374 + $0x9d0] sm:$0xf]
        %v1244 = vld [vmem:[%s374 + $0x9d4] sm:$0xf]
        %v1245 = vld [vmem:[%s374 + $0x9d8] sm:$0xf]
        %v1246 = vld [vmem:[%s374 + $0x9dc] sm:$0xf]
        %v1247 = vld [vmem:[%s374 + $0x9e0] sm:$0xf]
        %v1248 = vld [vmem:[%s374 + $0x9e4] sm:$0xf]
        %v1249 = vld [vmem:[%s374 + $0x9e8] sm:$0xf]
        %v1250 = vld [vmem:[%s374 + $0x9ec] sm:$0xf]
        %v1251 = vld [vmem:[%s374 + $0x9f0] sm:$0xf]
        %v1252 = vld [vmem:[%s374 + $0x9f4] sm:$0xf]
        %v1253 = vld [vmem:[%s374 + $0x9f8] sm:$0xf]
        %v1254 = vld [vmem:[%s374 + $0x9fc] sm:$0xf]
        %v1255 = vld [vmem:[%s374 + $0xa00] sm:$0xf]
        %v1256 = vld [vmem:[%s374 + $0xa04] sm:$0xf]
        %v1257 = vld [vmem:[%s374 + $0xa08] sm:$0xf]
        %v1258 = vld [vmem:[%s374 + $0xa0c] sm:$0xf]
        %v1259 = vld [vmem:[%s374 + $0xa10] sm:$0xf]
        %v1260 = vld [vmem:[%s374 + $0xa14] sm:$0xf]
        %v1261 = vld [vmem:[%s374 + $0xa18] sm:$0xf]
        %v1262 = vld [vmem:[%s374 + $0xa1c] sm:$0xf]
        %v1263 = vld [vmem:[%s374 + $0xa20] sm:$0xf]
        %v1264 = vld [vmem:[%s374 + $0xa24] sm:$0xf]
        %v1265 = vld [vmem:[%s374 + $0xa28] sm:$0xf]
        %v1266 = vld [vmem:[%s374 + $0xa2c] sm:$0xf]
        %v1267 = vld [vmem:[%s374 + $0xa30] sm:$0xf]
        %v1268 = vld [vmem:[%s374 + $0xa34] sm:$0xf]
        %v1269 = vld [vmem:[%s374 + $0xa38] sm:$0xf]
        %v1270 = vld [vmem:[%s374 + $0xa3c] sm:$0xf]
        %v1271 = vld [vmem:[%s374 + $0xa40] sm:$0xf]
        %v1272 = vld [vmem:[%s374 + $0xa44] sm:$0xf]
        %v1273 = vld [vmem:[%s374 + $0xa48] sm:$0xf]
        %v1274 = vld [vmem:[%s374 + $0xa4c] sm:$0xf]
        %v1275 = vld [vmem:[%s374 + $0xa50] sm:$0xf]
        %v1276 = vld [vmem:[%s374 + $0xa54] sm:$0xf]
        %v1277 = vld [vmem:[%s374 + $0xa58] sm:$0xf]
        %v1278 = vld [vmem:[%s374 + $0xa5c] sm:$0xf]
        %v1279 = vld [vmem:[%s374 + $0xa60] sm:$0xf]
        %v1280 = vld [vmem:[%s374 + $0xa64] sm:$0xf]
        %v1281 = vld [vmem:[%s374 + $0xa68] sm:$0xf]
        %v1282 = vld [vmem:[%s374 + $0xa6c] sm:$0xf]
        %v1283 = vld [vmem:[%s374 + $0xa70] sm:$0xf]
        %v1284 = vld [vmem:[%s374 + $0xa74] sm:$0xf]
        %v1285 = vld [vmem:[%s374 + $0xa78] sm:$0xf]
        %v1286 = vld [vmem:[%s374 + $0xa7c] sm:$0xf]
        %v1287 = vld [vmem:[%s374 + $0xa80] sm:$0xf]
        %v1288 = vld [vmem:[%s374 + $0xa84] sm:$0xf]
        %v1289 = vld [vmem:[%s374 + $0xa88] sm:$0xf]
        %v1290 = vld [vmem:[%s374 + $0xa8c] sm:$0xf]
        %v1291 = vld [vmem:[%s374 + $0xa90] sm:$0xf]
        %v1292 = vld [vmem:[%s374 + $0xa94] sm:$0xf]
        %v1293 = vld [vmem:[%s374 + $0xa98] sm:$0xf]
        %v1294 = vld [vmem:[%s374 + $0xa9c] sm:$0xf]
        %v1295 = vld [vmem:[%s374 + $0xaa0] sm:$0xf]
        %v1296 = vld [vmem:[%s374 + $0xaa4] sm:$0xf]
        %v1297 = vld [vmem:[%s374 + $0xaa8] sm:$0xf]
        %v1298 = vld [vmem:[%s374 + $0xaac] sm:$0xf]
        %v1299 = vld [vmem:[%s374 + $0xab0] sm:$0xf]
        %v1300 = vld [vmem:[%s374 + $0xab4] sm:$0xf]
        %v1301 = vld [vmem:[%s374 + $0xab8] sm:$0xf]
        %v1302 = vld [vmem:[%s374 + $0xabc] sm:$0xf]
        %v1303 = vld [vmem:[%s374 + $0xac0] sm:$0xf]
        %v1304 = vld [vmem:[%s374 + $0xac4] sm:$0xf]
        %v1305 = vld [vmem:[%s374 + $0xac8] sm:$0xf]
        %v1306 = vld [vmem:[%s374 + $0xacc] sm:$0xf]
        %v1307 = vld [vmem:[%s374 + $0xad0] sm:$0xf]
        %v1308 = vld [vmem:[%s374 + $0xad4] sm:$0xf]
        %v1309 = vld [vmem:[%s374 + $0xad8] sm:$0xf]
        %v1310 = vld [vmem:[%s374 + $0xadc] sm:$0xf]
        %v1311 = vld [vmem:[%s374 + $0xae0] sm:$0xf]
        %v1312 = vld [vmem:[%s374 + $0xae4] sm:$0xf]
        %v1313 = vld [vmem:[%s374 + $0xae8] sm:$0xf]
        %v1314 = vld [vmem:[%s374 + $0xaec] sm:$0xf]
        %v1315 = vld [vmem:[%s374 + $0xaf0] sm:$0xf]
        %v1316 = vld [vmem:[%s374 + $0xaf4] sm:$0xf]
        %v1317 = vld [vmem:[%s374 + $0xaf8] sm:$0xf]
        %v1318 = vld [vmem:[%s374 + $0xafc] sm:$0xf]
        %v1319 = vld [vmem:[%s374 + $0xb00] sm:$0xf]
        %v1320 = vld [vmem:[%s374 + $0xb04] sm:$0xf]
        %v1321 = vld [vmem:[%s374 + $0xb08] sm:$0xf]
        %v1322 = vld [vmem:[%s374 + $0xb0c] sm:$0xf]
        %v1323 = vld [vmem:[%s374 + $0xb10] sm:$0xf]
        %v1324 = vld [vmem:[%s374 + $0xb14] sm:$0xf]
        %v1325 = vld [vmem:[%s374 + $0xb18] sm:$0xf]
        %v1326 = vld [vmem:[%s374 + $0xb1c] sm:$0xf]
        %v1327 = vld [vmem:[%s374 + $0xb20] sm:$0xf]
        %v1328 = vld [vmem:[%s374 + $0xb24] sm:$0xf]
        %v1329 = vld [vmem:[%s374 + $0xb28] sm:$0xf]
        %v1330 = vld [vmem:[%s374 + $0xb2c] sm:$0xf]
        %v1331 = vld [vmem:[%s374 + $0xb30] sm:$0xf]
        %v1332 = vld [vmem:[%s374 + $0xb34] sm:$0xf]
        %v1333 = vld [vmem:[%s374 + $0xb38] sm:$0xf]
        %v1334 = vld [vmem:[%s374 + $0xb3c] sm:$0xf]
        %v1335 = vld [vmem:[%s374 + $0xb40] sm:$0xf]
        %v1336 = vld [vmem:[%s374 + $0xb44] sm:$0xf]
        %v1337 = vld [vmem:[%s374 + $0xb48] sm:$0xf]
        %v1338 = vld [vmem:[%s374 + $0xb4c] sm:$0xf]
        %v1339 = vld [vmem:[%s374 + $0xb50] sm:$0xf]
        %v1340 = vld [vmem:[%s374 + $0xb54] sm:$0xf]
        %v1341 = vld [vmem:[%s374 + $0xb58] sm:$0xf]
        %v1342 = vld [vmem:[%s374 + $0xb5c] sm:$0xf]
        %v1343 = vld [vmem:[%s374 + $0xb60] sm:$0xf]
        %v1344 = vld [vmem:[%s374 + $0xb64] sm:$0xf]
        %v1345 = vld [vmem:[%s374 + $0xb68] sm:$0xf]
        %v1346 = vld [vmem:[%s374 + $0xb6c] sm:$0xf]
        %v1347 = vld [vmem:[%s374 + $0xb70] sm:$0xf]
        %v1348 = vld [vmem:[%s374 + $0xb74] sm:$0xf]
        %v1349 = vld [vmem:[%s374 + $0xb78] sm:$0xf]
        %v1350 = vld [vmem:[%s374 + $0xb7c] sm:$0xf]
        %v1351 = vld [vmem:[%s374 + $0xb80] sm:$0xf]
        %v1352 = vld [vmem:[%s374 + $0xb84] sm:$0xf]
        %v1353 = vld [vmem:[%s374 + $0xb88] sm:$0xf]
        %v1354 = vld [vmem:[%s374 + $0xb8c] sm:$0xf]
        %v1355 = vld [vmem:[%s374 + $0xb90] sm:$0xf]
        %v1356 = vld [vmem:[%s374 + $0xb94] sm:$0xf]
        %v1357 = vld [vmem:[%s374 + $0xb98] sm:$0xf]
        %v1358 = vld [vmem:[%s374 + $0xb9c] sm:$0xf]
        %v1359 = vld [vmem:[%s374 + $0xba0] sm:$0xf]
        %v1360 = vld [vmem:[%s374 + $0xba4] sm:$0xf]
        %v1361 = vld [vmem:[%s374 + $0xba8] sm:$0xf]
        %v1362 = vld [vmem:[%s374 + $0xbac] sm:$0xf]
        %v1363 = vld [vmem:[%s374 + $0xbb0] sm:$0xf]
        %v1364 = vld [vmem:[%s374 + $0xbb4] sm:$0xf]
        %v1365 = vld [vmem:[%s374 + $0xbb8] sm:$0xf]
        %v1366 = vld [vmem:[%s374 + $0xbbc] sm:$0xf]
        %v1367 = vld [vmem:[%s374 + $0xbc0] sm:$0xf]
        %v1368 = vld [vmem:[%s374 + $0xbc4] sm:$0xf]
        %v1369 = vld [vmem:[%s374 + $0xbc8] sm:$0xf]
        %v1370 = vld [vmem:[%s374 + $0xbcc] sm:$0xf]
        %v1371 = vld [vmem:[%s374 + $0xbd0] sm:$0xf]
        %v1372 = vld [vmem:[%s374 + $0xbd4] sm:$0xf]
        %v1373 = vld [vmem:[%s374 + $0xbd8] sm:$0xf]
        %v1374 = vld [vmem:[%s374 + $0xbdc] sm:$0xf]
        %v1375 = vld [vmem:[%s374 + $0xbe0] sm:$0xf]
        %v1376 = vld [vmem:[%s374 + $0xbe4] sm:$0xf]
        %v1377 = vld [vmem:[%s374 + $0xbe8] sm:$0xf]
        %v1378 = vld [vmem:[%s374 + $0xbec] sm:$0xf]
        %v1379 = vld [vmem:[%s374 + $0xbf0] sm:$0xf]
        %v1380 = vld [vmem:[%s374 + $0xbf4] sm:$0xf]
        %v1381 = vld [vmem:[%s374 + $0xbf8] sm:$0xf]
        %v1382 = vld [vmem:[%s374 + $0xbfc] sm:$0xf]
        %v1383 = vld [vmem:[%s374 + $0xc00] sm:$0xf]
        %v1384 = vld [vmem:[%s374 + $0xc04] sm:$0xf]
        %v1385 = vld [vmem:[%s374 + $0xc08] sm:$0xf]
        %v1386 = vld [vmem:[%s374 + $0xc0c] sm:$0xf]
        %v1387 = vld [vmem:[%s374 + $0xc10] sm:$0xf]
        %v1388 = vld [vmem:[%s374 + $0xc14] sm:$0xf]
        %v1389 = vld [vmem:[%s374 + $0xc18] sm:$0xf]
        %v1390 = vld [vmem:[%s374 + $0xc1c] sm:$0xf]
        %v1391 = vld [vmem:[%s374 + $0xc20] sm:$0xf]
        %v1392 = vld [vmem:[%s374 + $0xc24] sm:$0xf]
        %v1393 = vld [vmem:[%s374 + $0xc28] sm:$0xf]
        %v1394 = vld [vmem:[%s374 + $0xc2c] sm:$0xf]
        %v1395 = vld [vmem:[%s374 + $0xc30] sm:$0xf]
        %v1396 = vld [vmem:[%s374 + $0xc34] sm:$0xf]
        %v1397 = vld [vmem:[%s374 + $0xc38] sm:$0xf]
        %v1398 = vld [vmem:[%s374 + $0xc3c] sm:$0xf]
        %v1399 = vld [vmem:[%s374 + $0xc40] sm:$0xf]
        %v1400 = vld [vmem:[%s374 + $0xc44] sm:$0xf]
        %v1401 = vld [vmem:[%s374 + $0xc48] sm:$0xf]
        %v1402 = vld [vmem:[%s374 + $0xc4c] sm:$0xf]
        %v1403 = vld [vmem:[%s374 + $0xc50] sm:$0xf]
        %v1404 = vld [vmem:[%s374 + $0xc54] sm:$0xf]
        %v1405 = vld [vmem:[%s374 + $0xc58] sm:$0xf]
        %v1406 = vld [vmem:[%s374 + $0xc5c] sm:$0xf]
        %v1407 = vld [vmem:[%s374 + $0xc60] sm:$0xf]
        %v1408 = vld [vmem:[%s374 + $0xc64] sm:$0xf]
        %v1409 = vld [vmem:[%s374 + $0xc68] sm:$0xf]
        %v1410 = vld [vmem:[%s374 + $0xc6c] sm:$0xf]
        %v1411 = vld [vmem:[%s374 + $0xc70] sm:$0xf]
        %v1412 = vld [vmem:[%s374 + $0xc74] sm:$0xf]
        %v1413 = vld [vmem:[%s374 + $0xc78] sm:$0xf]
        %v1414 = vld [vmem:[%s374 + $0xc7c] sm:$0xf]
        %v1415 = vld [vmem:[%s374 + $0xc80] sm:$0xf]
        %v1416 = vld [vmem:[%s374 + $0xc84] sm:$0xf]
        %v1417 = vld [vmem:[%s374 + $0xc88] sm:$0xf]
        %v1418 = vld [vmem:[%s374 + $0xc8c] sm:$0xf]
        %v1419 = vld [vmem:[%s374 + $0xc90] sm:$0xf]
        %v1420 = vld [vmem:[%s374 + $0xc94] sm:$0xf]
        %v1421 = vld [vmem:[%s374 + $0xc98] sm:$0xf]
        %v1422 = vld [vmem:[%s374 + $0xc9c] sm:$0xf]
        %v1423 = vld [vmem:[%s374 + $0xca0] sm:$0xf]
        %v1424 = vld [vmem:[%s374 + $0xca4] sm:$0xf]
        %v1425 = vld [vmem:[%s374 + $0xca8] sm:$0xf]
        %v1426 = vld [vmem:[%s374 + $0xcac] sm:$0xf]
        %v1427 = vld [vmem:[%s374 + $0xcb0] sm:$0xf]
        %v1428 = vld [vmem:[%s374 + $0xcb4] sm:$0xf]
        %v1429 = vld [vmem:[%s374 + $0xcb8] sm:$0xf]
        %v1430 = vld [vmem:[%s374 + $0xcbc] sm:$0xf]
        %v1431 = vld [vmem:[%s374 + $0xcc0] sm:$0xf]
        %v1432 = vld [vmem:[%s374 + $0xcc4] sm:$0xf]
        %v1433 = vld [vmem:[%s374 + $0xcc8] sm:$0xf]
        %v1434 = vld [vmem:[%s374 + $0xccc] sm:$0xf]
        %v1435 = vld [vmem:[%s374 + $0xcd0] sm:$0xf]
        %v1436 = vld [vmem:[%s374 + $0xcd4] sm:$0xf]
        %v1437 = vld [vmem:[%s374 + $0xcd8] sm:$0xf]
        %v1438 = vld [vmem:[%s374 + $0xcdc] sm:$0xf]
        %v1439 = vld [vmem:[%s374 + $0xce0] sm:$0xf]
        %v1440 = vld [vmem:[%s374 + $0xce4] sm:$0xf]
        %v1441 = vld [vmem:[%s374 + $0xce8] sm:$0xf]
        %v1442 = vld [vmem:[%s374 + $0xcec] sm:$0xf]
        %v1443 = vld [vmem:[%s374 + $0xcf0] sm:$0xf]
        %v1444 = vld [vmem:[%s374 + $0xcf4] sm:$0xf]
        %v1445 = vld [vmem:[%s374 + $0xcf8] sm:$0xf]
        %v1446 = vld [vmem:[%s374 + $0xcfc] sm:$0xf]
        %v1447 = vld [vmem:[%s374 + $0xd00] sm:$0xf]
        %v1448 = vld [vmem:[%s374 + $0xd04] sm:$0xf]
        %v1449 = vld [vmem:[%s374 + $0xd08] sm:$0xf]
        %v1450 = vld [vmem:[%s374 + $0xd0c] sm:$0xf]
        %v1451 = vld [vmem:[%s374 + $0xd10] sm:$0xf]
        %v1452 = vld [vmem:[%s374 + $0xd14] sm:$0xf]
        %v1453 = vld [vmem:[%s374 + $0xd18] sm:$0xf]
        %v1454 = vld [vmem:[%s374 + $0xd1c] sm:$0xf]
        %v1455 = vld [vmem:[%s374 + $0xd20] sm:$0xf]
        %v1456 = vld [vmem:[%s374 + $0xd24] sm:$0xf]
        %v1457 = vld [vmem:[%s374 + $0xd28] sm:$0xf]
        %v1458 = vld [vmem:[%s374 + $0xd2c] sm:$0xf]
        %v1459 = vld [vmem:[%s374 + $0xd30] sm:$0xf]
        %v1460 = vld [vmem:[%s374 + $0xd34] sm:$0xf]
        %v1461 = vld [vmem:[%s374 + $0xd38] sm:$0xf]
        %v1462 = vld [vmem:[%s374 + $0xd3c] sm:$0xf]
        %v1463 = vld [vmem:[%s374 + $0xd40] sm:$0xf]
        %v1464 = vld [vmem:[%s374 + $0xd44] sm:$0xf]
        %v1465 = vld [vmem:[%s374 + $0xd48] sm:$0xf]
        %v1466 = vld [vmem:[%s374 + $0xd4c] sm:$0xf]
        %v1467 = vld [vmem:[%s374 + $0xd50] sm:$0xf]
        %v1468 = vld [vmem:[%s374 + $0xd54] sm:$0xf]
        %v1469 = vld [vmem:[%s374 + $0xd58] sm:$0xf]
        %v1470 = vld [vmem:[%s374 + $0xd5c] sm:$0xf]
        %v1471 = vld [vmem:[%s374 + $0xd60] sm:$0xf]
        %v1472 = vld [vmem:[%s374 + $0xd64] sm:$0xf]
        %v1473 = vld [vmem:[%s374 + $0xd68] sm:$0xf]
        %v1474 = vld [vmem:[%s374 + $0xd6c] sm:$0xf]
        %v1475 = vld [vmem:[%s374 + $0xd70] sm:$0xf]
        %v1476 = vld [vmem:[%s374 + $0xd74] sm:$0xf]
        %v1477 = vld [vmem:[%s374 + $0xd78] sm:$0xf]
        %v1478 = vld [vmem:[%s374 + $0xd7c] sm:$0xf]
        %v1479 = vld [vmem:[%s374 + $0xd80] sm:$0xf]
        %v1480 = vld [vmem:[%s374 + $0xd84] sm:$0xf]
        %v1481 = vld [vmem:[%s374 + $0xd88] sm:$0xf]
        %v1482 = vld [vmem:[%s374 + $0xd8c] sm:$0xf]
        %v1483 = vld [vmem:[%s374 + $0xd90] sm:$0xf]
        %v1484 = vld [vmem:[%s374 + $0xd94] sm:$0xf]
        %v1485 = vld [vmem:[%s374 + $0xd98] sm:$0xf]
        %v1486 = vld [vmem:[%s374 + $0xd9c] sm:$0xf]
        %v1487 = vld [vmem:[%s374 + $0xda0] sm:$0xf]
        %v1488 = vld [vmem:[%s374 + $0xda4] sm:$0xf]
        %v1489 = vld [vmem:[%s374 + $0xda8] sm:$0xf]
        %v1490 = vld [vmem:[%s374 + $0xdac] sm:$0xf]
        %v1491 = vld [vmem:[%s374 + $0xdb0] sm:$0xf]
        %v1492 = vld [vmem:[%s374 + $0xdb4] sm:$0xf]
        %v1493 = vld [vmem:[%s374 + $0xdb8] sm:$0xf]
        %v1494 = vld [vmem:[%s374 + $0xdbc] sm:$0xf]
        %v1495 = vld [vmem:[%s374 + $0xdc0] sm:$0xf]
        %v1496 = vld [vmem:[%s374 + $0xdc4] sm:$0xf]
        %v1497 = vld [vmem:[%s374 + $0xdc8] sm:$0xf]
        %v1498 = vld [vmem:[%s374 + $0xdcc] sm:$0xf]
        %v1499 = vld [vmem:[%s374 + $0xdd0] sm:$0xf]
        %v1500 = vld [vmem:[%s374 + $0xdd4] sm:$0xf]
        %v1501 = vld [vmem:[%s374 + $0xdd8] sm:$0xf]
        %v1502 = vld [vmem:[%s374 + $0xddc] sm:$0xf]
        %v1503 = vld [vmem:[%s374 + $0xde0] sm:$0xf]
        %v1504 = vld [vmem:[%s374 + $0xde4] sm:$0xf]
        %v1505 = vld [vmem:[%s374 + $0xde8] sm:$0xf]
        %v1506 = vld [vmem:[%s374 + $0xdec] sm:$0xf]
        %v1507 = vld [vmem:[%s374 + $0xdf0] sm:$0xf]
        %v1508 = vld [vmem:[%s374 + $0xdf4] sm:$0xf]
        %v1509 = vld [vmem:[%s374 + $0xdf8] sm:$0xf]
        %v1510 = vld [vmem:[%s374 + $0xdfc] sm:$0xf]
        %v1511 = vld [vmem:[%s374 + $0xe00] sm:$0xf]
        %v1512 = vld [vmem:[%s374 + $0xe04] sm:$0xf]
        %v1513 = vld [vmem:[%s374 + $0xe08] sm:$0xf]
        %v1514 = vld [vmem:[%s374 + $0xe0c] sm:$0xf]
        %v1515 = vld [vmem:[%s374 + $0xe10] sm:$0xf]
        %v1516 = vld [vmem:[%s374 + $0xe14] sm:$0xf]
        %v1517 = vld [vmem:[%s374 + $0xe18] sm:$0xf]
        %v1518 = vld [vmem:[%s374 + $0xe1c] sm:$0xf]
        %v1519 = vld [vmem:[%s374 + $0xe20] sm:$0xf]
        %v1520 = vld [vmem:[%s374 + $0xe24] sm:$0xf]
        %v1521 = vld [vmem:[%s374 + $0xe28] sm:$0xf]
        %v1522 = vld [vmem:[%s374 + $0xe2c] sm:$0xf]
        %v1523 = vld [vmem:[%s374 + $0xe30] sm:$0xf]
        %v1524 = vld [vmem:[%s374 + $0xe34] sm:$0xf]
        %v1525 = vld [vmem:[%s374 + $0xe38] sm:$0xf]
        %v1526 = vld [vmem:[%s374 + $0xe3c] sm:$0xf]
        %v1527 = vld [vmem:[%s374 + $0xe40] sm:$0xf]
        %v1528 = vld [vmem:[%s374 + $0xe44] sm:$0xf]
        %v1529 = vld [vmem:[%s374 + $0xe48] sm:$0xf]
        %v1530 = vld [vmem:[%s374 + $0xe4c] sm:$0xf]
        %v1531 = vld [vmem:[%s374 + $0xe50] sm:$0xf]
        %v1532 = vld [vmem:[%s374 + $0xe54] sm:$0xf]
        %v1533 = vld [vmem:[%s374 + $0xe58] sm:$0xf]
        %v1534 = vld [vmem:[%s374 + $0xe5c] sm:$0xf]
        %v1535 = vld [vmem:[%s374 + $0xe60] sm:$0xf]
        %v1536 = vld [vmem:[%s374 + $0xe64] sm:$0xf]
        %v1537 = vld [vmem:[%s374 + $0xe68] sm:$0xf]
        %v1538 = vld [vmem:[%s374 + $0xe6c] sm:$0xf]
        %v1539 = vld [vmem:[%s374 + $0xe70] sm:$0xf]
        %v1540 = vld [vmem:[%s374 + $0xe74] sm:$0xf]
        %v1541 = vld [vmem:[%s374 + $0xe78] sm:$0xf]
        %v1542 = vld [vmem:[%s374 + $0xe7c] sm:$0xf]
        %v1543 = vld [vmem:[%s374 + $0xe80] sm:$0xf]
        %v1544 = vld [vmem:[%s374 + $0xe84] sm:$0xf]
        %v1545 = vld [vmem:[%s374 + $0xe88] sm:$0xf]
        %v1546 = vld [vmem:[%s374 + $0xe8c] sm:$0xf]
        %v1547 = vld [vmem:[%s374 + $0xe90] sm:$0xf]
        %v1548 = vld [vmem:[%s374 + $0xe94] sm:$0xf]
        %v1549 = vld [vmem:[%s374 + $0xe98] sm:$0xf]
        %v1550 = vld [vmem:[%s374 + $0xe9c] sm:$0xf]
        %v1551 = vld [vmem:[%s374 + $0xea0] sm:$0xf]
        %v1552 = vld [vmem:[%s374 + $0xea4] sm:$0xf]
        %v1553 = vld [vmem:[%s374 + $0xea8] sm:$0xf]
        %v1554 = vld [vmem:[%s374 + $0xeac] sm:$0xf]
        %v1555 = vld [vmem:[%s374 + $0xeb0] sm:$0xf]
        %v1556 = vld [vmem:[%s374 + $0xeb4] sm:$0xf]
        %v1557 = vld [vmem:[%s374 + $0xeb8] sm:$0xf]
        %v1558 = vld [vmem:[%s374 + $0xebc] sm:$0xf]
        %v1559 = vld [vmem:[%s374 + $0xec0] sm:$0xf]
        %v1560 = vld [vmem:[%s374 + $0xec4] sm:$0xf]
        %v1561 = vld [vmem:[%s374 + $0xec8] sm:$0xf]
        %v1562 = vld [vmem:[%s374 + $0xecc] sm:$0xf]
        %v1563 = vld [vmem:[%s374 + $0xed0] sm:$0xf]
        %v1564 = vld [vmem:[%s374 + $0xed4] sm:$0xf]
        %v1565 = vld [vmem:[%s374 + $0xed8] sm:$0xf]
        %v1566 = vld [vmem:[%s374 + $0xedc] sm:$0xf]
        %v1567 = vld [vmem:[%s374 + $0xee0] sm:$0xf]
        %v1568 = vld [vmem:[%s374 + $0xee4] sm:$0xf]
        %v1569 = vld [vmem:[%s374 + $0xee8] sm:$0xf]
        %v1570 = vld [vmem:[%s374 + $0xeec] sm:$0xf]
        %v1571 = vld [vmem:[%s374 + $0xef0] sm:$0xf]
        %v1572 = vld [vmem:[%s374 + $0xef4] sm:$0xf]
        %v1573 = vld [vmem:[%s374 + $0xef8] sm:$0xf]
        %v1574 = vld [vmem:[%s374 + $0xefc] sm:$0xf]
        %v1575 = vld [vmem:[%s374 + $0xf00] sm:$0xf]
        %v1576 = vld [vmem:[%s374 + $0xf04] sm:$0xf]
        %v1577 = vld [vmem:[%s374 + $0xf08] sm:$0xf]
        %v1578 = vld [vmem:[%s374 + $0xf0c] sm:$0xf]
        %v1579 = vld [vmem:[%s374 + $0xf10] sm:$0xf]
        %v1580 = vld [vmem:[%s374 + $0xf14] sm:$0xf]
        %v1581 = vld [vmem:[%s374 + $0xf18] sm:$0xf]
        %v1582 = vld [vmem:[%s374 + $0xf1c] sm:$0xf]
        %v1583 = vld [vmem:[%s374 + $0xf20] sm:$0xf]
        %v1584 = vld [vmem:[%s374 + $0xf24] sm:$0xf]
        %v1585 = vld [vmem:[%s374 + $0xf28] sm:$0xf]
        %v1586 = vld [vmem:[%s374 + $0xf2c] sm:$0xf]
        %v1587 = vld [vmem:[%s374 + $0xf30] sm:$0xf]
        %v1588 = vld [vmem:[%s374 + $0xf34] sm:$0xf]
        %v1589 = vld [vmem:[%s374 + $0xf38] sm:$0xf]
        %v1590 = vld [vmem:[%s374 + $0xf3c] sm:$0xf]
        %v1591 = vld [vmem:[%s374 + $0xf40] sm:$0xf]
        %v1592 = vld [vmem:[%s374 + $0xf44] sm:$0xf]
        %v1593 = vld [vmem:[%s374 + $0xf48] sm:$0xf]
        %v1594 = vld [vmem:[%s374 + $0xf4c] sm:$0xf]
        %v1595 = vld [vmem:[%s374 + $0xf50] sm:$0xf]
        %v1596 = vld [vmem:[%s374 + $0xf54] sm:$0xf]
        %v1597 = vld [vmem:[%s374 + $0xf58] sm:$0xf]
        %v1598 = vld [vmem:[%s374 + $0xf5c] sm:$0xf]
        %v1599 = vld [vmem:[%s374 + $0xf60] sm:$0xf]
        %v1600 = vld [vmem:[%s374 + $0xf64] sm:$0xf]
        %v1601 = vld [vmem:[%s374 + $0xf68] sm:$0xf]
        %v1602 = vld [vmem:[%s374 + $0xf6c] sm:$0xf]
        %v1603 = vld [vmem:[%s374 + $0xf70] sm:$0xf]
        %v1604 = vld [vmem:[%s374 + $0xf74] sm:$0xf]
        %v1605 = vld [vmem:[%s374 + $0xf78] sm:$0xf]
        %v1606 = vld [vmem:[%s374 + $0xf7c] sm:$0xf]
        %v1607 = vld [vmem:[%s374 + $0xf80] sm:$0xf]
        %v1608 = vld [vmem:[%s374 + $0xf84] sm:$0xf]
        %v1609 = vld [vmem:[%s374 + $0xf88] sm:$0xf]
        %v1610 = vld [vmem:[%s374 + $0xf8c] sm:$0xf]
        %v1611 = vld [vmem:[%s374 + $0xf90] sm:$0xf]
        %v1612 = vld [vmem:[%s374 + $0xf94] sm:$0xf]
        %v1613 = vld [vmem:[%s374 + $0xf98] sm:$0xf]
        %v1614 = vld [vmem:[%s374 + $0xf9c] sm:$0xf]
        %v1615 = vld [vmem:[%s374 + $0xfa0] sm:$0xf]
        %v1616 = vld [vmem:[%s374 + $0xfa4] sm:$0xf]
        %v1617 = vld [vmem:[%s374 + $0xfa8] sm:$0xf]
        %v1618 = vld [vmem:[%s374 + $0xfac] sm:$0xf]
        %v1619 = vld [vmem:[%s374 + $0xfb0] sm:$0xf]
        %v1620 = vld [vmem:[%s374 + $0xfb4] sm:$0xf]
        %v1621 = vld [vmem:[%s374 + $0xfb8] sm:$0xf]
        %v1622 = vld [vmem:[%s374 + $0xfbc] sm:$0xf]
        %v1623 = vld [vmem:[%s374 + $0xfc0] sm:$0xf]
        %v1624 = vld [vmem:[%s374 + $0xfc4] sm:$0xf]
        %v1625 = vld [vmem:[%s374 + $0xfc8] sm:$0xf]
        %v1626 = vld [vmem:[%s374 + $0xfcc] sm:$0xf]
        %v1627 = vld [vmem:[%s374 + $0xfd0] sm:$0xf]
        %v1628 = vld [vmem:[%s374 + $0xfd4] sm:$0xf]
        %v1629 = vld [vmem:[%s374 + $0xfd8] sm:$0xf]
        %v1630 = vld [vmem:[%s374 + $0xfdc] sm:$0xf]
        %v1631 = vld [vmem:[%s374 + $0xfe0] sm:$0xf]
        %v1632 = vld [vmem:[%s374 + $0xfe4] sm:$0xf]
        %v1633 = vld [vmem:[%s374 + $0xfe8] sm:$0xf]
        %v1634 = vld [vmem:[%s374 + $0xfec] sm:$0xf]
        %v1635 = vld [vmem:[%s374 + $0xff0] sm:$0xf]
        %v1636 = vld [vmem:[%s374 + $0xff4] sm:$0xf]
        %v1637 = vld [vmem:[%s374 + $0xff8] sm:$0xf]
        %v1638 = vld [vmem:[%s374 + $0xffc] sm:$0xf]
        %v1639 = vld [vmem:[%s374 + $0x1000] sm:$0xf]
        %v1640 = vld [vmem:[%s374 + $0x1004] sm:$0xf]
        %v1641 = vld [vmem:[%s374 + $0x1008] sm:$0xf]
        %v1642 = vld [vmem:[%s374 + $0x100c] sm:$0xf]
        %v1643 = vld [vmem:[%s374 + $0x1010] sm:$0xf]
        %v1644 = vld [vmem:[%s374 + $0x1014] sm:$0xf]
        %v1645 = vld [vmem:[%s374 + $0x1018] sm:$0xf]
        %v1646 = vld [vmem:[%s374 + $0x101c] sm:$0xf]
        %v1647 = vld [vmem:[%s374 + $0x1020] sm:$0xf]
        %v1648 = vld [vmem:[%s374 + $0x1024] sm:$0xf]
        %v1649 = vld [vmem:[%s374 + $0x1028] sm:$0xf]
        %v1650 = vld [vmem:[%s374 + $0x102c] sm:$0xf]
        %v1651 = vld [vmem:[%s374 + $0x1030] sm:$0xf]
        %v1652 = vld [vmem:[%s374 + $0x1034] sm:$0xf]
        %v1653 = vld [vmem:[%s374 + $0x1038] sm:$0xf]
        %v1654 = vld [vmem:[%s374 + $0x103c] sm:$0xf]
        %v1655 = vld [vmem:[%s374 + $0x1040] sm:$0xf]
        %v1656 = vld [vmem:[%s374 + $0x1044] sm:$0xf]
        %v1657 = vld [vmem:[%s374 + $0x1048] sm:$0xf]
        %v1658 = vld [vmem:[%s374 + $0x104c] sm:$0xf]
        %v1659 = vld [vmem:[%s374 + $0x1050] sm:$0xf]
        %v1660 = vld [vmem:[%s374 + $0x1054] sm:$0xf]
        %v1661 = vld [vmem:[%s374 + $0x1058] sm:$0xf]
        %v1662 = vld [vmem:[%s374 + $0x105c] sm:$0xf]
        %v1663 = vld [vmem:[%s374 + $0x1060] sm:$0xf]
        %v1664 = vld [vmem:[%s374 + $0x1064] sm:$0xf]
        %v1665 = vld [vmem:[%s374 + $0x1068] sm:$0xf]
        %v1666 = vld [vmem:[%s374 + $0x106c] sm:$0xf]
        %v1667 = vld [vmem:[%s374 + $0x1070] sm:$0xf]
        %v1668 = vld [vmem:[%s374 + $0x1074] sm:$0xf]
        %v1669 = vld [vmem:[%s374 + $0x1078] sm:$0xf]
        %v1670 = vld [vmem:[%s374 + $0x107c] sm:$0xf]
        %v1671 = vld [vmem:[%s374 + $0x1080] sm:$0xf]
        %v1672 = vld [vmem:[%s374 + $0x1084] sm:$0xf]
        %v1673 = vld [vmem:[%s374 + $0x1088] sm:$0xf]
        %v1674 = vld [vmem:[%s374 + $0x108c] sm:$0xf]
        %v1675 = vld [vmem:[%s374 + $0x1090] sm:$0xf]
        %v1676 = vld [vmem:[%s374 + $0x1094] sm:$0xf]
        %v1677 = vld [vmem:[%s374 + $0x1098] sm:$0xf]
        %v1678 = vld [vmem:[%s374 + $0x109c] sm:$0xf]
        %v1679 = vld [vmem:[%s374 + $0x10a0] sm:$0xf]
        %v1680 = vld [vmem:[%s374 + $0x10a4] sm:$0xf]
        %v1681 = vld [vmem:[%s374 + $0x10a8] sm:$0xf]
        %v1682 = vld [vmem:[%s374 + $0x10ac] sm:$0xf]
        %v1683 = vld [vmem:[%s374 + $0x10b0] sm:$0xf]
        %v1684 = vld [vmem:[%s374 + $0x10b4] sm:$0xf]
        %v1685 = vld [vmem:[%s374 + $0x10b8] sm:$0xf]
        %v1686 = vld [vmem:[%s374 + $0x10bc] sm:$0xf]
        %v2759 = vunpack.c.l.b16 %v615
        %v2760 = vunpack.c.l.b16 %v616
        %v2761 = vunpack.c.l.b16 %v617
        %v2762 = vunpack.c.l.b16 %v618
        %v2763 = vunpack.c.l.b16 %v619
        %v2764 = vunpack.c.l.b16 %v620
        %v2765 = vunpack.c.l.b16 %v621
        %v2766 = vunpack.c.l.b16 %v622
        %v2767 = vunpack.c.l.b16 %v623
        %v2768 = vunpack.c.l.b16 %v624
        %v2769 = vunpack.c.l.b16 %v625
        %v2770 = vunpack.c.l.b16 %v626
        %v2771 = vunpack.c.l.b16 %v627
        %v2772 = vunpack.c.l.b16 %v628
        %v2773 = vunpack.c.l.b16 %v629
        %v2774 = vunpack.c.l.b16 %v630
        %v2775 = vunpack.c.l.b16 %v631
        %v2776 = vunpack.c.l.b16 %v632
        %v2777 = vunpack.c.l.b16 %v633
        %v2778 = vunpack.c.l.b16 %v634
        %v2779 = vunpack.c.l.b16 %v635
        %v2780 = vunpack.c.l.b16 %v636
        %v2781 = vunpack.c.l.b16 %v637
        %v2782 = vunpack.c.l.b16 %v638
        %v2783 = vunpack.c.l.b16 %v639
        %v2784 = vunpack.c.l.b16 %v640
        %v2785 = vunpack.c.l.b16 %v641
        %v2786 = vunpack.c.l.b16 %v642
        %v2787 = vunpack.c.l.b16 %v643
        %v2788 = vunpack.c.l.b16 %v644
        %v2789 = vunpack.c.l.b16 %v645
        %v2790 = vunpack.c.l.b16 %v646
        %v2791 = vunpack.c.l.b16 %v647
        %v2792 = vunpack.c.l.b16 %v648
        %v2793 = vunpack.c.l.b16 %v649
        %v2794 = vunpack.c.l.b16 %v650
        %v2795 = vunpack.c.l.b16 %v651
        %v2796 = vunpack.c.l.b16 %v652
        %v2797 = vunpack.c.l.b16 %v653
        %v2798 = vunpack.c.l.b16 %v654
        %v2799 = vunpack.c.l.b16 %v655
        %v2800 = vunpack.c.l.b16 %v656
        %v2801 = vunpack.c.l.b16 %v657
        %v2802 = vunpack.c.l.b16 %v658
        %v2803 = vunpack.c.l.b16 %v659
        %v2804 = vunpack.c.l.b16 %v660
        %v2805 = vunpack.c.l.b16 %v661
        %v2806 = vunpack.c.l.b16 %v662
        %v2807 = vunpack.c.l.b16 %v663
        %v2808 = vunpack.c.l.b16 %v664
        %v2809 = vunpack.c.l.b16 %v665
        %v2810 = vunpack.c.l.b16 %v666
        %v2811 = vunpack.c.l.b16 %v667
        %v2812 = vunpack.c.l.b16 %v668
        %v2813 = vunpack.c.l.b16 %v669
        %v2814 = vunpack.c.l.b16 %v670
        %v2815 = vunpack.c.l.b16 %v671
        %v2816 = vunpack.c.l.b16 %v672
        %v2817 = vunpack.c.l.b16 %v673
        %v2818 = vunpack.c.l.b16 %v674
        %v2819 = vunpack.c.l.b16 %v675
        %v2820 = vunpack.c.l.b16 %v676
        %v2821 = vunpack.c.l.b16 %v677
        %v2822 = vunpack.c.l.b16 %v678
        %v2823 = vunpack.c.l.b16 %v679
        %v2824 = vunpack.c.l.b16 %v680
        %v2825 = vunpack.c.l.b16 %v681
        %v2826 = vunpack.c.l.b16 %v682
        %v2827 = vunpack.c.l.b16 %v683
        %v2828 = vunpack.c.l.b16 %v684
        %v2829 = vunpack.c.l.b16 %v685
        %v2830 = vunpack.c.l.b16 %v686
        %v2831 = vunpack.c.l.b16 %v687
        %v2832 = vunpack.c.l.b16 %v688
        %v2833 = vunpack.c.l.b16 %v689
        %v2834 = vunpack.c.l.b16 %v690
        %v2835 = vunpack.c.l.b16 %v691
        %v2836 = vunpack.c.l.b16 %v692
        %v2837 = vunpack.c.l.b16 %v693
        %v2838 = vunpack.c.l.b16 %v694
        %v2839 = vunpack.c.l.b16 %v695
        %v2840 = vunpack.c.l.b16 %v696
        %v2841 = vunpack.c.l.b16 %v697
        %v2842 = vunpack.c.l.b16 %v698
        %v2843 = vunpack.c.l.b16 %v699
        %v2844 = vunpack.c.l.b16 %v700
        %v2845 = vunpack.c.l.b16 %v701
        %v2846 = vunpack.c.l.b16 %v702
        %v2847 = vunpack.c.l.b16 %v703
        %v2848 = vunpack.c.l.b16 %v704
        %v2849 = vunpack.c.l.b16 %v705
        %v2850 = vunpack.c.l.b16 %v706
        %v2851 = vunpack.c.l.b16 %v707
        %v2852 = vunpack.c.l.b16 %v708
        %v2853 = vunpack.c.l.b16 %v709
        %v2854 = vunpack.c.l.b16 %v710
        %v2855 = vunpack.c.l.b16 %v711
        %v2856 = vunpack.c.l.b16 %v712
        %v2857 = vunpack.c.l.b16 %v713
        %v2858 = vunpack.c.l.b16 %v714
        %v2859 = vunpack.c.l.b16 %v715
        %v2860 = vunpack.c.l.b16 %v716
        %v2861 = vunpack.c.l.b16 %v717
        %v2862 = vunpack.c.l.b16 %v718
        %v2863 = vunpack.c.l.b16 %v719
        %v2864 = vunpack.c.l.b16 %v720
        %v2865 = vunpack.c.l.b16 %v721
        %v2866 = vunpack.c.l.b16 %v722
        %v2867 = vunpack.c.l.b16 %v723
        %v2868 = vunpack.c.l.b16 %v724
        %v2869 = vunpack.c.l.b16 %v725
        %v2870 = vunpack.c.l.b16 %v726
        %v2871 = vunpack.c.l.b16 %v727
        %v2872 = vunpack.c.l.b16 %v728
        %v2873 = vunpack.c.l.b16 %v729
        %v2874 = vunpack.c.l.b16 %v730
        %v2875 = vunpack.c.l.b16 %v731
        %v2876 = vunpack.c.l.b16 %v732
        %v2877 = vunpack.c.l.b16 %v733
        %v2878 = vunpack.c.l.b16 %v734
        %v2879 = vunpack.c.l.b16 %v735
        %v2880 = vunpack.c.l.b16 %v736
        %v2881 = vunpack.c.l.b16 %v737
        %v2882 = vunpack.c.l.b16 %v738
        %v2883 = vunpack.c.l.b16 %v739
        %v2884 = vunpack.c.l.b16 %v740
        %v2885 = vunpack.c.l.b16 %v741
        %v2886 = vunpack.c.l.b16 %v742
        %v2887 = vunpack.c.l.b16 %v743
        %v2888 = vunpack.c.l.b16 %v744
        %v2889 = vunpack.c.l.b16 %v745
        %v2890 = vunpack.c.l.b16 %v746
        %v2891 = vunpack.c.l.b16 %v747
        %v2892 = vunpack.c.l.b16 %v748
        %v2893 = vunpack.c.l.b16 %v749
        %v2894 = vunpack.c.l.b16 %v750
        %v2895 = vunpack.c.l.b16 %v751
        %v2896 = vunpack.c.l.b16 %v752
        %v2897 = vunpack.c.l.b16 %v753
        %v2898 = vunpack.c.l.b16 %v754
        %v2899 = vunpack.c.l.b16 %v755
        %v2900 = vunpack.c.l.b16 %v756
        %v2901 = vunpack.c.l.b16 %v757
        %v2902 = vunpack.c.l.b16 %v758
        %v2903 = vunpack.c.l.b16 %v759
        %v2904 = vunpack.c.l.b16 %v760
        %v2905 = vunpack.c.l.b16 %v761
        %v2906 = vunpack.c.l.b16 %v762
        %v2907 = vunpack.c.l.b16 %v763
        %v2908 = vunpack.c.l.b16 %v764
        %v2909 = vunpack.c.l.b16 %v765
        %v2910 = vunpack.c.l.b16 %v766
        %v2911 = vunpack.c.l.b16 %v767
        %v2912 = vunpack.c.l.b16 %v768
        %v2913 = vunpack.c.l.b16 %v769
        %v2914 = vunpack.c.l.b16 %v770
        %v2915 = vunpack.c.l.b16 %v771
        %v2916 = vunpack.c.l.b16 %v772
        %v2917 = vunpack.c.l.b16 %v773
        %v2918 = vunpack.c.l.b16 %v774
        %v2919 = vunpack.c.l.b16 %v775
        %v2920 = vunpack.c.l.b16 %v776
        %v2921 = vunpack.c.l.b16 %v777
        %v2922 = vunpack.c.l.b16 %v778
        %v2923 = vunpack.c.l.b16 %v779
        %v2924 = vunpack.c.l.b16 %v780
        %v2925 = vunpack.c.l.b16 %v781
        %v2926 = vunpack.c.l.b16 %v782
        %v2927 = vunpack.c.l.b16 %v783
        %v2928 = vunpack.c.l.b16 %v784
        %v2929 = vunpack.c.l.b16 %v785
        %v2930 = vunpack.c.l.b16 %v786
        %v2931 = vunpack.c.l.b16 %v787
        %v2932 = vunpack.c.l.b16 %v788
        %v2933 = vunpack.c.l.b16 %v789
        %v2934 = vunpack.c.l.b16 %v790
        %v2935 = vunpack.c.l.b16 %v791
        %v2936 = vunpack.c.l.b16 %v792
        %v2937 = vunpack.c.l.b16 %v793
        %v2938 = vunpack.c.l.b16 %v794
        %v2939 = vunpack.c.l.b16 %v795
        %v2940 = vunpack.c.l.b16 %v796
        %v2941 = vunpack.c.l.b16 %v797
        %v2942 = vunpack.c.l.b16 %v798
        %v2943 = vunpack.c.l.b16 %v799
        %v2944 = vunpack.c.l.b16 %v800
        %v2945 = vunpack.c.l.b16 %v801
        %v2946 = vunpack.c.l.b16 %v802
        %v2947 = vunpack.c.l.b16 %v803
        %v2948 = vunpack.c.l.b16 %v804
        %v2949 = vunpack.c.l.b16 %v805
        %v2950 = vunpack.c.l.b16 %v806
        %v2951 = vunpack.c.l.b16 %v807
        %v2952 = vunpack.c.l.b16 %v808
        %v2953 = vunpack.c.l.b16 %v809
        %v2954 = vunpack.c.l.b16 %v810
        %v2955 = vunpack.c.l.b16 %v811
        %v2956 = vunpack.c.l.b16 %v812
        %v2957 = vunpack.c.l.b16 %v813
        %v2958 = vunpack.c.l.b16 %v814
        %v2959 = vunpack.c.l.b16 %v815
        %v2960 = vunpack.c.l.b16 %v816
        %v2961 = vunpack.c.l.b16 %v817
        %v2962 = vunpack.c.l.b16 %v818
        %v2963 = vunpack.c.l.b16 %v819
        %v2964 = vunpack.c.l.b16 %v820
        %v2965 = vunpack.c.l.b16 %v821
        %v2966 = vunpack.c.l.b16 %v822
        %v2967 = vunpack.c.l.b16 %v823
        %v2968 = vunpack.c.l.b16 %v824
        %v2969 = vunpack.c.l.b16 %v825
        %v2970 = vunpack.c.l.b16 %v826
        %v2971 = vunpack.c.l.b16 %v827
        %v2972 = vunpack.c.l.b16 %v828
        %v2973 = vunpack.c.l.b16 %v829
        %v2974 = vunpack.c.l.b16 %v830
        %v2975 = vunpack.c.l.b16 %v831
        %v2976 = vunpack.c.l.b16 %v832
        %v2977 = vunpack.c.l.b16 %v833
        %v2978 = vunpack.c.l.b16 %v834
        %v2979 = vunpack.c.l.b16 %v835
        %v2980 = vunpack.c.l.b16 %v836
        %v2981 = vunpack.c.l.b16 %v837
        %v2982 = vunpack.c.l.b16 %v838
        %v2983 = vunpack.c.l.b16 %v839
        %v2984 = vunpack.c.l.b16 %v840
        %v2985 = vunpack.c.l.b16 %v841
        %v2986 = vunpack.c.l.b16 %v842
        %v2987 = vunpack.c.l.b16 %v843
        %v2988 = vunpack.c.l.b16 %v844
        %v2989 = vunpack.c.l.b16 %v845
        %v2990 = vunpack.c.l.b16 %v846
        %v2991 = vunpack.c.l.b16 %v847
        %v2992 = vunpack.c.l.b16 %v848
        %v2993 = vunpack.c.l.b16 %v849
        %v2994 = vunpack.c.l.b16 %v850
        %v2995 = vunpack.c.l.b16 %v851
        %v2996 = vunpack.c.l.b16 %v852
        %v2997 = vunpack.c.l.b16 %v853
        %v2998 = vunpack.c.l.b16 %v854
        %v2999 = vunpack.c.l.b16 %v855
        %v3000 = vunpack.c.l.b16 %v856
        %v3001 = vunpack.c.l.b16 %v857
        %v3002 = vunpack.c.l.b16 %v858
        %v3003 = vunpack.c.l.b16 %v859
        %v3004 = vunpack.c.l.b16 %v860
        %v3005 = vunpack.c.l.b16 %v861
        %v3006 = vunpack.c.l.b16 %v862
        %v3007 = vunpack.c.l.b16 %v863
        %v3008 = vunpack.c.l.b16 %v864
        %v3009 = vunpack.c.l.b16 %v865
        %v3010 = vunpack.c.l.b16 %v866
        %v3011 = vunpack.c.l.b16 %v867
        %v3012 = vunpack.c.l.b16 %v868
        %v3013 = vunpack.c.l.b16 %v869
        %v3014 = vunpack.c.l.b16 %v870
        %v3015 = vunpack.c.l.b16 %v871
        %v3016 = vunpack.c.l.b16 %v872
        %v3017 = vunpack.c.l.b16 %v873
        %v3018 = vunpack.c.l.b16 %v874
        %v3019 = vunpack.c.l.b16 %v875
        %v3020 = vunpack.c.l.b16 %v876
        %v3021 = vunpack.c.l.b16 %v877
        %v3022 = vunpack.c.l.b16 %v878
        %v3023 = vunpack.c.l.b16 %v879
        %v3024 = vunpack.c.l.b16 %v880
        %v3025 = vunpack.c.l.b16 %v881
        %v3026 = vunpack.c.l.b16 %v882
        %v3027 = vunpack.c.l.b16 %v883
        %v3028 = vunpack.c.l.b16 %v884
        %v3029 = vunpack.c.l.b16 %v885
        %v3030 = vunpack.c.l.b16 %v886
        %v3031 = vunpack.c.l.b16 %v887
        %v3032 = vunpack.c.l.b16 %v888
        %v3033 = vunpack.c.l.b16 %v889
        %v3034 = vunpack.c.l.b16 %v890
        %v3035 = vunpack.c.l.b16 %v891
        %v3036 = vunpack.c.l.b16 %v892
        %v3037 = vunpack.c.l.b16 %v893
        %v3038 = vunpack.c.l.b16 %v894
        %v3039 = vunpack.c.l.b16 %v895
        %v3040 = vunpack.c.l.b16 %v896
        %v3041 = vunpack.c.l.b16 %v897
        %v3042 = vunpack.c.l.b16 %v898
        %v3043 = vunpack.c.l.b16 %v899
        %v3044 = vunpack.c.l.b16 %v900
        %v3045 = vunpack.c.l.b16 %v901
        %v3046 = vunpack.c.l.b16 %v902
        %v3047 = vunpack.c.l.b16 %v903
        %v3048 = vunpack.c.l.b16 %v904
        %v3049 = vunpack.c.l.b16 %v905
        %v3050 = vunpack.c.l.b16 %v906
        %v3051 = vunpack.c.l.b16 %v907
        %v3052 = vunpack.c.l.b16 %v908
        %v3053 = vunpack.c.l.b16 %v909
        %v3054 = vunpack.c.l.b16 %v910
        %v3055 = vunpack.c.l.b16 %v911
        %v3056 = vunpack.c.l.b16 %v912
        %v3057 = vunpack.c.l.b16 %v913
        %v3058 = vunpack.c.l.b16 %v914
        %v3059 = vunpack.c.l.b16 %v915
        %v3060 = vunpack.c.l.b16 %v916
        %v3061 = vunpack.c.l.b16 %v917
        %v3062 = vunpack.c.l.b16 %v918
        %v3063 = vunpack.c.l.b16 %v919
        %v3064 = vunpack.c.l.b16 %v920
        %v3065 = vunpack.c.l.b16 %v921
        %v3066 = vunpack.c.l.b16 %v922
        %v3067 = vunpack.c.l.b16 %v923
        %v3068 = vunpack.c.l.b16 %v924
        %v3069 = vunpack.c.l.b16 %v925
        %v3070 = vunpack.c.l.b16 %v926
        %v3071 = vunpack.c.l.b16 %v927
        %v3072 = vunpack.c.l.b16 %v928
        %v3073 = vunpack.c.l.b16 %v929
        %v3074 = vunpack.c.l.b16 %v930
        %v3075 = vunpack.c.l.b16 %v931
        %v3076 = vunpack.c.l.b16 %v932
        %v3077 = vunpack.c.l.b16 %v933
        %v3078 = vunpack.c.l.b16 %v934
        %v3079 = vunpack.c.l.b16 %v935
        %v3080 = vunpack.c.l.b16 %v936
        %v3081 = vunpack.c.l.b16 %v937
        %v3082 = vunpack.c.l.b16 %v938
        %v3083 = vunpack.c.l.b16 %v939
        %v3084 = vunpack.c.l.b16 %v940
        %v3085 = vunpack.c.l.b16 %v941
        %v3086 = vunpack.c.l.b16 %v942
        %v3087 = vunpack.c.l.b16 %v943
        %v3088 = vunpack.c.l.b16 %v944
        %v3089 = vunpack.c.l.b16 %v945
        %v3090 = vunpack.c.l.b16 %v946
        %v3091 = vunpack.c.l.b16 %v947
        %v3092 = vunpack.c.l.b16 %v948
        %v3093 = vunpack.c.l.b16 %v949
        %v3094 = vunpack.c.l.b16 %v950
        %v3095 = vunpack.c.l.b16 %v951
        %v3096 = vunpack.c.l.b16 %v952
        %v3097 = vunpack.c.l.b16 %v953
        %v3098 = vunpack.c.l.b16 %v954
        %v3099 = vunpack.c.l.b16 %v955
        %v3100 = vunpack.c.l.b16 %v956
        %v3101 = vunpack.c.l.b16 %v957
        %v3102 = vunpack.c.l.b16 %v958
        %v3103 = vunpack.c.l.b16 %v959
        %v3104 = vunpack.c.l.b16 %v960
        %v3105 = vunpack.c.l.b16 %v961
        %v3106 = vunpack.c.l.b16 %v962
        %v3107 = vunpack.c.l.b16 %v963
        %v3108 = vunpack.c.l.b16 %v964
        %v3109 = vunpack.c.l.b16 %v965
        %v3110 = vunpack.c.l.b16 %v966
        %v3111 = vunpack.c.l.b16 %v967
        %v3112 = vunpack.c.l.b16 %v968
        %v3113 = vunpack.c.l.b16 %v969
        %v3114 = vunpack.c.l.b16 %v970
        %v3115 = vunpack.c.l.b16 %v971
        %v3116 = vunpack.c.l.b16 %v972
        %v3117 = vunpack.c.l.b16 %v973
        %v3118 = vunpack.c.l.b16 %v974
        %v3119 = vunpack.c.l.b16 %v975
        %v3120 = vunpack.c.l.b16 %v976
        %v3121 = vunpack.c.l.b16 %v977
        %v3122 = vunpack.c.l.b16 %v978
        %v3123 = vunpack.c.l.b16 %v979
        %v3124 = vunpack.c.l.b16 %v980
        %v3125 = vunpack.c.l.b16 %v981
        %v3126 = vunpack.c.l.b16 %v982
        %v3127 = vunpack.c.l.b16 %v983
        %v3128 = vunpack.c.l.b16 %v984
        %v3129 = vunpack.c.l.b16 %v985
        %v3130 = vunpack.c.l.b16 %v986
        %v3131 = vunpack.c.l.b16 %v987
        %v3132 = vunpack.c.l.b16 %v988
        %v3133 = vunpack.c.l.b16 %v989
        %v3134 = vunpack.c.l.b16 %v990
        %v3135 = vunpack.c.l.b16 %v991
        %v3136 = vunpack.c.l.b16 %v992
        %v3137 = vunpack.c.l.b16 %v993
        %v3138 = vunpack.c.l.b16 %v994
        %v3139 = vunpack.c.l.b16 %v995
        %v3140 = vunpack.c.l.b16 %v996
        %v3141 = vunpack.c.l.b16 %v997
        %v3142 = vunpack.c.l.b16 %v998
        %v3143 = vunpack.c.l.b16 %v999
        %v3144 = vunpack.c.l.b16 %v1000
        %v3145 = vunpack.c.l.b16 %v1001
        %v3146 = vunpack.c.l.b16 %v1002
        %v3147 = vunpack.c.l.b16 %v1003
        %v3148 = vunpack.c.l.b16 %v1004
        %v3149 = vunpack.c.l.b16 %v1005
        %v3150 = vunpack.c.l.b16 %v1006
        %v3151 = vunpack.c.l.b16 %v1007
        %v3152 = vunpack.c.l.b16 %v1008
        %v3153 = vunpack.c.l.b16 %v1009
        %v3154 = vunpack.c.l.b16 %v1010
        %v3155 = vunpack.c.l.b16 %v1011
        %v3156 = vunpack.c.l.b16 %v1012
        %v3157 = vunpack.c.l.b16 %v1013
        %v3158 = vunpack.c.l.b16 %v1014
        %v3159 = vunpack.c.l.b16 %v1015
        %v3160 = vunpack.c.l.b16 %v1016
        %v3161 = vunpack.c.l.b16 %v1017
        %v3162 = vunpack.c.l.b16 %v1018
        %v3163 = vunpack.c.l.b16 %v1019
        %v3164 = vunpack.c.l.b16 %v1020
        %v3165 = vunpack.c.l.b16 %v1021
        %v3166 = vunpack.c.l.b16 %v1022
        %v3167 = vunpack.c.l.b16 %v1023
        %v3168 = vunpack.c.l.b16 %v1024
        %v3169 = vunpack.c.l.b16 %v1025
        %v3170 = vunpack.c.l.b16 %v1026
        %v3171 = vunpack.c.l.b16 %v1027
        %v3172 = vunpack.c.l.b16 %v1028
        %v3173 = vunpack.c.l.b16 %v1029
        %v3174 = vunpack.c.l.b16 %v1030
        %v3175 = vunpack.c.l.b16 %v1031
        %v3176 = vunpack.c.l.b16 %v1032
        %v3177 = vunpack.c.l.b16 %v1033
        %v3178 = vunpack.c.l.b16 %v1034
        %v3179 = vunpack.c.l.b16 %v1035
        %v3180 = vunpack.c.l.b16 %v1036
        %v3181 = vunpack.c.l.b16 %v1037
        %v3182 = vunpack.c.l.b16 %v1038
        %v3183 = vunpack.c.l.b16 %v1039
        %v3184 = vunpack.c.l.b16 %v1040
        %v3185 = vunpack.c.l.b16 %v1041
        %v3186 = vunpack.c.l.b16 %v1042
        %v3187 = vunpack.c.l.b16 %v1043
        %v3188 = vunpack.c.l.b16 %v1044
        %v3189 = vunpack.c.l.b16 %v1045
        %v3190 = vunpack.c.l.b16 %v1046
        %v3191 = vunpack.c.l.b16 %v1047
        %v3192 = vunpack.c.l.b16 %v1048
        %v3193 = vunpack.c.l.b16 %v1049
        %v3194 = vunpack.c.l.b16 %v1050
        %v3195 = vunpack.c.l.b16 %v1051
        %v3196 = vunpack.c.l.b16 %v1052
        %v3197 = vunpack.c.l.b16 %v1053
        %v3198 = vunpack.c.l.b16 %v1054
        %v3199 = vunpack.c.l.b16 %v1055
        %v3200 = vunpack.c.l.b16 %v1056
        %v3201 = vunpack.c.l.b16 %v1057
        %v3202 = vunpack.c.l.b16 %v1058
        %v3203 = vunpack.c.l.b16 %v1059
        %v3204 = vunpack.c.l.b16 %v1060
        %v3205 = vunpack.c.l.b16 %v1061
        %v3206 = vunpack.c.l.b16 %v1062
        %v3207 = vunpack.c.l.b16 %v1063
        %v3208 = vunpack.c.l.b16 %v1064
        %v3209 = vunpack.c.l.b16 %v1065
        %v3210 = vunpack.c.l.b16 %v1066
        %v3211 = vunpack.c.l.b16 %v1067
        %v3212 = vunpack.c.l.b16 %v1068
        %v3213 = vunpack.c.l.b16 %v1069
        %v3214 = vunpack.c.l.b16 %v1070
        %v3215 = vunpack.c.l.b16 %v1071
        %v3216 = vunpack.c.l.b16 %v1072
        %v3217 = vunpack.c.l.b16 %v1073
        %v3218 = vunpack.c.l.b16 %v1074
        %v3219 = vunpack.c.l.b16 %v1075
        %v3220 = vunpack.c.l.b16 %v1076
        %v3221 = vunpack.c.l.b16 %v1077
        %v3222 = vunpack.c.l.b16 %v1078
        %v3223 = vunpack.c.l.b16 %v1079
        %v3224 = vunpack.c.l.b16 %v1080
        %v3225 = vunpack.c.l.b16 %v1081
        %v3226 = vunpack.c.l.b16 %v1082
        %v3227 = vunpack.c.l.b16 %v1083
        %v3228 = vunpack.c.l.b16 %v1084
        %v3229 = vunpack.c.l.b16 %v1085
        %v3230 = vunpack.c.l.b16 %v1086
        %v3231 = vunpack.c.l.b16 %v1087
        %v3232 = vunpack.c.l.b16 %v1088
        %v3233 = vunpack.c.l.b16 %v1089
        %v3234 = vunpack.c.l.b16 %v1090
        %v3235 = vunpack.c.l.b16 %v1091
        %v3236 = vunpack.c.l.b16 %v1092
        %v3237 = vunpack.c.l.b16 %v1093
        %v3238 = vunpack.c.l.b16 %v1094
        %v3239 = vunpack.c.l.b16 %v1095
        %v3240 = vunpack.c.l.b16 %v1096
        %v3241 = vunpack.c.l.b16 %v1097
        %v3242 = vunpack.c.l.b16 %v1098
        %v3243 = vunpack.c.l.b16 %v1099
        %v3244 = vunpack.c.l.b16 %v1100
        %v3245 = vunpack.c.l.b16 %v1101
        %v3246 = vunpack.c.l.b16 %v1102
        %v3247 = vunpack.c.l.b16 %v1103
        %v3248 = vunpack.c.l.b16 %v1104
        %v3249 = vunpack.c.l.b16 %v1105
        %v3250 = vunpack.c.l.b16 %v1106
        %v3251 = vunpack.c.l.b16 %v1107
        %v3252 = vunpack.c.l.b16 %v1108
        %v3253 = vunpack.c.l.b16 %v1109
        %v3254 = vunpack.c.l.b16 %v1110
        %v3255 = vunpack.c.l.b16 %v1111
        %v3256 = vunpack.c.l.b16 %v1112
        %v3257 = vunpack.c.l.b16 %v1113
        %v3258 = vunpack.c.l.b16 %v1114
        %v3259 = vunpack.c.l.b16 %v1115
        %v3260 = vunpack.c.l.b16 %v1116
        %v3261 = vunpack.c.l.b16 %v1117
        %v3262 = vunpack.c.l.b16 %v1118
        %v3263 = vunpack.c.l.b16 %v1119
        %v3264 = vunpack.c.l.b16 %v1120
        %v3265 = vunpack.c.l.b16 %v1121
        %v3266 = vunpack.c.l.b16 %v1122
        %v3267 = vunpack.c.l.b16 %v1123
        %v3268 = vunpack.c.l.b16 %v1124
        %v3269 = vunpack.c.l.b16 %v1125
        %v3270 = vunpack.c.l.b16 %v1126
        %v3271 = vunpack.c.l.b16 %v1127
        %v3272 = vunpack.c.l.b16 %v1128
        %v3273 = vunpack.c.l.b16 %v1129
        %v3274 = vunpack.c.l.b16 %v1130
        %v3275 = vunpack.c.l.b16 %v1131
        %v3276 = vunpack.c.l.b16 %v1132
        %v3277 = vunpack.c.l.b16 %v1133
        %v3278 = vunpack.c.l.b16 %v1134
        %v3279 = vunpack.c.l.b16 %v1135
        %v3280 = vunpack.c.l.b16 %v1136
        %v3281 = vunpack.c.l.b16 %v1137
        %v3282 = vunpack.c.l.b16 %v1138
        %v3283 = vunpack.c.l.b16 %v1139
        %v3284 = vunpack.c.l.b16 %v1140
        %v3285 = vunpack.c.l.b16 %v1141
        %v3286 = vunpack.c.l.b16 %v1142
        %v3287 = vunpack.c.l.b16 %v1143
        %v3288 = vunpack.c.l.b16 %v1144
        %v3289 = vunpack.c.l.b16 %v1145
        %v3290 = vunpack.c.l.b16 %v1146
        %v3291 = vunpack.c.l.b16 %v1147
        %v3292 = vunpack.c.l.b16 %v1148
        %v3293 = vunpack.c.l.b16 %v1149
        %v3294 = vunpack.c.l.b16 %v1150
        %v3295 = vunpack.c.l.b16 %v1151
        %v3296 = vunpack.c.l.b16 %v1152
        %v3297 = vunpack.c.l.b16 %v1153
        %v3298 = vunpack.c.l.b16 %v1154
        %v3299 = vunpack.c.l.b16 %v1155
        %v3300 = vunpack.c.l.b16 %v1156
        %v3301 = vunpack.c.l.b16 %v1157
        %v3302 = vunpack.c.l.b16 %v1158
        %v3303 = vunpack.c.l.b16 %v1159
        %v3304 = vunpack.c.l.b16 %v1160
        %v3305 = vunpack.c.l.b16 %v1161
        %v3306 = vunpack.c.l.b16 %v1162
        %v3307 = vunpack.c.l.b16 %v1163
        %v3308 = vunpack.c.l.b16 %v1164
        %v3309 = vunpack.c.l.b16 %v1165
        %v3310 = vunpack.c.l.b16 %v1166
        %v3311 = vunpack.c.l.b16 %v1167
        %v3312 = vunpack.c.l.b16 %v1168
        %v3313 = vunpack.c.l.b16 %v1169
        %v3314 = vunpack.c.l.b16 %v1170
        %v3315 = vunpack.c.l.b16 %v1171
        %v3316 = vunpack.c.l.b16 %v1172
        %v3317 = vunpack.c.l.b16 %v1173
        %v3318 = vunpack.c.l.b16 %v1174
        %v3319 = vunpack.c.l.b16 %v1175
        %v3320 = vunpack.c.l.b16 %v1176
        %v3321 = vunpack.c.l.b16 %v1177
        %v3322 = vunpack.c.l.b16 %v1178
        %v3323 = vunpack.c.l.b16 %v1179
        %v3324 = vunpack.c.l.b16 %v1180
        %v3325 = vunpack.c.l.b16 %v1181
        %v3326 = vunpack.c.l.b16 %v1182
        %v3327 = vunpack.c.l.b16 %v1183
        %v3328 = vunpack.c.l.b16 %v1184
        %v3329 = vunpack.c.l.b16 %v1185
        %v3330 = vunpack.c.l.b16 %v1186
        %v3331 = vunpack.c.l.b16 %v1187
        %v3332 = vunpack.c.l.b16 %v1188
        %v3333 = vunpack.c.l.b16 %v1189
        %v3334 = vunpack.c.l.b16 %v1190
        %v3335 = vunpack.c.l.b16 %v1191
        %v3336 = vunpack.c.l.b16 %v1192
        %v3337 = vunpack.c.l.b16 %v1193
        %v3338 = vunpack.c.l.b16 %v1194
        %v3339 = vunpack.c.l.b16 %v1195
        %v3340 = vunpack.c.l.b16 %v1196
        %v3341 = vunpack.c.l.b16 %v1197
        %v3342 = vunpack.c.l.b16 %v1198
        %v3343 = vunpack.c.l.b16 %v1199
        %v3344 = vunpack.c.l.b16 %v1200
        %v3345 = vunpack.c.l.b16 %v1201
        %v3346 = vunpack.c.l.b16 %v1202
        %v3347 = vunpack.c.l.b16 %v1203
        %v3348 = vunpack.c.l.b16 %v1204
        %v3349 = vunpack.c.l.b16 %v1205
        %v3350 = vunpack.c.l.b16 %v1206
        %v3351 = vunpack.c.l.b16 %v1207
        %v3352 = vunpack.c.l.b16 %v1208
        %v3353 = vunpack.c.l.b16 %v1209
        %v3354 = vunpack.c.l.b16 %v1210
        %v3355 = vunpack.c.l.b16 %v1211
        %v3356 = vunpack.c.l.b16 %v1212
        %v3357 = vunpack.c.l.b16 %v1213
        %v3358 = vunpack.c.l.b16 %v1214
        %v3359 = vunpack.c.l.b16 %v1215
        %v3360 = vunpack.c.l.b16 %v1216
        %v3361 = vunpack.c.l.b16 %v1217
        %v3362 = vunpack.c.l.b16 %v1218
        %v3363 = vunpack.c.l.b16 %v1219
        %v3364 = vunpack.c.l.b16 %v1220
        %v3365 = vunpack.c.l.b16 %v1221
        %v3366 = vunpack.c.l.b16 %v1222
        %v3367 = vunpack.c.l.b16 %v1223
        %v3368 = vunpack.c.l.b16 %v1224
        %v3369 = vunpack.c.l.b16 %v1225
        %v3370 = vunpack.c.l.b16 %v1226
        %v3371 = vunpack.c.l.b16 %v1227
        %v3372 = vunpack.c.l.b16 %v1228
        %v3373 = vunpack.c.l.b16 %v1229
        %v3374 = vunpack.c.l.b16 %v1230
        %v3375 = vunpack.c.l.b16 %v1231
        %v3376 = vunpack.c.l.b16 %v1232
        %v3377 = vunpack.c.l.b16 %v1233
        %v3378 = vunpack.c.l.b16 %v1234
        %v3379 = vunpack.c.l.b16 %v1235
        %v3380 = vunpack.c.l.b16 %v1236
        %v3381 = vunpack.c.l.b16 %v1237
        %v3382 = vunpack.c.l.b16 %v1238
        %v3383 = vunpack.c.l.b16 %v1239
        %v3384 = vunpack.c.l.b16 %v1240
        %v3385 = vunpack.c.l.b16 %v1241
        %v3386 = vunpack.c.l.b16 %v1242
        %v3387 = vunpack.c.l.b16 %v1243
        %v3388 = vunpack.c.l.b16 %v1244
        %v3389 = vunpack.c.l.b16 %v1245
        %v3390 = vunpack.c.l.b16 %v1246
        %v3391 = vunpack.c.l.b16 %v1247
        %v3392 = vunpack.c.l.b16 %v1248
        %v3393 = vunpack.c.l.b16 %v1249
        %v3394 = vunpack.c.l.b16 %v1250
        %v3395 = vunpack.c.l.b16 %v1251
        %v3396 = vunpack.c.l.b16 %v1252
        %v3397 = vunpack.c.l.b16 %v1253
        %v3398 = vunpack.c.l.b16 %v1254
        %v3399 = vunpack.c.l.b16 %v1255
        %v3400 = vunpack.c.l.b16 %v1256
        %v3401 = vunpack.c.l.b16 %v1257
        %v3402 = vunpack.c.l.b16 %v1258
        %v3403 = vunpack.c.l.b16 %v1259
        %v3404 = vunpack.c.l.b16 %v1260
        %v3405 = vunpack.c.l.b16 %v1261
        %v3406 = vunpack.c.l.b16 %v1262
        %v3407 = vunpack.c.l.b16 %v1263
        %v3408 = vunpack.c.l.b16 %v1264
        %v3409 = vunpack.c.l.b16 %v1265
        %v3410 = vunpack.c.l.b16 %v1266
        %v3411 = vunpack.c.l.b16 %v1267
        %v3412 = vunpack.c.l.b16 %v1268
        %v3413 = vunpack.c.l.b16 %v1269
        %v3414 = vunpack.c.l.b16 %v1270
        %v3415 = vunpack.c.l.b16 %v1271
        %v3416 = vunpack.c.l.b16 %v1272
        %v3417 = vunpack.c.l.b16 %v1273
        %v3418 = vunpack.c.l.b16 %v1274
        %v3419 = vunpack.c.l.b16 %v1275
        %v3420 = vunpack.c.l.b16 %v1276
        %v3421 = vunpack.c.l.b16 %v1277
        %v3422 = vunpack.c.l.b16 %v1278
        %v3423 = vunpack.c.l.b16 %v1279
        %v3424 = vunpack.c.l.b16 %v1280
        %v3425 = vunpack.c.l.b16 %v1281
        %v3426 = vunpack.c.l.b16 %v1282
        %v3427 = vunpack.c.l.b16 %v1283
        %v3428 = vunpack.c.l.b16 %v1284
        %v3429 = vunpack.c.l.b16 %v1285
        %v3430 = vunpack.c.l.b16 %v1286
        %v3431 = vunpack.c.l.b16 %v1287
        %v3432 = vunpack.c.l.b16 %v1288
        %v3433 = vunpack.c.l.b16 %v1289
        %v3434 = vunpack.c.l.b16 %v1290
        %v3435 = vunpack.c.l.b16 %v1291
        %v3436 = vunpack.c.l.b16 %v1292
        %v3437 = vunpack.c.l.b16 %v1293
        %v3438 = vunpack.c.l.b16 %v1294
        %v3439 = vunpack.c.l.b16 %v1295
        %v3440 = vunpack.c.l.b16 %v1296
        %v3441 = vunpack.c.l.b16 %v1297
        %v3442 = vunpack.c.l.b16 %v1298
        %v3443 = vunpack.c.l.b16 %v1299
        %v3444 = vunpack.c.l.b16 %v1300
        %v3445 = vunpack.c.l.b16 %v1301
        %v3446 = vunpack.c.l.b16 %v1302
        %v3447 = vunpack.c.l.b16 %v1303
        %v3448 = vunpack.c.l.b16 %v1304
        %v3449 = vunpack.c.l.b16 %v1305
        %v3450 = vunpack.c.l.b16 %v1306
        %v3451 = vunpack.c.l.b16 %v1307
        %v3452 = vunpack.c.l.b16 %v1308
        %v3453 = vunpack.c.l.b16 %v1309
        %v3454 = vunpack.c.l.b16 %v1310
        %v3455 = vunpack.c.l.b16 %v1311
        %v3456 = vunpack.c.l.b16 %v1312
        %v3457 = vunpack.c.l.b16 %v1313
        %v3458 = vunpack.c.l.b16 %v1314
        %v3459 = vunpack.c.l.b16 %v1315
        %v3460 = vunpack.c.l.b16 %v1316
        %v3461 = vunpack.c.l.b16 %v1317
        %v3462 = vunpack.c.l.b16 %v1318
        %v3463 = vunpack.c.l.b16 %v1319
        %v3464 = vunpack.c.l.b16 %v1320
        %v3465 = vunpack.c.l.b16 %v1321
        %v3466 = vunpack.c.l.b16 %v1322
        %v3467 = vunpack.c.l.b16 %v1323
        %v3468 = vunpack.c.l.b16 %v1324
        %v3469 = vunpack.c.l.b16 %v1325
        %v3470 = vunpack.c.l.b16 %v1326
        %v3471 = vunpack.c.l.b16 %v1327
        %v3472 = vunpack.c.l.b16 %v1328
        %v3473 = vunpack.c.l.b16 %v1329
        %v3474 = vunpack.c.l.b16 %v1330
        %v3475 = vunpack.c.l.b16 %v1331
        %v3476 = vunpack.c.l.b16 %v1332
        %v3477 = vunpack.c.l.b16 %v1333
        %v3478 = vunpack.c.l.b16 %v1334
        %v3479 = vunpack.c.l.b16 %v1335
        %v3480 = vunpack.c.l.b16 %v1336
        %v3481 = vunpack.c.l.b16 %v1337
        %v3482 = vunpack.c.l.b16 %v1338
        %v3483 = vunpack.c.l.b16 %v1339
        %v3484 = vunpack.c.l.b16 %v1340
        %v3485 = vunpack.c.l.b16 %v1341
        %v3486 = vunpack.c.l.b16 %v1342
        %v3487 = vunpack.c.l.b16 %v1343
        %v3488 = vunpack.c.l.b16 %v1344
        %v3489 = vunpack.c.l.b16 %v1345
        %v3490 = vunpack.c.l.b16 %v1346
        %v3491 = vunpack.c.l.b16 %v1347
        %v3492 = vunpack.c.l.b16 %v1348
        %v3493 = vunpack.c.l.b16 %v1349
        %v3494 = vunpack.c.l.b16 %v1350
        %v3495 = vunpack.c.l.b16 %v1351
        %v3496 = vunpack.c.l.b16 %v1352
        %v3497 = vunpack.c.l.b16 %v1353
        %v3498 = vunpack.c.l.b16 %v1354
        %v3499 = vunpack.c.l.b16 %v1355
        %v3500 = vunpack.c.l.b16 %v1356
        %v3501 = vunpack.c.l.b16 %v1357
        %v3502 = vunpack.c.l.b16 %v1358
        %v3503 = vunpack.c.l.b16 %v1359
        %v3504 = vunpack.c.l.b16 %v1360
        %v3505 = vunpack.c.l.b16 %v1361
        %v3506 = vunpack.c.l.b16 %v1362
        %v3507 = vunpack.c.l.b16 %v1363
        %v3508 = vunpack.c.l.b16 %v1364
        %v3509 = vunpack.c.l.b16 %v1365
        %v3510 = vunpack.c.l.b16 %v1366
        %v3511 = vunpack.c.l.b16 %v1367
        %v3512 = vunpack.c.l.b16 %v1368
        %v3513 = vunpack.c.l.b16 %v1369
        %v3514 = vunpack.c.l.b16 %v1370
        %v3515 = vunpack.c.l.b16 %v1371
        %v3516 = vunpack.c.l.b16 %v1372
        %v3517 = vunpack.c.l.b16 %v1373
        %v3518 = vunpack.c.l.b16 %v1374
        %v3519 = vunpack.c.l.b16 %v1375
        %v3520 = vunpack.c.l.b16 %v1376
        %v3521 = vunpack.c.l.b16 %v1377
        %v3522 = vunpack.c.l.b16 %v1378
        %v3523 = vunpack.c.l.b16 %v1379
        %v3524 = vunpack.c.l.b16 %v1380
        %v3525 = vunpack.c.l.b16 %v1381
        %v3526 = vunpack.c.l.b16 %v1382
        %v3527 = vunpack.c.l.b16 %v1383
        %v3528 = vunpack.c.l.b16 %v1384
        %v3529 = vunpack.c.l.b16 %v1385
        %v3530 = vunpack.c.l.b16 %v1386
        %v3531 = vunpack.c.l.b16 %v1387
        %v3532 = vunpack.c.l.b16 %v1388
        %v3533 = vunpack.c.l.b16 %v1389
        %v3534 = vunpack.c.l.b16 %v1390
        %v3535 = vunpack.c.l.b16 %v1391
        %v3536 = vunpack.c.l.b16 %v1392
        %v3537 = vunpack.c.l.b16 %v1393
        %v3538 = vunpack.c.l.b16 %v1394
        %v3539 = vunpack.c.l.b16 %v1395
        %v3540 = vunpack.c.l.b16 %v1396
        %v3541 = vunpack.c.l.b16 %v1397
        %v3542 = vunpack.c.l.b16 %v1398
        %v3543 = vunpack.c.l.b16 %v1399
        %v3544 = vunpack.c.l.b16 %v1400
        %v3545 = vunpack.c.l.b16 %v1401
        %v3546 = vunpack.c.l.b16 %v1402
        %v3547 = vunpack.c.l.b16 %v1403
        %v3548 = vunpack.c.l.b16 %v1404
        %v3549 = vunpack.c.l.b16 %v1405
        %v3550 = vunpack.c.l.b16 %v1406
        %v3551 = vunpack.c.l.b16 %v1407
        %v3552 = vunpack.c.l.b16 %v1408
        %v3553 = vunpack.c.l.b16 %v1409
        %v3554 = vunpack.c.l.b16 %v1410
        %v3555 = vunpack.c.l.b16 %v1411
        %v3556 = vunpack.c.l.b16 %v1412
        %v3557 = vunpack.c.l.b16 %v1413
        %v3558 = vunpack.c.l.b16 %v1414
        %v3559 = vunpack.c.l.b16 %v1415
        %v3560 = vunpack.c.l.b16 %v1416
        %v3561 = vunpack.c.l.b16 %v1417
        %v3562 = vunpack.c.l.b16 %v1418
        %v3563 = vunpack.c.l.b16 %v1419
        %v3564 = vunpack.c.l.b16 %v1420
        %v3565 = vunpack.c.l.b16 %v1421
        %v3566 = vunpack.c.l.b16 %v1422
        %v3567 = vunpack.c.l.b16 %v1423
        %v3568 = vunpack.c.l.b16 %v1424
        %v3569 = vunpack.c.l.b16 %v1425
        %v3570 = vunpack.c.l.b16 %v1426
        %v3571 = vunpack.c.l.b16 %v1427
        %v3572 = vunpack.c.l.b16 %v1428
        %v3573 = vunpack.c.l.b16 %v1429
        %v3574 = vunpack.c.l.b16 %v1430
        %v3575 = vunpack.c.l.b16 %v1431
        %v3576 = vunpack.c.l.b16 %v1432
        %v3577 = vunpack.c.l.b16 %v1433
        %v3578 = vunpack.c.l.b16 %v1434
        %v3579 = vunpack.c.l.b16 %v1435
        %v3580 = vunpack.c.l.b16 %v1436
        %v3581 = vunpack.c.l.b16 %v1437
        %v3582 = vunpack.c.l.b16 %v1438
        %v3583 = vunpack.c.l.b16 %v1439
        %v3584 = vunpack.c.l.b16 %v1440
        %v3585 = vunpack.c.l.b16 %v1441
        %v3586 = vunpack.c.l.b16 %v1442
        %v3587 = vunpack.c.l.b16 %v1443
        %v3588 = vunpack.c.l.b16 %v1444
        %v3589 = vunpack.c.l.b16 %v1445
        %v3590 = vunpack.c.l.b16 %v1446
        %v3591 = vunpack.c.l.b16 %v1447
        %v3592 = vunpack.c.l.b16 %v1448
        %v3593 = vunpack.c.l.b16 %v1449
        %v3594 = vunpack.c.l.b16 %v1450
        %v3595 = vunpack.c.l.b16 %v1451
        %v3596 = vunpack.c.l.b16 %v1452
        %v3597 = vunpack.c.l.b16 %v1453
        %v3598 = vunpack.c.l.b16 %v1454
        %v3599 = vunpack.c.l.b16 %v1455
        %v3600 = vunpack.c.l.b16 %v1456
        %v3601 = vunpack.c.l.b16 %v1457
        %v3602 = vunpack.c.l.b16 %v1458
        %v3603 = vunpack.c.l.b16 %v1459
        %v3604 = vunpack.c.l.b16 %v1460
        %v3605 = vunpack.c.l.b16 %v1461
        %v3606 = vunpack.c.l.b16 %v1462
        %v3607 = vunpack.c.l.b16 %v1463
        %v3608 = vunpack.c.l.b16 %v1464
        %v3609 = vunpack.c.l.b16 %v1465
        %v3610 = vunpack.c.l.b16 %v1466
        %v3611 = vunpack.c.l.b16 %v1467
        %v3612 = vunpack.c.l.b16 %v1468
        %v3613 = vunpack.c.l.b16 %v1469
        %v3614 = vunpack.c.l.b16 %v1470
        %v3615 = vunpack.c.l.b16 %v1471
        %v3616 = vunpack.c.l.b16 %v1472
        %v3617 = vunpack.c.l.b16 %v1473
        %v3618 = vunpack.c.l.b16 %v1474
        %v3619 = vunpack.c.l.b16 %v1475
        %v3620 = vunpack.c.l.b16 %v1476
        %v3621 = vunpack.c.l.b16 %v1477
        %v3622 = vunpack.c.l.b16 %v1478
        %v3623 = vunpack.c.l.b16 %v1479
        %v3624 = vunpack.c.l.b16 %v1480
        %v3625 = vunpack.c.l.b16 %v1481
        %v3626 = vunpack.c.l.b16 %v1482
        %v3627 = vunpack.c.l.b16 %v1483
        %v3628 = vunpack.c.l.b16 %v1484
        %v3629 = vunpack.c.l.b16 %v1485
        %v3630 = vunpack.c.l.b16 %v1486
        %v3631 = vunpack.c.l.b16 %v1487
        %v3632 = vunpack.c.l.b16 %v1488
        %v3633 = vunpack.c.l.b16 %v1489
        %v3634 = vunpack.c.l.b16 %v1490
        %v3635 = vunpack.c.l.b16 %v1491
        %v3636 = vunpack.c.l.b16 %v1492
        %v3637 = vunpack.c.l.b16 %v1493
        %v3638 = vunpack.c.l.b16 %v1494
        %v3639 = vunpack.c.l.b16 %v1495
        %v3640 = vunpack.c.l.b16 %v1496
        %v3641 = vunpack.c.l.b16 %v1497
        %v3642 = vunpack.c.l.b16 %v1498
        %v3643 = vunpack.c.l.b16 %v1499
        %v3644 = vunpack.c.l.b16 %v1500
        %v3645 = vunpack.c.l.b16 %v1501
        %v3646 = vunpack.c.l.b16 %v1502
        %v3647 = vunpack.c.l.b16 %v1503
        %v3648 = vunpack.c.l.b16 %v1504
        %v3649 = vunpack.c.l.b16 %v1505
        %v3650 = vunpack.c.l.b16 %v1506
        %v3651 = vunpack.c.l.b16 %v1507
        %v3652 = vunpack.c.l.b16 %v1508
        %v3653 = vunpack.c.l.b16 %v1509
        %v3654 = vunpack.c.l.b16 %v1510
        %v3655 = vunpack.c.l.b16 %v1511
        %v3656 = vunpack.c.l.b16 %v1512
        %v3657 = vunpack.c.l.b16 %v1513
        %v3658 = vunpack.c.l.b16 %v1514
        %v3659 = vunpack.c.l.b16 %v1515
        %v3660 = vunpack.c.l.b16 %v1516
        %v3661 = vunpack.c.l.b16 %v1517
        %v3662 = vunpack.c.l.b16 %v1518
        %v3663 = vunpack.c.l.b16 %v1519
        %v3664 = vunpack.c.l.b16 %v1520
        %v3665 = vunpack.c.l.b16 %v1521
        %v3666 = vunpack.c.l.b16 %v1522
        %v3667 = vunpack.c.l.b16 %v1523
        %v3668 = vunpack.c.l.b16 %v1524
        %v3669 = vunpack.c.l.b16 %v1525
        %v3670 = vunpack.c.l.b16 %v1526
        %v3671 = vunpack.c.l.b16 %v1527
        %v3672 = vunpack.c.l.b16 %v1528
        %v3673 = vunpack.c.l.b16 %v1529
        %v3674 = vunpack.c.l.b16 %v1530
        %v3675 = vunpack.c.l.b16 %v1531
        %v3676 = vunpack.c.l.b16 %v1532
        %v3677 = vunpack.c.l.b16 %v1533
        %v3678 = vunpack.c.l.b16 %v1534
        %v3679 = vunpack.c.l.b16 %v1535
        %v3680 = vunpack.c.l.b16 %v1536
        %v3681 = vunpack.c.l.b16 %v1537
        %v3682 = vunpack.c.l.b16 %v1538
        %v3683 = vunpack.c.l.b16 %v1539
        %v3684 = vunpack.c.l.b16 %v1540
        %v3685 = vunpack.c.l.b16 %v1541
        %v3686 = vunpack.c.l.b16 %v1542
        %v3687 = vunpack.c.l.b16 %v1543
        %v3688 = vunpack.c.l.b16 %v1544
        %v3689 = vunpack.c.l.b16 %v1545
        %v3690 = vunpack.c.l.b16 %v1546
        %v3691 = vunpack.c.l.b16 %v1547
        %v3692 = vunpack.c.l.b16 %v1548
        %v3693 = vunpack.c.l.b16 %v1549
        %v3694 = vunpack.c.l.b16 %v1550
        %v3695 = vunpack.c.l.b16 %v1551
        %v3696 = vunpack.c.l.b16 %v1552
        %v3697 = vunpack.c.l.b16 %v1553
        %v3698 = vunpack.c.l.b16 %v1554
        %v3699 = vunpack.c.l.b16 %v1555
        %v3700 = vunpack.c.l.b16 %v1556
        %v3701 = vunpack.c.l.b16 %v1557
        %v3702 = vunpack.c.l.b16 %v1558
        %v3703 = vunpack.c.l.b16 %v1559
        %v3704 = vunpack.c.l.b16 %v1560
        %v3705 = vunpack.c.l.b16 %v1561
        %v3706 = vunpack.c.l.b16 %v1562
        %v3707 = vunpack.c.l.b16 %v1563
        %v3708 = vunpack.c.l.b16 %v1564
        %v3709 = vunpack.c.l.b16 %v1565
        %v3710 = vunpack.c.l.b16 %v1566
        %v3711 = vunpack.c.l.b16 %v1567
        %v3712 = vunpack.c.l.b16 %v1568
        %v3713 = vunpack.c.l.b16 %v1569
        %v3714 = vunpack.c.l.b16 %v1570
        %v3715 = vunpack.c.l.b16 %v1571
        %v3716 = vunpack.c.l.b16 %v1572
        %v3717 = vunpack.c.l.b16 %v1573
        %v3718 = vunpack.c.l.b16 %v1574
        %v3719 = vunpack.c.l.b16 %v1575
        %v3720 = vunpack.c.l.b16 %v1576
        %v3721 = vunpack.c.l.b16 %v1577
        %v3722 = vunpack.c.l.b16 %v1578
        %v3723 = vunpack.c.l.b16 %v1579
        %v3724 = vunpack.c.l.b16 %v1580
        %v3725 = vunpack.c.l.b16 %v1581
        %v3726 = vunpack.c.l.b16 %v1582
        %v3727 = vunpack.c.l.b16 %v1583
        %v3728 = vunpack.c.l.b16 %v1584
        %v3729 = vunpack.c.l.b16 %v1585
        %v3730 = vunpack.c.l.b16 %v1586
        %v3731 = vunpack.c.l.b16 %v1587
        %v3732 = vunpack.c.l.b16 %v1588
        %v3733 = vunpack.c.l.b16 %v1589
        %v3734 = vunpack.c.l.b16 %v1590
        %v3735 = vunpack.c.l.b16 %v1591
        %v3736 = vunpack.c.l.b16 %v1592
        %v3737 = vunpack.c.l.b16 %v1593
        %v3738 = vunpack.c.l.b16 %v1594
        %v3739 = vunpack.c.l.b16 %v1595
        %v3740 = vunpack.c.l.b16 %v1596
        %v3741 = vunpack.c.l.b16 %v1597
        %v3742 = vunpack.c.l.b16 %v1598
        %v3743 = vunpack.c.l.b16 %v1599
        %v3744 = vunpack.c.l.b16 %v1600
        %v3745 = vunpack.c.l.b16 %v1601
        %v3746 = vunpack.c.l.b16 %v1602
        %v3747 = vunpack.c.l.b16 %v1603
        %v3748 = vunpack.c.l.b16 %v1604
        %v3749 = vunpack.c.l.b16 %v1605
        %v3750 = vunpack.c.l.b16 %v1606
        %v3751 = vunpack.c.l.b16 %v1607
        %v3752 = vunpack.c.l.b16 %v1608
        %v3753 = vunpack.c.l.b16 %v1609
        %v3754 = vunpack.c.l.b16 %v1610
        %v3755 = vunpack.c.l.b16 %v1611
        %v3756 = vunpack.c.l.b16 %v1612
        %v3757 = vunpack.c.l.b16 %v1613
        %v3758 = vunpack.c.l.b16 %v1614
        %v3759 = vunpack.c.l.b16 %v1615
        %v3760 = vunpack.c.l.b16 %v1616
        %v3761 = vunpack.c.l.b16 %v1617
        %v3762 = vunpack.c.l.b16 %v1618
        %v3763 = vunpack.c.l.b16 %v1619
        %v3764 = vunpack.c.l.b16 %v1620
        %v3765 = vunpack.c.l.b16 %v1621
        %v3766 = vunpack.c.l.b16 %v1622
        %v3767 = vunpack.c.l.b16 %v1623
        %v3768 = vunpack.c.l.b16 %v1624
        %v3769 = vunpack.c.l.b16 %v1625
        %v3770 = vunpack.c.l.b16 %v1626
        %v3771 = vunpack.c.l.b16 %v1627
        %v3772 = vunpack.c.l.b16 %v1628
        %v3773 = vunpack.c.l.b16 %v1629
        %v3774 = vunpack.c.l.b16 %v1630
        %v3775 = vunpack.c.l.b16 %v1631
        %v3776 = vunpack.c.l.b16 %v1632
        %v3777 = vunpack.c.l.b16 %v1633
        %v3778 = vunpack.c.l.b16 %v1634
        %v3779 = vunpack.c.l.b16 %v1635
        %v3780 = vunpack.c.l.b16 %v1636
        %v3781 = vunpack.c.l.b16 %v1637
        %v3782 = vunpack.c.l.b16 %v1638
        %v3783 = vunpack.c.l.b16 %v1639
        %v3784 = vunpack.c.l.b16 %v1640
        %v3785 = vunpack.c.l.b16 %v1641
        %v3786 = vunpack.c.l.b16 %v1642
        %v3787 = vunpack.c.l.b16 %v1643
        %v3788 = vunpack.c.l.b16 %v1644
        %v3789 = vunpack.c.l.b16 %v1645
        %v3790 = vunpack.c.l.b16 %v1646
        %v3791 = vunpack.c.l.b16 %v1647
        %v3792 = vunpack.c.l.b16 %v1648
        %v3793 = vunpack.c.l.b16 %v1649
        %v3794 = vunpack.c.l.b16 %v1650
        %v3795 = vunpack.c.l.b16 %v1651
        %v3796 = vunpack.c.l.b16 %v1652
        %v3797 = vunpack.c.l.b16 %v1653
        %v3798 = vunpack.c.l.b16 %v1654
        %v3799 = vunpack.c.l.b16 %v1655
        %v3800 = vunpack.c.l.b16 %v1656
        %v3801 = vunpack.c.l.b16 %v1657
        %v3802 = vunpack.c.l.b16 %v1658
        %v3803 = vunpack.c.l.b16 %v1659
        %v3804 = vunpack.c.l.b16 %v1660
        %v3805 = vunpack.c.l.b16 %v1661
        %v3806 = vunpack.c.l.b16 %v1662
        %v3807 = vunpack.c.l.b16 %v1663
        %v3808 = vunpack.c.l.b16 %v1664
        %v3809 = vunpack.c.l.b16 %v1665
        %v3810 = vunpack.c.l.b16 %v1666
        %v3811 = vunpack.c.l.b16 %v1667
        %v3812 = vunpack.c.l.b16 %v1668
        %v3813 = vunpack.c.l.b16 %v1669
        %v3814 = vunpack.c.l.b16 %v1670
        %v3815 = vunpack.c.l.b16 %v1671
        %v3816 = vunpack.c.l.b16 %v1672
        %v3817 = vunpack.c.l.b16 %v1673
        %v3818 = vunpack.c.l.b16 %v1674
        %v3819 = vunpack.c.l.b16 %v1675
        %v3820 = vunpack.c.l.b16 %v1676
        %v3821 = vunpack.c.l.b16 %v1677
        %v3822 = vunpack.c.l.b16 %v1678
        %v3823 = vunpack.c.l.b16 %v1679
        %v3824 = vunpack.c.l.b16 %v1680
        %v3825 = vunpack.c.l.b16 %v1681
        %v3826 = vunpack.c.l.b16 %v1682
        %v3827 = vunpack.c.l.b16 %v1683
        %v3828 = vunpack.c.l.b16 %v1684
        %v3829 = vunpack.c.l.b16 %v1685
        %v3830 = vunpack.c.l.b16 %v1686
        %v3831 = vpack.c.b16 %v2760, %v2759
        %v3832 = vpack.c.b16 %v2762, %v2761
        %v3833 = vpack.c.b16 %v2764, %v2763
        %v3834 = vpack.c.b16 %v2766, %v2765
        %v3835 = vpack.c.b16 %v2768, %v2767
        %v3836 = vpack.c.b16 %v2770, %v2769
        %v3837 = vpack.c.b16 %v2772, %v2771
        %v3838 = vpack.c.b16 %v2774, %v2773
        %v3839 = vpack.c.b16 %v2776, %v2775
        %v3840 = vpack.c.b16 %v2778, %v2777
        %v3841 = vpack.c.b16 %v2780, %v2779
        %v3842 = vpack.c.b16 %v2782, %v2781
        %v3843 = vpack.c.b16 %v2784, %v2783
        %v3844 = vpack.c.b16 %v2786, %v2785
        %v3845 = vpack.c.b16 %v2788, %v2787
        %v3846 = vpack.c.b16 %v2790, %v2789
        %v3847 = vpack.c.b16 %v2792, %v2791
        %v3848 = vpack.c.b16 %v2794, %v2793
        %v3849 = vpack.c.b16 %v2796, %v2795
        %v3850 = vpack.c.b16 %v2798, %v2797
        %v3851 = vpack.c.b16 %v2800, %v2799
        %v3852 = vpack.c.b16 %v2802, %v2801
        %v3853 = vpack.c.b16 %v2804, %v2803
        %v3854 = vpack.c.b16 %v2806, %v2805
        %v3855 = vpack.c.b16 %v2808, %v2807
        %v3856 = vpack.c.b16 %v2810, %v2809
        %v3857 = vpack.c.b16 %v2812, %v2811
        %v3858 = vpack.c.b16 %v2814, %v2813
        %v3859 = vpack.c.b16 %v2816, %v2815
        %v3860 = vpack.c.b16 %v2818, %v2817
        %v3861 = vpack.c.b16 %v2820, %v2819
        %v3862 = vpack.c.b16 %v2822, %v2821
        %v3863 = vpack.c.b16 %v2824, %v2823
        %v3864 = vpack.c.b16 %v2826, %v2825
        %v3865 = vpack.c.b16 %v2828, %v2827
        %v3866 = vpack.c.b16 %v2830, %v2829
        %v3867 = vpack.c.b16 %v2832, %v2831
        %v3868 = vpack.c.b16 %v2834, %v2833
        %v3869 = vpack.c.b16 %v2836, %v2835
        %v3870 = vpack.c.b16 %v2838, %v2837
        %v3871 = vpack.c.b16 %v2840, %v2839
        %v3872 = vpack.c.b16 %v2842, %v2841
        %v3873 = vpack.c.b16 %v2844, %v2843
        %v3874 = vpack.c.b16 %v2846, %v2845
        %v3875 = vpack.c.b16 %v2848, %v2847
        %v3876 = vpack.c.b16 %v2850, %v2849
        %v3877 = vpack.c.b16 %v2852, %v2851
        %v3878 = vpack.c.b16 %v2854, %v2853
        %v3879 = vpack.c.b16 %v2856, %v2855
        %v3880 = vpack.c.b16 %v2858, %v2857
        %v3881 = vpack.c.b16 %v2860, %v2859
        %v3882 = vpack.c.b16 %v2862, %v2861
        %v3883 = vpack.c.b16 %v2864, %v2863
        %v3884 = vpack.c.b16 %v2866, %v2865
        %v3885 = vpack.c.b16 %v2868, %v2867
        %v3886 = vpack.c.b16 %v2870, %v2869
        %v3887 = vpack.c.b16 %v2872, %v2871
        %v3888 = vpack.c.b16 %v2874, %v2873
        %v3889 = vpack.c.b16 %v2876, %v2875
        %v3890 = vpack.c.b16 %v2878, %v2877
        %v3891 = vpack.c.b16 %v2880, %v2879
        %v3892 = vpack.c.b16 %v2882, %v2881
        %v3893 = vpack.c.b16 %v2884, %v2883
        %v3894 = vpack.c.b16 %v2886, %v2885
        %v3895 = vpack.c.b16 %v2888, %v2887
        %v3896 = vpack.c.b16 %v2890, %v2889
        %v3897 = vpack.c.b16 %v2892, %v2891
        %v3898 = vpack.c.b16 %v2894, %v2893
        %v3899 = vpack.c.b16 %v2896, %v2895
        %v3900 = vpack.c.b16 %v2898, %v2897
        %v3901 = vpack.c.b16 %v2900, %v2899
        %v3902 = vpack.c.b16 %v2902, %v2901
        %v3903 = vpack.c.b16 %v2904, %v2903
        %v3904 = vpack.c.b16 %v2906, %v2905
        %v3905 = vpack.c.b16 %v2908, %v2907
        %v3906 = vpack.c.b16 %v2910, %v2909
        %v3907 = vpack.c.b16 %v2912, %v2911
        %v3908 = vpack.c.b16 %v2914, %v2913
        %v3909 = vpack.c.b16 %v2916, %v2915
        %v3910 = vpack.c.b16 %v2918, %v2917
        %v3911 = vpack.c.b16 %v2920, %v2919
        %v3912 = vpack.c.b16 %v2922, %v2921
        %v3913 = vpack.c.b16 %v2924, %v2923
        %v3914 = vpack.c.b16 %v2926, %v2925
        %v3915 = vpack.c.b16 %v2928, %v2927
        %v3916 = vpack.c.b16 %v2930, %v2929
        %v3917 = vpack.c.b16 %v2932, %v2931
        %v3918 = vpack.c.b16 %v2934, %v2933
        %v3919 = vpack.c.b16 %v2936, %v2935
        %v3920 = vpack.c.b16 %v2938, %v2937
        %v3921 = vpack.c.b16 %v2940, %v2939
        %v3922 = vpack.c.b16 %v2942, %v2941
        %v3923 = vpack.c.b16 %v2944, %v2943
        %v3924 = vpack.c.b16 %v2946, %v2945
        %v3925 = vpack.c.b16 %v2948, %v2947
        %v3926 = vpack.c.b16 %v2950, %v2949
        %v3927 = vpack.c.b16 %v2952, %v2951
        %v3928 = vpack.c.b16 %v2954, %v2953
        %v3929 = vpack.c.b16 %v2956, %v2955
        %v3930 = vpack.c.b16 %v2958, %v2957
        %v3931 = vpack.c.b16 %v2960, %v2959
        %v3932 = vpack.c.b16 %v2962, %v2961
        %v3933 = vpack.c.b16 %v2964, %v2963
        %v3934 = vpack.c.b16 %v2966, %v2965
        %v3935 = vpack.c.b16 %v2968, %v2967
        %v3936 = vpack.c.b16 %v2970, %v2969
        %v3937 = vpack.c.b16 %v2972, %v2971
        %v3938 = vpack.c.b16 %v2974, %v2973
        %v3939 = vpack.c.b16 %v2976, %v2975
        %v3940 = vpack.c.b16 %v2978, %v2977
        %v3941 = vpack.c.b16 %v2980, %v2979
        %v3942 = vpack.c.b16 %v2982, %v2981
        %v3943 = vpack.c.b16 %v2984, %v2983
        %v3944 = vpack.c.b16 %v2986, %v2985
        %v3945 = vpack.c.b16 %v2988, %v2987
        %v3946 = vpack.c.b16 %v2990, %v2989
        %v3947 = vpack.c.b16 %v2992, %v2991
        %v3948 = vpack.c.b16 %v2994, %v2993
        %v3949 = vpack.c.b16 %v2996, %v2995
        %v3950 = vpack.c.b16 %v2998, %v2997
        %v3951 = vpack.c.b16 %v3000, %v2999
        %v3952 = vpack.c.b16 %v3002, %v3001
        %v3953 = vpack.c.b16 %v3004, %v3003
        %v3954 = vpack.c.b16 %v3006, %v3005
        %v3955 = vpack.c.b16 %v3008, %v3007
        %v3956 = vpack.c.b16 %v3010, %v3009
        %v3957 = vpack.c.b16 %v3012, %v3011
        %v3958 = vpack.c.b16 %v3014, %v3013
        %v3959 = vpack.c.b16 %v3016, %v3015
        %v3960 = vpack.c.b16 %v3018, %v3017
        %v3961 = vpack.c.b16 %v3020, %v3019
        %v3962 = vpack.c.b16 %v3022, %v3021
        %v3963 = vpack.c.b16 %v3024, %v3023
        %v3964 = vpack.c.b16 %v3026, %v3025
        %v3965 = vpack.c.b16 %v3028, %v3027
        %v3966 = vpack.c.b16 %v3030, %v3029
        %v3967 = vpack.c.b16 %v3032, %v3031
        %v3968 = vpack.c.b16 %v3034, %v3033
        %v3969 = vpack.c.b16 %v3036, %v3035
        %v3970 = vpack.c.b16 %v3038, %v3037
        %v3971 = vpack.c.b16 %v3040, %v3039
        %v3972 = vpack.c.b16 %v3042, %v3041
        %v3973 = vpack.c.b16 %v3044, %v3043
        %v3974 = vpack.c.b16 %v3046, %v3045
        %v3975 = vpack.c.b16 %v3048, %v3047
        %v3976 = vpack.c.b16 %v3050, %v3049
        %v3977 = vpack.c.b16 %v3052, %v3051
        %v3978 = vpack.c.b16 %v3054, %v3053
        %v3979 = vpack.c.b16 %v3056, %v3055
        %v3980 = vpack.c.b16 %v3058, %v3057
        %v3981 = vpack.c.b16 %v3060, %v3059
        %v3982 = vpack.c.b16 %v3062, %v3061
        %v3983 = vpack.c.b16 %v3064, %v3063
        %v3984 = vpack.c.b16 %v3066, %v3065
        %v3985 = vpack.c.b16 %v3068, %v3067
        %v3986 = vpack.c.b16 %v3070, %v3069
        %v3987 = vpack.c.b16 %v3072, %v3071
        %v3988 = vpack.c.b16 %v3074, %v3073
        %v3989 = vpack.c.b16 %v3076, %v3075
        %v3990 = vpack.c.b16 %v3078, %v3077
        %v3991 = vpack.c.b16 %v3080, %v3079
        %v3992 = vpack.c.b16 %v3082, %v3081
        %v3993 = vpack.c.b16 %v3084, %v3083
        %v3994 = vpack.c.b16 %v3086, %v3085
        %v3995 = vpack.c.b16 %v3088, %v3087
        %v3996 = vpack.c.b16 %v3090, %v3089
        %v3997 = vpack.c.b16 %v3092, %v3091
        %v3998 = vpack.c.b16 %v3094, %v3093
        %v3999 = vpack.c.b16 %v3096, %v3095
        %v4000 = vpack.c.b16 %v3098, %v3097
        %v4001 = vpack.c.b16 %v3100, %v3099
        %v4002 = vpack.c.b16 %v3102, %v3101
        %v4003 = vpack.c.b16 %v3104, %v3103
        %v4004 = vpack.c.b16 %v3106, %v3105
        %v4005 = vpack.c.b16 %v3108, %v3107
        %v4006 = vpack.c.b16 %v3110, %v3109
        %v4007 = vpack.c.b16 %v3112, %v3111
        %v4008 = vpack.c.b16 %v3114, %v3113
        %v4009 = vpack.c.b16 %v3116, %v3115
        %v4010 = vpack.c.b16 %v3118, %v3117
        %v4011 = vpack.c.b16 %v3120, %v3119
        %v4012 = vpack.c.b16 %v3122, %v3121
        %v4013 = vpack.c.b16 %v3124, %v3123
        %v4014 = vpack.c.b16 %v3126, %v3125
        %v4015 = vpack.c.b16 %v3128, %v3127
        %v4016 = vpack.c.b16 %v3130, %v3129
        %v4017 = vpack.c.b16 %v3132, %v3131
        %v4018 = vpack.c.b16 %v3134, %v3133
        %v4019 = vpack.c.b16 %v3136, %v3135
        %v4020 = vpack.c.b16 %v3138, %v3137
        %v4021 = vpack.c.b16 %v3140, %v3139
        %v4022 = vpack.c.b16 %v3142, %v3141
        %v4023 = vpack.c.b16 %v3144, %v3143
        %v4024 = vpack.c.b16 %v3146, %v3145
        %v4025 = vpack.c.b16 %v3148, %v3147
        %v4026 = vpack.c.b16 %v3150, %v3149
        %v4027 = vpack.c.b16 %v3152, %v3151
        %v4028 = vpack.c.b16 %v3154, %v3153
        %v4029 = vpack.c.b16 %v3156, %v3155
        %v4030 = vpack.c.b16 %v3158, %v3157
        %v4031 = vpack.c.b16 %v3160, %v3159
        %v4032 = vpack.c.b16 %v3162, %v3161
        %v4033 = vpack.c.b16 %v3164, %v3163
        %v4034 = vpack.c.b16 %v3166, %v3165
        %v4035 = vpack.c.b16 %v3168, %v3167
        %v4036 = vpack.c.b16 %v3170, %v3169
        %v4037 = vpack.c.b16 %v3172, %v3171
        %v4038 = vpack.c.b16 %v3174, %v3173
        %v4039 = vpack.c.b16 %v3176, %v3175
        %v4040 = vpack.c.b16 %v3178, %v3177
        %v4041 = vpack.c.b16 %v3180, %v3179
        %v4042 = vpack.c.b16 %v3182, %v3181
        %v4043 = vpack.c.b16 %v3184, %v3183
        %v4044 = vpack.c.b16 %v3186, %v3185
        %v4045 = vpack.c.b16 %v3188, %v3187
        %v4046 = vpack.c.b16 %v3190, %v3189
        %v4047 = vpack.c.b16 %v3192, %v3191
        %v4048 = vpack.c.b16 %v3194, %v3193
        %v4049 = vpack.c.b16 %v3196, %v3195
        %v4050 = vpack.c.b16 %v3198, %v3197
        %v4051 = vpack.c.b16 %v3200, %v3199
        %v4052 = vpack.c.b16 %v3202, %v3201
        %v4053 = vpack.c.b16 %v3204, %v3203
        %v4054 = vpack.c.b16 %v3206, %v3205
        %v4055 = vpack.c.b16 %v3208, %v3207
        %v4056 = vpack.c.b16 %v3210, %v3209
        %v4057 = vpack.c.b16 %v3212, %v3211
        %v4058 = vpack.c.b16 %v3214, %v3213
        %v4059 = vpack.c.b16 %v3216, %v3215
        %v4060 = vpack.c.b16 %v3218, %v3217
        %v4061 = vpack.c.b16 %v3220, %v3219
        %v4062 = vpack.c.b16 %v3222, %v3221
        %v4063 = vpack.c.b16 %v3224, %v3223
        %v4064 = vpack.c.b16 %v3226, %v3225
        %v4065 = vpack.c.b16 %v3228, %v3227
        %v4066 = vpack.c.b16 %v3230, %v3229
        %v4067 = vpack.c.b16 %v3232, %v3231
        %v4068 = vpack.c.b16 %v3234, %v3233
        %v4069 = vpack.c.b16 %v3236, %v3235
        %v4070 = vpack.c.b16 %v3238, %v3237
        %v4071 = vpack.c.b16 %v3240, %v3239
        %v4072 = vpack.c.b16 %v3242, %v3241
        %v4073 = vpack.c.b16 %v3244, %v3243
        %v4074 = vpack.c.b16 %v3246, %v3245
        %v4075 = vpack.c.b16 %v3248, %v3247
        %v4076 = vpack.c.b16 %v3250, %v3249
        %v4077 = vpack.c.b16 %v3252, %v3251
        %v4078 = vpack.c.b16 %v3254, %v3253
        %v4079 = vpack.c.b16 %v3256, %v3255
        %v4080 = vpack.c.b16 %v3258, %v3257
        %v4081 = vpack.c.b16 %v3260, %v3259
        %v4082 = vpack.c.b16 %v3262, %v3261
        %v4083 = vpack.c.b16 %v3264, %v3263
        %v4084 = vpack.c.b16 %v3266, %v3265
        %v4085 = vpack.c.b16 %v3268, %v3267
        %v4086 = vpack.c.b16 %v3270, %v3269
        %v4087 = vpack.c.b16 %v3272, %v3271
        %v4088 = vpack.c.b16 %v3274, %v3273
        %v4089 = vpack.c.b16 %v3276, %v3275
        %v4090 = vpack.c.b16 %v3278, %v3277
        %v4091 = vpack.c.b16 %v3280, %v3279
        %v4092 = vpack.c.b16 %v3282, %v3281
        %v4093 = vpack.c.b16 %v3284, %v3283
        %v4094 = vpack.c.b16 %v3286, %v3285
        %v4095 = vpack.c.b16 %v3288, %v3287
        %v4096 = vpack.c.b16 %v3290, %v3289
        %v4097 = vpack.c.b16 %v3292, %v3291
        %v4098 = vpack.c.b16 %v3294, %v3293
        %v4099 = vpack.c.b16 %v3296, %v3295
        %v4100 = vpack.c.b16 %v3298, %v3297
        %v4101 = vpack.c.b16 %v3300, %v3299
        %v4102 = vpack.c.b16 %v3302, %v3301
        %v4103 = vpack.c.b16 %v3304, %v3303
        %v4104 = vpack.c.b16 %v3306, %v3305
        %v4105 = vpack.c.b16 %v3308, %v3307
        %v4106 = vpack.c.b16 %v3310, %v3309
        %v4107 = vpack.c.b16 %v3312, %v3311
        %v4108 = vpack.c.b16 %v3314, %v3313
        %v4109 = vpack.c.b16 %v3316, %v3315
        %v4110 = vpack.c.b16 %v3318, %v3317
        %v4111 = vpack.c.b16 %v3320, %v3319
        %v4112 = vpack.c.b16 %v3322, %v3321
        %v4113 = vpack.c.b16 %v3324, %v3323
        %v4114 = vpack.c.b16 %v3326, %v3325
        %v4115 = vpack.c.b16 %v3328, %v3327
        %v4116 = vpack.c.b16 %v3330, %v3329
        %v4117 = vpack.c.b16 %v3332, %v3331
        %v4118 = vpack.c.b16 %v3334, %v3333
        %v4119 = vpack.c.b16 %v3336, %v3335
        %v4120 = vpack.c.b16 %v3338, %v3337
        %v4121 = vpack.c.b16 %v3340, %v3339
        %v4122 = vpack.c.b16 %v3342, %v3341
        %v4123 = vpack.c.b16 %v3344, %v3343
        %v4124 = vpack.c.b16 %v3346, %v3345
        %v4125 = vpack.c.b16 %v3348, %v3347
        %v4126 = vpack.c.b16 %v3350, %v3349
        %v4127 = vpack.c.b16 %v3352, %v3351
        %v4128 = vpack.c.b16 %v3354, %v3353
        %v4129 = vpack.c.b16 %v3356, %v3355
        %v4130 = vpack.c.b16 %v3358, %v3357
        %v4131 = vpack.c.b16 %v3360, %v3359
        %v4132 = vpack.c.b16 %v3362, %v3361
        %v4133 = vpack.c.b16 %v3364, %v3363
        %v4134 = vpack.c.b16 %v3366, %v3365
        %v4135 = vpack.c.b16 %v3368, %v3367
        %v4136 = vpack.c.b16 %v3370, %v3369
        %v4137 = vpack.c.b16 %v3372, %v3371
        %v4138 = vpack.c.b16 %v3374, %v3373
        %v4139 = vpack.c.b16 %v3376, %v3375
        %v4140 = vpack.c.b16 %v3378, %v3377
        %v4141 = vpack.c.b16 %v3380, %v3379
        %v4142 = vpack.c.b16 %v3382, %v3381
        %v4143 = vpack.c.b16 %v3384, %v3383
        %v4144 = vpack.c.b16 %v3386, %v3385
        %v4145 = vpack.c.b16 %v3388, %v3387
        %v4146 = vpack.c.b16 %v3390, %v3389
        %v4147 = vpack.c.b16 %v3392, %v3391
        %v4148 = vpack.c.b16 %v3394, %v3393
        %v4149 = vpack.c.b16 %v3396, %v3395
        %v4150 = vpack.c.b16 %v3398, %v3397
        %v4151 = vpack.c.b16 %v3400, %v3399
        %v4152 = vpack.c.b16 %v3402, %v3401
        %v4153 = vpack.c.b16 %v3404, %v3403
        %v4154 = vpack.c.b16 %v3406, %v3405
        %v4155 = vpack.c.b16 %v3408, %v3407
        %v4156 = vpack.c.b16 %v3410, %v3409
        %v4157 = vpack.c.b16 %v3412, %v3411
        %v4158 = vpack.c.b16 %v3414, %v3413
        %v4159 = vpack.c.b16 %v3416, %v3415
        %v4160 = vpack.c.b16 %v3418, %v3417
        %v4161 = vpack.c.b16 %v3420, %v3419
        %v4162 = vpack.c.b16 %v3422, %v3421
        %v4163 = vpack.c.b16 %v3424, %v3423
        %v4164 = vpack.c.b16 %v3426, %v3425
        %v4165 = vpack.c.b16 %v3428, %v3427
        %v4166 = vpack.c.b16 %v3430, %v3429
        %v4167 = vpack.c.b16 %v3432, %v3431
        %v4168 = vpack.c.b16 %v3434, %v3433
        %v4169 = vpack.c.b16 %v3436, %v3435
        %v4170 = vpack.c.b16 %v3438, %v3437
        %v4171 = vpack.c.b16 %v3440, %v3439
        %v4172 = vpack.c.b16 %v3442, %v3441
        %v4173 = vpack.c.b16 %v3444, %v3443
        %v4174 = vpack.c.b16 %v3446, %v3445
        %v4175 = vpack.c.b16 %v3448, %v3447
        %v4176 = vpack.c.b16 %v3450, %v3449
        %v4177 = vpack.c.b16 %v3452, %v3451
        %v4178 = vpack.c.b16 %v3454, %v3453
        %v4179 = vpack.c.b16 %v3456, %v3455
        %v4180 = vpack.c.b16 %v3458, %v3457
        %v4181 = vpack.c.b16 %v3460, %v3459
        %v4182 = vpack.c.b16 %v3462, %v3461
        %v4183 = vpack.c.b16 %v3464, %v3463
        %v4184 = vpack.c.b16 %v3466, %v3465
        %v4185 = vpack.c.b16 %v3468, %v3467
        %v4186 = vpack.c.b16 %v3470, %v3469
        %v4187 = vpack.c.b16 %v3472, %v3471
        %v4188 = vpack.c.b16 %v3474, %v3473
        %v4189 = vpack.c.b16 %v3476, %v3475
        %v4190 = vpack.c.b16 %v3478, %v3477
        %v4191 = vpack.c.b16 %v3480, %v3479
        %v4192 = vpack.c.b16 %v3482, %v3481
        %v4193 = vpack.c.b16 %v3484, %v3483
        %v4194 = vpack.c.b16 %v3486, %v3485
        %v4195 = vpack.c.b16 %v3488, %v3487
        %v4196 = vpack.c.b16 %v3490, %v3489
        %v4197 = vpack.c.b16 %v3492, %v3491
        %v4198 = vpack.c.b16 %v3494, %v3493
        %v4199 = vpack.c.b16 %v3496, %v3495
        %v4200 = vpack.c.b16 %v3498, %v3497
        %v4201 = vpack.c.b16 %v3500, %v3499
        %v4202 = vpack.c.b16 %v3502, %v3501
        %v4203 = vpack.c.b16 %v3504, %v3503
        %v4204 = vpack.c.b16 %v3506, %v3505
        %v4205 = vpack.c.b16 %v3508, %v3507
        %v4206 = vpack.c.b16 %v3510, %v3509
        %v4207 = vpack.c.b16 %v3512, %v3511
        %v4208 = vpack.c.b16 %v3514, %v3513
        %v4209 = vpack.c.b16 %v3516, %v3515
        %v4210 = vpack.c.b16 %v3518, %v3517
        %v4211 = vpack.c.b16 %v3520, %v3519
        %v4212 = vpack.c.b16 %v3522, %v3521
        %v4213 = vpack.c.b16 %v3524, %v3523
        %v4214 = vpack.c.b16 %v3526, %v3525
        %v4215 = vpack.c.b16 %v3528, %v3527
        %v4216 = vpack.c.b16 %v3530, %v3529
        %v4217 = vpack.c.b16 %v3532, %v3531
        %v4218 = vpack.c.b16 %v3534, %v3533
        %v4219 = vpack.c.b16 %v3536, %v3535
        %v4220 = vpack.c.b16 %v3538, %v3537
        %v4221 = vpack.c.b16 %v3540, %v3539
        %v4222 = vpack.c.b16 %v3542, %v3541
        %v4223 = vpack.c.b16 %v3544, %v3543
        %v4224 = vpack.c.b16 %v3546, %v3545
        %v4225 = vpack.c.b16 %v3548, %v3547
        %v4226 = vpack.c.b16 %v3550, %v3549
        %v4227 = vpack.c.b16 %v3552, %v3551
        %v4228 = vpack.c.b16 %v3554, %v3553
        %v4229 = vpack.c.b16 %v3556, %v3555
        %v4230 = vpack.c.b16 %v3558, %v3557
        %v4231 = vpack.c.b16 %v3560, %v3559
        %v4232 = vpack.c.b16 %v3562, %v3561
        %v4233 = vpack.c.b16 %v3564, %v3563
        %v4234 = vpack.c.b16 %v3566, %v3565
        %v4235 = vpack.c.b16 %v3568, %v3567
        %v4236 = vpack.c.b16 %v3570, %v3569
        %v4237 = vpack.c.b16 %v3572, %v3571
        %v4238 = vpack.c.b16 %v3574, %v3573
        %v4239 = vpack.c.b16 %v3576, %v3575
        %v4240 = vpack.c.b16 %v3578, %v3577
        %v4241 = vpack.c.b16 %v3580, %v3579
        %v4242 = vpack.c.b16 %v3582, %v3581
        %v4243 = vpack.c.b16 %v3584, %v3583
        %v4244 = vpack.c.b16 %v3586, %v3585
        %v4245 = vpack.c.b16 %v3588, %v3587
        %v4246 = vpack.c.b16 %v3590, %v3589
        %v4247 = vpack.c.b16 %v3592, %v3591
        %v4248 = vpack.c.b16 %v3594, %v3593
        %v4249 = vpack.c.b16 %v3596, %v3595
        %v4250 = vpack.c.b16 %v3598, %v3597
        %v4251 = vpack.c.b16 %v3600, %v3599
        %v4252 = vpack.c.b16 %v3602, %v3601
        %v4253 = vpack.c.b16 %v3604, %v3603
        %v4254 = vpack.c.b16 %v3606, %v3605
        %v4255 = vpack.c.b16 %v3608, %v3607
        %v4256 = vpack.c.b16 %v3610, %v3609
        %v4257 = vpack.c.b16 %v3612, %v3611
        %v4258 = vpack.c.b16 %v3614, %v3613
        %v4259 = vpack.c.b16 %v3616, %v3615
        %v4260 = vpack.c.b16 %v3618, %v3617
        %v4261 = vpack.c.b16 %v3620, %v3619
        %v4262 = vpack.c.b16 %v3622, %v3621
        %v4263 = vpack.c.b16 %v3624, %v3623
        %v4264 = vpack.c.b16 %v3626, %v3625
        %v4265 = vpack.c.b16 %v3628, %v3627
        %v4266 = vpack.c.b16 %v3630, %v3629
        %v4267 = vpack.c.b16 %v3632, %v3631
        %v4268 = vpack.c.b16 %v3634, %v3633
        %v4269 = vpack.c.b16 %v3636, %v3635
        %v4270 = vpack.c.b16 %v3638, %v3637
        %v4271 = vpack.c.b16 %v3640, %v3639
        %v4272 = vpack.c.b16 %v3642, %v3641
        %v4273 = vpack.c.b16 %v3644, %v3643
        %v4274 = vpack.c.b16 %v3646, %v3645
        %v4275 = vpack.c.b16 %v3648, %v3647
        %v4276 = vpack.c.b16 %v3650, %v3649
        %v4277 = vpack.c.b16 %v3652, %v3651
        %v4278 = vpack.c.b16 %v3654, %v3653
        %v4279 = vpack.c.b16 %v3656, %v3655
        %v4280 = vpack.c.b16 %v3658, %v3657
        %v4281 = vpack.c.b16 %v3660, %v3659
        %v4282 = vpack.c.b16 %v3662, %v3661
        %v4283 = vpack.c.b16 %v3664, %v3663
        %v4284 = vpack.c.b16 %v3666, %v3665
        %v4285 = vpack.c.b16 %v3668, %v3667
        %v4286 = vpack.c.b16 %v3670, %v3669
        %v4287 = vpack.c.b16 %v3672, %v3671
        %v4288 = vpack.c.b16 %v3674, %v3673
        %v4289 = vpack.c.b16 %v3676, %v3675
        %v4290 = vpack.c.b16 %v3678, %v3677
        %v4291 = vpack.c.b16 %v3680, %v3679
        %v4292 = vpack.c.b16 %v3682, %v3681
        %v4293 = vpack.c.b16 %v3684, %v3683
        %v4294 = vpack.c.b16 %v3686, %v3685
        %v4295 = vpack.c.b16 %v3688, %v3687
        %v4296 = vpack.c.b16 %v3690, %v3689
        %v4297 = vpack.c.b16 %v3692, %v3691
        %v4298 = vpack.c.b16 %v3694, %v3693
        %v4299 = vpack.c.b16 %v3696, %v3695
        %v4300 = vpack.c.b16 %v3698, %v3697
        %v4301 = vpack.c.b16 %v3700, %v3699
        %v4302 = vpack.c.b16 %v3702, %v3701
        %v4303 = vpack.c.b16 %v3704, %v3703
        %v4304 = vpack.c.b16 %v3706, %v3705
        %v4305 = vpack.c.b16 %v3708, %v3707
        %v4306 = vpack.c.b16 %v3710, %v3709
        %v4307 = vpack.c.b16 %v3712, %v3711
        %v4308 = vpack.c.b16 %v3714, %v3713
        %v4309 = vpack.c.b16 %v3716, %v3715
        %v4310 = vpack.c.b16 %v3718, %v3717
        %v4311 = vpack.c.b16 %v3720, %v3719
        %v4312 = vpack.c.b16 %v3722, %v3721
        %v4313 = vpack.c.b16 %v3724, %v3723
        %v4314 = vpack.c.b16 %v3726, %v3725
        %v4315 = vpack.c.b16 %v3728, %v3727
        %v4316 = vpack.c.b16 %v3730, %v3729
        %v4317 = vpack.c.b16 %v3732, %v3731
        %v4318 = vpack.c.b16 %v3734, %v3733
        %v4319 = vpack.c.b16 %v3736, %v3735
        %v4320 = vpack.c.b16 %v3738, %v3737
        %v4321 = vpack.c.b16 %v3740, %v3739
        %v4322 = vpack.c.b16 %v3742, %v3741
        %v4323 = vpack.c.b16 %v3744, %v3743
        %v4324 = vpack.c.b16 %v3746, %v3745
        %v4325 = vpack.c.b16 %v3748, %v3747
        %v4326 = vpack.c.b16 %v3750, %v3749
        %v4327 = vpack.c.b16 %v3752, %v3751
        %v4328 = vpack.c.b16 %v3754, %v3753
        %v4329 = vpack.c.b16 %v3756, %v3755
        %v4330 = vpack.c.b16 %v3758, %v3757
        %v4331 = vpack.c.b16 %v3760, %v3759
        %v4332 = vpack.c.b16 %v3762, %v3761
        %v4333 = vpack.c.b16 %v3764, %v3763
        %v4334 = vpack.c.b16 %v3766, %v3765
        %v4335 = vpack.c.b16 %v3768, %v3767
        %v4336 = vpack.c.b16 %v3770, %v3769
        %v4337 = vpack.c.b16 %v3772, %v3771
        %v4338 = vpack.c.b16 %v3774, %v3773
        %v4339 = vpack.c.b16 %v3776, %v3775
        %v4340 = vpack.c.b16 %v3778, %v3777
        %v4341 = vpack.c.b16 %v3780, %v3779
        %v4342 = vpack.c.b16 %v3782, %v3781
        %v4343 = vpack.c.b16 %v3784, %v3783
        %v4344 = vpack.c.b16 %v3786, %v3785
        %v4345 = vpack.c.b16 %v3788, %v3787
        %v4346 = vpack.c.b16 %v3790, %v3789
        %v4347 = vpack.c.b16 %v3792, %v3791
        %v4348 = vpack.c.b16 %v3794, %v3793
        %v4349 = vpack.c.b16 %v3796, %v3795
        %v4350 = vpack.c.b16 %v3798, %v3797
        %v4351 = vpack.c.b16 %v3800, %v3799
        %v4352 = vpack.c.b16 %v3802, %v3801
        %v4353 = vpack.c.b16 %v3804, %v3803
        %v4354 = vpack.c.b16 %v3806, %v3805
        %v4355 = vpack.c.b16 %v3808, %v3807
        %v4356 = vpack.c.b16 %v3810, %v3809
        %v4357 = vpack.c.b16 %v3812, %v3811
        %v4358 = vpack.c.b16 %v3814, %v3813
        %v4359 = vpack.c.b16 %v3816, %v3815
        %v4360 = vpack.c.b16 %v3818, %v3817
        %v4361 = vpack.c.b16 %v3820, %v3819
        %v4362 = vpack.c.b16 %v3822, %v3821
        %v4363 = vpack.c.b16 %v3824, %v3823
        %v4364 = vpack.c.b16 %v3826, %v3825
        %v4365 = vpack.c.b16 %v3828, %v3827
        %v4366 = vpack.c.b16 %v3830, %v3829
        %4903 = vmatprep.subr.bf16.mxu0 0
        %4904 = vmatpush1.bf16.msra.mxu0 %v3831
        %4905 = vmatprep.subr.bf16.mxu0 0
        %4906 = vmatpush1.bf16.msra.mxu0 %v3832
        %4907 = vmatprep.subr.bf16.mxu0 0
        %4908 = vmatpush1.bf16.msra.mxu0 %v3833
        %4909 = vmatprep.subr.bf16.mxu0 0
        %4910 = vmatpush1.bf16.msra.mxu0 %v3834
        %4911 = vmatprep.subr.bf16.mxu0 0
        %4912 = vmatpush1.bf16.msra.mxu0 %v3835
        %4913 = vmatprep.subr.bf16.mxu0 0
        %4914 = vmatpush1.bf16.msra.mxu0 %v3836
        %4915 = vmatprep.subr.bf16.mxu0 0
        %4916 = vmatpush1.bf16.msra.mxu0 %v3837
        %4917 = vmatprep.subr.bf16.mxu0 0
        %4918 = vmatpush1.bf16.msra.mxu0 %v3838
        %4919 = vmatprep.subr.bf16.mxu0 0
        %4920 = vmatpush1.bf16.msra.mxu0 %v3839
        %4921 = vmatprep.subr.bf16.mxu0 0
        %4922 = vmatpush1.bf16.msra.mxu0 %v3840
        %4923 = vmatprep.subr.bf16.mxu0 0
        %4924 = vmatpush1.bf16.msra.mxu0 %v3841
        %4925 = vmatprep.subr.bf16.mxu0 0
        %4926 = vmatpush1.bf16.msra.mxu0 %v3842
        %4927 = vmatprep.subr.bf16.mxu0 0
        %4928 = vmatpush1.bf16.msra.mxu0 %v3843
        %4929 = vmatprep.subr.bf16.mxu0 0
        %4930 = vmatpush1.bf16.msra.mxu0 %v3844
        %4931 = vmatprep.subr.bf16.mxu0 0
        %4932 = vmatpush1.bf16.msra.mxu0 %v3845
        %4933 = vmatprep.subr.bf16.mxu0 0
        %4934 = vmatpush1.bf16.msra.mxu0 %v3846
        %4935 = vmatprep.mubr.bf16.mxu0 %v549
        %4936 = vmatmul.mubr.bf16.gmra.mrb[0].mxu0 %v548
        %v4937 = vpop.f32.mrb[0].mxu0
        %v4938 = vadd.f32 0.0, %v4937
        %v4939 = vpop.f32.mrb[0].mxu0
        %v4940 = vpop.f32.mrb[0].mxu0
        %v4941 = vpop.f32.mrb[0].mxu0
        %4942 = vdwg.mxu0
        %4943 = vmatprep.subr.bf16.mxu0 0
        %4944 = vmatpush1.bf16.msra.mxu0 %v3847
        %4945 = vmatprep.subr.bf16.mxu0 0
        %4946 = vmatpush1.bf16.msra.mxu0 %v3848
        %4947 = vmatprep.subr.bf16.mxu0 0
        %4948 = vmatpush1.bf16.msra.mxu0 %v3849
        %4949 = vmatprep.subr.bf16.mxu0 0
        %4950 = vmatpush1.bf16.msra.mxu0 %v3850
        %4951 = vmatprep.subr.bf16.mxu0 0
        %4952 = vmatpush1.bf16.msra.mxu0 %v3851
        %4953 = vmatprep.subr.bf16.mxu0 0
        %4954 = vmatpush1.bf16.msra.mxu0 %v3852
        %4955 = vmatprep.subr.bf16.mxu0 0
        %4956 = vmatpush1.bf16.msra.mxu0 %v3853
        %4957 = vmatprep.subr.bf16.mxu0 0
        %4958 = vmatpush1.bf16.msra.mxu0 %v3854
        %4959 = vmatprep.subr.bf16.mxu0 0
        %4960 = vmatpush1.bf16.msra.mxu0 %v3855
        %4961 = vmatprep.subr.bf16.mxu0 0
        %4962 = vmatpush1.bf16.msra.mxu0 %v3856
        %4963 = vmatprep.subr.bf16.mxu0 0
        %4964 = vmatpush1.bf16.msra.mxu0 %v3857
        %4965 = vmatprep.subr.bf16.mxu0 0
        %4966 = vmatpush1.bf16.msra.mxu0 %v3858
        %4967 = vmatprep.subr.bf16.mxu0 0
        %4968 = vmatpush1.bf16.msra.mxu0 %v3859
        %4969 = vmatprep.subr.bf16.mxu0 0
        %4970 = vmatpush1.bf16.msra.mxu0 %v3860
        %4971 = vmatprep.subr.bf16.mxu0 0
        %4972 = vmatpush1.bf16.msra.mxu0 %v3861
        %4973 = vmatprep.subr.bf16.mxu0 0
        %4974 = vmatpush1.bf16.msra.mxu0 %v3862
        %4975 = vmatprep.mubr.bf16.mxu0 %v551
        %4976 = vmatmul.mubr.bf16.gmra.mrb[0].mxu0 %v550
        %v4977 = vpop.f32.mrb[0].mxu0
        %v4978 = vadd.f32 %v4938, %v4977
        %v4979 = vpop.f32.mrb[0].mxu0
        %v4980 = vpop.f32.mrb[0].mxu0
        %v4981 = vpop.f32.mrb[0].mxu0
        %4982 = vdwg.mxu0
        %4983 = vmatprep.subr.bf16.mxu0 0
        %4984 = vmatpush1.bf16.msra.mxu0 %v3863
        %4985 = vmatprep.subr.bf16.mxu0 0
        %4986 = vmatpush1.bf16.msra.mxu0 %v3864
        %4987 = vmatprep.subr.bf16.mxu0 0
        %4988 = vmatpush1.bf16.msra.mxu0 %v3865
        %4989 = vmatprep.subr.bf16.mxu0 0
        %4990 = vmatpush1.bf16.msra.mxu0 %v3866
        %4991 = vmatprep.subr.bf16.mxu0 0
        %4992 = vmatpush1.bf16.msra.mxu0 %v3867
        %4993 = vmatprep.subr.bf16.mxu0 0
        %4994 = vmatpush1.bf16.msra.mxu0 %v3868
        %4995 = vmatprep.subr.bf16.mxu0 0
        %4996 = vmatpush1.bf16.msra.mxu0 %v3869
        %4997 = vmatprep.subr.bf16.mxu0 0
        %4998 = vmatpush1.bf16.msra.mxu0 %v3870
        %4999 = vmatprep.subr.bf16.mxu0 0
        %5000 = vmatpush1.bf16.msra.mxu0 %v3871
        %5001 = vmatprep.subr.bf16.mxu0 0
        %5002 = vmatpush1.bf16.msra.mxu0 %v3872
        %5003 = vmatprep.subr.bf16.mxu0 0
        %5004 = vmatpush1.bf16.msra.mxu0 %v3873
        %5005 = vmatprep.subr.bf16.mxu0 0
        %5006 = vmatpush1.bf16.msra.mxu0 %v3874
        %5007 = vmatprep.subr.bf16.mxu0 0
        %5008 = vmatpush1.bf16.msra.mxu0 %v3875
        %5009 = vmatprep.subr.bf16.mxu0 0
        %5010 = vmatpush1.bf16.msra.mxu0 %v3876
        %5011 = vmatprep.subr.bf16.mxu0 0
        %5012 = vmatpush1.bf16.msra.mxu0 %v3877
        %5013 = vmatprep.subr.bf16.mxu0 0
        %5014 = vmatpush1.bf16.msra.mxu0 %v3878
        %5015 = vmatprep.mubr.bf16.mxu0 %v553
        %5016 = vmatmul.mubr.bf16.gmra.mrb[0].mxu0 %v552
        %v5017 = vpop.f32.mrb[0].mxu0
        %v5018 = vadd.f32 %v4978, %v5017
        %v5019 = vpop.f32.mrb[0].mxu0
        %v5020 = vpop.f32.mrb[0].mxu0
        %v5021 = vpop.f32.mrb[0].mxu0
        %5022 = vdwg.mxu0
        %5023 = vmatprep.subr.bf16.mxu0 0
        %5024 = vmatpush1.bf16.msra.mxu0 %v3879
        %5025 = vmatprep.subr.bf16.mxu0 0
        %5026 = vmatpush1.bf16.msra.mxu0 %v3880
        %5027 = vmatprep.subr.bf16.mxu0 0
        %5028 = vmatpush1.bf16.msra.mxu0 %v3881
        %5029 = vmatprep.subr.bf16.mxu0 0
        %5030 = vmatpush1.bf16.msra.mxu0 %v3882
        %5031 = vmatprep.subr.bf16.mxu0 0
        %5032 = vmatpush1.bf16.msra.mxu0 %v3883
        %5033 = vmatprep.subr.bf16.mxu0 0
        %5034 = vmatpush1.bf16.msra.mxu0 %v3884
        %5035 = vmatprep.subr.bf16.mxu0 0
        %5036 = vmatpush1.bf16.msra.mxu0 %v3885
        %5037 = vmatprep.subr.bf16.mxu0 0
        %5038 = vmatpush1.bf16.msra.mxu0 %v3886
        %5039 = vmatprep.subr.bf16.mxu0 0
        %5040 = vmatpush1.bf16.msra.mxu0 %v3887
        %5041 = vmatprep.subr.bf16.mxu0 0
        %5042 = vmatpush1.bf16.msra.mxu0 %v3888
        %5043 = vmatprep.subr.bf16.mxu0 0
        %5044 = vmatpush1.bf16.msra.mxu0 %v3889
        %5045 = vmatprep.subr.bf16.mxu0 0
        %5046 = vmatpush1.bf16.msra.mxu0 %v3890
        %5047 = vmatprep.subr.bf16.mxu0 0
        %5048 = vmatpush1.bf16.msra.mxu0 %v3891
        %5049 = vmatprep.subr.bf16.mxu0 0
        %5050 = vmatpush1.bf16.msra.mxu0 %v3892
        %5051 = vmatprep.subr.bf16.mxu0 0
        %5052 = vmatpush1.bf16.msra.mxu0 %v3893
        %5053 = vmatprep.subr.bf16.mxu0 0
        %5054 = vmatpush1.bf16.msra.mxu0 %v3894
        %5055 = vmatprep.mubr.bf16.mxu0 %v555
        %5056 = vmatmul.mubr.bf16.gmra.mrb[0].mxu0 %v554
        %v5057 = vpop.f32.mrb[0].mxu0
        %v5058 = vadd.f32 %v5018, %v5057
        %v5059 = vpop.f32.mrb[0].mxu0
        %v5060 = vpop.f32.mrb[0].mxu0
        %v5061 = vpop.f32.mrb[0].mxu0
        %5062 = vdwg.mxu0
        %5063 = vmatprep.subr.bf16.mxu0 0
        %5064 = vmatpush1.bf16.msra.mxu0 %v3895
        %5065 = vmatprep.subr.bf16.mxu0 0
        %5066 = vmatpush1.bf16.msra.mxu0 %v3896
        %5067 = vmatprep.subr.bf16.mxu0 0
        %5068 = vmatpush1.bf16.msra.mxu0 %v3897
        %5069 = vmatprep.subr.bf16.mxu0 0
        %5070 = vmatpush1.bf16.msra.mxu0 %v3898
        %5071 = vmatprep.subr.bf16.mxu0 0
        %5072 = vmatpush1.bf16.msra.mxu0 %v3899
        %5073 = vmatprep.subr.bf16.mxu0 0
        %5074 = vmatpush1.bf16.msra.mxu0 %v3900
        %5075 = vmatprep.subr.bf16.mxu0 0
        %5076 = vmatpush1.bf16.msra.mxu0 %v3901
        %5077 = vmatprep.subr.bf16.mxu0 0
        %5078 = vmatpush1.bf16.msra.mxu0 %v3902
        %5079 = vmatprep.subr.bf16.mxu0 0
        %5080 = vmatpush1.bf16.msra.mxu0 %v3903
        %5081 = vmatprep.subr.bf16.mxu0 0
        %5082 = vmatpush1.bf16.msra.mxu0 %v3904
        %5083 = vmatprep.subr.bf16.mxu0 0
        %5084 = vmatpush1.bf16.msra.mxu0 %v3905
        %5085 = vmatprep.subr.bf16.mxu0 0
        %5086 = vmatpush1.bf16.msra.mxu0 %v3906
        %5087 = vmatprep.subr.bf16.mxu0 0
        %5088 = vmatpush1.bf16.msra.mxu0 %v3907
        %5089 = vmatprep.subr.bf16.mxu0 0
        %5090 = vmatpush1.bf16.msra.mxu0 %v3908
        %5091 = vmatprep.subr.bf16.mxu0 0
        %5092 = vmatpush1.bf16.msra.mxu0 %v3909
        %5093 = vmatprep.subr.bf16.mxu0 0
        %5094 = vmatpush1.bf16.msra.mxu0 %v3910
        %5095 = vmatprep.mubr.bf16.mxu0 %v557
        %5096 = vmatmul.mubr.bf16.gmra.mrb[0].mxu0 %v556
        %v5097 = vpop.f32.mrb[0].mxu0
        %v5098 = vadd.f32 %v5058, %v5097
        %v5099 = vpop.f32.mrb[0].mxu0
        %v5100 = vpop.f32.mrb[0].mxu0
        %v5101 = vpop.f32.mrb[0].mxu0
        %5102 = vdwg.mxu0
        %5103 = vmatprep.subr.bf16.mxu0 0
        %5104 = vmatpush1.bf16.msra.mxu0 %v3911
        %5105 = vmatprep.subr.bf16.mxu0 0
        %5106 = vmatpush1.bf16.msra.mxu0 %v3912
        %5107 = vmatprep.subr.bf16.mxu0 0
        %5108 = vmatpush1.bf16.msra.mxu0 %v3913
        %5109 = vmatprep.subr.bf16.mxu0 0
        %5110 = vmatpush1.bf16.msra.mxu0 %v3914
        %5111 = vmatprep.subr.bf16.mxu0 0
        %5112 = vmatpush1.bf16.msra.mxu0 %v3915
        %5113 = vmatprep.subr.bf16.mxu0 0
        %5114 = vmatpush1.bf16.msra.mxu0 %v3916
        %5115 = vmatprep.subr.bf16.mxu0 0
        %5116 = vmatpush1.bf16.msra.mxu0 %v3917
        %5117 = vmatprep.subr.bf16.mxu0 0
        %5118 = vmatpush1.bf16.msra.mxu0 %v3918
        %5119 = vmatprep.subr.bf16.mxu0 0
        %5120 = vmatpush1.bf16.msra.mxu0 %v3919
        %5121 = vmatprep.subr.bf16.mxu0 0
        %5122 = vmatpush1.bf16.msra.mxu0 %v3920
        %5123 = vmatprep.subr.bf16.mxu0 0
        %5124 = vmatpush1.bf16.msra.mxu0 %v3921
        %5125 = vmatprep.subr.bf16.mxu0 0
        %5126 = vmatpush1.bf16.msra.mxu0 %v3922
        %5127 = vmatprep.subr.bf16.mxu0 0
        %5128 = vmatpush1.bf16.msra.mxu0 %v3923
        %5129 = vmatprep.subr.bf16.mxu0 0
        %5130 = vmatpush1.bf16.msra.mxu0 %v3924
        %5131 = vmatprep.subr.bf16.mxu0 0
        %5132 = vmatpush1.bf16.msra.mxu0 %v3925
        %5133 = vmatprep.subr.bf16.mxu0 0
        %5134 = vmatpush1.bf16.msra.mxu0 %v3926
        %5135 = vmatprep.mubr.bf16.mxu0 %v559
        %5136 = vmatmul.mubr.bf16.gmra.mrb[0].mxu0 %v558
        %v5137 = vpop.f32.mrb[0].mxu0
        %v5138 = vadd.f32 %v5098, %v5137
        %v5139 = vpop.f32.mrb[0].mxu0
        %v5140 = vpop.f32.mrb[0].mxu0
        %v5141 = vpop.f32.mrb[0].mxu0
        %5142 = vdwg.mxu0
        %5143 = vmatprep.subr.bf16.mxu0 0
        %5144 = vmatpush1.bf16.msra.mxu0 %v3927
        %5145 = vmatprep.subr.bf16.mxu0 0
        %5146 = vmatpush1.bf16.msra.mxu0 %v3928
        %5147 = vmatprep.subr.bf16.mxu0 0
        %5148 = vmatpush1.bf16.msra.mxu0 %v3929
        %5149 = vmatprep.subr.bf16.mxu0 0
        %5150 = vmatpush1.bf16.msra.mxu0 %v3930
        %5151 = vmatprep.subr.bf16.mxu0 0
        %5152 = vmatpush1.bf16.msra.mxu0 %v3931
        %5153 = vmatprep.subr.bf16.mxu0 0
        %5154 = vmatpush1.bf16.msra.mxu0 %v3932
        %5155 = vmatprep.subr.bf16.mxu0 0
        %5156 = vmatpush1.bf16.msra.mxu0 %v3933
        %5157 = vmatprep.subr.bf16.mxu0 0
        %5158 = vmatpush1.bf16.msra.mxu0 %v3934
        %5159 = vmatprep.subr.bf16.mxu0 0
        %5160 = vmatpush1.bf16.msra.mxu0 %v3935
        %5161 = vmatprep.subr.bf16.mxu0 0
        %5162 = vmatpush1.bf16.msra.mxu0 %v3936
        %5163 = vmatprep.subr.bf16.mxu0 0
        %5164 = vmatpush1.bf16.msra.mxu0 %v3937
        %5165 = vmatprep.subr.bf16.mxu0 0
        %5166 = vmatpush1.bf16.msra.mxu0 %v3938
        %5167 = vmatprep.subr.bf16.mxu0 0
        %5168 = vmatpush1.bf16.msra.mxu0 %v3939
        %5169 = vmatprep.subr.bf16.mxu0 0
        %5170 = vmatpush1.bf16.msra.mxu0 %v3940
        %5171 = vmatprep.subr.bf16.mxu0 0
        %5172 = vmatpush1.bf16.msra.mxu0 %v3941
        %5173 = vmatprep.subr.bf16.mxu0 0
        %5174 = vmatpush1.bf16.msra.mxu0 %v3942
        %5175 = vmatprep.mubr.bf16.mxu0 %v561
        %5176 = vmatmul.mubr.bf16.gmra.mrb[0].mxu0 %v560
        %v5177 = vpop.f32.mrb[0].mxu0
        %v5178 = vadd.f32 %v5138, %v5177
        %v5179 = vpop.f32.mrb[0].mxu0
        %v5180 = vpop.f32.mrb[0].mxu0
        %v5181 = vpop.f32.mrb[0].mxu0
        %5182 = vdwg.mxu0
        %5183 = vmatprep.subr.bf16.mxu0 0
        %5184 = vmatpush1.bf16.msra.mxu0 %v3943
        %5185 = vmatprep.subr.bf16.mxu0 0
        %5186 = vmatpush1.bf16.msra.mxu0 %v3944
        %5187 = vmatprep.subr.bf16.mxu0 0
        %5188 = vmatpush1.bf16.msra.mxu0 %v3945
        %5189 = vmatprep.subr.bf16.mxu0 0
        %5190 = vmatpush1.bf16.msra.mxu0 %v3946
        %5191 = vmatprep.subr.bf16.mxu0 0
        %5192 = vmatpush1.bf16.msra.mxu0 %v3947
        %5193 = vmatprep.subr.bf16.mxu0 0
        %5194 = vmatpush1.bf16.msra.mxu0 %v3948
        %5195 = vmatprep.subr.bf16.mxu0 0
        %5196 = vmatpush1.bf16.msra.mxu0 %v3949
        %5197 = vmatprep.subr.bf16.mxu0 0
        %5198 = vmatpush1.bf16.msra.mxu0 %v3950
        %5199 = vmatprep.subr.bf16.mxu0 0
        %5200 = vmatpush1.bf16.msra.mxu0 %v3951
        %5201 = vmatprep.subr.bf16.mxu0 0
        %5202 = vmatpush1.bf16.msra.mxu0 %v3952
        %5203 = vmatprep.subr.bf16.mxu0 0
        %5204 = vmatpush1.bf16.msra.mxu0 %v3953
        %5205 = vmatprep.subr.bf16.mxu0 0
        %5206 = vmatpush1.bf16.msra.mxu0 %v3954
        %5207 = vmatprep.subr.bf16.mxu0 0
        %5208 = vmatpush1.bf16.msra.mxu0 %v3955
        %5209 = vmatprep.subr.bf16.mxu0 0
        %5210 = vmatpush1.bf16.msra.mxu0 %v3956
        %5211 = vmatprep.subr.bf16.mxu0 0
        %5212 = vmatpush1.bf16.msra.mxu0 %v3957
        %5213 = vmatprep.subr.bf16.mxu0 0
        %5214 = vmatpush1.bf16.msra.mxu0 %v3958
        %5215 = vmatprep.mubr.bf16.mxu0 %v563
        %5216 = vmatmul.mubr.bf16.gmra.mrb[0].mxu0 %v562
        %v5217 = vpop.f32.mrb[0].mxu0
        %v5218 = vadd.f32 %v5178, %v5217
        %v5219 = vpop.f32.mrb[0].mxu0
        %v5220 = vpop.f32.mrb[0].mxu0
        %v5221 = vpop.f32.mrb[0].mxu0
        %5222 = vdwg.mxu0
        %5223 = vmatprep.subr.bf16.mxu0 0
        %5224 = vmatpush1.bf16.msra.mxu0 %v3959
        %5225 = vmatprep.subr.bf16.mxu0 0
        %5226 = vmatpush1.bf16.msra.mxu0 %v3960
        %5227 = vmatprep.subr.bf16.mxu0 0
        %5228 = vmatpush1.bf16.msra.mxu0 %v3961
        %5229 = vmatprep.subr.bf16.mxu0 0
        %5230 = vmatpush1.bf16.msra.mxu0 %v3962
        %5231 = vmatprep.subr.bf16.mxu0 0
        %5232 = vmatpush1.bf16.msra.mxu0 %v3963
        %5233 = vmatprep.subr.bf16.mxu0 0
        %5234 = vmatpush1.bf16.msra.mxu0 %v3964
        %5235 = vmatprep.subr.bf16.mxu0 0
        %5236 = vmatpush1.bf16.msra.mxu0 %v3965
        %5237 = vmatprep.subr.bf16.mxu0 0
        %5238 = vmatpush1.bf16.msra.mxu0 %v3966
        %5239 = vmatprep.subr.bf16.mxu0 0
        %5240 = vmatpush1.bf16.msra.mxu0 %v3967
        %5241 = vmatprep.subr.bf16.mxu0 0
        %5242 = vmatpush1.bf16.msra.mxu0 %v3968
        %5243 = vmatprep.subr.bf16.mxu0 0
        %5244 = vmatpush1.bf16.msra.mxu0 %v3969
        %5245 = vmatprep.subr.bf16.mxu0 0
        %5246 = vmatpush1.bf16.msra.mxu0 %v3970
        %5247 = vmatprep.subr.bf16.mxu0 0
        %5248 = vmatpush1.bf16.msra.mxu0 %v3971
        %5249 = vmatprep.subr.bf16.mxu0 0
        %5250 = vmatpush1.bf16.msra.mxu0 %v3972
        %5251 = vmatprep.subr.bf16.mxu0 0
        %5252 = vmatpush1.bf16.msra.mxu0 %v3973
        %5253 = vmatprep.subr.bf16.mxu0 0
        %5254 = vmatpush1.bf16.msra.mxu0 %v3974
        %5255 = vmatprep.mubr.bf16.mxu0 %v565
        %5256 = vmatmul.mubr.bf16.gmra.mrb[0].mxu0 %v564
        %v5257 = vpop.f32.mrb[0].mxu0
        %v5258 = vadd.f32 %v5218, %v5257
        %v5259 = vpop.f32.mrb[0].mxu0
        %v5260 = vpop.f32.mrb[0].mxu0
        %v5261 = vpop.f32.mrb[0].mxu0
        %5262 = vdwg.mxu0
        %5263 = vmatprep.subr.bf16.mxu0 0
        %5264 = vmatpush1.bf16.msra.mxu0 %v3975
        %5265 = vmatprep.subr.bf16.mxu0 0
        %5266 = vmatpush1.bf16.msra.mxu0 %v3976
        %5267 = vmatprep.subr.bf16.mxu0 0
        %5268 = vmatpush1.bf16.msra.mxu0 %v3977
        %5269 = vmatprep.subr.bf16.mxu0 0
        %5270 = vmatpush1.bf16.msra.mxu0 %v3978
        %5271 = vmatprep.subr.bf16.mxu0 0
        %5272 = vmatpush1.bf16.msra.mxu0 %v3979
        %5273 = vmatprep.subr.bf16.mxu0 0
        %5274 = vmatpush1.bf16.msra.mxu0 %v3980
        %5275 = vmatprep.subr.bf16.mxu0 0
        %5276 = vmatpush1.bf16.msra.mxu0 %v3981
        %5277 = vmatprep.subr.bf16.mxu0 0
        %5278 = vmatpush1.bf16.msra.mxu0 %v3982
        %5279 = vmatprep.subr.bf16.mxu0 0
        %5280 = vmatpush1.bf16.msra.mxu0 %v3983
        %5281 = vmatprep.subr.bf16.mxu0 0
        %5282 = vmatpush1.bf16.msra.mxu0 %v3984
        %5283 = vmatprep.subr.bf16.mxu0 0
        %5284 = vmatpush1.bf16.msra.mxu0 %v3985
        %5285 = vmatprep.subr.bf16.mxu0 0
        %5286 = vmatpush1.bf16.msra.mxu0 %v3986
        %5287 = vmatprep.subr.bf16.mxu0 0
        %5288 = vmatpush1.bf16.msra.mxu0 %v3987
        %5289 = vmatprep.subr.bf16.mxu0 0
        %5290 = vmatpush1.bf16.msra.mxu0 %v3988
        %5291 = vmatprep.subr.bf16.mxu0 0
        %5292 = vmatpush1.bf16.msra.mxu0 %v3989
        %5293 = vmatprep.subr.bf16.mxu0 0
        %5294 = vmatpush1.bf16.msra.mxu0 %v3990
        %5295 = vmatprep.mubr.bf16.mxu0 %v567
        %5296 = vmatmul.mubr.bf16.gmra.mrb[0].mxu0 %v566
        %v5297 = vpop.f32.mrb[0].mxu0
        %v5298 = vadd.f32 %v5258, %v5297
        %v5299 = vpop.f32.mrb[0].mxu0
        %v5300 = vpop.f32.mrb[0].mxu0
        %v5301 = vpop.f32.mrb[0].mxu0
        %5302 = vdwg.mxu0
        %5303 = vmatprep.subr.bf16.mxu0 0
        %5304 = vmatpush1.bf16.msra.mxu0 %v3991
        %5305 = vmatprep.subr.bf16.mxu0 0
        %5306 = vmatpush1.bf16.msra.mxu0 %v3992
        %5307 = vmatprep.subr.bf16.mxu0 0
        %5308 = vmatpush1.bf16.msra.mxu0 %v3993
        %5309 = vmatprep.subr.bf16.mxu0 0
        %5310 = vmatpush1.bf16.msra.mxu0 %v3994
        %5311 = vmatprep.subr.bf16.mxu0 0
        %5312 = vmatpush1.bf16.msra.mxu0 %v3995
        %5313 = vmatprep.subr.bf16.mxu0 0
        %5314 = vmatpush1.bf16.msra.mxu0 %v3996
        %5315 = vmatprep.subr.bf16.mxu0 0
        %5316 = vmatpush1.bf16.msra.mxu0 %v3997
        %5317 = vmatprep.subr.bf16.mxu0 0
        %5318 = vmatpush1.bf16.msra.mxu0 %v3998
        %5319 = vmatprep.subr.bf16.mxu0 0
        %5320 = vmatpush1.bf16.msra.mxu0 %v3999
        %5321 = vmatprep.subr.bf16.mxu0 0
        %5322 = vmatpush1.bf16.msra.mxu0 %v4000
        %5323 = vmatprep.subr.bf16.mxu0 0
        %5324 = vmatpush1.bf16.msra.mxu0 %v4001
        %5325 = vmatprep.subr.bf16.mxu0 0
        %5326 = vmatpush1.bf16.msra.mxu0 %v4002
        %5327 = vmatprep.subr.bf16.mxu0 0
        %5328 = vmatpush1.bf16.msra.mxu0 %v4003
        %5329 = vmatprep.subr.bf16.mxu0 0
        %5330 = vmatpush1.bf16.msra.mxu0 %v4004
        %5331 = vmatprep.subr.bf16.mxu0 0
        %5332 = vmatpush1.bf16.msra.mxu0 %v4005
        %5333 = vmatprep.subr.bf16.mxu0 0
        %5334 = vmatpush1.bf16.msra.mxu0 %v4006
        %5335 = vmatprep.mubr.bf16.mxu0 %v569
        %5336 = vmatmul.mubr.bf16.gmra.mrb[0].mxu0 %v568
        %v5337 = vpop.f32.mrb[0].mxu0
        %v5338 = vadd.f32 %v5298, %v5337
        %v5339 = vpop.f32.mrb[0].mxu0
        %v5340 = vpop.f32.mrb[0].mxu0
        %v5341 = vpop.f32.mrb[0].mxu0
        %5342 = vdwg.mxu0
        %5343 = vmatprep.subr.bf16.mxu0 0
        %5344 = vmatpush1.bf16.msra.mxu0 %v4007
        %5345 = vmatprep.subr.bf16.mxu0 0
        %5346 = vmatpush1.bf16.msra.mxu0 %v4008
        %5347 = vmatprep.subr.bf16.mxu0 0
        %5348 = vmatpush1.bf16.msra.mxu0 %v4009
        %5349 = vmatprep.subr.bf16.mxu0 0
        %5350 = vmatpush1.bf16.msra.mxu0 %v4010
        %5351 = vmatprep.subr.bf16.mxu0 0
        %5352 = vmatpush1.bf16.msra.mxu0 %v4011
        %5353 = vmatprep.subr.bf16.mxu0 0
        %5354 = vmatpush1.bf16.msra.mxu0 %v4012
        %5355 = vmatprep.subr.bf16.mxu0 0
        %5356 = vmatpush1.bf16.msra.mxu0 %v4013
        %5357 = vmatprep.subr.bf16.mxu0 0
        %5358 = vmatpush1.bf16.msra.mxu0 %v4014
        %5359 = vmatprep.subr.bf16.mxu0 0
        %5360 = vmatpush1.bf16.msra.mxu0 %v4015
        %5361 = vmatprep.subr.bf16.mxu0 0
        %5362 = vmatpush1.bf16.msra.mxu0 %v4016
        %5363 = vmatprep.subr.bf16.mxu0 0
        %5364 = vmatpush1.bf16.msra.mxu0 %v4017
        %5365 = vmatprep.subr.bf16.mxu0 0
        %5366 = vmatpush1.bf16.msra.mxu0 %v4018
        %5367 = vmatprep.subr.bf16.mxu0 0
        %5368 = vmatpush1.bf16.msra.mxu0 %v4019
        %5369 = vmatprep.subr.bf16.mxu0 0
        %5370 = vmatpush1.bf16.msra.mxu0 %v4020
        %5371 = vmatprep.subr.bf16.mxu0 0
        %5372 = vmatpush1.bf16.msra.mxu0 %v4021
        %5373 = vmatprep.subr.bf16.mxu0 0
        %5374 = vmatpush1.bf16.msra.mxu0 %v4022
        %5375 = vmatprep.mubr.bf16.mxu0 %v571
        %5376 = vmatmul.mubr.bf16.gmra.mrb[0].mxu0 %v570
        %v5377 = vpop.f32.mrb[0].mxu0
        %v5378 = vadd.f32 %v5338, %v5377
        %v5379 = vpop.f32.mrb[0].mxu0
        %v5380 = vpop.f32.mrb[0].mxu0
        %v5381 = vpop.f32.mrb[0].mxu0
        %5382 = vdwg.mxu0
        %5383 = vmatprep.subr.bf16.mxu0 0
        %5384 = vmatpush1.bf16.msra.mxu0 %v4023
        %5385 = vmatprep.subr.bf16.mxu0 0
        %5386 = vmatpush1.bf16.msra.mxu0 %v4024
        %5387 = vmatprep.subr.bf16.mxu0 0
        %5388 = vmatpush1.bf16.msra.mxu0 %v4025
        %5389 = vmatprep.subr.bf16.mxu0 0
        %5390 = vmatpush1.bf16.msra.mxu0 %v4026
        %5391 = vmatprep.subr.bf16.mxu0 0
        %5392 = vmatpush1.bf16.msra.mxu0 %v4027
        %5393 = vmatprep.subr.bf16.mxu0 0
        %5394 = vmatpush1.bf16.msra.mxu0 %v4028
        %5395 = vmatprep.subr.bf16.mxu0 0
        %5396 = vmatpush1.bf16.msra.mxu0 %v4029
        %5397 = vmatprep.subr.bf16.mxu0 0
        %5398 = vmatpush1.bf16.msra.mxu0 %v4030
        %5399 = vmatprep.subr.bf16.mxu0 0
        %5400 = vmatpush1.bf16.msra.mxu0 %v4031
        %5401 = vmatprep.subr.bf16.mxu0 0
        %5402 = vmatpush1.bf16.msra.mxu0 %v4032
        %5403 = vmatprep.subr.bf16.mxu0 0
        %5404 = vmatpush1.bf16.msra.mxu0 %v4033
        %5405 = vmatprep.subr.bf16.mxu0 0
        %5406 = vmatpush1.bf16.msra.mxu0 %v4034
        %5407 = vmatprep.subr.bf16.mxu0 0
        %5408 = vmatpush1.bf16.msra.mxu0 %v4035
        %5409 = vmatprep.subr.bf16.mxu0 0
        %5410 = vmatpush1.bf16.msra.mxu0 %v4036
        %5411 = vmatprep.subr.bf16.mxu0 0
        %5412 = vmatpush1.bf16.msra.mxu0 %v4037
        %5413 = vmatprep.subr.bf16.mxu0 0
        %5414 = vmatpush1.bf16.msra.mxu0 %v4038
        %5415 = vmatprep.mubr.bf16.mxu0 %v573
        %5416 = vmatmul.mubr.bf16.gmra.mrb[0].mxu0 %v572
        %v5417 = vpop.f32.mrb[0].mxu0
        %v5418 = vadd.f32 %v5378, %v5417
        %v5419 = vpop.f32.mrb[0].mxu0
        %v5420 = vpop.f32.mrb[0].mxu0
        %v5421 = vpop.f32.mrb[0].mxu0
        %5422 = vdwg.mxu0
        %5423 = vmatprep.subr.bf16.mxu0 0
        %5424 = vmatpush1.bf16.msra.mxu0 %v4039
        %5425 = vmatprep.subr.bf16.mxu0 0
        %5426 = vmatpush1.bf16.msra.mxu0 %v4040
        %5427 = vmatprep.subr.bf16.mxu0 0
        %5428 = vmatpush1.bf16.msra.mxu0 %v4041
        %5429 = vmatprep.subr.bf16.mxu0 0
        %5430 = vmatpush1.bf16.msra.mxu0 %v4042
        %5431 = vmatprep.subr.bf16.mxu0 0
        %5432 = vmatpush1.bf16.msra.mxu0 %v4043
        %5433 = vmatprep.subr.bf16.mxu0 0
        %5434 = vmatpush1.bf16.msra.mxu0 %v4044
        %5435 = vmatprep.subr.bf16.mxu0 0
        %5436 = vmatpush1.bf16.msra.mxu0 %v4045
        %5437 = vmatprep.subr.bf16.mxu0 0
        %5438 = vmatpush1.bf16.msra.mxu0 %v4046
        %5439 = vmatprep.subr.bf16.mxu0 0
        %5440 = vmatpush1.bf16.msra.mxu0 %v4047
        %5441 = vmatprep.subr.bf16.mxu0 0
        %5442 = vmatpush1.bf16.msra.mxu0 %v4048
        %5443 = vmatprep.subr.bf16.mxu0 0
        %5444 = vmatpush1.bf16.msra.mxu0 %v4049
        %5445 = vmatprep.subr.bf16.mxu0 0
        %5446 = vmatpush1.bf16.msra.mxu0 %v4050
        %5447 = vmatprep.subr.bf16.mxu0 0
        %5448 = vmatpush1.bf16.msra.mxu0 %v4051
        %5449 = vmatprep.subr.bf16.mxu0 0
        %5450 = vmatpush1.bf16.msra.mxu0 %v4052
        %5451 = vmatprep.subr.bf16.mxu0 0
        %5452 = vmatpush1.bf16.msra.mxu0 %v4053
        %5453 = vmatprep.subr.bf16.mxu0 0
        %5454 = vmatpush1.bf16.msra.mxu0 %v4054
        %5455 = vmatprep.mubr.bf16.mxu0 %v575
        %5456 = vmatmul.mubr.bf16.gmra.mrb[0].mxu0 %v574
        %v5457 = vpop.f32.mrb[0].mxu0
        %v5458 = vadd.f32 %v5418, %v5457
        %v5459 = vpop.f32.mrb[0].mxu0
        %v5460 = vpop.f32.mrb[0].mxu0
        %v5461 = vpop.f32.mrb[0].mxu0
        %5462 = vdwg.mxu0
        %5463 = vmatprep.subr.bf16.mxu0 0
        %5464 = vmatpush1.bf16.msra.mxu0 %v4055
        %5465 = vmatprep.subr.bf16.mxu0 0
        %5466 = vmatpush1.bf16.msra.mxu0 %v4056
        %5467 = vmatprep.subr.bf16.mxu0 0
        %5468 = vmatpush1.bf16.msra.mxu0 %v4057
        %5469 = vmatprep.subr.bf16.mxu0 0
        %5470 = vmatpush1.bf16.msra.mxu0 %v4058
        %5471 = vmatprep.subr.bf16.mxu0 0
        %5472 = vmatpush1.bf16.msra.mxu0 %v4059
        %5473 = vmatprep.subr.bf16.mxu0 0
        %5474 = vmatpush1.bf16.msra.mxu0 %v4060
        %5475 = vmatprep.subr.bf16.mxu0 0
        %5476 = vmatpush1.bf16.msra.mxu0 %v4061
        %5477 = vmatprep.subr.bf16.mxu0 0
        %5478 = vmatpush1.bf16.msra.mxu0 %v4062
        %5479 = vmatprep.subr.bf16.mxu0 0
        %5480 = vmatpush1.bf16.msra.mxu0 %v4063
        %5481 = vmatprep.subr.bf16.mxu0 0
        %5482 = vmatpush1.bf16.msra.mxu0 %v4064
        %5483 = vmatprep.subr.bf16.mxu0 0
        %5484 = vmatpush1.bf16.msra.mxu0 %v4065
        %5485 = vmatprep.subr.bf16.mxu0 0
        %5486 = vmatpush1.bf16.msra.mxu0 %v4066
        %5487 = vmatprep.subr.bf16.mxu0 0
        %5488 = vmatpush1.bf16.msra.mxu0 %v4067
        %5489 = vmatprep.subr.bf16.mxu0 0
        %5490 = vmatpush1.bf16.msra.mxu0 %v4068
        %5491 = vmatprep.subr.bf16.mxu0 0
        %5492 = vmatpush1.bf16.msra.mxu0 %v4069
        %5493 = vmatprep.subr.bf16.mxu0 0
        %5494 = vmatpush1.bf16.msra.mxu0 %v4070
        %5495 = vmatprep.mubr.bf16.mxu0 %v577
        %5496 = vmatmul.mubr.bf16.gmra.mrb[0].mxu0 %v576
        %v5497 = vpop.f32.mrb[0].mxu0
        %v5498 = vadd.f32 %v5458, %v5497
        %v5499 = vpop.f32.mrb[0].mxu0
        %v5500 = vpop.f32.mrb[0].mxu0
        %v5501 = vpop.f32.mrb[0].mxu0
        %5502 = vdwg.mxu0
        %5503 = vmatprep.subr.bf16.mxu0 0
        %5504 = vmatpush1.bf16.msra.mxu0 %v4071
        %5505 = vmatprep.subr.bf16.mxu0 0
        %5506 = vmatpush1.bf16.msra.mxu0 %v4072
        %5507 = vmatprep.subr.bf16.mxu0 0
        %5508 = vmatpush1.bf16.msra.mxu0 %v4073
        %5509 = vmatprep.subr.bf16.mxu0 0
        %5510 = vmatpush1.bf16.msra.mxu0 %v4074
        %5511 = vmatprep.subr.bf16.mxu0 0
        %5512 = vmatpush1.bf16.msra.mxu0 %v4075
        %5513 = vmatprep.subr.bf16.mxu0 0
        %5514 = vmatpush1.bf16.msra.mxu0 %v4076
        %5515 = vmatprep.subr.bf16.mxu0 0
        %5516 = vmatpush1.bf16.msra.mxu0 %v4077
        %5517 = vmatprep.subr.bf16.mxu0 0
        %5518 = vmatpush1.bf16.msra.mxu0 %v4078
        %5519 = vmatprep.subr.bf16.mxu0 0
        %5520 = vmatpush1.bf16.msra.mxu0 %v4079
        %5521 = vmatprep.subr.bf16.mxu0 0
        %5522 = vmatpush1.bf16.msra.mxu0 %v4080
        %5523 = vmatprep.subr.bf16.mxu0 0
        %5524 = vmatpush1.bf16.msra.mxu0 %v4081
        %5525 = vmatprep.subr.bf16.mxu0 0
        %5526 = vmatpush1.bf16.msra.mxu0 %v4082
        %5527 = vmatprep.subr.bf16.mxu0 0
        %5528 = vmatpush1.bf16.msra.mxu0 %v4083
        %5529 = vmatprep.subr.bf16.mxu0 0
        %5530 = vmatpush1.bf16.msra.mxu0 %v4084
        %5531 = vmatprep.subr.bf16.mxu0 0
        %5532 = vmatpush1.bf16.msra.mxu0 %v4085
        %5533 = vmatprep.subr.bf16.mxu0 0
        %5534 = vmatpush1.bf16.msra.mxu0 %v4086
        %5535 = vmatprep.mubr.bf16.mxu0 %v579
        %5536 = vmatmul.mubr.bf16.gmra.mrb[0].mxu0 %v578
        %v5537 = vpop.f32.mrb[0].mxu0
        %v5538 = vadd.f32 %v5498, %v5537
        %v5539 = vpop.f32.mrb[0].mxu0
        %v5540 = vpop.f32.mrb[0].mxu0
        %v5541 = vpop.f32.mrb[0].mxu0
        %5542 = vdwg.mxu0
        %5543 = vmatprep.subr.bf16.mxu0 0
        %5544 = vmatpush1.bf16.msra.mxu0 %v4087
        %5545 = vmatprep.subr.bf16.mxu0 0
        %5546 = vmatpush1.bf16.msra.mxu0 %v4088
        %5547 = vmatprep.subr.bf16.mxu0 0
        %5548 = vmatpush1.bf16.msra.mxu0 %v4089
        %5549 = vmatprep.subr.bf16.mxu0 0
        %5550 = vmatpush1.bf16.msra.mxu0 %v4090
        %5551 = vmatprep.subr.bf16.mxu0 0
        %5552 = vmatpush1.bf16.msra.mxu0 %v4091
        %5553 = vmatprep.subr.bf16.mxu0 0
        %5554 = vmatpush1.bf16.msra.mxu0 %v4092
        %5555 = vmatprep.subr.bf16.mxu0 0
        %5556 = vmatpush1.bf16.msra.mxu0 %v4093
        %5557 = vmatprep.subr.bf16.mxu0 0
        %5558 = vmatpush1.bf16.msra.mxu0 %v4094
        %5559 = vmatprep.subr.bf16.mxu0 0
        %5560 = vmatpush1.bf16.msra.mxu0 %v4095
        %5561 = vmatprep.subr.bf16.mxu0 0
        %5562 = vmatpush1.bf16.msra.mxu0 %v4096
        %5563 = vmatprep.subr.bf16.mxu0 0
        %5564 = vmatpush1.bf16.msra.mxu0 %v4097
        %5565 = vmatprep.subr.bf16.mxu0 0
        %5566 = vmatpush1.bf16.msra.mxu0 %v4098
        %5567 = vmatprep.subr.bf16.mxu0 0
        %5568 = vmatpush1.bf16.msra.mxu0 %v4099
        %5569 = vmatprep.subr.bf16.mxu0 0
        %5570 = vmatpush1.bf16.msra.mxu0 %v4100
        %5571 = vmatprep.subr.bf16.mxu0 0
        %5572 = vmatpush1.bf16.msra.mxu0 %v4101
        %5573 = vmatprep.subr.bf16.mxu0 0
        %5574 = vmatpush1.bf16.msra.mxu0 %v4102
        %5575 = vmatprep.mubr.bf16.mxu0 %v581
        %5576 = vmatmul.mubr.bf16.gmra.mrb[0].mxu0 %v580
        %v5577 = vpop.f32.mrb[0].mxu0
        %v5578 = vadd.f32 %v5538, %v5577
        %v5579 = vpop.f32.mrb[0].mxu0
        %v5580 = vpop.f32.mrb[0].mxu0
        %v5581 = vpop.f32.mrb[0].mxu0
        %5582 = vdwg.mxu0
        %5583 = vmatprep.subr.bf16.mxu0 0
        %5584 = vmatpush1.bf16.msra.mxu0 %v4103
        %5585 = vmatprep.subr.bf16.mxu0 0
        %5586 = vmatpush1.bf16.msra.mxu0 %v4104
        %5587 = vmatprep.subr.bf16.mxu0 0
        %5588 = vmatpush1.bf16.msra.mxu0 %v4105
        %5589 = vmatprep.subr.bf16.mxu0 0
        %5590 = vmatpush1.bf16.msra.mxu0 %v4106
        %5591 = vmatprep.subr.bf16.mxu0 0
        %5592 = vmatpush1.bf16.msra.mxu0 %v4107
        %5593 = vmatprep.subr.bf16.mxu0 0
        %5594 = vmatpush1.bf16.msra.mxu0 %v4108
        %5595 = vmatprep.subr.bf16.mxu0 0
        %5596 = vmatpush1.bf16.msra.mxu0 %v4109
        %5597 = vmatprep.subr.bf16.mxu0 0
        %5598 = vmatpush1.bf16.msra.mxu0 %v4110
        %5599 = vmatprep.subr.bf16.mxu0 0
        %5600 = vmatpush1.bf16.msra.mxu0 %v4111
        %5601 = vmatprep.subr.bf16.mxu0 0
        %5602 = vmatpush1.bf16.msra.mxu0 %v4112
        %5603 = vmatprep.subr.bf16.mxu0 0
        %5604 = vmatpush1.bf16.msra.mxu0 %v4113
        %5605 = vmatprep.subr.bf16.mxu0 0
        %5606 = vmatpush1.bf16.msra.mxu0 %v4114
        %5607 = vmatprep.subr.bf16.mxu0 0
        %5608 = vmatpush1.bf16.msra.mxu0 %v4115
        %5609 = vmatprep.subr.bf16.mxu0 0
        %5610 = vmatpush1.bf16.msra.mxu0 %v4116
        %5611 = vmatprep.subr.bf16.mxu0 0
        %5612 = vmatpush1.bf16.msra.mxu0 %v4117
        %5613 = vmatprep.subr.bf16.mxu0 0
        %5614 = vmatpush1.bf16.msra.mxu0 %v4118
        %5615 = vmatprep.mubr.bf16.mxu0 %v583
        %5616 = vmatmul.mubr.bf16.gmra.mrb[0].mxu0 %v582
        %v5617 = vpop.f32.mrb[0].mxu0
        %v5618 = vadd.f32 %v5578, %v5617
        %v5619 = vpop.f32.mrb[0].mxu0
        %v5620 = vpop.f32.mrb[0].mxu0
        %v5621 = vpop.f32.mrb[0].mxu0
        %5622 = vdwg.mxu0
        %5623 = vmatprep.subr.bf16.mxu0 0
        %5624 = vmatpush1.bf16.msra.mxu0 %v4119
        %5625 = vmatprep.subr.bf16.mxu0 0
        %5626 = vmatpush1.bf16.msra.mxu0 %v4120
        %5627 = vmatprep.subr.bf16.mxu0 0
        %5628 = vmatpush1.bf16.msra.mxu0 %v4121
        %5629 = vmatprep.subr.bf16.mxu0 0
        %5630 = vmatpush1.bf16.msra.mxu0 %v4122
        %5631 = vmatprep.subr.bf16.mxu0 0
        %5632 = vmatpush1.bf16.msra.mxu0 %v4123
        %5633 = vmatprep.subr.bf16.mxu0 0
        %5634 = vmatpush1.bf16.msra.mxu0 %v4124
        %5635 = vmatprep.subr.bf16.mxu0 0
        %5636 = vmatpush1.bf16.msra.mxu0 %v4125
        %5637 = vmatprep.subr.bf16.mxu0 0
        %5638 = vmatpush1.bf16.msra.mxu0 %v4126
        %5639 = vmatprep.subr.bf16.mxu0 0
        %5640 = vmatpush1.bf16.msra.mxu0 %v4127
        %5641 = vmatprep.subr.bf16.mxu0 0
        %5642 = vmatpush1.bf16.msra.mxu0 %v4128
        %5643 = vmatprep.subr.bf16.mxu0 0
        %5644 = vmatpush1.bf16.msra.mxu0 %v4129
        %5645 = vmatprep.subr.bf16.mxu0 0
        %5646 = vmatpush1.bf16.msra.mxu0 %v4130
        %5647 = vmatprep.subr.bf16.mxu0 0
        %5648 = vmatpush1.bf16.msra.mxu0 %v4131
        %5649 = vmatprep.subr.bf16.mxu0 0
        %5650 = vmatpush1.bf16.msra.mxu0 %v4132
        %5651 = vmatprep.subr.bf16.mxu0 0
        %5652 = vmatpush1.bf16.msra.mxu0 %v4133
        %5653 = vmatprep.subr.bf16.mxu0 0
        %5654 = vmatpush1.bf16.msra.mxu0 %v4134
        %5655 = vmatprep.mubr.bf16.mxu0 %v585
        %5656 = vmatmul.mubr.bf16.gmra.mrb[0].mxu0 %v584
        %v5657 = vpop.f32.mrb[0].mxu0
        %v5658 = vadd.f32 %v5618, %v5657
        %v5659 = vpop.f32.mrb[0].mxu0
        %v5660 = vpop.f32.mrb[0].mxu0
        %v5661 = vpop.f32.mrb[0].mxu0
        %5662 = vdwg.mxu0
        %5663 = vmatprep.subr.bf16.mxu0 0
        %5664 = vmatpush1.bf16.msra.mxu0 %v4135
        %5665 = vmatprep.subr.bf16.mxu0 0
        %5666 = vmatpush1.bf16.msra.mxu0 %v4136
        %5667 = vmatprep.subr.bf16.mxu0 0
        %5668 = vmatpush1.bf16.msra.mxu0 %v4137
        %5669 = vmatprep.subr.bf16.mxu0 0
        %5670 = vmatpush1.bf16.msra.mxu0 %v4138
        %5671 = vmatprep.subr.bf16.mxu0 0
        %5672 = vmatpush1.bf16.msra.mxu0 %v4139
        %5673 = vmatprep.subr.bf16.mxu0 0
        %5674 = vmatpush1.bf16.msra.mxu0 %v4140
        %5675 = vmatprep.subr.bf16.mxu0 0
        %5676 = vmatpush1.bf16.msra.mxu0 %v4141
        %5677 = vmatprep.subr.bf16.mxu0 0
        %5678 = vmatpush1.bf16.msra.mxu0 %v4142
        %5679 = vmatprep.subr.bf16.mxu0 0
        %5680 = vmatpush1.bf16.msra.mxu0 %v4143
        %5681 = vmatprep.subr.bf16.mxu0 0
        %5682 = vmatpush1.bf16.msra.mxu0 %v4144
        %5683 = vmatprep.subr.bf16.mxu0 0
        %5684 = vmatpush1.bf16.msra.mxu0 %v4145
        %5685 = vmatprep.subr.bf16.mxu0 0
        %5686 = vmatpush1.bf16.msra.mxu0 %v4146
        %5687 = vmatprep.subr.bf16.mxu0 0
        %5688 = vmatpush1.bf16.msra.mxu0 %v4147
        %5689 = vmatprep.subr.bf16.mxu0 0
        %5690 = vmatpush1.bf16.msra.mxu0 %v4148
        %5691 = vmatprep.subr.bf16.mxu0 0
        %5692 = vmatpush1.bf16.msra.mxu0 %v4149
        %5693 = vmatprep.subr.bf16.mxu0 0
        %5694 = vmatpush1.bf16.msra.mxu0 %v4150
        %5695 = vmatprep.mubr.bf16.mxu0 %v587
        %5696 = vmatmul.mubr.bf16.gmra.mrb[0].mxu0 %v586
        %v5697 = vpop.f32.mrb[0].mxu0
        %v5698 = vadd.f32 %v5658, %v5697
        %v5699 = vpop.f32.mrb[0].mxu0
        %v5700 = vpop.f32.mrb[0].mxu0
        %v5701 = vpop.f32.mrb[0].mxu0
        %5702 = vdwg.mxu0
        %5703 = vmatprep.subr.bf16.mxu0 0
        %5704 = vmatpush1.bf16.msra.mxu0 %v4151
        %5705 = vmatprep.subr.bf16.mxu0 0
        %5706 = vmatpush1.bf16.msra.mxu0 %v4152
        %5707 = vmatprep.subr.bf16.mxu0 0
        %5708 = vmatpush1.bf16.msra.mxu0 %v4153
        %5709 = vmatprep.subr.bf16.mxu0 0
        %5710 = vmatpush1.bf16.msra.mxu0 %v4154
        %5711 = vmatprep.subr.bf16.mxu0 0
        %5712 = vmatpush1.bf16.msra.mxu0 %v4155
        %5713 = vmatprep.subr.bf16.mxu0 0
        %5714 = vmatpush1.bf16.msra.mxu0 %v4156
        %5715 = vmatprep.subr.bf16.mxu0 0
        %5716 = vmatpush1.bf16.msra.mxu0 %v4157
        %5717 = vmatprep.subr.bf16.mxu0 0
        %5718 = vmatpush1.bf16.msra.mxu0 %v4158
        %5719 = vmatprep.subr.bf16.mxu0 0
        %5720 = vmatpush1.bf16.msra.mxu0 %v4159
        %5721 = vmatprep.subr.bf16.mxu0 0
        %5722 = vmatpush1.bf16.msra.mxu0 %v4160
        %5723 = vmatprep.subr.bf16.mxu0 0
        %5724 = vmatpush1.bf16.msra.mxu0 %v4161
        %5725 = vmatprep.subr.bf16.mxu0 0
        %5726 = vmatpush1.bf16.msra.mxu0 %v4162
        %5727 = vmatprep.subr.bf16.mxu0 0
        %5728 = vmatpush1.bf16.msra.mxu0 %v4163
        %5729 = vmatprep.subr.bf16.mxu0 0
        %5730 = vmatpush1.bf16.msra.mxu0 %v4164
        %5731 = vmatprep.subr.bf16.mxu0 0
        %5732 = vmatpush1.bf16.msra.mxu0 %v4165
        %5733 = vmatprep.subr.bf16.mxu0 0
        %5734 = vmatpush1.bf16.msra.mxu0 %v4166
        %5735 = vmatprep.mubr.bf16.mxu0 %v589
        %5736 = vmatmul.mubr.bf16.gmra.mrb[0].mxu0 %v588
        %v5737 = vpop.f32.mrb[0].mxu0
        %v5738 = vadd.f32 %v5698, %v5737
        %v5739 = vpop.f32.mrb[0].mxu0
        %v5740 = vpop.f32.mrb[0].mxu0
        %v5741 = vpop.f32.mrb[0].mxu0
        %5742 = vdwg.mxu0
        %5743 = vmatprep.subr.bf16.mxu0 0
        %5744 = vmatpush1.bf16.msra.mxu0 %v4167
        %5745 = vmatprep.subr.bf16.mxu0 0
        %5746 = vmatpush1.bf16.msra.mxu0 %v4168
        %5747 = vmatprep.subr.bf16.mxu0 0
        %5748 = vmatpush1.bf16.msra.mxu0 %v4169
        %5749 = vmatprep.subr.bf16.mxu0 0
        %5750 = vmatpush1.bf16.msra.mxu0 %v4170
        %5751 = vmatprep.subr.bf16.mxu0 0
        %5752 = vmatpush1.bf16.msra.mxu0 %v4171
        %5753 = vmatprep.subr.bf16.mxu0 0
        %5754 = vmatpush1.bf16.msra.mxu0 %v4172
        %5755 = vmatprep.subr.bf16.mxu0 0
        %5756 = vmatpush1.bf16.msra.mxu0 %v4173
        %5757 = vmatprep.subr.bf16.mxu0 0
        %5758 = vmatpush1.bf16.msra.mxu0 %v4174
        %5759 = vmatprep.subr.bf16.mxu0 0
        %5760 = vmatpush1.bf16.msra.mxu0 %v4175
        %5761 = vmatprep.subr.bf16.mxu0 0
        %5762 = vmatpush1.bf16.msra.mxu0 %v4176
        %5763 = vmatprep.subr.bf16.mxu0 0
        %5764 = vmatpush1.bf16.msra.mxu0 %v4177
        %5765 = vmatprep.subr.bf16.mxu0 0
        %5766 = vmatpush1.bf16.msra.mxu0 %v4178
        %5767 = vmatprep.subr.bf16.mxu0 0
        %5768 = vmatpush1.bf16.msra.mxu0 %v4179
        %5769 = vmatprep.subr.bf16.mxu0 0
        %5770 = vmatpush1.bf16.msra.mxu0 %v4180
        %5771 = vmatprep.subr.bf16.mxu0 0
        %5772 = vmatpush1.bf16.msra.mxu0 %v4181
        %5773 = vmatprep.subr.bf16.mxu0 0
        %5774 = vmatpush1.bf16.msra.mxu0 %v4182
        %5775 = vmatprep.mubr.bf16.mxu0 %v591
        %5776 = vmatmul.mubr.bf16.gmra.mrb[0].mxu0 %v590
        %v5777 = vpop.f32.mrb[0].mxu0
        %v5778 = vadd.f32 %v5738, %v5777
        %v5779 = vpop.f32.mrb[0].mxu0
        %v5780 = vpop.f32.mrb[0].mxu0
        %v5781 = vpop.f32.mrb[0].mxu0
        %5782 = vdwg.mxu0
        %5783 = vmatprep.subr.bf16.mxu0 0
        %5784 = vmatpush1.bf16.msra.mxu0 %v4183
        %5785 = vmatprep.subr.bf16.mxu0 0
        %5786 = vmatpush1.bf16.msra.mxu0 %v4184
        %5787 = vmatprep.subr.bf16.mxu0 0
        %5788 = vmatpush1.bf16.msra.mxu0 %v4185
        %5789 = vmatprep.subr.bf16.mxu0 0
        %5790 = vmatpush1.bf16.msra.mxu0 %v4186
        %5791 = vmatprep.subr.bf16.mxu0 0
        %5792 = vmatpush1.bf16.msra.mxu0 %v4187
        %5793 = vmatprep.subr.bf16.mxu0 0
        %5794 = vmatpush1.bf16.msra.mxu0 %v4188
        %5795 = vmatprep.subr.bf16.mxu0 0
        %5796 = vmatpush1.bf16.msra.mxu0 %v4189
        %5797 = vmatprep.subr.bf16.mxu0 0
        %5798 = vmatpush1.bf16.msra.mxu0 %v4190
        %5799 = vmatprep.subr.bf16.mxu0 0
        %5800 = vmatpush1.bf16.msra.mxu0 %v4191
        %5801 = vmatprep.subr.bf16.mxu0 0
        %5802 = vmatpush1.bf16.msra.mxu0 %v4192
        %5803 = vmatprep.subr.bf16.mxu0 0
        %5804 = vmatpush1.bf16.msra.mxu0 %v4193
        %5805 = vmatprep.subr.bf16.mxu0 0
        %5806 = vmatpush1.bf16.msra.mxu0 %v4194
        %5807 = vmatprep.subr.bf16.mxu0 0
        %5808 = vmatpush1.bf16.msra.mxu0 %v4195
        %5809 = vmatprep.subr.bf16.mxu0 0
        %5810 = vmatpush1.bf16.msra.mxu0 %v4196
        %5811 = vmatprep.subr.bf16.mxu0 0
        %5812 = vmatpush1.bf16.msra.mxu0 %v4197
        %5813 = vmatprep.subr.bf16.mxu0 0
        %5814 = vmatpush1.bf16.msra.mxu0 %v4198
        %5815 = vmatprep.mubr.bf16.mxu0 %v593
        %5816 = vmatmul.mubr.bf16.gmra.mrb[0].mxu0 %v592
        %v5817 = vpop.f32.mrb[0].mxu0
        %v5818 = vadd.f32 %v5778, %v5817
        %v5819 = vpop.f32.mrb[0].mxu0
        %v5820 = vpop.f32.mrb[0].mxu0
        %v5821 = vpop.f32.mrb[0].mxu0
        %5822 = vdwg.mxu0
        %5823 = vmatprep.subr.bf16.mxu0 0
        %5824 = vmatpush1.bf16.msra.mxu0 %v4199
        %5825 = vmatprep.subr.bf16.mxu0 0
        %5826 = vmatpush1.bf16.msra.mxu0 %v4200
        %5827 = vmatprep.subr.bf16.mxu0 0
        %5828 = vmatpush1.bf16.msra.mxu0 %v4201
        %5829 = vmatprep.subr.bf16.mxu0 0
        %5830 = vmatpush1.bf16.msra.mxu0 %v4202
        %5831 = vmatprep.subr.bf16.mxu0 0
        %5832 = vmatpush1.bf16.msra.mxu0 %v4203
        %5833 = vmatprep.subr.bf16.mxu0 0
        %5834 = vmatpush1.bf16.msra.mxu0 %v4204
        %5835 = vmatprep.subr.bf16.mxu0 0
        %5836 = vmatpush1.bf16.msra.mxu0 %v4205
        %5837 = vmatprep.subr.bf16.mxu0 0
        %5838 = vmatpush1.bf16.msra.mxu0 %v4206
        %5839 = vmatprep.subr.bf16.mxu0 0
        %5840 = vmatpush1.bf16.msra.mxu0 %v4207
        %5841 = vmatprep.subr.bf16.mxu0 0
        %5842 = vmatpush1.bf16.msra.mxu0 %v4208
        %5843 = vmatprep.subr.bf16.mxu0 0
        %5844 = vmatpush1.bf16.msra.mxu0 %v4209
        %5845 = vmatprep.subr.bf16.mxu0 0
        %5846 = vmatpush1.bf16.msra.mxu0 %v4210
        %5847 = vmatprep.subr.bf16.mxu0 0
        %5848 = vmatpush1.bf16.msra.mxu0 %v4211
        %5849 = vmatprep.subr.bf16.mxu0 0
        %5850 = vmatpush1.bf16.msra.mxu0 %v4212
        %5851 = vmatprep.subr.bf16.mxu0 0
        %5852 = vmatpush1.bf16.msra.mxu0 %v4213
        %5853 = vmatprep.subr.bf16.mxu0 0
        %5854 = vmatpush1.bf16.msra.mxu0 %v4214
        %5855 = vmatprep.mubr.bf16.mxu0 %v595
        %5856 = vmatmul.mubr.bf16.gmra.mrb[0].mxu0 %v594
        %v5857 = vpop.f32.mrb[0].mxu0
        %v5858 = vadd.f32 %v5818, %v5857
        %v5859 = vpop.f32.mrb[0].mxu0
        %v5860 = vpop.f32.mrb[0].mxu0
        %v5861 = vpop.f32.mrb[0].mxu0
        %5862 = vdwg.mxu0
        %5863 = vmatprep.subr.bf16.mxu0 0
        %5864 = vmatpush1.bf16.msra.mxu0 %v4215
        %5865 = vmatprep.subr.bf16.mxu0 0
        %5866 = vmatpush1.bf16.msra.mxu0 %v4216
        %5867 = vmatprep.subr.bf16.mxu0 0
        %5868 = vmatpush1.bf16.msra.mxu0 %v4217
        %5869 = vmatprep.subr.bf16.mxu0 0
        %5870 = vmatpush1.bf16.msra.mxu0 %v4218
        %5871 = vmatprep.subr.bf16.mxu0 0
        %5872 = vmatpush1.bf16.msra.mxu0 %v4219
        %5873 = vmatprep.subr.bf16.mxu0 0
        %5874 = vmatpush1.bf16.msra.mxu0 %v4220
        %5875 = vmatprep.subr.bf16.mxu0 0
        %5876 = vmatpush1.bf16.msra.mxu0 %v4221
        %5877 = vmatprep.subr.bf16.mxu0 0
        %5878 = vmatpush1.bf16.msra.mxu0 %v4222
        %5879 = vmatprep.subr.bf16.mxu0 0
        %5880 = vmatpush1.bf16.msra.mxu0 %v4223
        %5881 = vmatprep.subr.bf16.mxu0 0
        %5882 = vmatpush1.bf16.msra.mxu0 %v4224
        %5883 = vmatprep.subr.bf16.mxu0 0
        %5884 = vmatpush1.bf16.msra.mxu0 %v4225
        %5885 = vmatprep.subr.bf16.mxu0 0
        %5886 = vmatpush1.bf16.msra.mxu0 %v4226
        %5887 = vmatprep.subr.bf16.mxu0 0
        %5888 = vmatpush1.bf16.msra.mxu0 %v4227
        %5889 = vmatprep.subr.bf16.mxu0 0
        %5890 = vmatpush1.bf16.msra.mxu0 %v4228
        %5891 = vmatprep.subr.bf16.mxu0 0
        %5892 = vmatpush1.bf16.msra.mxu0 %v4229
        %5893 = vmatprep.subr.bf16.mxu0 0
        %5894 = vmatpush1.bf16.msra.mxu0 %v4230
        %5895 = vmatprep.mubr.bf16.mxu0 %v597
        %5896 = vmatmul.mubr.bf16.gmra.mrb[0].mxu0 %v596
        %v5897 = vpop.f32.mrb[0].mxu0
        %v5898 = vadd.f32 %v5858, %v5897
        %v5899 = vpop.f32.mrb[0].mxu0
        %v5900 = vpop.f32.mrb[0].mxu0
        %v5901 = vpop.f32.mrb[0].mxu0
        %5902 = vdwg.mxu0
        %5903 = vmatprep.subr.bf16.mxu0 0
        %5904 = vmatpush1.bf16.msra.mxu0 %v4231
        %5905 = vmatprep.subr.bf16.mxu0 0
        %5906 = vmatpush1.bf16.msra.mxu0 %v4232
        %5907 = vmatprep.subr.bf16.mxu0 0
        %5908 = vmatpush1.bf16.msra.mxu0 %v4233
        %5909 = vmatprep.subr.bf16.mxu0 0
        %5910 = vmatpush1.bf16.msra.mxu0 %v4234
        %5911 = vmatprep.subr.bf16.mxu0 0
        %5912 = vmatpush1.bf16.msra.mxu0 %v4235
        %5913 = vmatprep.subr.bf16.mxu0 0
        %5914 = vmatpush1.bf16.msra.mxu0 %v4236
        %5915 = vmatprep.subr.bf16.mxu0 0
        %5916 = vmatpush1.bf16.msra.mxu0 %v4237
        %5917 = vmatprep.subr.bf16.mxu0 0
        %5918 = vmatpush1.bf16.msra.mxu0 %v4238
        %5919 = vmatprep.subr.bf16.mxu0 0
        %5920 = vmatpush1.bf16.msra.mxu0 %v4239
        %5921 = vmatprep.subr.bf16.mxu0 0
        %5922 = vmatpush1.bf16.msra.mxu0 %v4240
        %5923 = vmatprep.subr.bf16.mxu0 0
        %5924 = vmatpush1.bf16.msra.mxu0 %v4241
        %5925 = vmatprep.subr.bf16.mxu0 0
        %5926 = vmatpush1.bf16.msra.mxu0 %v4242
        %5927 = vmatprep.subr.bf16.mxu0 0
        %5928 = vmatpush1.bf16.msra.mxu0 %v4243
        %5929 = vmatprep.subr.bf16.mxu0 0
        %5930 = vmatpush1.bf16.msra.mxu0 %v4244
        %5931 = vmatprep.subr.bf16.mxu0 0
        %5932 = vmatpush1.bf16.msra.mxu0 %v4245
        %5933 = vmatprep.subr.bf16.mxu0 0
        %5934 = vmatpush1.bf16.msra.mxu0 %v4246
        %5935 = vmatprep.mubr.bf16.mxu0 %v599
        %5936 = vmatmul.mubr.bf16.gmra.mrb[0].mxu0 %v598
        %v5937 = vpop.f32.mrb[0].mxu0
        %v5938 = vadd.f32 %v5898, %v5937
        %v5939 = vpop.f32.mrb[0].mxu0
        %v5940 = vpop.f32.mrb[0].mxu0
        %v5941 = vpop.f32.mrb[0].mxu0
        %5942 = vdwg.mxu0
        %5943 = vmatprep.subr.bf16.mxu0 0
        %5944 = vmatpush1.bf16.msra.mxu0 %v4247
        %5945 = vmatprep.subr.bf16.mxu0 0
        %5946 = vmatpush1.bf16.msra.mxu0 %v4248
        %5947 = vmatprep.subr.bf16.mxu0 0
        %5948 = vmatpush1.bf16.msra.mxu0 %v4249
        %5949 = vmatprep.subr.bf16.mxu0 0
        %5950 = vmatpush1.bf16.msra.mxu0 %v4250
        %5951 = vmatprep.subr.bf16.mxu0 0
        %5952 = vmatpush1.bf16.msra.mxu0 %v4251
        %5953 = vmatprep.subr.bf16.mxu0 0
        %5954 = vmatpush1.bf16.msra.mxu0 %v4252
        %5955 = vmatprep.subr.bf16.mxu0 0
        %5956 = vmatpush1.bf16.msra.mxu0 %v4253
        %5957 = vmatprep.subr.bf16.mxu0 0
        %5958 = vmatpush1.bf16.msra.mxu0 %v4254
        %5959 = vmatprep.subr.bf16.mxu0 0
        %5960 = vmatpush1.bf16.msra.mxu0 %v4255
        %5961 = vmatprep.subr.bf16.mxu0 0
        %5962 = vmatpush1.bf16.msra.mxu0 %v4256
        %5963 = vmatprep.subr.bf16.mxu0 0
        %5964 = vmatpush1.bf16.msra.mxu0 %v4257
        %5965 = vmatprep.subr.bf16.mxu0 0
        %5966 = vmatpush1.bf16.msra.mxu0 %v4258
        %5967 = vmatprep.subr.bf16.mxu0 0
        %5968 = vmatpush1.bf16.msra.mxu0 %v4259
        %5969 = vmatprep.subr.bf16.mxu0 0
        %5970 = vmatpush1.bf16.msra.mxu0 %v4260
        %5971 = vmatprep.subr.bf16.mxu0 0
        %5972 = vmatpush1.bf16.msra.mxu0 %v4261
        %5973 = vmatprep.subr.bf16.mxu0 0
        %5974 = vmatpush1.bf16.msra.mxu0 %v4262
        %5975 = vmatprep.mubr.bf16.mxu0 %v601
        %5976 = vmatmul.mubr.bf16.gmra.mrb[0].mxu0 %v600
        %v5977 = vpop.f32.mrb[0].mxu0
        %v5978 = vadd.f32 %v5938, %v5977
        %v5979 = vpop.f32.mrb[0].mxu0
        %v5980 = vpop.f32.mrb[0].mxu0
        %v5981 = vpop.f32.mrb[0].mxu0
        %5982 = vdwg.mxu0
        %5983 = vmatprep.subr.bf16.mxu0 0
        %5984 = vmatpush1.bf16.msra.mxu0 %v4263
        %5985 = vmatprep.subr.bf16.mxu0 0
        %5986 = vmatpush1.bf16.msra.mxu0 %v4264
        %5987 = vmatprep.subr.bf16.mxu0 0
        %5988 = vmatpush1.bf16.msra.mxu0 %v4265
        %5989 = vmatprep.subr.bf16.mxu0 0
        %5990 = vmatpush1.bf16.msra.mxu0 %v4266
        %5991 = vmatprep.subr.bf16.mxu0 0
        %5992 = vmatpush1.bf16.msra.mxu0 %v4267
        %5993 = vmatprep.subr.bf16.mxu0 0
        %5994 = vmatpush1.bf16.msra.mxu0 %v4268
        %5995 = vmatprep.subr.bf16.mxu0 0
        %5996 = vmatpush1.bf16.msra.mxu0 %v4269
        %5997 = vmatprep.subr.bf16.mxu0 0
        %5998 = vmatpush1.bf16.msra.mxu0 %v4270
        %5999 = vmatprep.subr.bf16.mxu0 0
        %6000 = vmatpush1.bf16.msra.mxu0 %v4271
        %6001 = vmatprep.subr.bf16.mxu0 0
        %6002 = vmatpush1.bf16.msra.mxu0 %v4272
        %6003 = vmatprep.subr.bf16.mxu0 0
        %6004 = vmatpush1.bf16.msra.mxu0 %v4273
        %6005 = vmatprep.subr.bf16.mxu0 0
        %6006 = vmatpush1.bf16.msra.mxu0 %v4274
        %6007 = vmatprep.subr.bf16.mxu0 0
        %6008 = vmatpush1.bf16.msra.mxu0 %v4275
        %6009 = vmatprep.subr.bf16.mxu0 0
        %6010 = vmatpush1.bf16.msra.mxu0 %v4276
        %6011 = vmatprep.subr.bf16.mxu0 0
        %6012 = vmatpush1.bf16.msra.mxu0 %v4277
        %6013 = vmatprep.subr.bf16.mxu0 0
        %6014 = vmatpush1.bf16.msra.mxu0 %v4278
        %6015 = vmatprep.mubr.bf16.mxu0 %v603
        %6016 = vmatmul.mubr.bf16.gmra.mrb[0].mxu0 %v602
        %v6017 = vpop.f32.mrb[0].mxu0
        %v6018 = vadd.f32 %v5978, %v6017
        %v6019 = vpop.f32.mrb[0].mxu0
        %v6020 = vpop.f32.mrb[0].mxu0
        %v6021 = vpop.f32.mrb[0].mxu0
        %6022 = vdwg.mxu0
        %6023 = vmatprep.subr.bf16.mxu0 0
        %6024 = vmatpush1.bf16.msra.mxu0 %v4279
        %6025 = vmatprep.subr.bf16.mxu0 0
        %6026 = vmatpush1.bf16.msra.mxu0 %v4280
        %6027 = vmatprep.subr.bf16.mxu0 0
        %6028 = vmatpush1.bf16.msra.mxu0 %v4281
        %6029 = vmatprep.subr.bf16.mxu0 0
        %6030 = vmatpush1.bf16.msra.mxu0 %v4282
        %6031 = vmatprep.subr.bf16.mxu0 0
        %6032 = vmatpush1.bf16.msra.mxu0 %v4283
        %6033 = vmatprep.subr.bf16.mxu0 0
        %6034 = vmatpush1.bf16.msra.mxu0 %v4284
        %6035 = vmatprep.subr.bf16.mxu0 0
        %6036 = vmatpush1.bf16.msra.mxu0 %v4285
        %6037 = vmatprep.subr.bf16.mxu0 0
        %6038 = vmatpush1.bf16.msra.mxu0 %v4286
        %6039 = vmatprep.subr.bf16.mxu0 0
        %6040 = vmatpush1.bf16.msra.mxu0 %v4287
        %6041 = vmatprep.subr.bf16.mxu0 0
        %6042 = vmatpush1.bf16.msra.mxu0 %v4288
        %6043 = vmatprep.subr.bf16.mxu0 0
        %6044 = vmatpush1.bf16.msra.mxu0 %v4289
        %6045 = vmatprep.subr.bf16.mxu0 0
        %6046 = vmatpush1.bf16.msra.mxu0 %v4290
        %6047 = vmatprep.subr.bf16.mxu0 0
        %6048 = vmatpush1.bf16.msra.mxu0 %v4291
        %6049 = vmatprep.subr.bf16.mxu0 0
        %6050 = vmatpush1.bf16.msra.mxu0 %v4292
        %6051 = vmatprep.subr.bf16.mxu0 0
        %6052 = vmatpush1.bf16.msra.mxu0 %v4293
        %6053 = vmatprep.subr.bf16.mxu0 0
        %6054 = vmatpush1.bf16.msra.mxu0 %v4294
        %6055 = vmatprep.mubr.bf16.mxu0 %v605
        %6056 = vmatmul.mubr.bf16.gmra.mrb[0].mxu0 %v604
        %v6057 = vpop.f32.mrb[0].mxu0
        %v6058 = vadd.f32 %v6018, %v6057
        %v6059 = vpop.f32.mrb[0].mxu0
        %v6060 = vpop.f32.mrb[0].mxu0
        %v6061 = vpop.f32.mrb[0].mxu0
        %6062 = vdwg.mxu0
        %6063 = vmatprep.subr.bf16.mxu0 0
        %6064 = vmatpush1.bf16.msra.mxu0 %v4295
        %6065 = vmatprep.subr.bf16.mxu0 0
        %6066 = vmatpush1.bf16.msra.mxu0 %v4296
        %6067 = vmatprep.subr.bf16.mxu0 0
        %6068 = vmatpush1.bf16.msra.mxu0 %v4297
        %6069 = vmatprep.subr.bf16.mxu0 0
        %6070 = vmatpush1.bf16.msra.mxu0 %v4298
        %6071 = vmatprep.subr.bf16.mxu0 0
        %6072 = vmatpush1.bf16.msra.mxu0 %v4299
        %6073 = vmatprep.subr.bf16.mxu0 0
        %6074 = vmatpush1.bf16.msra.mxu0 %v4300
        %6075 = vmatprep.subr.bf16.mxu0 0
        %6076 = vmatpush1.bf16.msra.mxu0 %v4301
        %6077 = vmatprep.subr.bf16.mxu0 0
        %6078 = vmatpush1.bf16.msra.mxu0 %v4302
        %6079 = vmatprep.subr.bf16.mxu0 0
        %6080 = vmatpush1.bf16.msra.mxu0 %v4303
        %6081 = vmatprep.subr.bf16.mxu0 0
        %6082 = vmatpush1.bf16.msra.mxu0 %v4304
        %6083 = vmatprep.subr.bf16.mxu0 0
        %6084 = vmatpush1.bf16.msra.mxu0 %v4305
        %6085 = vmatprep.subr.bf16.mxu0 0
        %6086 = vmatpush1.bf16.msra.mxu0 %v4306
        %6087 = vmatprep.subr.bf16.mxu0 0
        %6088 = vmatpush1.bf16.msra.mxu0 %v4307
        %6089 = vmatprep.subr.bf16.mxu0 0
        %6090 = vmatpush1.bf16.msra.mxu0 %v4308
        %6091 = vmatprep.subr.bf16.mxu0 0
        %6092 = vmatpush1.bf16.msra.mxu0 %v4309
        %6093 = vmatprep.subr.bf16.mxu0 0
        %6094 = vmatpush1.bf16.msra.mxu0 %v4310
        %6095 = vmatprep.mubr.bf16.mxu0 %v607
        %6096 = vmatmul.mubr.bf16.gmra.mrb[0].mxu0 %v606
        %v6097 = vpop.f32.mrb[0].mxu0
        %v6098 = vadd.f32 %v6058, %v6097
        %v6099 = vpop.f32.mrb[0].mxu0
        %v6100 = vpop.f32.mrb[0].mxu0
        %v6101 = vpop.f32.mrb[0].mxu0
        %6102 = vdwg.mxu0
        %6103 = vmatprep.subr.bf16.mxu0 0
        %6104 = vmatpush1.bf16.msra.mxu0 %v4311
        %6105 = vmatprep.subr.bf16.mxu0 0
        %6106 = vmatpush1.bf16.msra.mxu0 %v4312
        %6107 = vmatprep.subr.bf16.mxu0 0
        %6108 = vmatpush1.bf16.msra.mxu0 %v4313
        %6109 = vmatprep.subr.bf16.mxu0 0
        %6110 = vmatpush1.bf16.msra.mxu0 %v4314
        %6111 = vmatprep.subr.bf16.mxu0 0
        %6112 = vmatpush1.bf16.msra.mxu0 %v4315
        %6113 = vmatprep.subr.bf16.mxu0 0
        %6114 = vmatpush1.bf16.msra.mxu0 %v4316
        %6115 = vmatprep.subr.bf16.mxu0 0
        %6116 = vmatpush1.bf16.msra.mxu0 %v4317
        %6117 = vmatprep.subr.bf16.mxu0 0
        %6118 = vmatpush1.bf16.msra.mxu0 %v4318
        %6119 = vmatprep.subr.bf16.mxu0 0
        %6120 = vmatpush1.bf16.msra.mxu0 %v4319
        %6121 = vmatprep.subr.bf16.mxu0 0
        %6122 = vmatpush1.bf16.msra.mxu0 %v4320
        %6123 = vmatprep.subr.bf16.mxu0 0
        %6124 = vmatpush1.bf16.msra.mxu0 %v4321
        %6125 = vmatprep.subr.bf16.mxu0 0
        %6126 = vmatpush1.bf16.msra.mxu0 %v4322
        %6127 = vmatprep.subr.bf16.mxu0 0
        %6128 = vmatpush1.bf16.msra.mxu0 %v4323
        %6129 = vmatprep.subr.bf16.mxu0 0
        %6130 = vmatpush1.bf16.msra.mxu0 %v4324
        %6131 = vmatprep.subr.bf16.mxu0 0
        %6132 = vmatpush1.bf16.msra.mxu0 %v4325
        %6133 = vmatprep.subr.bf16.mxu0 0
        %6134 = vmatpush1.bf16.msra.mxu0 %v4326
        %6135 = vmatprep.mubr.bf16.mxu0 %v609
        %6136 = vmatmul.mubr.bf16.gmra.mrb[0].mxu0 %v608
        %v6137 = vpop.f32.mrb[0].mxu0
        %v6138 = vadd.f32 %v6098, %v6137
        %v6139 = vpop.f32.mrb[0].mxu0
        %v6140 = vpop.f32.mrb[0].mxu0
        %v6141 = vpop.f32.mrb[0].mxu0
        %6142 = vdwg.mxu0
        %6143 = vmatprep.subr.bf16.mxu0 0
        %6144 = vmatpush1.bf16.msra.mxu0 %v4327
        %6145 = vmatprep.subr.bf16.mxu0 0
        %6146 = vmatpush1.bf16.msra.mxu0 %v4328
        %6147 = vmatprep.subr.bf16.mxu0 0
        %6148 = vmatpush1.bf16.msra.mxu0 %v4329
        %6149 = vmatprep.subr.bf16.mxu0 0
        %6150 = vmatpush1.bf16.msra.mxu0 %v4330
        %6151 = vmatprep.subr.bf16.mxu0 0
        %6152 = vmatpush1.bf16.msra.mxu0 %v4331
        %6153 = vmatprep.subr.bf16.mxu0 0
        %6154 = vmatpush1.bf16.msra.mxu0 %v4332
        %6155 = vmatprep.subr.bf16.mxu0 0
        %6156 = vmatpush1.bf16.msra.mxu0 %v4333
        %6157 = vmatprep.subr.bf16.mxu0 0
        %6158 = vmatpush1.bf16.msra.mxu0 %v4334
        %6159 = vmatprep.subr.bf16.mxu0 0
        %6160 = vmatpush1.bf16.msra.mxu0 %v4335
        %6161 = vmatprep.subr.bf16.mxu0 0
        %6162 = vmatpush1.bf16.msra.mxu0 %v4336
        %6163 = vmatprep.subr.bf16.mxu0 0
        %6164 = vmatpush1.bf16.msra.mxu0 %v4337
        %6165 = vmatprep.subr.bf16.mxu0 0
        %6166 = vmatpush1.bf16.msra.mxu0 %v4338
        %6167 = vmatprep.subr.bf16.mxu0 0
        %6168 = vmatpush1.bf16.msra.mxu0 %v4339
        %6169 = vmatprep.subr.bf16.mxu0 0
        %6170 = vmatpush1.bf16.msra.mxu0 %v4340
        %6171 = vmatprep.subr.bf16.mxu0 0
        %6172 = vmatpush1.bf16.msra.mxu0 %v4341
        %6173 = vmatprep.subr.bf16.mxu0 0
        %6174 = vmatpush1.bf16.msra.mxu0 %v4342
        %6175 = vmatprep.mubr.bf16.mxu0 %v611
        %6176 = vmatmul.mubr.bf16.gmra.mrb[0].mxu0 %v610
        %v6177 = vpop.f32.mrb[0].mxu0
        %v6178 = vadd.f32 %v6138, %v6177
        %v6179 = vpop.f32.mrb[0].mxu0
        %v6180 = vpop.f32.mrb[0].mxu0
        %v6181 = vpop.f32.mrb[0].mxu0
        %6182 = vdwg.mxu0
        %6183 = vmatprep.subr.bf16.mxu0 0
        %6184 = vmatpush1.bf16.msra.mxu0 %v4343
        %6185 = vmatprep.subr.bf16.mxu0 0
        %6186 = vmatpush1.bf16.msra.mxu0 %v4344
        %6187 = vmatprep.subr.bf16.mxu0 0
        %6188 = vmatpush1.bf16.msra.mxu0 %v4345
        %6189 = vmatprep.subr.bf16.mxu0 0
        %6190 = vmatpush1.bf16.msra.mxu0 %v4346
        %6191 = vmatprep.subr.bf16.mxu0 0
        %6192 = vmatpush1.bf16.msra.mxu0 %v4347
        %6193 = vmatprep.subr.bf16.mxu0 0
        %6194 = vmatpush1.bf16.msra.mxu0 %v4348
        %6195 = vmatprep.subr.bf16.mxu0 0
        %6196 = vmatpush1.bf16.msra.mxu0 %v4349
        %6197 = vmatprep.subr.bf16.mxu0 0
        %6198 = vmatpush1.bf16.msra.mxu0 %v4350
        %6199 = vmatprep.subr.bf16.mxu0 0
        %6200 = vmatpush1.bf16.msra.mxu0 %v4351
        %6201 = vmatprep.subr.bf16.mxu0 0
        %6202 = vmatpush1.bf16.msra.mxu0 %v4352
        %6203 = vmatprep.subr.bf16.mxu0 0
        %6204 = vmatpush1.bf16.msra.mxu0 %v4353
        %6205 = vmatprep.subr.bf16.mxu0 0
        %6206 = vmatpush1.bf16.msra.mxu0 %v4354
        %6207 = vmatprep.subr.bf16.mxu0 0
        %6208 = vmatpush1.bf16.msra.mxu0 %v4355
        %6209 = vmatprep.subr.bf16.mxu0 0
        %6210 = vmatpush1.bf16.msra.mxu0 %v4356
        %6211 = vmatprep.subr.bf16.mxu0 0
        %6212 = vmatpush1.bf16.msra.mxu0 %v4357
        %6213 = vmatprep.subr.bf16.mxu0 0
        %6214 = vmatpush1.bf16.msra.mxu0 %v4358
        %6215 = vmatprep.mubr.bf16.mxu0 %v613
        %6216 = vmatmul.mubr.bf16.gmra.mrb[0].mxu0 %v612
        %v6217 = vpop.f32.mrb[0].mxu0
        %v6218 = vadd.f32 %v6178, %v6217
        %v6219 = vpop.f32.mrb[0].mxu0
        %v6220 = vpop.f32.mrb[0].mxu0
        %v6221 = vpop.f32.mrb[0].mxu0
        %6222 = vdwg.mxu0
        %6223 = vmatprep.subr.bf16.mxu0 0
        %6224 = vmatpush1.bf16.msra.mxu0 %v4359
        %6225 = vmatprep.subr.bf16.mxu0 0
        %6226 = vmatpush1.bf16.msra.mxu0 %v4360
        %6227 = vmatprep.subr.bf16.mxu0 0
        %6228 = vmatpush1.bf16.msra.mxu0 %v4361
        %6229 = vmatprep.subr.bf16.mxu0 0
        %6230 = vmatpush1.bf16.msra.mxu0 %v4362
        %6231 = vmatprep.subr.bf16.mxu0 0
        %6232 = vmatpush1.bf16.msra.mxu0 %v4363
        %6233 = vmatprep.subr.bf16.mxu0 0
        %6234 = vmatpush1.bf16.msra.mxu0 %v4364
        %6235 = vmatprep.subr.bf16.mxu0 0
        %6236 = vmatpush1.bf16.msra.mxu0 %v4365
        %6237 = vmatprep.subr.bf16.mxu0 0
        %6238 = vmatpush1.bf16.msra.mxu0 %v4366
        %6239 = vmatprep.subr.bf16.mxu0 0
        %6240 = vmatpush1.bf16.msra.mxu0 0
        %6241 = vmatprep.subr.bf16.mxu0 0
        %6242 = vmatpush1.bf16.msra.mxu0 0
        %6243 = vmatprep.subr.bf16.mxu0 0
        %6244 = vmatpush1.bf16.msra.mxu0 0
        %6245 = vmatprep.subr.bf16.mxu0 0
        %6246 = vmatpush1.bf16.msra.mxu0 0
        %6247 = vmatprep.subr.bf16.mxu0 0
        %6248 = vmatpush1.bf16.msra.mxu0 0
        %6249 = vmatprep.subr.bf16.mxu0 0
        %6250 = vmatpush1.bf16.msra.mxu0 0
        %6251 = vmatprep.subr.bf16.mxu0 0
        %6252 = vmatpush1.bf16.msra.mxu0 0
        %6253 = vmatprep.subr.bf16.mxu0 0
        %6254 = vmatpush1.bf16.msra.mxu0 0
        %6255 = vmatprep.mubr.bf16.mxu0 0
        %6256 = vmatmul.mubr.bf16.gmra.mrb[0].mxu0 %v614
        %v6257 = vpop.f32.mrb[0].mxu0
        %v6258 = vadd.f32 %v6218, %v6257
        %v6259 = vpop.f32.mrb[0].mxu0
        %v6260 = vpop.f32.mrb[0].mxu0
        %v6261 = vpop.f32.mrb[0].mxu0
        %6262 = vdwg.mxu0
        %v6263 = vadd.f32 %v547, %v6258
        %6264 = vst [vmem:[#allocation2] sm:$0xff] %v6263
      $region56: #{prn_forward.1} parent=47 // pred_fallthru
        _
      // Predicated region
      $region57: #{prn_forward.1} parent=47 // pred_check
        _
      $region58: #{prn_forward.1} parent=47 // pred_check_branch
        %6266 = sbr.rel (%p401) target = $region60
      $region59: #{prn_forward.1} parent=47 // pred_region
        %v6267 = vld [vmem:[#allocation2] sm:$0xff]
        %v6268 = vld [vmem:[%s2] sm:$0x1]
        %v6270 = vlaneseq
        %v6271 = vshrl.u32 %v6270, 7
        %v6272 = vsub.s32 0, %v6271
        %v6273 = vrot.slane %v6268, %v6272
        %v6275 = vadd.f32 %v6267, %v6273
        %v6276 = vmax.f32 %v6275, 0.0
        %v6277 = vpack.c.bf16 %v6276, %v6276
        %v6278 = vld [vmem:[%s3] sm:$0xf]
        %v6279 = vld [vmem:[%s3 + $0x4] sm:$0xf]
        %v6280 = vld [vmem:[%s3 + $0x8] sm:$0xf]
        %v6281 = vld [vmem:[%s3 + $0xc] sm:$0xf]
        %v6282 = vld [vmem:[%s3 + $0x10] sm:$0xf]
        %v6283 = vld [vmem:[%s3 + $0x14] sm:$0xf]
        %v6284 = vld [vmem:[%s3 + $0x18] sm:$0xf]
        %v6285 = vld [vmem:[%s3 + $0x1c] sm:$0xf]
        %v6286 = vld [vmem:[%s3 + $0x20] sm:$0xf]
        %v6287 = vld [vmem:[%s3 + $0x24] sm:$0xf]
        %v6288 = vld [vmem:[%s3 + $0x28] sm:$0xf]
        %v6289 = vld [vmem:[%s3 + $0x2c] sm:$0xf]
        %v6290 = vld [vmem:[%s3 + $0x30] sm:$0xf]
        %v6291 = vld [vmem:[%s3 + $0x34] sm:$0xf]
        %v6292 = vld [vmem:[%s3 + $0x38] sm:$0xf]
        %v6293 = vld [vmem:[%s3 + $0x3c] sm:$0xf]
        %v6294 = vld [vmem:[%s4] sm:$0x1]
        %v6296 = vlaneseq
        %v6297 = vshrl.u32 %v6296, 7
        %v6298 = vsub.s32 0, %v6297
        %v6299 = vrot.slane %v6294, %v6298
        %v6317 = vunpack.c.l.b16 %v6278
        %v6318 = vunpack.c.l.b16 %v6279
        %v6319 = vunpack.c.l.b16 %v6280
        %v6320 = vunpack.c.l.b16 %v6281
        %v6321 = vunpack.c.l.b16 %v6282
        %v6322 = vunpack.c.l.b16 %v6283
        %v6323 = vunpack.c.l.b16 %v6284
        %v6324 = vunpack.c.l.b16 %v6285
        %v6325 = vunpack.c.l.b16 %v6286
        %v6326 = vunpack.c.l.b16 %v6287
        %v6327 = vunpack.c.l.b16 %v6288
        %v6328 = vunpack.c.l.b16 %v6289
        %v6329 = vunpack.c.l.b16 %v6290
        %v6330 = vunpack.c.l.b16 %v6291
        %v6331 = vunpack.c.l.b16 %v6292
        %v6332 = vunpack.c.l.b16 %v6293
        %v6333 = vpack.c.b16 %v6318, %v6317
        %v6334 = vpack.c.b16 %v6320, %v6319
        %v6335 = vpack.c.b16 %v6322, %v6321
        %v6336 = vpack.c.b16 %v6324, %v6323
        %v6337 = vpack.c.b16 %v6326, %v6325
        %v6338 = vpack.c.b16 %v6328, %v6327
        %v6339 = vpack.c.b16 %v6330, %v6329
        %v6340 = vpack.c.b16 %v6332, %v6331
        %6349 = vmatprep.subr.bf16.mxu0 0
        %6350 = vmatpush1.bf16.msra.mxu0 %v6333
        %6351 = vmatprep.subr.bf16.mxu0 0
        %6352 = vmatpush1.bf16.msra.mxu0 %v6334
        %6353 = vmatprep.subr.bf16.mxu0 0
        %6354 = vmatpush1.bf16.msra.mxu0 %v6335
        %6355 = vmatprep.subr.bf16.mxu0 0
        %6356 = vmatpush1.bf16.msra.mxu0 %v6336
        %6357 = vmatprep.subr.bf16.mxu0 0
        %6358 = vmatpush1.bf16.msra.mxu0 %v6337
        %6359 = vmatprep.subr.bf16.mxu0 0
        %6360 = vmatpush1.bf16.msra.mxu0 %v6338
        %6361 = vmatprep.subr.bf16.mxu0 0
        %6362 = vmatpush1.bf16.msra.mxu0 %v6339
        %6363 = vmatprep.subr.bf16.mxu0 0
        %6364 = vmatpush1.bf16.msra.mxu0 %v6340
        %6365 = vmatprep.subr.bf16.mxu0 0
        %6366 = vmatpush1.bf16.msra.mxu0 0
        %6367 = vmatprep.subr.bf16.mxu0 0
        %6368 = vmatpush1.bf16.msra.mxu0 0
        %6369 = vmatprep.subr.bf16.mxu0 0
        %6370 = vmatpush1.bf16.msra.mxu0 0
        %6371 = vmatprep.subr.bf16.mxu0 0
        %6372 = vmatpush1.bf16.msra.mxu0 0
        %6373 = vmatprep.subr.bf16.mxu0 0
        %6374 = vmatpush1.bf16.msra.mxu0 0
        %6375 = vmatprep.subr.bf16.mxu0 0
        %6376 = vmatpush1.bf16.msra.mxu0 0
        %6377 = vmatprep.subr.bf16.mxu0 0
        %6378 = vmatpush1.bf16.msra.mxu0 0
        %6379 = vmatprep.subr.bf16.mxu0 0
        %6380 = vmatpush1.bf16.msra.mxu0 0
        %6381 = vmatprep.mubr.bf16.mxu0 0
        %6382 = vmatmul.mubr.bf16.gmra.mrb[0].mxu0 %v6277
        %v6383 = vpop.f32.mrb[0].mxu0
        %v6384 = vadd.f32 %v6299, %v6383
        %v6385 = vpop.f32.mrb[0].mxu0
        %v6386 = vpop.f32.mrb[0].mxu0
        %v6387 = vpop.f32.mrb[0].mxu0
        %6388 = vdwg.mxu0
        %v6389 = vmax.f32 %v6384, 0.0
        %6390 = vst [vmem:[#allocation2] sm:$0xff] %v6389
      $region60: #{prn_forward.1} parent=47 // pred_fallthru
        _
      %p6391 = scmp.eq.s32.totalorder %s22, 1
      // Predicated region
      $region61: #{prn_forward.1} parent=47 // pred_check
        %p6392 = pneg %p6391
      $region62: #{prn_forward.1} parent=47 // pred_check_branch
        %6394 = sbr.rel (%p6392) target = $region64
      $region63: #{prn_forward.1} parent=47 // pred_region
        %v6395 = vld [vmem:[#allocation2] sm:$0xff]
        %v6396 = vpack.c.bf16 %v6395, %v6395
        %v6397 = vld [vmem:[%s384] sm:$0xff]
        %v6398 = vld [vmem:[%s384 + $0x8] sm:$0xff]
        %v6399 = vld [vmem:[%s384 + $0x10] sm:$0xff]
        %v6400 = vld [vmem:[%s384 + $0x18] sm:$0xff]
        %v6401 = vld [vmem:[%s384 + $0x20] sm:$0xff]
        %v6402 = vld [vmem:[%s384 + $0x28] sm:$0xff]
        %v6403 = vld [vmem:[%s384 + $0x30] sm:$0xff]
        %v6404 = vld [vmem:[%s384 + $0x38] sm:$0xff]
        %v6405 = vld [vmem:[%s384 + $0x40] sm:$0xff]
        %v6406 = vld [vmem:[%s384 + $0x48] sm:$0xff]
        %v6407 = vld [vmem:[%s384 + $0x50] sm:$0xff]
        %v6408 = vld [vmem:[%s384 + $0x58] sm:$0xff]
        %v6409 = vld [vmem:[%s384 + $0x60] sm:$0xff]
        %v6410 = vld [vmem:[%s384 + $0x68] sm:$0xff]
        %v6411 = vld [vmem:[%s384 + $0x70] sm:$0xff]
        %v6412 = vld [vmem:[%s384 + $0x78] sm:$0xff]
        %v6413 = vld [vmem:[%s384 + $0x80] sm:$0xff]
        %v6414 = vld [vmem:[%s384 + $0x88] sm:$0xff]
        %v6415 = vld [vmem:[%s384 + $0x90] sm:$0xff]
        %v6416 = vld [vmem:[%s384 + $0x98] sm:$0xff]
        %v6417 = vld [vmem:[%s384 + $0xa0] sm:$0xff]
        %v6418 = vld [vmem:[%s384 + $0xa8] sm:$0xff]
        %v6419 = vld [vmem:[%s384 + $0xb0] sm:$0xff]
        %v6420 = vld [vmem:[%s384 + $0xb8] sm:$0xff]
        %v6421 = vld [vmem:[%s384 + $0xc0] sm:$0xff]
        %v6422 = vld [vmem:[%s384 + $0xc8] sm:$0xff]
        %v6423 = vld [vmem:[%s384 + $0xd0] sm:$0xff]
        %v6424 = vld [vmem:[%s384 + $0xd8] sm:$0xff]
        %v6425 = vld [vmem:[%s384 + $0xe0] sm:$0xff]
        %v6426 = vld [vmem:[%s384 + $0xe8] sm:$0xff]
        %v6427 = vld [vmem:[%s384 + $0xf0] sm:$0xff]
        %v6428 = vld [vmem:[%s384 + $0xf8] sm:$0xff]
        %v6429 = vld [vmem:[%s384 + $0x100] sm:$0xff]
        %v6430 = vld [vmem:[%s384 + $0x108] sm:$0xf]
        %v6431 = vld [vmem:[%s384 + $0x10c] sm:$0xff]
        %v6432 = vld [vmem:[%s384 + $0x114] sm:$0xff]
        %v6433 = vld [vmem:[%s384 + $0x11c] sm:$0xff]
        %v6434 = vld [vmem:[%s384 + $0x124] sm:$0xff]
        %v6435 = vld [vmem:[%s384 + $0x12c] sm:$0xff]
        %v6436 = vld [vmem:[%s384 + $0x134] sm:$0xff]
        %v6437 = vld [vmem:[%s384 + $0x13c] sm:$0xff]
        %v6438 = vld [vmem:[%s384 + $0x144] sm:$0xff]
        %v6439 = vld [vmem:[%s384 + $0x14c] sm:$0xff]
        %v6440 = vld [vmem:[%s384 + $0x154] sm:$0xff]
        %v6441 = vld [vmem:[%s384 + $0x15c] sm:$0xff]
        %v6442 = vld [vmem:[%s384 + $0x164] sm:$0xff]
        %v6443 = vld [vmem:[%s384 + $0x16c] sm:$0xff]
        %v6444 = vld [vmem:[%s384 + $0x174] sm:$0xff]
        %v6445 = vld [vmem:[%s384 + $0x17c] sm:$0xff]
        %v6446 = vld [vmem:[%s384 + $0x184] sm:$0xff]
        %v6447 = vld [vmem:[%s384 + $0x18c] sm:$0xff]
        %v6448 = vld [vmem:[%s384 + $0x194] sm:$0xff]
        %v6449 = vld [vmem:[%s384 + $0x19c] sm:$0xff]
        %v6450 = vld [vmem:[%s384 + $0x1a4] sm:$0xff]
        %v6451 = vld [vmem:[%s384 + $0x1ac] sm:$0xff]
        %v6452 = vld [vmem:[%s384 + $0x1b4] sm:$0xff]
        %v6453 = vld [vmem:[%s384 + $0x1bc] sm:$0xff]
        %v6454 = vld [vmem:[%s384 + $0x1c4] sm:$0xff]
        %v6455 = vld [vmem:[%s384 + $0x1cc] sm:$0xff]
        %v6456 = vld [vmem:[%s384 + $0x1d4] sm:$0xff]
        %v6457 = vld [vmem:[%s384 + $0x1dc] sm:$0xff]
        %v6458 = vld [vmem:[%s384 + $0x1e4] sm:$0xff]
        %v6459 = vld [vmem:[%s384 + $0x1ec] sm:$0xff]
        %v6460 = vld [vmem:[%s384 + $0x1f4] sm:$0xff]
        %v6461 = vld [vmem:[%s384 + $0x1fc] sm:$0xff]
        %v6462 = vld [vmem:[%s384 + $0x204] sm:$0xff]
        %v6463 = vld [vmem:[%s384 + $0x20c] sm:$0xff]
        %v6464 = vld [vmem:[%s384 + $0x214] sm:$0xf]
        %v6465 = vld [vmem:[%s384 + $0x218] sm:$0xff]
        %v6466 = vld [vmem:[%s384 + $0x220] sm:$0xff]
        %v6467 = vld [vmem:[%s384 + $0x228] sm:$0xff]
        %v6468 = vld [vmem:[%s384 + $0x230] sm:$0xff]
        %v6469 = vld [vmem:[%s384 + $0x238] sm:$0xff]
        %v6470 = vld [vmem:[%s384 + $0x240] sm:$0xff]
        %v6471 = vld [vmem:[%s384 + $0x248] sm:$0xff]
        %v6472 = vld [vmem:[%s384 + $0x250] sm:$0xff]
        %v6473 = vld [vmem:[%s384 + $0x258] sm:$0xff]
        %v6474 = vld [vmem:[%s384 + $0x260] sm:$0xff]
        %v6475 = vld [vmem:[%s384 + $0x268] sm:$0xff]
        %v6476 = vld [vmem:[%s384 + $0x270] sm:$0xff]
        %v6477 = vld [vmem:[%s384 + $0x278] sm:$0xff]
        %v6478 = vld [vmem:[%s384 + $0x280] sm:$0xff]
        %v6479 = vld [vmem:[%s384 + $0x288] sm:$0xff]
        %v6480 = vld [vmem:[%s384 + $0x290] sm:$0xff]
        %v6481 = vld [vmem:[%s384 + $0x298] sm:$0xff]
        %v6482 = vld [vmem:[%s384 + $0x2a0] sm:$0xff]
        %v6483 = vld [vmem:[%s384 + $0x2a8] sm:$0xff]
        %v6484 = vld [vmem:[%s384 + $0x2b0] sm:$0xff]
        %v6485 = vld [vmem:[%s384 + $0x2b8] sm:$0xff]
        %v6486 = vld [vmem:[%s384 + $0x2c0] sm:$0xff]
        %v6487 = vld [vmem:[%s384 + $0x2c8] sm:$0xff]
        %v6488 = vld [vmem:[%s384 + $0x2d0] sm:$0xff]
        %v6489 = vld [vmem:[%s384 + $0x2d8] sm:$0xff]
        %v6490 = vld [vmem:[%s384 + $0x2e0] sm:$0xff]
        %v6491 = vld [vmem:[%s384 + $0x2e8] sm:$0xff]
        %v6492 = vld [vmem:[%s384 + $0x2f0] sm:$0xff]
        %v6493 = vld [vmem:[%s384 + $0x2f8] sm:$0xff]
        %v6494 = vld [vmem:[%s384 + $0x300] sm:$0xff]
        %v6495 = vld [vmem:[%s384 + $0x308] sm:$0xff]
        %v6496 = vld [vmem:[%s384 + $0x310] sm:$0xff]
        %v6497 = vld [vmem:[%s384 + $0x318] sm:$0xff]
        %v6498 = vld [vmem:[%s384 + $0x320] sm:$0xf]
        %v6499 = vld [vmem:[%s384 + $0x324] sm:$0xff]
        %v6500 = vld [vmem:[%s384 + $0x32c] sm:$0xff]
        %v6501 = vld [vmem:[%s384 + $0x334] sm:$0xff]
        %v6502 = vld [vmem:[%s384 + $0x33c] sm:$0xff]
        %v6503 = vld [vmem:[%s384 + $0x344] sm:$0xff]
        %v6504 = vld [vmem:[%s384 + $0x34c] sm:$0xff]
        %v6505 = vld [vmem:[%s384 + $0x354] sm:$0xff]
        %v6506 = vld [vmem:[%s384 + $0x35c] sm:$0xff]
        %v6507 = vld [vmem:[%s384 + $0x364] sm:$0xff]
        %v6508 = vld [vmem:[%s384 + $0x36c] sm:$0xff]
        %v6509 = vld [vmem:[%s384 + $0x374] sm:$0xff]
        %v6510 = vld [vmem:[%s384 + $0x37c] sm:$0xff]
        %v6511 = vld [vmem:[%s384 + $0x384] sm:$0xff]
        %v6512 = vld [vmem:[%s384 + $0x38c] sm:$0xff]
        %v6513 = vld [vmem:[%s384 + $0x394] sm:$0xff]
        %v6514 = vld [vmem:[%s384 + $0x39c] sm:$0xff]
        %v6515 = vld [vmem:[%s384 + $0x3a4] sm:$0xff]
        %v6516 = vld [vmem:[%s384 + $0x3ac] sm:$0xff]
        %v6517 = vld [vmem:[%s384 + $0x3b4] sm:$0xff]
        %v6518 = vld [vmem:[%s384 + $0x3bc] sm:$0xff]
        %v6519 = vld [vmem:[%s384 + $0x3c4] sm:$0xff]
        %v6520 = vld [vmem:[%s384 + $0x3cc] sm:$0xff]
        %v6521 = vld [vmem:[%s384 + $0x3d4] sm:$0xff]
        %v6522 = vld [vmem:[%s384 + $0x3dc] sm:$0xff]
        %v6523 = vld [vmem:[%s384 + $0x3e4] sm:$0xff]
        %v6524 = vld [vmem:[%s384 + $0x3ec] sm:$0xff]
        %v6525 = vld [vmem:[%s384 + $0x3f4] sm:$0xff]
        %v6526 = vld [vmem:[%s384 + $0x3fc] sm:$0xff]
        %v6527 = vld [vmem:[%s384 + $0x404] sm:$0xff]
        %v6528 = vld [vmem:[%s384 + $0x40c] sm:$0xff]
        %v6529 = vld [vmem:[%s384 + $0x414] sm:$0xff]
        %v6530 = vld [vmem:[%s384 + $0x41c] sm:$0xff]
        %v6531 = vld [vmem:[%s384 + $0x424] sm:$0xff]
        %v6532 = vld [vmem:[%s384 + $0x42c] sm:$0xf]
        %v6533 = vld [vmem:[%s384 + $0x430] sm:$0xff]
        %v6534 = vld [vmem:[%s384 + $0x438] sm:$0xff]
        %v6535 = vld [vmem:[%s384 + $0x440] sm:$0xff]
        %v6536 = vld [vmem:[%s384 + $0x448] sm:$0xff]
        %v6537 = vld [vmem:[%s384 + $0x450] sm:$0xff]
        %v6538 = vld [vmem:[%s384 + $0x458] sm:$0xff]
        %v6539 = vld [vmem:[%s384 + $0x460] sm:$0xff]
        %v6540 = vld [vmem:[%s384 + $0x468] sm:$0xff]
        %v6541 = vld [vmem:[%s384 + $0x470] sm:$0xff]
        %v6542 = vld [vmem:[%s384 + $0x478] sm:$0xff]
        %v6543 = vld [vmem:[%s384 + $0x480] sm:$0xff]
        %v6544 = vld [vmem:[%s384 + $0x488] sm:$0xff]
        %v6545 = vld [vmem:[%s384 + $0x490] sm:$0xff]
        %v6546 = vld [vmem:[%s384 + $0x498] sm:$0xff]
        %v6547 = vld [vmem:[%s384 + $0x4a0] sm:$0xff]
        %v6548 = vld [vmem:[%s384 + $0x4a8] sm:$0xff]
        %v6549 = vld [vmem:[%s384 + $0x4b0] sm:$0xff]
        %v6550 = vld [vmem:[%s384 + $0x4b8] sm:$0xff]
        %v6551 = vld [vmem:[%s384 + $0x4c0] sm:$0xff]
        %v6552 = vld [vmem:[%s384 + $0x4c8] sm:$0xff]
        %v6553 = vld [vmem:[%s384 + $0x4d0] sm:$0xff]
        %v6554 = vld [vmem:[%s384 + $0x4d8] sm:$0xff]
        %v6555 = vld [vmem:[%s384 + $0x4e0] sm:$0xff]
        %v6556 = vld [vmem:[%s384 + $0x4e8] sm:$0xff]
        %v6557 = vld [vmem:[%s384 + $0x4f0] sm:$0xff]
        %v6558 = vld [vmem:[%s384 + $0x4f8] sm:$0xff]
        %v6559 = vld [vmem:[%s384 + $0x500] sm:$0xff]
        %v6560 = vld [vmem:[%s384 + $0x508] sm:$0xff]
        %v6561 = vld [vmem:[%s384 + $0x510] sm:$0xff]
        %v6562 = vld [vmem:[%s384 + $0x518] sm:$0xff]
        %v6563 = vld [vmem:[%s384 + $0x520] sm:$0xff]
        %v6564 = vld [vmem:[%s384 + $0x528] sm:$0xff]
        %v6565 = vld [vmem:[%s384 + $0x530] sm:$0xff]
        %v6566 = vld [vmem:[%s384 + $0x538] sm:$0xf]
        %v6567 = vld [vmem:[%s384 + $0x53c] sm:$0xff]
        %v6568 = vld [vmem:[%s384 + $0x544] sm:$0xff]
        %v6569 = vld [vmem:[%s384 + $0x54c] sm:$0xff]
        %v6570 = vld [vmem:[%s384 + $0x554] sm:$0xff]
        %v6571 = vld [vmem:[%s384 + $0x55c] sm:$0xff]
        %v6572 = vld [vmem:[%s384 + $0x564] sm:$0xff]
        %v6573 = vld [vmem:[%s384 + $0x56c] sm:$0xff]
        %v6574 = vld [vmem:[%s384 + $0x574] sm:$0xff]
        %v6575 = vld [vmem:[%s384 + $0x57c] sm:$0xff]
        %v6576 = vld [vmem:[%s384 + $0x584] sm:$0xff]
        %v6577 = vld [vmem:[%s384 + $0x58c] sm:$0xff]
        %v6578 = vld [vmem:[%s384 + $0x594] sm:$0xff]
        %v6579 = vld [vmem:[%s384 + $0x59c] sm:$0xff]
        %v6580 = vld [vmem:[%s384 + $0x5a4] sm:$0xff]
        %v6581 = vld [vmem:[%s384 + $0x5ac] sm:$0xff]
        %v6582 = vld [vmem:[%s384 + $0x5b4] sm:$0xff]
        %v6583 = vld [vmem:[%s384 + $0x5bc] sm:$0xff]
        %v6584 = vld [vmem:[%s384 + $0x5c4] sm:$0xff]
        %v6585 = vld [vmem:[%s384 + $0x5cc] sm:$0xff]
        %v6586 = vld [vmem:[%s384 + $0x5d4] sm:$0xff]
        %v6587 = vld [vmem:[%s384 + $0x5dc] sm:$0xff]
        %v6588 = vld [vmem:[%s384 + $0x5e4] sm:$0xff]
        %v6589 = vld [vmem:[%s384 + $0x5ec] sm:$0xff]
        %v6590 = vld [vmem:[%s384 + $0x5f4] sm:$0xff]
        %v6591 = vld [vmem:[%s384 + $0x5fc] sm:$0xff]
        %v6592 = vld [vmem:[%s384 + $0x604] sm:$0xff]
        %v6593 = vld [vmem:[%s384 + $0x60c] sm:$0xff]
        %v6594 = vld [vmem:[%s384 + $0x614] sm:$0xff]
        %v6595 = vld [vmem:[%s384 + $0x61c] sm:$0xff]
        %v6596 = vld [vmem:[%s384 + $0x624] sm:$0xff]
        %v6597 = vld [vmem:[%s384 + $0x62c] sm:$0xff]
        %v6598 = vld [vmem:[%s384 + $0x634] sm:$0xff]
        %v6599 = vld [vmem:[%s384 + $0x63c] sm:$0xff]
        %v6600 = vld [vmem:[%s384 + $0x644] sm:$0xf]
        %v6601 = vld [vmem:[%s384 + $0x648] sm:$0xff]
        %v6602 = vld [vmem:[%s384 + $0x650] sm:$0xff]
        %v6603 = vld [vmem:[%s384 + $0x658] sm:$0xff]
        %v6604 = vld [vmem:[%s384 + $0x660] sm:$0xff]
        %v6605 = vld [vmem:[%s384 + $0x668] sm:$0xff]
        %v6606 = vld [vmem:[%s384 + $0x670] sm:$0xff]
        %v6607 = vld [vmem:[%s384 + $0x678] sm:$0xff]
        %v6608 = vld [vmem:[%s384 + $0x680] sm:$0xff]
        %v6609 = vld [vmem:[%s384 + $0x688] sm:$0xff]
        %v6610 = vld [vmem:[%s384 + $0x690] sm:$0xff]
        %v6611 = vld [vmem:[%s384 + $0x698] sm:$0xff]
        %v6612 = vld [vmem:[%s384 + $0x6a0] sm:$0xff]
        %v6613 = vld [vmem:[%s384 + $0x6a8] sm:$0xff]
        %v6614 = vld [vmem:[%s384 + $0x6b0] sm:$0xff]
        %v6615 = vld [vmem:[%s384 + $0x6b8] sm:$0xff]
        %v6616 = vld [vmem:[%s384 + $0x6c0] sm:$0xff]
        %v6617 = vld [vmem:[%s384 + $0x6c8] sm:$0xff]
        %v6618 = vld [vmem:[%s384 + $0x6d0] sm:$0xff]
        %v6619 = vld [vmem:[%s384 + $0x6d8] sm:$0xff]
        %v6620 = vld [vmem:[%s384 + $0x6e0] sm:$0xff]
        %v6621 = vld [vmem:[%s384 + $0x6e8] sm:$0xff]
        %v6622 = vld [vmem:[%s384 + $0x6f0] sm:$0xff]
        %v6623 = vld [vmem:[%s384 + $0x6f8] sm:$0xff]
        %v6624 = vld [vmem:[%s384 + $0x700] sm:$0xff]
        %v6625 = vld [vmem:[%s384 + $0x708] sm:$0xff]
        %v6626 = vld [vmem:[%s384 + $0x710] sm:$0xff]
        %v6627 = vld [vmem:[%s384 + $0x718] sm:$0xff]
        %v6628 = vld [vmem:[%s384 + $0x720] sm:$0xff]
        %v6629 = vld [vmem:[%s384 + $0x728] sm:$0xff]
        %v6630 = vld [vmem:[%s384 + $0x730] sm:$0xff]
        %v6631 = vld [vmem:[%s384 + $0x738] sm:$0xff]
        %v6632 = vld [vmem:[%s384 + $0x740] sm:$0xff]
        %v6633 = vld [vmem:[%s384 + $0x748] sm:$0xff]
        %v6634 = vld [vmem:[%s384 + $0x750] sm:$0xf]
        %v6635 = vld [vmem:[%s384 + $0x754] sm:$0xff]
        %v6636 = vld [vmem:[%s384 + $0x75c] sm:$0xff]
        %v6637 = vld [vmem:[%s384 + $0x764] sm:$0xff]
        %v6638 = vld [vmem:[%s384 + $0x76c] sm:$0xff]
        %v6639 = vld [vmem:[%s384 + $0x774] sm:$0xff]
        %v6640 = vld [vmem:[%s384 + $0x77c] sm:$0xff]
        %v6641 = vld [vmem:[%s384 + $0x784] sm:$0xff]
        %v6642 = vld [vmem:[%s384 + $0x78c] sm:$0xff]
        %v6643 = vld [vmem:[%s384 + $0x794] sm:$0xff]
        %v6644 = vld [vmem:[%s384 + $0x79c] sm:$0xff]
        %v6645 = vld [vmem:[%s384 + $0x7a4] sm:$0xff]
        %v6646 = vld [vmem:[%s384 + $0x7ac] sm:$0xff]
        %v6647 = vld [vmem:[%s384 + $0x7b4] sm:$0xff]
        %v6648 = vld [vmem:[%s384 + $0x7bc] sm:$0xff]
        %v6649 = vld [vmem:[%s384 + $0x7c4] sm:$0xff]
        %v6650 = vld [vmem:[%s384 + $0x7cc] sm:$0xff]
        %v6651 = vld [vmem:[%s384 + $0x7d4] sm:$0xff]
        %v6652 = vld [vmem:[%s384 + $0x7dc] sm:$0xff]
        %v6653 = vld [vmem:[%s384 + $0x7e4] sm:$0xff]
        %v6654 = vld [vmem:[%s384 + $0x7ec] sm:$0xff]
        %v6655 = vld [vmem:[%s384 + $0x7f4] sm:$0xff]
        %v6656 = vld [vmem:[%s384 + $0x7fc] sm:$0xff]
        %v6657 = vld [vmem:[%s384 + $0x804] sm:$0xff]
        %v6658 = vld [vmem:[%s384 + $0x80c] sm:$0xff]
        %v6659 = vld [vmem:[%s384 + $0x814] sm:$0xff]
        %v6660 = vld [vmem:[%s384 + $0x81c] sm:$0xff]
        %v6661 = vld [vmem:[%s384 + $0x824] sm:$0xff]
        %v6662 = vld [vmem:[%s384 + $0x82c] sm:$0xff]
        %v6663 = vld [vmem:[%s384 + $0x834] sm:$0xff]
        %v6664 = vld [vmem:[%s384 + $0x83c] sm:$0xff]
        %v6665 = vld [vmem:[%s384 + $0x844] sm:$0xff]
        %v6666 = vld [vmem:[%s384 + $0x84c] sm:$0xff]
        %v6667 = vld [vmem:[%s384 + $0x854] sm:$0xff]
        %v6668 = vld [vmem:[%s384 + $0x85c] sm:$0xf]
        %v6669 = vld [vmem:[%s384 + $0x860] sm:$0xff]
        %v6670 = vld [vmem:[%s384 + $0x868] sm:$0xff]
        %v6671 = vld [vmem:[%s384 + $0x870] sm:$0xff]
        %v6672 = vld [vmem:[%s384 + $0x878] sm:$0xff]
        %v6673 = vld [vmem:[%s384 + $0x880] sm:$0xff]
        %v6674 = vld [vmem:[%s384 + $0x888] sm:$0xff]
        %v6675 = vld [vmem:[%s384 + $0x890] sm:$0xff]
        %v6676 = vld [vmem:[%s384 + $0x898] sm:$0xff]
        %v6677 = vld [vmem:[%s384 + $0x8a0] sm:$0xff]
        %v6678 = vld [vmem:[%s384 + $0x8a8] sm:$0xff]
        %v6679 = vld [vmem:[%s384 + $0x8b0] sm:$0xff]
        %v6680 = vld [vmem:[%s384 + $0x8b8] sm:$0xff]
        %v6681 = vld [vmem:[%s384 + $0x8c0] sm:$0xff]
        %v6682 = vld [vmem:[%s384 + $0x8c8] sm:$0xff]
        %v6683 = vld [vmem:[%s384 + $0x8d0] sm:$0xff]
        %v6684 = vld [vmem:[%s384 + $0x8d8] sm:$0xff]
        %v6685 = vld [vmem:[%s384 + $0x8e0] sm:$0xff]
        %v6686 = vld [vmem:[%s384 + $0x8e8] sm:$0xff]
        %v6687 = vld [vmem:[%s384 + $0x8f0] sm:$0xff]
        %v6688 = vld [vmem:[%s384 + $0x8f8] sm:$0xff]
        %v6689 = vld [vmem:[%s384 + $0x900] sm:$0xff]
        %v6690 = vld [vmem:[%s384 + $0x908] sm:$0xff]
        %v6691 = vld [vmem:[%s384 + $0x910] sm:$0xff]
        %v6692 = vld [vmem:[%s384 + $0x918] sm:$0xff]
        %v6693 = vld [vmem:[%s384 + $0x920] sm:$0xff]
        %v6694 = vld [vmem:[%s384 + $0x928] sm:$0xff]
        %v6695 = vld [vmem:[%s384 + $0x930] sm:$0xff]
        %v6696 = vld [vmem:[%s384 + $0x938] sm:$0xff]
        %v6697 = vld [vmem:[%s384 + $0x940] sm:$0xff]
        %v6698 = vld [vmem:[%s384 + $0x948] sm:$0xff]
        %v6699 = vld [vmem:[%s384 + $0x950] sm:$0xff]
        %v6700 = vld [vmem:[%s384 + $0x958] sm:$0xff]
        %v6701 = vld [vmem:[%s384 + $0x960] sm:$0xff]
        %v6702 = vld [vmem:[%s384 + $0x968] sm:$0xf]
        %v6703 = vld [vmem:[%s384 + $0x96c] sm:$0xff]
        %v6704 = vld [vmem:[%s384 + $0x974] sm:$0xff]
        %v6705 = vld [vmem:[%s384 + $0x97c] sm:$0xff]
        %v6706 = vld [vmem:[%s384 + $0x984] sm:$0xff]
        %v6707 = vld [vmem:[%s384 + $0x98c] sm:$0xff]
        %v6708 = vld [vmem:[%s384 + $0x994] sm:$0xff]
        %v6709 = vld [vmem:[%s384 + $0x99c] sm:$0xff]
        %v6710 = vld [vmem:[%s384 + $0x9a4] sm:$0xff]
        %v6711 = vld [vmem:[%s384 + $0x9ac] sm:$0xff]
        %v6712 = vld [vmem:[%s384 + $0x9b4] sm:$0xff]
        %v6713 = vld [vmem:[%s384 + $0x9bc] sm:$0xff]
        %v6714 = vld [vmem:[%s384 + $0x9c4] sm:$0xff]
        %v6715 = vld [vmem:[%s384 + $0x9cc] sm:$0xff]
        %v6716 = vld [vmem:[%s384 + $0x9d4] sm:$0xff]
        %v6717 = vld [vmem:[%s384 + $0x9dc] sm:$0xff]
        %v6718 = vld [vmem:[%s384 + $0x9e4] sm:$0xff]
        %v6719 = vld [vmem:[%s384 + $0x9ec] sm:$0xff]
        %v6720 = vld [vmem:[%s384 + $0x9f4] sm:$0xff]
        %v6721 = vld [vmem:[%s384 + $0x9fc] sm:$0xff]
        %v6722 = vld [vmem:[%s384 + $0xa04] sm:$0xff]
        %v6723 = vld [vmem:[%s384 + $0xa0c] sm:$0xff]
        %v6724 = vld [vmem:[%s384 + $0xa14] sm:$0xff]
        %v6725 = vld [vmem:[%s384 + $0xa1c] sm:$0xff]
        %v6726 = vld [vmem:[%s384 + $0xa24] sm:$0xff]
        %v6727 = vld [vmem:[%s384 + $0xa2c] sm:$0xff]
        %v6728 = vld [vmem:[%s384 + $0xa34] sm:$0xff]
        %v6729 = vld [vmem:[%s384 + $0xa3c] sm:$0xff]
        %v6730 = vld [vmem:[%s384 + $0xa44] sm:$0xff]
        %v6731 = vld [vmem:[%s384 + $0xa4c] sm:$0xff]
        %v6732 = vld [vmem:[%s384 + $0xa54] sm:$0xff]
        %v6733 = vld [vmem:[%s384 + $0xa5c] sm:$0xff]
        %v6734 = vld [vmem:[%s384 + $0xa64] sm:$0xff]
        %v6735 = vld [vmem:[%s384 + $0xa6c] sm:$0xff]
        %v6736 = vld [vmem:[%s384 + $0xa74] sm:$0xf]
        %v6737 = vld [vmem:[%s384 + $0xa78] sm:$0xff]
        %v6738 = vld [vmem:[%s384 + $0xa80] sm:$0xff]
        %v6739 = vld [vmem:[%s384 + $0xa88] sm:$0xff]
        %v6740 = vld [vmem:[%s384 + $0xa90] sm:$0xff]
        %v6741 = vld [vmem:[%s384 + $0xa98] sm:$0xff]
        %v6742 = vld [vmem:[%s384 + $0xaa0] sm:$0xff]
        %v6743 = vld [vmem:[%s384 + $0xaa8] sm:$0xff]
        %v6744 = vld [vmem:[%s384 + $0xab0] sm:$0xff]
        %v6745 = vld [vmem:[%s384 + $0xab8] sm:$0xff]
        %v6746 = vld [vmem:[%s384 + $0xac0] sm:$0xff]
        %v6747 = vld [vmem:[%s384 + $0xac8] sm:$0xff]
        %v6748 = vld [vmem:[%s384 + $0xad0] sm:$0xff]
        %v6749 = vld [vmem:[%s384 + $0xad8] sm:$0xff]
        %v6750 = vld [vmem:[%s384 + $0xae0] sm:$0xff]
        %v6751 = vld [vmem:[%s384 + $0xae8] sm:$0xff]
        %v6752 = vld [vmem:[%s384 + $0xaf0] sm:$0xff]
        %v6753 = vld [vmem:[%s384 + $0xaf8] sm:$0xff]
        %v6754 = vld [vmem:[%s384 + $0xb00] sm:$0xff]
        %v6755 = vld [vmem:[%s384 + $0xb08] sm:$0xff]
        %v6756 = vld [vmem:[%s384 + $0xb10] sm:$0xff]
        %v6757 = vld [vmem:[%s384 + $0xb18] sm:$0xff]
        %v6758 = vld [vmem:[%s384 + $0xb20] sm:$0xff]
        %v6759 = vld [vmem:[%s384 + $0xb28] sm:$0xff]
        %v6760 = vld [vmem:[%s384 + $0xb30] sm:$0xff]
        %v6761 = vld [vmem:[%s384 + $0xb38] sm:$0xff]
        %v6762 = vld [vmem:[%s384 + $0xb40] sm:$0xff]
        %v6763 = vld [vmem:[%s384 + $0xb48] sm:$0xff]
        %v6764 = vld [vmem:[%s384 + $0xb50] sm:$0xff]
        %v6765 = vld [vmem:[%s384 + $0xb58] sm:$0xff]
        %v6766 = vld [vmem:[%s384 + $0xb60] sm:$0xff]
        %v6767 = vld [vmem:[%s384 + $0xb68] sm:$0xff]
        %v6768 = vld [vmem:[%s384 + $0xb70] sm:$0xff]
        %v6769 = vld [vmem:[%s384 + $0xb78] sm:$0xff]
        %v6770 = vld [vmem:[%s384 + $0xb80] sm:$0xf]
        %v6771 = vld [vmem:[%s384 + $0xb84] sm:$0xff]
        %v6772 = vld [vmem:[%s384 + $0xb8c] sm:$0xff]
        %v6773 = vld [vmem:[%s384 + $0xb94] sm:$0xff]
        %v6774 = vld [vmem:[%s384 + $0xb9c] sm:$0xff]
        %v6775 = vld [vmem:[%s384 + $0xba4] sm:$0xff]
        %v6776 = vld [vmem:[%s384 + $0xbac] sm:$0xff]
        %v6777 = vld [vmem:[%s384 + $0xbb4] sm:$0xff]
        %v6778 = vld [vmem:[%s384 + $0xbbc] sm:$0xff]
        %v6779 = vld [vmem:[%s384 + $0xbc4] sm:$0xff]
        %v6780 = vld [vmem:[%s384 + $0xbcc] sm:$0xff]
        %v6781 = vld [vmem:[%s384 + $0xbd4] sm:$0xff]
        %v6782 = vld [vmem:[%s384 + $0xbdc] sm:$0xff]
        %v6783 = vld [vmem:[%s384 + $0xbe4] sm:$0xff]
        %v6784 = vld [vmem:[%s384 + $0xbec] sm:$0xff]
        %v6785 = vld [vmem:[%s384 + $0xbf4] sm:$0xff]
        %v6786 = vld [vmem:[%s384 + $0xbfc] sm:$0xff]
        %v6787 = vld [vmem:[%s384 + $0xc04] sm:$0xff]
        %v6788 = vld [vmem:[%s384 + $0xc0c] sm:$0xff]
        %v6789 = vld [vmem:[%s384 + $0xc14] sm:$0xff]
        %v6790 = vld [vmem:[%s384 + $0xc1c] sm:$0xff]
        %v6791 = vld [vmem:[%s384 + $0xc24] sm:$0xff]
        %v6792 = vld [vmem:[%s384 + $0xc2c] sm:$0xff]
        %v6793 = vld [vmem:[%s384 + $0xc34] sm:$0xff]
        %v6794 = vld [vmem:[%s384 + $0xc3c] sm:$0xff]
        %v6795 = vld [vmem:[%s384 + $0xc44] sm:$0xff]
        %v6796 = vld [vmem:[%s384 + $0xc4c] sm:$0xff]
        %v6797 = vld [vmem:[%s384 + $0xc54] sm:$0xff]
        %v6798 = vld [vmem:[%s384 + $0xc5c] sm:$0xff]
        %v6799 = vld [vmem:[%s384 + $0xc64] sm:$0xff]
        %v6800 = vld [vmem:[%s384 + $0xc6c] sm:$0xff]
        %v6801 = vld [vmem:[%s384 + $0xc74] sm:$0xff]
        %v6802 = vld [vmem:[%s384 + $0xc7c] sm:$0xff]
        %v6803 = vld [vmem:[%s384 + $0xc84] sm:$0xff]
        %v6804 = vld [vmem:[%s384 + $0xc8c] sm:$0xf]
        %v6805 = vld [vmem:[%s384 + $0xc90] sm:$0xff]
        %v6806 = vld [vmem:[%s384 + $0xc98] sm:$0xff]
        %v6807 = vld [vmem:[%s384 + $0xca0] sm:$0xff]
        %v6808 = vld [vmem:[%s384 + $0xca8] sm:$0xff]
        %v6809 = vld [vmem:[%s384 + $0xcb0] sm:$0xff]
        %v6810 = vld [vmem:[%s384 + $0xcb8] sm:$0xff]
        %v6811 = vld [vmem:[%s384 + $0xcc0] sm:$0xff]
        %v6812 = vld [vmem:[%s384 + $0xcc8] sm:$0xff]
        %v6813 = vld [vmem:[%s384 + $0xcd0] sm:$0xff]
        %v6814 = vld [vmem:[%s384 + $0xcd8] sm:$0xff]
        %v6815 = vld [vmem:[%s384 + $0xce0] sm:$0xff]
        %v6816 = vld [vmem:[%s384 + $0xce8] sm:$0xff]
        %v6817 = vld [vmem:[%s384 + $0xcf0] sm:$0xff]
        %v6818 = vld [vmem:[%s384 + $0xcf8] sm:$0xff]
        %v6819 = vld [vmem:[%s384 + $0xd00] sm:$0xff]
        %v6820 = vld [vmem:[%s384 + $0xd08] sm:$0xff]
        %v6821 = vld [vmem:[%s384 + $0xd10] sm:$0xff]
        %v6822 = vld [vmem:[%s384 + $0xd18] sm:$0xff]
        %v6823 = vld [vmem:[%s384 + $0xd20] sm:$0xff]
        %v6824 = vld [vmem:[%s384 + $0xd28] sm:$0xff]
        %v6825 = vld [vmem:[%s384 + $0xd30] sm:$0xff]
        %v6826 = vld [vmem:[%s384 + $0xd38] sm:$0xff]
        %v6827 = vld [vmem:[%s384 + $0xd40] sm:$0xff]
        %v6828 = vld [vmem:[%s384 + $0xd48] sm:$0xff]
        %v6829 = vld [vmem:[%s384 + $0xd50] sm:$0xff]
        %v6830 = vld [vmem:[%s384 + $0xd58] sm:$0xff]
        %v6831 = vld [vmem:[%s384 + $0xd60] sm:$0xff]
        %v6832 = vld [vmem:[%s384 + $0xd68] sm:$0xff]
        %v6833 = vld [vmem:[%s384 + $0xd70] sm:$0xff]
        %v6834 = vld [vmem:[%s384 + $0xd78] sm:$0xff]
        %v6835 = vld [vmem:[%s384 + $0xd80] sm:$0xff]
        %v6836 = vld [vmem:[%s384 + $0xd88] sm:$0xff]
        %v6837 = vld [vmem:[%s384 + $0xd90] sm:$0xff]
        %v6838 = vld [vmem:[%s384 + $0xd98] sm:$0xf]
        %v6839 = vld [vmem:[%s384 + $0xd9c] sm:$0xff]
        %v6840 = vld [vmem:[%s384 + $0xda4] sm:$0xff]
        %v6841 = vld [vmem:[%s384 + $0xdac] sm:$0xff]
        %v6842 = vld [vmem:[%s384 + $0xdb4] sm:$0xff]
        %v6843 = vld [vmem:[%s384 + $0xdbc] sm:$0xff]
        %v6844 = vld [vmem:[%s384 + $0xdc4] sm:$0xff]
        %v6845 = vld [vmem:[%s384 + $0xdcc] sm:$0xff]
        %v6846 = vld [vmem:[%s384 + $0xdd4] sm:$0xff]
        %v6847 = vld [vmem:[%s384 + $0xddc] sm:$0xff]
        %v6848 = vld [vmem:[%s384 + $0xde4] sm:$0xff]
        %v6849 = vld [vmem:[%s384 + $0xdec] sm:$0xff]
        %v6850 = vld [vmem:[%s384 + $0xdf4] sm:$0xff]
        %v6851 = vld [vmem:[%s384 + $0xdfc] sm:$0xff]
        %v6852 = vld [vmem:[%s384 + $0xe04] sm:$0xff]
        %v6853 = vld [vmem:[%s384 + $0xe0c] sm:$0xff]
        %v6854 = vld [vmem:[%s384 + $0xe14] sm:$0xff]
        %v6855 = vld [vmem:[%s384 + $0xe1c] sm:$0xff]
        %v6856 = vld [vmem:[%s384 + $0xe24] sm:$0xff]
        %v6857 = vld [vmem:[%s384 + $0xe2c] sm:$0xff]
        %v6858 = vld [vmem:[%s384 + $0xe34] sm:$0xff]
        %v6859 = vld [vmem:[%s384 + $0xe3c] sm:$0xff]
        %v6860 = vld [vmem:[%s384 + $0xe44] sm:$0xff]
        %v6861 = vld [vmem:[%s384 + $0xe4c] sm:$0xff]
        %v6862 = vld [vmem:[%s384 + $0xe54] sm:$0xff]
        %v6863 = vld [vmem:[%s384 + $0xe5c] sm:$0xff]
        %v6864 = vld [vmem:[%s384 + $0xe64] sm:$0xff]
        %v6865 = vld [vmem:[%s384 + $0xe6c] sm:$0xff]
        %v6866 = vld [vmem:[%s384 + $0xe74] sm:$0xff]
        %v6867 = vld [vmem:[%s384 + $0xe7c] sm:$0xff]
        %v6868 = vld [vmem:[%s384 + $0xe84] sm:$0xff]
        %v6869 = vld [vmem:[%s384 + $0xe8c] sm:$0xff]
        %v6870 = vld [vmem:[%s384 + $0xe94] sm:$0xff]
        %v6871 = vld [vmem:[%s384 + $0xe9c] sm:$0xff]
        %v6872 = vld [vmem:[%s384 + $0xea4] sm:$0xf]
        %v6873 = vld [vmem:[%s384 + $0xea8] sm:$0xff]
        %v6874 = vld [vmem:[%s384 + $0xeb0] sm:$0xff]
        %v6875 = vld [vmem:[%s384 + $0xeb8] sm:$0xff]
        %v6876 = vld [vmem:[%s384 + $0xec0] sm:$0xff]
        %v6877 = vld [vmem:[%s384 + $0xec8] sm:$0xff]
        %v6878 = vld [vmem:[%s384 + $0xed0] sm:$0xff]
        %v6879 = vld [vmem:[%s384 + $0xed8] sm:$0xff]
        %v6880 = vld [vmem:[%s384 + $0xee0] sm:$0xff]
        %v6881 = vld [vmem:[%s384 + $0xee8] sm:$0xff]
        %v6882 = vld [vmem:[%s384 + $0xef0] sm:$0xff]
        %v6883 = vld [vmem:[%s384 + $0xef8] sm:$0xff]
        %v6884 = vld [vmem:[%s384 + $0xf00] sm:$0xff]
        %v6885 = vld [vmem:[%s384 + $0xf08] sm:$0xff]
        %v6886 = vld [vmem:[%s384 + $0xf10] sm:$0xff]
        %v6887 = vld [vmem:[%s384 + $0xf18] sm:$0xff]
        %v6888 = vld [vmem:[%s384 + $0xf20] sm:$0xff]
        %v6889 = vld [vmem:[%s384 + $0xf28] sm:$0xff]
        %v6890 = vld [vmem:[%s384 + $0xf30] sm:$0xff]
        %v6891 = vld [vmem:[%s384 + $0xf38] sm:$0xff]
        %v6892 = vld [vmem:[%s384 + $0xf40] sm:$0xff]
        %v6893 = vld [vmem:[%s384 + $0xf48] sm:$0xff]
        %v6894 = vld [vmem:[%s384 + $0xf50] sm:$0xff]
        %v6895 = vld [vmem:[%s384 + $0xf58] sm:$0xff]
        %v6896 = vld [vmem:[%s384 + $0xf60] sm:$0xff]
        %v6897 = vld [vmem:[%s384 + $0xf68] sm:$0xff]
        %v6898 = vld [vmem:[%s384 + $0xf70] sm:$0xff]
        %v6899 = vld [vmem:[%s384 + $0xf78] sm:$0xff]
        %v6900 = vld [vmem:[%s384 + $0xf80] sm:$0xff]
        %v6901 = vld [vmem:[%s384 + $0xf88] sm:$0xff]
        %v6902 = vld [vmem:[%s384 + $0xf90] sm:$0xff]
        %v6903 = vld [vmem:[%s384 + $0xf98] sm:$0xff]
        %v6904 = vld [vmem:[%s384 + $0xfa0] sm:$0xff]
        %v6905 = vld [vmem:[%s384 + $0xfa8] sm:$0xff]
        %v6906 = vld [vmem:[%s384 + $0xfb0] sm:$0xf]
        %v6907 = vld [vmem:[%s384 + $0xfb4] sm:$0xff]
        %v6908 = vld [vmem:[%s384 + $0xfbc] sm:$0xff]
        %v6909 = vld [vmem:[%s384 + $0xfc4] sm:$0xff]
        %v6910 = vld [vmem:[%s384 + $0xfcc] sm:$0xff]
        %v6911 = vld [vmem:[%s384 + $0xfd4] sm:$0xff]
        %v6912 = vld [vmem:[%s384 + $0xfdc] sm:$0xff]
        %v6913 = vld [vmem:[%s384 + $0xfe4] sm:$0xff]
        %v6914 = vld [vmem:[%s384 + $0xfec] sm:$0xff]
        %v6915 = vld [vmem:[%s384 + $0xff4] sm:$0xff]
        %v6916 = vld [vmem:[%s384 + $0xffc] sm:$0xff]
        %v6917 = vld [vmem:[%s384 + $0x1004] sm:$0xff]
        %v6918 = vld [vmem:[%s384 + $0x100c] sm:$0xff]
        %v6919 = vld [vmem:[%s384 + $0x1014] sm:$0xff]
        %v6920 = vld [vmem:[%s384 + $0x101c] sm:$0xff]
        %v6921 = vld [vmem:[%s384 + $0x1024] sm:$0xff]
        %v6922 = vld [vmem:[%s384 + $0x102c] sm:$0xff]
        %v6923 = vld [vmem:[%s384 + $0x1034] sm:$0xff]
        %v6924 = vld [vmem:[%s384 + $0x103c] sm:$0xff]
        %v6925 = vld [vmem:[%s384 + $0x1044] sm:$0xff]
        %v6926 = vld [vmem:[%s384 + $0x104c] sm:$0xff]
        %v6927 = vld [vmem:[%s384 + $0x1054] sm:$0xff]
        %v6928 = vld [vmem:[%s384 + $0x105c] sm:$0xff]
        %v6929 = vld [vmem:[%s384 + $0x1064] sm:$0xff]
        %v6930 = vld [vmem:[%s384 + $0x106c] sm:$0xff]
        %v6931 = vld [vmem:[%s384 + $0x1074] sm:$0xff]
        %v6932 = vld [vmem:[%s384 + $0x107c] sm:$0xff]
        %v6933 = vld [vmem:[%s384 + $0x1084] sm:$0xff]
        %v6934 = vld [vmem:[%s384 + $0x108c] sm:$0xff]
        %v6935 = vld [vmem:[%s384 + $0x1094] sm:$0xff]
        %v6936 = vld [vmem:[%s384 + $0x109c] sm:$0xff]
        %v6937 = vld [vmem:[%s384 + $0x10a4] sm:$0xff]
        %v6938 = vld [vmem:[%s384 + $0x10ac] sm:$0xff]
        %v6939 = vld [vmem:[%s384 + $0x10b4] sm:$0xff]
        %v6940 = vld [vmem:[%s384 + $0x10bc] sm:$0xf]
        %v6941 = vld [vmem:[%s393] sm:$0xff]
        %v6942 = vld [vmem:[%s393 + $0x8] sm:$0xff]
        %v6943 = vld [vmem:[%s393 + $0x10] sm:$0xff]
        %v6944 = vld [vmem:[%s393 + $0x18] sm:$0xff]
        %v6945 = vld [vmem:[%s393 + $0x20] sm:$0xff]
        %v6946 = vld [vmem:[%s393 + $0x28] sm:$0xff]
        %v6947 = vld [vmem:[%s393 + $0x30] sm:$0xff]
        %v6948 = vld [vmem:[%s393 + $0x38] sm:$0xff]
        %v6949 = vld [vmem:[%s393 + $0x40] sm:$0x7]
        %v6959 = vlaneseq
        %v6960 = vshrl.u32 %v6959, 7
        %v6961 = vsub.s32 0, %v6960
        %v6962 = vrot.slane %v6941, %v6961
        %v6963 = vlaneseq
        %v6964 = vshrl.u32 %v6963, 7
        %v6965 = vsub.s32 1, %v6964
        %v6966 = vrot.slane %v6941, %v6965
        %v6967 = vlaneseq
        %v6968 = vshrl.u32 %v6967, 7
        %v6969 = vsub.s32 2, %v6968
        %v6970 = vrot.slane %v6941, %v6969
        %v6971 = vlaneseq
        %v6972 = vshrl.u32 %v6971, 7
        %v6973 = vsub.s32 3, %v6972
        %v6974 = vrot.slane %v6941, %v6973
        %v6975 = vlaneseq
        %v6976 = vshrl.u32 %v6975, 7
        %v6977 = vsub.s32 4, %v6976
        %v6978 = vrot.slane %v6941, %v6977
        %v6979 = vlaneseq
        %v6980 = vshrl.u32 %v6979, 7
        %v6981 = vsub.s32 5, %v6980
        %v6982 = vrot.slane %v6941, %v6981
        %v6983 = vlaneseq
        %v6984 = vshrl.u32 %v6983, 7
        %v6985 = vsub.s32 6, %v6984
        %v6986 = vrot.slane %v6941, %v6985
        %v6987 = vlaneseq
        %v6988 = vshrl.u32 %v6987, 7
        %v6989 = vsub.s32 7, %v6988
        %v6990 = vrot.slane %v6941, %v6989
        %v6991 = vlaneseq
        %v6992 = vshrl.u32 %v6991, 7
        %v6993 = vsub.s32 0, %v6992
        %v6994 = vrot.slane %v6942, %v6993
        %v6995 = vlaneseq
        %v6996 = vshrl.u32 %v6995, 7
        %v6997 = vsub.s32 1, %v6996
        %v6998 = vrot.slane %v6942, %v6997
        %v6999 = vlaneseq
        %v7000 = vshrl.u32 %v6999, 7
        %v7001 = vsub.s32 2, %v7000
        %v7002 = vrot.slane %v6942, %v7001
        %v7003 = vlaneseq
        %v7004 = vshrl.u32 %v7003, 7
        %v7005 = vsub.s32 3, %v7004
        %v7006 = vrot.slane %v6942, %v7005
        %v7007 = vlaneseq
        %v7008 = vshrl.u32 %v7007, 7
        %v7009 = vsub.s32 4, %v7008
        %v7010 = vrot.slane %v6942, %v7009
        %v7011 = vlaneseq
        %v7012 = vshrl.u32 %v7011, 7
        %v7013 = vsub.s32 5, %v7012
        %v7014 = vrot.slane %v6942, %v7013
        %v7015 = vlaneseq
        %v7016 = vshrl.u32 %v7015, 7
        %v7017 = vsub.s32 6, %v7016
        %v7018 = vrot.slane %v6942, %v7017
        %v7019 = vlaneseq
        %v7020 = vshrl.u32 %v7019, 7
        %v7021 = vsub.s32 7, %v7020
        %v7022 = vrot.slane %v6942, %v7021
        %v7023 = vlaneseq
        %v7024 = vshrl.u32 %v7023, 7
        %v7025 = vsub.s32 0, %v7024
        %v7026 = vrot.slane %v6943, %v7025
        %v7027 = vlaneseq
        %v7028 = vshrl.u32 %v7027, 7
        %v7029 = vsub.s32 1, %v7028
        %v7030 = vrot.slane %v6943, %v7029
        %v7031 = vlaneseq
        %v7032 = vshrl.u32 %v7031, 7
        %v7033 = vsub.s32 2, %v7032
        %v7034 = vrot.slane %v6943, %v7033
        %v7035 = vlaneseq
        %v7036 = vshrl.u32 %v7035, 7
        %v7037 = vsub.s32 3, %v7036
        %v7038 = vrot.slane %v6943, %v7037
        %v7039 = vlaneseq
        %v7040 = vshrl.u32 %v7039, 7
        %v7041 = vsub.s32 4, %v7040
        %v7042 = vrot.slane %v6943, %v7041
        %v7043 = vlaneseq
        %v7044 = vshrl.u32 %v7043, 7
        %v7045 = vsub.s32 5, %v7044
        %v7046 = vrot.slane %v6943, %v7045
        %v7047 = vlaneseq
        %v7048 = vshrl.u32 %v7047, 7
        %v7049 = vsub.s32 6, %v7048
        %v7050 = vrot.slane %v6943, %v7049
        %v7051 = vlaneseq
        %v7052 = vshrl.u32 %v7051, 7
        %v7053 = vsub.s32 7, %v7052
        %v7054 = vrot.slane %v6943, %v7053
        %v7055 = vlaneseq
        %v7056 = vshrl.u32 %v7055, 7
        %v7057 = vsub.s32 0, %v7056
        %v7058 = vrot.slane %v6944, %v7057
        %v7059 = vlaneseq
        %v7060 = vshrl.u32 %v7059, 7
        %v7061 = vsub.s32 1, %v7060
        %v7062 = vrot.slane %v6944, %v7061
        %v7063 = vlaneseq
        %v7064 = vshrl.u32 %v7063, 7
        %v7065 = vsub.s32 2, %v7064
        %v7066 = vrot.slane %v6944, %v7065
        %v7067 = vlaneseq
        %v7068 = vshrl.u32 %v7067, 7
        %v7069 = vsub.s32 3, %v7068
        %v7070 = vrot.slane %v6944, %v7069
        %v7071 = vlaneseq
        %v7072 = vshrl.u32 %v7071, 7
        %v7073 = vsub.s32 4, %v7072
        %v7074 = vrot.slane %v6944, %v7073
        %v7075 = vlaneseq
        %v7076 = vshrl.u32 %v7075, 7
        %v7077 = vsub.s32 5, %v7076
        %v7078 = vrot.slane %v6944, %v7077
        %v7079 = vlaneseq
        %v7080 = vshrl.u32 %v7079, 7
        %v7081 = vsub.s32 6, %v7080
        %v7082 = vrot.slane %v6944, %v7081
        %v7083 = vlaneseq
        %v7084 = vshrl.u32 %v7083, 7
        %v7085 = vsub.s32 7, %v7084
        %v7086 = vrot.slane %v6944, %v7085
        %v7087 = vlaneseq
        %v7088 = vshrl.u32 %v7087, 7
        %v7089 = vsub.s32 0, %v7088
        %v7090 = vrot.slane %v6945, %v7089
        %v7091 = vlaneseq
        %v7092 = vshrl.u32 %v7091, 7
        %v7093 = vsub.s32 1, %v7092
        %v7094 = vrot.slane %v6945, %v7093
        %v7095 = vlaneseq
        %v7096 = vshrl.u32 %v7095, 7
        %v7097 = vsub.s32 2, %v7096
        %v7098 = vrot.slane %v6945, %v7097
        %v7099 = vlaneseq
        %v7100 = vshrl.u32 %v7099, 7
        %v7101 = vsub.s32 3, %v7100
        %v7102 = vrot.slane %v6945, %v7101
        %v7103 = vlaneseq
        %v7104 = vshrl.u32 %v7103, 7
        %v7105 = vsub.s32 4, %v7104
        %v7106 = vrot.slane %v6945, %v7105
        %v7107 = vlaneseq
        %v7108 = vshrl.u32 %v7107, 7
        %v7109 = vsub.s32 5, %v7108
        %v7110 = vrot.slane %v6945, %v7109
        %v7111 = vlaneseq
        %v7112 = vshrl.u32 %v7111, 7
        %v7113 = vsub.s32 6, %v7112
        %v7114 = vrot.slane %v6945, %v7113
        %v7115 = vlaneseq
        %v7116 = vshrl.u32 %v7115, 7
        %v7117 = vsub.s32 7, %v7116
        %v7118 = vrot.slane %v6945, %v7117
        %v7119 = vlaneseq
        %v7120 = vshrl.u32 %v7119, 7
        %v7121 = vsub.s32 0, %v7120
        %v7122 = vrot.slane %v6946, %v7121
        %v7123 = vlaneseq
        %v7124 = vshrl.u32 %v7123, 7
        %v7125 = vsub.s32 1, %v7124
        %v7126 = vrot.slane %v6946, %v7125
        %v7127 = vlaneseq
        %v7128 = vshrl.u32 %v7127, 7
        %v7129 = vsub.s32 2, %v7128
        %v7130 = vrot.slane %v6946, %v7129
        %v7131 = vlaneseq
        %v7132 = vshrl.u32 %v7131, 7
        %v7133 = vsub.s32 3, %v7132
        %v7134 = vrot.slane %v6946, %v7133
        %v7135 = vlaneseq
        %v7136 = vshrl.u32 %v7135, 7
        %v7137 = vsub.s32 4, %v7136
        %v7138 = vrot.slane %v6946, %v7137
        %v7139 = vlaneseq
        %v7140 = vshrl.u32 %v7139, 7
        %v7141 = vsub.s32 5, %v7140
        %v7142 = vrot.slane %v6946, %v7141
        %v7143 = vlaneseq
        %v7144 = vshrl.u32 %v7143, 7
        %v7145 = vsub.s32 6, %v7144
        %v7146 = vrot.slane %v6946, %v7145
        %v7147 = vlaneseq
        %v7148 = vshrl.u32 %v7147, 7
        %v7149 = vsub.s32 7, %v7148
        %v7150 = vrot.slane %v6946, %v7149
        %v7151 = vlaneseq
        %v7152 = vshrl.u32 %v7151, 7
        %v7153 = vsub.s32 0, %v7152
        %v7154 = vrot.slane %v6947, %v7153
        %v7155 = vlaneseq
        %v7156 = vshrl.u32 %v7155, 7
        %v7157 = vsub.s32 1, %v7156
        %v7158 = vrot.slane %v6947, %v7157
        %v7159 = vlaneseq
        %v7160 = vshrl.u32 %v7159, 7
        %v7161 = vsub.s32 2, %v7160
        %v7162 = vrot.slane %v6947, %v7161
        %v7163 = vlaneseq
        %v7164 = vshrl.u32 %v7163, 7
        %v7165 = vsub.s32 3, %v7164
        %v7166 = vrot.slane %v6947, %v7165
        %v7167 = vlaneseq
        %v7168 = vshrl.u32 %v7167, 7
        %v7169 = vsub.s32 4, %v7168
        %v7170 = vrot.slane %v6947, %v7169
        %v7171 = vlaneseq
        %v7172 = vshrl.u32 %v7171, 7
        %v7173 = vsub.s32 5, %v7172
        %v7174 = vrot.slane %v6947, %v7173
        %v7175 = vlaneseq
        %v7176 = vshrl.u32 %v7175, 7
        %v7177 = vsub.s32 6, %v7176
        %v7178 = vrot.slane %v6947, %v7177
        %v7179 = vlaneseq
        %v7180 = vshrl.u32 %v7179, 7
        %v7181 = vsub.s32 7, %v7180
        %v7182 = vrot.slane %v6947, %v7181
        %v7183 = vlaneseq
        %v7184 = vshrl.u32 %v7183, 7
        %v7185 = vsub.s32 0, %v7184
        %v7186 = vrot.slane %v6948, %v7185
        %v7187 = vlaneseq
        %v7188 = vshrl.u32 %v7187, 7
        %v7189 = vsub.s32 1, %v7188
        %v7190 = vrot.slane %v6948, %v7189
        %v7191 = vlaneseq
        %v7192 = vshrl.u32 %v7191, 7
        %v7193 = vsub.s32 2, %v7192
        %v7194 = vrot.slane %v6948, %v7193
        %v7195 = vlaneseq
        %v7196 = vshrl.u32 %v7195, 7
        %v7197 = vsub.s32 3, %v7196
        %v7198 = vrot.slane %v6948, %v7197
        %v7199 = vlaneseq
        %v7200 = vshrl.u32 %v7199, 7
        %v7201 = vsub.s32 4, %v7200
        %v7202 = vrot.slane %v6948, %v7201
        %v7203 = vlaneseq
        %v7204 = vshrl.u32 %v7203, 7
        %v7205 = vsub.s32 5, %v7204
        %v7206 = vrot.slane %v6948, %v7205
        %v7207 = vlaneseq
        %v7208 = vshrl.u32 %v7207, 7
        %v7209 = vsub.s32 6, %v7208
        %v7210 = vrot.slane %v6948, %v7209
        %v7211 = vlaneseq
        %v7212 = vshrl.u32 %v7211, 7
        %v7213 = vsub.s32 7, %v7212
        %v7214 = vrot.slane %v6948, %v7213
        %v7215 = vlaneseq
        %v7216 = vshrl.u32 %v7215, 7
        %v7217 = vsub.s32 0, %v7216
        %v7218 = vrot.slane %v6949, %v7217
        %v7219 = vlaneseq
        %v7220 = vshrl.u32 %v7219, 7
        %v7221 = vsub.s32 1, %v7220
        %v7222 = vrot.slane %v6949, %v7221
        %v7223 = vlaneseq
        %v7224 = vshrl.u32 %v7223, 7
        %v7225 = vsub.s32 2, %v7224
        %v7226 = vrot.slane %v6949, %v7225
        %v7838 = vunpack.c.l.b16 %v6397
        %v7839 = vunpack.c.h.b16 %v6397
        %v7840 = vunpack.c.l.b16 %v6398
        %v7841 = vunpack.c.h.b16 %v6398
        %v7842 = vunpack.c.l.b16 %v6399
        %v7843 = vunpack.c.h.b16 %v6399
        %v7844 = vunpack.c.l.b16 %v6400
        %v7845 = vunpack.c.h.b16 %v6400
        %v7846 = vunpack.c.l.b16 %v6401
        %v7847 = vunpack.c.h.b16 %v6401
        %v7848 = vunpack.c.l.b16 %v6402
        %v7849 = vunpack.c.h.b16 %v6402
        %v7850 = vunpack.c.l.b16 %v6403
        %v7851 = vunpack.c.h.b16 %v6403
        %v7852 = vunpack.c.l.b16 %v6404
        %v7853 = vunpack.c.h.b16 %v6404
        %v7854 = vunpack.c.l.b16 %v6405
        %v7855 = vunpack.c.h.b16 %v6405
        %v7856 = vunpack.c.l.b16 %v6406
        %v7857 = vunpack.c.h.b16 %v6406
        %v7858 = vunpack.c.l.b16 %v6407
        %v7859 = vunpack.c.h.b16 %v6407
        %v7860 = vunpack.c.l.b16 %v6408
        %v7861 = vunpack.c.h.b16 %v6408
        %v7862 = vunpack.c.l.b16 %v6409
        %v7863 = vunpack.c.h.b16 %v6409
        %v7864 = vunpack.c.l.b16 %v6410
        %v7865 = vunpack.c.h.b16 %v6410
        %v7866 = vunpack.c.l.b16 %v6411
        %v7867 = vunpack.c.h.b16 %v6411
        %v7868 = vunpack.c.l.b16 %v6412
        %v7869 = vunpack.c.h.b16 %v6412
        %v7870 = vunpack.c.l.b16 %v6413
        %v7871 = vunpack.c.h.b16 %v6413
        %v7872 = vunpack.c.l.b16 %v6414
        %v7873 = vunpack.c.h.b16 %v6414
        %v7874 = vunpack.c.l.b16 %v6415
        %v7875 = vunpack.c.h.b16 %v6415
        %v7876 = vunpack.c.l.b16 %v6416
        %v7877 = vunpack.c.h.b16 %v6416
        %v7878 = vunpack.c.l.b16 %v6417
        %v7879 = vunpack.c.h.b16 %v6417
        %v7880 = vunpack.c.l.b16 %v6418
        %v7881 = vunpack.c.h.b16 %v6418
        %v7882 = vunpack.c.l.b16 %v6419
        %v7883 = vunpack.c.h.b16 %v6419
        %v7884 = vunpack.c.l.b16 %v6420
        %v7885 = vunpack.c.h.b16 %v6420
        %v7886 = vunpack.c.l.b16 %v6421
        %v7887 = vunpack.c.h.b16 %v6421
        %v7888 = vunpack.c.l.b16 %v6422
        %v7889 = vunpack.c.h.b16 %v6422
        %v7890 = vunpack.c.l.b16 %v6423
        %v7891 = vunpack.c.h.b16 %v6423
        %v7892 = vunpack.c.l.b16 %v6424
        %v7893 = vunpack.c.h.b16 %v6424
        %v7894 = vunpack.c.l.b16 %v6425
        %v7895 = vunpack.c.h.b16 %v6425
        %v7896 = vunpack.c.l.b16 %v6426
        %v7897 = vunpack.c.h.b16 %v6426
        %v7898 = vunpack.c.l.b16 %v6427
        %v7899 = vunpack.c.h.b16 %v6427
        %v7900 = vunpack.c.l.b16 %v6428
        %v7901 = vunpack.c.h.b16 %v6428
        %v7902 = vunpack.c.l.b16 %v6429
        %v7903 = vunpack.c.h.b16 %v6429
        %v7904 = vunpack.c.l.b16 %v6430
        %v7905 = vunpack.c.l.b16 %v6431
        %v7906 = vunpack.c.h.b16 %v6431
        %v7907 = vunpack.c.l.b16 %v6432
        %v7908 = vunpack.c.h.b16 %v6432
        %v7909 = vunpack.c.l.b16 %v6433
        %v7910 = vunpack.c.h.b16 %v6433
        %v7911 = vunpack.c.l.b16 %v6434
        %v7912 = vunpack.c.h.b16 %v6434
        %v7913 = vunpack.c.l.b16 %v6435
        %v7914 = vunpack.c.h.b16 %v6435
        %v7915 = vunpack.c.l.b16 %v6436
        %v7916 = vunpack.c.h.b16 %v6436
        %v7917 = vunpack.c.l.b16 %v6437
        %v7918 = vunpack.c.h.b16 %v6437
        %v7919 = vunpack.c.l.b16 %v6438
        %v7920 = vunpack.c.h.b16 %v6438
        %v7921 = vunpack.c.l.b16 %v6439
        %v7922 = vunpack.c.h.b16 %v6439
        %v7923 = vunpack.c.l.b16 %v6440
        %v7924 = vunpack.c.h.b16 %v6440
        %v7925 = vunpack.c.l.b16 %v6441
        %v7926 = vunpack.c.h.b16 %v6441
        %v7927 = vunpack.c.l.b16 %v6442
        %v7928 = vunpack.c.h.b16 %v6442
        %v7929 = vunpack.c.l.b16 %v6443
        %v7930 = vunpack.c.h.b16 %v6443
        %v7931 = vunpack.c.l.b16 %v6444
        %v7932 = vunpack.c.h.b16 %v6444
        %v7933 = vunpack.c.l.b16 %v6445
        %v7934 = vunpack.c.h.b16 %v6445
        %v7935 = vunpack.c.l.b16 %v6446
        %v7936 = vunpack.c.h.b16 %v6446
        %v7937 = vunpack.c.l.b16 %v6447
        %v7938 = vunpack.c.h.b16 %v6447
        %v7939 = vunpack.c.l.b16 %v6448
        %v7940 = vunpack.c.h.b16 %v6448
        %v7941 = vunpack.c.l.b16 %v6449
        %v7942 = vunpack.c.h.b16 %v6449
        %v7943 = vunpack.c.l.b16 %v6450
        %v7944 = vunpack.c.h.b16 %v6450
        %v7945 = vunpack.c.l.b16 %v6451
        %v7946 = vunpack.c.h.b16 %v6451
        %v7947 = vunpack.c.l.b16 %v6452
        %v7948 = vunpack.c.h.b16 %v6452
        %v7949 = vunpack.c.l.b16 %v6453
        %v7950 = vunpack.c.h.b16 %v6453
        %v7951 = vunpack.c.l.b16 %v6454
        %v7952 = vunpack.c.h.b16 %v6454
        %v7953 = vunpack.c.l.b16 %v6455
        %v7954 = vunpack.c.h.b16 %v6455
        %v7955 = vunpack.c.l.b16 %v6456
        %v7956 = vunpack.c.h.b16 %v6456
        %v7957 = vunpack.c.l.b16 %v6457
        %v7958 = vunpack.c.h.b16 %v6457
        %v7959 = vunpack.c.l.b16 %v6458
        %v7960 = vunpack.c.h.b16 %v6458
        %v7961 = vunpack.c.l.b16 %v6459
        %v7962 = vunpack.c.h.b16 %v6459
        %v7963 = vunpack.c.l.b16 %v6460
        %v7964 = vunpack.c.h.b16 %v6460
        %v7965 = vunpack.c.l.b16 %v6461
        %v7966 = vunpack.c.h.b16 %v6461
        %v7967 = vunpack.c.l.b16 %v6462
        %v7968 = vunpack.c.h.b16 %v6462
        %v7969 = vunpack.c.l.b16 %v6463
        %v7970 = vunpack.c.h.b16 %v6463
        %v7971 = vunpack.c.l.b16 %v6464
        %v7972 = vunpack.c.l.b16 %v6465
        %v7973 = vunpack.c.h.b16 %v6465
        %v7974 = vunpack.c.l.b16 %v6466
        %v7975 = vunpack.c.h.b16 %v6466
        %v7976 = vunpack.c.l.b16 %v6467
        %v7977 = vunpack.c.h.b16 %v6467
        %v7978 = vunpack.c.l.b16 %v6468
        %v7979 = vunpack.c.h.b16 %v6468
        %v7980 = vunpack.c.l.b16 %v6469
        %v7981 = vunpack.c.h.b16 %v6469
        %v7982 = vunpack.c.l.b16 %v6470
        %v7983 = vunpack.c.h.b16 %v6470
        %v7984 = vunpack.c.l.b16 %v6471
        %v7985 = vunpack.c.h.b16 %v6471
        %v7986 = vunpack.c.l.b16 %v6472
        %v7987 = vunpack.c.h.b16 %v6472
        %v7988 = vunpack.c.l.b16 %v6473
        %v7989 = vunpack.c.h.b16 %v6473
        %v7990 = vunpack.c.l.b16 %v6474
        %v7991 = vunpack.c.h.b16 %v6474
        %v7992 = vunpack.c.l.b16 %v6475
        %v7993 = vunpack.c.h.b16 %v6475
        %v7994 = vunpack.c.l.b16 %v6476
        %v7995 = vunpack.c.h.b16 %v6476
        %v7996 = vunpack.c.l.b16 %v6477
        %v7997 = vunpack.c.h.b16 %v6477
        %v7998 = vunpack.c.l.b16 %v6478
        %v7999 = vunpack.c.h.b16 %v6478
        %v8000 = vunpack.c.l.b16 %v6479
        %v8001 = vunpack.c.h.b16 %v6479
        %v8002 = vunpack.c.l.b16 %v6480
        %v8003 = vunpack.c.h.b16 %v6480
        %v8004 = vunpack.c.l.b16 %v6481
        %v8005 = vunpack.c.h.b16 %v6481
        %v8006 = vunpack.c.l.b16 %v6482
        %v8007 = vunpack.c.h.b16 %v6482
        %v8008 = vunpack.c.l.b16 %v6483
        %v8009 = vunpack.c.h.b16 %v6483
        %v8010 = vunpack.c.l.b16 %v6484
        %v8011 = vunpack.c.h.b16 %v6484
        %v8012 = vunpack.c.l.b16 %v6485
        %v8013 = vunpack.c.h.b16 %v6485
        %v8014 = vunpack.c.l.b16 %v6486
        %v8015 = vunpack.c.h.b16 %v6486
        %v8016 = vunpack.c.l.b16 %v6487
        %v8017 = vunpack.c.h.b16 %v6487
        %v8018 = vunpack.c.l.b16 %v6488
        %v8019 = vunpack.c.h.b16 %v6488
        %v8020 = vunpack.c.l.b16 %v6489
        %v8021 = vunpack.c.h.b16 %v6489
        %v8022 = vunpack.c.l.b16 %v6490
        %v8023 = vunpack.c.h.b16 %v6490
        %v8024 = vunpack.c.l.b16 %v6491
        %v8025 = vunpack.c.h.b16 %v6491
        %v8026 = vunpack.c.l.b16 %v6492
        %v8027 = vunpack.c.h.b16 %v6492
        %v8028 = vunpack.c.l.b16 %v6493
        %v8029 = vunpack.c.h.b16 %v6493
        %v8030 = vunpack.c.l.b16 %v6494
        %v8031 = vunpack.c.h.b16 %v6494
        %v8032 = vunpack.c.l.b16 %v6495
        %v8033 = vunpack.c.h.b16 %v6495
        %v8034 = vunpack.c.l.b16 %v6496
        %v8035 = vunpack.c.h.b16 %v6496
        %v8036 = vunpack.c.l.b16 %v6497
        %v8037 = vunpack.c.h.b16 %v6497
        %v8038 = vunpack.c.l.b16 %v6498
        %v8039 = vunpack.c.l.b16 %v6499
        %v8040 = vunpack.c.h.b16 %v6499
        %v8041 = vunpack.c.l.b16 %v6500
        %v8042 = vunpack.c.h.b16 %v6500
        %v8043 = vunpack.c.l.b16 %v6501
        %v8044 = vunpack.c.h.b16 %v6501
        %v8045 = vunpack.c.l.b16 %v6502
        %v8046 = vunpack.c.h.b16 %v6502
        %v8047 = vunpack.c.l.b16 %v6503
        %v8048 = vunpack.c.h.b16 %v6503
        %v8049 = vunpack.c.l.b16 %v6504
        %v8050 = vunpack.c.h.b16 %v6504
        %v8051 = vunpack.c.l.b16 %v6505
        %v8052 = vunpack.c.h.b16 %v6505
        %v8053 = vunpack.c.l.b16 %v6506
        %v8054 = vunpack.c.h.b16 %v6506
        %v8055 = vunpack.c.l.b16 %v6507
        %v8056 = vunpack.c.h.b16 %v6507
        %v8057 = vunpack.c.l.b16 %v6508
        %v8058 = vunpack.c.h.b16 %v6508
        %v8059 = vunpack.c.l.b16 %v6509
        %v8060 = vunpack.c.h.b16 %v6509
        %v8061 = vunpack.c.l.b16 %v6510
        %v8062 = vunpack.c.h.b16 %v6510
        %v8063 = vunpack.c.l.b16 %v6511
        %v8064 = vunpack.c.h.b16 %v6511
        %v8065 = vunpack.c.l.b16 %v6512
        %v8066 = vunpack.c.h.b16 %v6512
        %v8067 = vunpack.c.l.b16 %v6513
        %v8068 = vunpack.c.h.b16 %v6513
        %v8069 = vunpack.c.l.b16 %v6514
        %v8070 = vunpack.c.h.b16 %v6514
        %v8071 = vunpack.c.l.b16 %v6515
        %v8072 = vunpack.c.h.b16 %v6515
        %v8073 = vunpack.c.l.b16 %v6516
        %v8074 = vunpack.c.h.b16 %v6516
        %v8075 = vunpack.c.l.b16 %v6517
        %v8076 = vunpack.c.h.b16 %v6517
        %v8077 = vunpack.c.l.b16 %v6518
        %v8078 = vunpack.c.h.b16 %v6518
        %v8079 = vunpack.c.l.b16 %v6519
        %v8080 = vunpack.c.h.b16 %v6519
        %v8081 = vunpack.c.l.b16 %v6520
        %v8082 = vunpack.c.h.b16 %v6520
        %v8083 = vunpack.c.l.b16 %v6521
        %v8084 = vunpack.c.h.b16 %v6521
        %v8085 = vunpack.c.l.b16 %v6522
        %v8086 = vunpack.c.h.b16 %v6522
        %v8087 = vunpack.c.l.b16 %v6523
        %v8088 = vunpack.c.h.b16 %v6523
        %v8089 = vunpack.c.l.b16 %v6524
        %v8090 = vunpack.c.h.b16 %v6524
        %v8091 = vunpack.c.l.b16 %v6525
        %v8092 = vunpack.c.h.b16 %v6525
        %v8093 = vunpack.c.l.b16 %v6526
        %v8094 = vunpack.c.h.b16 %v6526
        %v8095 = vunpack.c.l.b16 %v6527
        %v8096 = vunpack.c.h.b16 %v6527
        %v8097 = vunpack.c.l.b16 %v6528
        %v8098 = vunpack.c.h.b16 %v6528
        %v8099 = vunpack.c.l.b16 %v6529
        %v8100 = vunpack.c.h.b16 %v6529
        %v8101 = vunpack.c.l.b16 %v6530
        %v8102 = vunpack.c.h.b16 %v6530
        %v8103 = vunpack.c.l.b16 %v6531
        %v8104 = vunpack.c.h.b16 %v6531
        %v8105 = vunpack.c.l.b16 %v6532
        %v8106 = vunpack.c.l.b16 %v6533
        %v8107 = vunpack.c.h.b16 %v6533
        %v8108 = vunpack.c.l.b16 %v6534
        %v8109 = vunpack.c.h.b16 %v6534
        %v8110 = vunpack.c.l.b16 %v6535
        %v8111 = vunpack.c.h.b16 %v6535
        %v8112 = vunpack.c.l.b16 %v6536
        %v8113 = vunpack.c.h.b16 %v6536
        %v8114 = vunpack.c.l.b16 %v6537
        %v8115 = vunpack.c.h.b16 %v6537
        %v8116 = vunpack.c.l.b16 %v6538
        %v8117 = vunpack.c.h.b16 %v6538
        %v8118 = vunpack.c.l.b16 %v6539
        %v8119 = vunpack.c.h.b16 %v6539
        %v8120 = vunpack.c.l.b16 %v6540
        %v8121 = vunpack.c.h.b16 %v6540
        %v8122 = vunpack.c.l.b16 %v6541
        %v8123 = vunpack.c.h.b16 %v6541
        %v8124 = vunpack.c.l.b16 %v6542
        %v8125 = vunpack.c.h.b16 %v6542
        %v8126 = vunpack.c.l.b16 %v6543
        %v8127 = vunpack.c.h.b16 %v6543
        %v8128 = vunpack.c.l.b16 %v6544
        %v8129 = vunpack.c.h.b16 %v6544
        %v8130 = vunpack.c.l.b16 %v6545
        %v8131 = vunpack.c.h.b16 %v6545
        %v8132 = vunpack.c.l.b16 %v6546
        %v8133 = vunpack.c.h.b16 %v6546
        %v8134 = vunpack.c.l.b16 %v6547
        %v8135 = vunpack.c.h.b16 %v6547
        %v8136 = vunpack.c.l.b16 %v6548
        %v8137 = vunpack.c.h.b16 %v6548
        %v8138 = vunpack.c.l.b16 %v6549
        %v8139 = vunpack.c.h.b16 %v6549
        %v8140 = vunpack.c.l.b16 %v6550
        %v8141 = vunpack.c.h.b16 %v6550
        %v8142 = vunpack.c.l.b16 %v6551
        %v8143 = vunpack.c.h.b16 %v6551
        %v8144 = vunpack.c.l.b16 %v6552
        %v8145 = vunpack.c.h.b16 %v6552
        %v8146 = vunpack.c.l.b16 %v6553
        %v8147 = vunpack.c.h.b16 %v6553
        %v8148 = vunpack.c.l.b16 %v6554
        %v8149 = vunpack.c.h.b16 %v6554
        %v8150 = vunpack.c.l.b16 %v6555
        %v8151 = vunpack.c.h.b16 %v6555
        %v8152 = vunpack.c.l.b16 %v6556
        %v8153 = vunpack.c.h.b16 %v6556
        %v8154 = vunpack.c.l.b16 %v6557
        %v8155 = vunpack.c.h.b16 %v6557
        %v8156 = vunpack.c.l.b16 %v6558
        %v8157 = vunpack.c.h.b16 %v6558
        %v8158 = vunpack.c.l.b16 %v6559
        %v8159 = vunpack.c.h.b16 %v6559
        %v8160 = vunpack.c.l.b16 %v6560
        %v8161 = vunpack.c.h.b16 %v6560
        %v8162 = vunpack.c.l.b16 %v6561
        %v8163 = vunpack.c.h.b16 %v6561
        %v8164 = vunpack.c.l.b16 %v6562
        %v8165 = vunpack.c.h.b16 %v6562
        %v8166 = vunpack.c.l.b16 %v6563
        %v8167 = vunpack.c.h.b16 %v6563
        %v8168 = vunpack.c.l.b16 %v6564
        %v8169 = vunpack.c.h.b16 %v6564
        %v8170 = vunpack.c.l.b16 %v6565
        %v8171 = vunpack.c.h.b16 %v6565
        %v8172 = vunpack.c.l.b16 %v6566
        %v8173 = vunpack.c.l.b16 %v6567
        %v8174 = vunpack.c.h.b16 %v6567
        %v8175 = vunpack.c.l.b16 %v6568
        %v8176 = vunpack.c.h.b16 %v6568
        %v8177 = vunpack.c.l.b16 %v6569
        %v8178 = vunpack.c.h.b16 %v6569
        %v8179 = vunpack.c.l.b16 %v6570
        %v8180 = vunpack.c.h.b16 %v6570
        %v8181 = vunpack.c.l.b16 %v6571
        %v8182 = vunpack.c.h.b16 %v6571
        %v8183 = vunpack.c.l.b16 %v6572
        %v8184 = vunpack.c.h.b16 %v6572
        %v8185 = vunpack.c.l.b16 %v6573
        %v8186 = vunpack.c.h.b16 %v6573
        %v8187 = vunpack.c.l.b16 %v6574
        %v8188 = vunpack.c.h.b16 %v6574
        %v8189 = vunpack.c.l.b16 %v6575
        %v8190 = vunpack.c.h.b16 %v6575
        %v8191 = vunpack.c.l.b16 %v6576
        %v8192 = vunpack.c.h.b16 %v6576
        %v8193 = vunpack.c.l.b16 %v6577
        %v8194 = vunpack.c.h.b16 %v6577
        %v8195 = vunpack.c.l.b16 %v6578
        %v8196 = vunpack.c.h.b16 %v6578
        %v8197 = vunpack.c.l.b16 %v6579
        %v8198 = vunpack.c.h.b16 %v6579
        %v8199 = vunpack.c.l.b16 %v6580
        %v8200 = vunpack.c.h.b16 %v6580
        %v8201 = vunpack.c.l.b16 %v6581
        %v8202 = vunpack.c.h.b16 %v6581
        %v8203 = vunpack.c.l.b16 %v6582
        %v8204 = vunpack.c.h.b16 %v6582
        %v8205 = vunpack.c.l.b16 %v6583
        %v8206 = vunpack.c.h.b16 %v6583
        %v8207 = vunpack.c.l.b16 %v6584
        %v8208 = vunpack.c.h.b16 %v6584
        %v8209 = vunpack.c.l.b16 %v6585
        %v8210 = vunpack.c.h.b16 %v6585
        %v8211 = vunpack.c.l.b16 %v6586
        %v8212 = vunpack.c.h.b16 %v6586
        %v8213 = vunpack.c.l.b16 %v6587
        %v8214 = vunpack.c.h.b16 %v6587
        %v8215 = vunpack.c.l.b16 %v6588
        %v8216 = vunpack.c.h.b16 %v6588
        %v8217 = vunpack.c.l.b16 %v6589
        %v8218 = vunpack.c.h.b16 %v6589
        %v8219 = vunpack.c.l.b16 %v6590
        %v8220 = vunpack.c.h.b16 %v6590
        %v8221 = vunpack.c.l.b16 %v6591
        %v8222 = vunpack.c.h.b16 %v6591
        %v8223 = vunpack.c.l.b16 %v6592
        %v8224 = vunpack.c.h.b16 %v6592
        %v8225 = vunpack.c.l.b16 %v6593
        %v8226 = vunpack.c.h.b16 %v6593
        %v8227 = vunpack.c.l.b16 %v6594
        %v8228 = vunpack.c.h.b16 %v6594
        %v8229 = vunpack.c.l.b16 %v6595
        %v8230 = vunpack.c.h.b16 %v6595
        %v8231 = vunpack.c.l.b16 %v6596
        %v8232 = vunpack.c.h.b16 %v6596
        %v8233 = vunpack.c.l.b16 %v6597
        %v8234 = vunpack.c.h.b16 %v6597
        %v8235 = vunpack.c.l.b16 %v6598
        %v8236 = vunpack.c.h.b16 %v6598
        %v8237 = vunpack.c.l.b16 %v6599
        %v8238 = vunpack.c.h.b16 %v6599
        %v8239 = vunpack.c.l.b16 %v6600
        %v8240 = vunpack.c.l.b16 %v6601
        %v8241 = vunpack.c.h.b16 %v6601
        %v8242 = vunpack.c.l.b16 %v6602
        %v8243 = vunpack.c.h.b16 %v6602
        %v8244 = vunpack.c.l.b16 %v6603
        %v8245 = vunpack.c.h.b16 %v6603
        %v8246 = vunpack.c.l.b16 %v6604
        %v8247 = vunpack.c.h.b16 %v6604
        %v8248 = vunpack.c.l.b16 %v6605
        %v8249 = vunpack.c.h.b16 %v6605
        %v8250 = vunpack.c.l.b16 %v6606
        %v8251 = vunpack.c.h.b16 %v6606
        %v8252 = vunpack.c.l.b16 %v6607
        %v8253 = vunpack.c.h.b16 %v6607
        %v8254 = vunpack.c.l.b16 %v6608
        %v8255 = vunpack.c.h.b16 %v6608
        %v8256 = vunpack.c.l.b16 %v6609
        %v8257 = vunpack.c.h.b16 %v6609
        %v8258 = vunpack.c.l.b16 %v6610
        %v8259 = vunpack.c.h.b16 %v6610
        %v8260 = vunpack.c.l.b16 %v6611
        %v8261 = vunpack.c.h.b16 %v6611
        %v8262 = vunpack.c.l.b16 %v6612
        %v8263 = vunpack.c.h.b16 %v6612
        %v8264 = vunpack.c.l.b16 %v6613
        %v8265 = vunpack.c.h.b16 %v6613
        %v8266 = vunpack.c.l.b16 %v6614
        %v8267 = vunpack.c.h.b16 %v6614
        %v8268 = vunpack.c.l.b16 %v6615
        %v8269 = vunpack.c.h.b16 %v6615
        %v8270 = vunpack.c.l.b16 %v6616
        %v8271 = vunpack.c.h.b16 %v6616
        %v8272 = vunpack.c.l.b16 %v6617
        %v8273 = vunpack.c.h.b16 %v6617
        %v8274 = vunpack.c.l.b16 %v6618
        %v8275 = vunpack.c.h.b16 %v6618
        %v8276 = vunpack.c.l.b16 %v6619
        %v8277 = vunpack.c.h.b16 %v6619
        %v8278 = vunpack.c.l.b16 %v6620
        %v8279 = vunpack.c.h.b16 %v6620
        %v8280 = vunpack.c.l.b16 %v6621
        %v8281 = vunpack.c.h.b16 %v6621
        %v8282 = vunpack.c.l.b16 %v6622
        %v8283 = vunpack.c.h.b16 %v6622
        %v8284 = vunpack.c.l.b16 %v6623
        %v8285 = vunpack.c.h.b16 %v6623
        %v8286 = vunpack.c.l.b16 %v6624
        %v8287 = vunpack.c.h.b16 %v6624
        %v8288 = vunpack.c.l.b16 %v6625
        %v8289 = vunpack.c.h.b16 %v6625
        %v8290 = vunpack.c.l.b16 %v6626
        %v8291 = vunpack.c.h.b16 %v6626
        %v8292 = vunpack.c.l.b16 %v6627
        %v8293 = vunpack.c.h.b16 %v6627
        %v8294 = vunpack.c.l.b16 %v6628
        %v8295 = vunpack.c.h.b16 %v6628
        %v8296 = vunpack.c.l.b16 %v6629
        %v8297 = vunpack.c.h.b16 %v6629
        %v8298 = vunpack.c.l.b16 %v6630
        %v8299 = vunpack.c.h.b16 %v6630
        %v8300 = vunpack.c.l.b16 %v6631
        %v8301 = vunpack.c.h.b16 %v6631
        %v8302 = vunpack.c.l.b16 %v6632
        %v8303 = vunpack.c.h.b16 %v6632
        %v8304 = vunpack.c.l.b16 %v6633
        %v8305 = vunpack.c.h.b16 %v6633
        %v8306 = vunpack.c.l.b16 %v6634
        %v8307 = vunpack.c.l.b16 %v6635
        %v8308 = vunpack.c.h.b16 %v6635
        %v8309 = vunpack.c.l.b16 %v6636
        %v8310 = vunpack.c.h.b16 %v6636
        %v8311 = vunpack.c.l.b16 %v6637
        %v8312 = vunpack.c.h.b16 %v6637
        %v8313 = vunpack.c.l.b16 %v6638
        %v8314 = vunpack.c.h.b16 %v6638
        %v8315 = vunpack.c.l.b16 %v6639
        %v8316 = vunpack.c.h.b16 %v6639
        %v8317 = vunpack.c.l.b16 %v6640
        %v8318 = vunpack.c.h.b16 %v6640
        %v8319 = vunpack.c.l.b16 %v6641
        %v8320 = vunpack.c.h.b16 %v6641
        %v8321 = vunpack.c.l.b16 %v6642
        %v8322 = vunpack.c.h.b16 %v6642
        %v8323 = vunpack.c.l.b16 %v6643
        %v8324 = vunpack.c.h.b16 %v6643
        %v8325 = vunpack.c.l.b16 %v6644
        %v8326 = vunpack.c.h.b16 %v6644
        %v8327 = vunpack.c.l.b16 %v6645
        %v8328 = vunpack.c.h.b16 %v6645
        %v8329 = vunpack.c.l.b16 %v6646
        %v8330 = vunpack.c.h.b16 %v6646
        %v8331 = vunpack.c.l.b16 %v6647
        %v8332 = vunpack.c.h.b16 %v6647
        %v8333 = vunpack.c.l.b16 %v6648
        %v8334 = vunpack.c.h.b16 %v6648
        %v8335 = vunpack.c.l.b16 %v6649
        %v8336 = vunpack.c.h.b16 %v6649
        %v8337 = vunpack.c.l.b16 %v6650
        %v8338 = vunpack.c.h.b16 %v6650
        %v8339 = vunpack.c.l.b16 %v6651
        %v8340 = vunpack.c.h.b16 %v6651
        %v8341 = vunpack.c.l.b16 %v6652
        %v8342 = vunpack.c.h.b16 %v6652
        %v8343 = vunpack.c.l.b16 %v6653
        %v8344 = vunpack.c.h.b16 %v6653
        %v8345 = vunpack.c.l.b16 %v6654
        %v8346 = vunpack.c.h.b16 %v6654
        %v8347 = vunpack.c.l.b16 %v6655
        %v8348 = vunpack.c.h.b16 %v6655
        %v8349 = vunpack.c.l.b16 %v6656
        %v8350 = vunpack.c.h.b16 %v6656
        %v8351 = vunpack.c.l.b16 %v6657
        %v8352 = vunpack.c.h.b16 %v6657
        %v8353 = vunpack.c.l.b16 %v6658
        %v8354 = vunpack.c.h.b16 %v6658
        %v8355 = vunpack.c.l.b16 %v6659
        %v8356 = vunpack.c.h.b16 %v6659
        %v8357 = vunpack.c.l.b16 %v6660
        %v8358 = vunpack.c.h.b16 %v6660
        %v8359 = vunpack.c.l.b16 %v6661
        %v8360 = vunpack.c.h.b16 %v6661
        %v8361 = vunpack.c.l.b16 %v6662
        %v8362 = vunpack.c.h.b16 %v6662
        %v8363 = vunpack.c.l.b16 %v6663
        %v8364 = vunpack.c.h.b16 %v6663
        %v8365 = vunpack.c.l.b16 %v6664
        %v8366 = vunpack.c.h.b16 %v6664
        %v8367 = vunpack.c.l.b16 %v6665
        %v8368 = vunpack.c.h.b16 %v6665
        %v8369 = vunpack.c.l.b16 %v6666
        %v8370 = vunpack.c.h.b16 %v6666
        %v8371 = vunpack.c.l.b16 %v6667
        %v8372 = vunpack.c.h.b16 %v6667
        %v8373 = vunpack.c.l.b16 %v6668
        %v8374 = vunpack.c.l.b16 %v6669
        %v8375 = vunpack.c.h.b16 %v6669
        %v8376 = vunpack.c.l.b16 %v6670
        %v8377 = vunpack.c.h.b16 %v6670
        %v8378 = vunpack.c.l.b16 %v6671
        %v8379 = vunpack.c.h.b16 %v6671
        %v8380 = vunpack.c.l.b16 %v6672
        %v8381 = vunpack.c.h.b16 %v6672
        %v8382 = vunpack.c.l.b16 %v6673
        %v8383 = vunpack.c.h.b16 %v6673
        %v8384 = vunpack.c.l.b16 %v6674
        %v8385 = vunpack.c.h.b16 %v6674
        %v8386 = vunpack.c.l.b16 %v6675
        %v8387 = vunpack.c.h.b16 %v6675
        %v8388 = vunpack.c.l.b16 %v6676
        %v8389 = vunpack.c.h.b16 %v6676
        %v8390 = vunpack.c.l.b16 %v6677
        %v8391 = vunpack.c.h.b16 %v6677
        %v8392 = vunpack.c.l.b16 %v6678
        %v8393 = vunpack.c.h.b16 %v6678
        %v8394 = vunpack.c.l.b16 %v6679
        %v8395 = vunpack.c.h.b16 %v6679
        %v8396 = vunpack.c.l.b16 %v6680
        %v8397 = vunpack.c.h.b16 %v6680
        %v8398 = vunpack.c.l.b16 %v6681
        %v8399 = vunpack.c.h.b16 %v6681
        %v8400 = vunpack.c.l.b16 %v6682
        %v8401 = vunpack.c.h.b16 %v6682
        %v8402 = vunpack.c.l.b16 %v6683
        %v8403 = vunpack.c.h.b16 %v6683
        %v8404 = vunpack.c.l.b16 %v6684
        %v8405 = vunpack.c.h.b16 %v6684
        %v8406 = vunpack.c.l.b16 %v6685
        %v8407 = vunpack.c.h.b16 %v6685
        %v8408 = vunpack.c.l.b16 %v6686
        %v8409 = vunpack.c.h.b16 %v6686
        %v8410 = vunpack.c.l.b16 %v6687
        %v8411 = vunpack.c.h.b16 %v6687
        %v8412 = vunpack.c.l.b16 %v6688
        %v8413 = vunpack.c.h.b16 %v6688
        %v8414 = vunpack.c.l.b16 %v6689
        %v8415 = vunpack.c.h.b16 %v6689
        %v8416 = vunpack.c.l.b16 %v6690
        %v8417 = vunpack.c.h.b16 %v6690
        %v8418 = vunpack.c.l.b16 %v6691
        %v8419 = vunpack.c.h.b16 %v6691
        %v8420 = vunpack.c.l.b16 %v6692
        %v8421 = vunpack.c.h.b16 %v6692
        %v8422 = vunpack.c.l.b16 %v6693
        %v8423 = vunpack.c.h.b16 %v6693
        %v8424 = vunpack.c.l.b16 %v6694
        %v8425 = vunpack.c.h.b16 %v6694
        %v8426 = vunpack.c.l.b16 %v6695
        %v8427 = vunpack.c.h.b16 %v6695
        %v8428 = vunpack.c.l.b16 %v6696
        %v8429 = vunpack.c.h.b16 %v6696
        %v8430 = vunpack.c.l.b16 %v6697
        %v8431 = vunpack.c.h.b16 %v6697
        %v8432 = vunpack.c.l.b16 %v6698
        %v8433 = vunpack.c.h.b16 %v6698
        %v8434 = vunpack.c.l.b16 %v6699
        %v8435 = vunpack.c.h.b16 %v6699
        %v8436 = vunpack.c.l.b16 %v6700
        %v8437 = vunpack.c.h.b16 %v6700
        %v8438 = vunpack.c.l.b16 %v6701
        %v8439 = vunpack.c.h.b16 %v6701
        %v8440 = vunpack.c.l.b16 %v6702
        %v8441 = vunpack.c.l.b16 %v6703
        %v8442 = vunpack.c.h.b16 %v6703
        %v8443 = vunpack.c.l.b16 %v6704
        %v8444 = vunpack.c.h.b16 %v6704
        %v8445 = vunpack.c.l.b16 %v6705
        %v8446 = vunpack.c.h.b16 %v6705
        %v8447 = vunpack.c.l.b16 %v6706
        %v8448 = vunpack.c.h.b16 %v6706
        %v8449 = vunpack.c.l.b16 %v6707
        %v8450 = vunpack.c.h.b16 %v6707
        %v8451 = vunpack.c.l.b16 %v6708
        %v8452 = vunpack.c.h.b16 %v6708
        %v8453 = vunpack.c.l.b16 %v6709
        %v8454 = vunpack.c.h.b16 %v6709
        %v8455 = vunpack.c.l.b16 %v6710
        %v8456 = vunpack.c.h.b16 %v6710
        %v8457 = vunpack.c.l.b16 %v6711
        %v8458 = vunpack.c.h.b16 %v6711
        %v8459 = vunpack.c.l.b16 %v6712
        %v8460 = vunpack.c.h.b16 %v6712
        %v8461 = vunpack.c.l.b16 %v6713
        %v8462 = vunpack.c.h.b16 %v6713
        %v8463 = vunpack.c.l.b16 %v6714
        %v8464 = vunpack.c.h.b16 %v6714
        %v8465 = vunpack.c.l.b16 %v6715
        %v8466 = vunpack.c.h.b16 %v6715
        %v8467 = vunpack.c.l.b16 %v6716
        %v8468 = vunpack.c.h.b16 %v6716
        %v8469 = vunpack.c.l.b16 %v6717
        %v8470 = vunpack.c.h.b16 %v6717
        %v8471 = vunpack.c.l.b16 %v6718
        %v8472 = vunpack.c.h.b16 %v6718
        %v8473 = vunpack.c.l.b16 %v6719
        %v8474 = vunpack.c.h.b16 %v6719
        %v8475 = vunpack.c.l.b16 %v6720
        %v8476 = vunpack.c.h.b16 %v6720
        %v8477 = vunpack.c.l.b16 %v6721
        %v8478 = vunpack.c.h.b16 %v6721
        %v8479 = vunpack.c.l.b16 %v6722
        %v8480 = vunpack.c.h.b16 %v6722
        %v8481 = vunpack.c.l.b16 %v6723
        %v8482 = vunpack.c.h.b16 %v6723
        %v8483 = vunpack.c.l.b16 %v6724
        %v8484 = vunpack.c.h.b16 %v6724
        %v8485 = vunpack.c.l.b16 %v6725
        %v8486 = vunpack.c.h.b16 %v6725
        %v8487 = vunpack.c.l.b16 %v6726
        %v8488 = vunpack.c.h.b16 %v6726
        %v8489 = vunpack.c.l.b16 %v6727
        %v8490 = vunpack.c.h.b16 %v6727
        %v8491 = vunpack.c.l.b16 %v6728
        %v8492 = vunpack.c.h.b16 %v6728
        %v8493 = vunpack.c.l.b16 %v6729
        %v8494 = vunpack.c.h.b16 %v6729
        %v8495 = vunpack.c.l.b16 %v6730
        %v8496 = vunpack.c.h.b16 %v6730
        %v8497 = vunpack.c.l.b16 %v6731
        %v8498 = vunpack.c.h.b16 %v6731
        %v8499 = vunpack.c.l.b16 %v6732
        %v8500 = vunpack.c.h.b16 %v6732
        %v8501 = vunpack.c.l.b16 %v6733
        %v8502 = vunpack.c.h.b16 %v6733
        %v8503 = vunpack.c.l.b16 %v6734
        %v8504 = vunpack.c.h.b16 %v6734
        %v8505 = vunpack.c.l.b16 %v6735
        %v8506 = vunpack.c.h.b16 %v6735
        %v8507 = vunpack.c.l.b16 %v6736
        %v8508 = vunpack.c.l.b16 %v6737
        %v8509 = vunpack.c.h.b16 %v6737
        %v8510 = vunpack.c.l.b16 %v6738
        %v8511 = vunpack.c.h.b16 %v6738
        %v8512 = vunpack.c.l.b16 %v6739
        %v8513 = vunpack.c.h.b16 %v6739
        %v8514 = vunpack.c.l.b16 %v6740
        %v8515 = vunpack.c.h.b16 %v6740
        %v8516 = vunpack.c.l.b16 %v6741
        %v8517 = vunpack.c.h.b16 %v6741
        %v8518 = vunpack.c.l.b16 %v6742
        %v8519 = vunpack.c.h.b16 %v6742
        %v8520 = vunpack.c.l.b16 %v6743
        %v8521 = vunpack.c.h.b16 %v6743
        %v8522 = vunpack.c.l.b16 %v6744
        %v8523 = vunpack.c.h.b16 %v6744
        %v8524 = vunpack.c.l.b16 %v6745
        %v8525 = vunpack.c.h.b16 %v6745
        %v8526 = vunpack.c.l.b16 %v6746
        %v8527 = vunpack.c.h.b16 %v6746
        %v8528 = vunpack.c.l.b16 %v6747
        %v8529 = vunpack.c.h.b16 %v6747
        %v8530 = vunpack.c.l.b16 %v6748
        %v8531 = vunpack.c.h.b16 %v6748
        %v8532 = vunpack.c.l.b16 %v6749
        %v8533 = vunpack.c.h.b16 %v6749
        %v8534 = vunpack.c.l.b16 %v6750
        %v8535 = vunpack.c.h.b16 %v6750
        %v8536 = vunpack.c.l.b16 %v6751
        %v8537 = vunpack.c.h.b16 %v6751
        %v8538 = vunpack.c.l.b16 %v6752
        %v8539 = vunpack.c.h.b16 %v6752
        %v8540 = vunpack.c.l.b16 %v6753
        %v8541 = vunpack.c.h.b16 %v6753
        %v8542 = vunpack.c.l.b16 %v6754
        %v8543 = vunpack.c.h.b16 %v6754
        %v8544 = vunpack.c.l.b16 %v6755
        %v8545 = vunpack.c.h.b16 %v6755
        %v8546 = vunpack.c.l.b16 %v6756
        %v8547 = vunpack.c.h.b16 %v6756
        %v8548 = vunpack.c.l.b16 %v6757
        %v8549 = vunpack.c.h.b16 %v6757
        %v8550 = vunpack.c.l.b16 %v6758
        %v8551 = vunpack.c.h.b16 %v6758
        %v8552 = vunpack.c.l.b16 %v6759
        %v8553 = vunpack.c.h.b16 %v6759
        %v8554 = vunpack.c.l.b16 %v6760
        %v8555 = vunpack.c.h.b16 %v6760
        %v8556 = vunpack.c.l.b16 %v6761
        %v8557 = vunpack.c.h.b16 %v6761
        %v8558 = vunpack.c.l.b16 %v6762
        %v8559 = vunpack.c.h.b16 %v6762
        %v8560 = vunpack.c.l.b16 %v6763
        %v8561 = vunpack.c.h.b16 %v6763
        %v8562 = vunpack.c.l.b16 %v6764
        %v8563 = vunpack.c.h.b16 %v6764
        %v8564 = vunpack.c.l.b16 %v6765
        %v8565 = vunpack.c.h.b16 %v6765
        %v8566 = vunpack.c.l.b16 %v6766
        %v8567 = vunpack.c.h.b16 %v6766
        %v8568 = vunpack.c.l.b16 %v6767
        %v8569 = vunpack.c.h.b16 %v6767
        %v8570 = vunpack.c.l.b16 %v6768
        %v8571 = vunpack.c.h.b16 %v6768
        %v8572 = vunpack.c.l.b16 %v6769
        %v8573 = vunpack.c.h.b16 %v6769
        %v8574 = vunpack.c.l.b16 %v6770
        %v8575 = vunpack.c.l.b16 %v6771
        %v8576 = vunpack.c.h.b16 %v6771
        %v8577 = vunpack.c.l.b16 %v6772
        %v8578 = vunpack.c.h.b16 %v6772
        %v8579 = vunpack.c.l.b16 %v6773
        %v8580 = vunpack.c.h.b16 %v6773
        %v8581 = vunpack.c.l.b16 %v6774
        %v8582 = vunpack.c.h.b16 %v6774
        %v8583 = vunpack.c.l.b16 %v6775
        %v8584 = vunpack.c.h.b16 %v6775
        %v8585 = vunpack.c.l.b16 %v6776
        %v8586 = vunpack.c.h.b16 %v6776
        %v8587 = vunpack.c.l.b16 %v6777
        %v8588 = vunpack.c.h.b16 %v6777
        %v8589 = vunpack.c.l.b16 %v6778
        %v8590 = vunpack.c.h.b16 %v6778
        %v8591 = vunpack.c.l.b16 %v6779
        %v8592 = vunpack.c.h.b16 %v6779
        %v8593 = vunpack.c.l.b16 %v6780
        %v8594 = vunpack.c.h.b16 %v6780
        %v8595 = vunpack.c.l.b16 %v6781
        %v8596 = vunpack.c.h.b16 %v6781
        %v8597 = vunpack.c.l.b16 %v6782
        %v8598 = vunpack.c.h.b16 %v6782
        %v8599 = vunpack.c.l.b16 %v6783
        %v8600 = vunpack.c.h.b16 %v6783
        %v8601 = vunpack.c.l.b16 %v6784
        %v8602 = vunpack.c.h.b16 %v6784
        %v8603 = vunpack.c.l.b16 %v6785
        %v8604 = vunpack.c.h.b16 %v6785
        %v8605 = vunpack.c.l.b16 %v6786
        %v8606 = vunpack.c.h.b16 %v6786
        %v8607 = vunpack.c.l.b16 %v6787
        %v8608 = vunpack.c.h.b16 %v6787
        %v8609 = vunpack.c.l.b16 %v6788
        %v8610 = vunpack.c.h.b16 %v6788
        %v8611 = vunpack.c.l.b16 %v6789
        %v8612 = vunpack.c.h.b16 %v6789
        %v8613 = vunpack.c.l.b16 %v6790
        %v8614 = vunpack.c.h.b16 %v6790
        %v8615 = vunpack.c.l.b16 %v6791
        %v8616 = vunpack.c.h.b16 %v6791
        %v8617 = vunpack.c.l.b16 %v6792
        %v8618 = vunpack.c.h.b16 %v6792
        %v8619 = vunpack.c.l.b16 %v6793
        %v8620 = vunpack.c.h.b16 %v6793
        %v8621 = vunpack.c.l.b16 %v6794
        %v8622 = vunpack.c.h.b16 %v6794
        %v8623 = vunpack.c.l.b16 %v6795
        %v8624 = vunpack.c.h.b16 %v6795
        %v8625 = vunpack.c.l.b16 %v6796
        %v8626 = vunpack.c.h.b16 %v6796
        %v8627 = vunpack.c.l.b16 %v6797
        %v8628 = vunpack.c.h.b16 %v6797
        %v8629 = vunpack.c.l.b16 %v6798
        %v8630 = vunpack.c.h.b16 %v6798
        %v8631 = vunpack.c.l.b16 %v6799
        %v8632 = vunpack.c.h.b16 %v6799
        %v8633 = vunpack.c.l.b16 %v6800
        %v8634 = vunpack.c.h.b16 %v6800
        %v8635 = vunpack.c.l.b16 %v6801
        %v8636 = vunpack.c.h.b16 %v6801
        %v8637 = vunpack.c.l.b16 %v6802
        %v8638 = vunpack.c.h.b16 %v6802
        %v8639 = vunpack.c.l.b16 %v6803
        %v8640 = vunpack.c.h.b16 %v6803
        %v8641 = vunpack.c.l.b16 %v6804
        %v8642 = vunpack.c.l.b16 %v6805
        %v8643 = vunpack.c.h.b16 %v6805
        %v8644 = vunpack.c.l.b16 %v6806
        %v8645 = vunpack.c.h.b16 %v6806
        %v8646 = vunpack.c.l.b16 %v6807
        %v8647 = vunpack.c.h.b16 %v6807
        %v8648 = vunpack.c.l.b16 %v6808
        %v8649 = vunpack.c.h.b16 %v6808
        %v8650 = vunpack.c.l.b16 %v6809
        %v8651 = vunpack.c.h.b16 %v6809
        %v8652 = vunpack.c.l.b16 %v6810
        %v8653 = vunpack.c.h.b16 %v6810
        %v8654 = vunpack.c.l.b16 %v6811
        %v8655 = vunpack.c.h.b16 %v6811
        %v8656 = vunpack.c.l.b16 %v6812
        %v8657 = vunpack.c.h.b16 %v6812
        %v8658 = vunpack.c.l.b16 %v6813
        %v8659 = vunpack.c.h.b16 %v6813
        %v8660 = vunpack.c.l.b16 %v6814
        %v8661 = vunpack.c.h.b16 %v6814
        %v8662 = vunpack.c.l.b16 %v6815
        %v8663 = vunpack.c.h.b16 %v6815
        %v8664 = vunpack.c.l.b16 %v6816
        %v8665 = vunpack.c.h.b16 %v6816
        %v8666 = vunpack.c.l.b16 %v6817
        %v8667 = vunpack.c.h.b16 %v6817
        %v8668 = vunpack.c.l.b16 %v6818
        %v8669 = vunpack.c.h.b16 %v6818
        %v8670 = vunpack.c.l.b16 %v6819
        %v8671 = vunpack.c.h.b16 %v6819
        %v8672 = vunpack.c.l.b16 %v6820
        %v8673 = vunpack.c.h.b16 %v6820
        %v8674 = vunpack.c.l.b16 %v6821
        %v8675 = vunpack.c.h.b16 %v6821
        %v8676 = vunpack.c.l.b16 %v6822
        %v8677 = vunpack.c.h.b16 %v6822
        %v8678 = vunpack.c.l.b16 %v6823
        %v8679 = vunpack.c.h.b16 %v6823
        %v8680 = vunpack.c.l.b16 %v6824
        %v8681 = vunpack.c.h.b16 %v6824
        %v8682 = vunpack.c.l.b16 %v6825
        %v8683 = vunpack.c.h.b16 %v6825
        %v8684 = vunpack.c.l.b16 %v6826
        %v8685 = vunpack.c.h.b16 %v6826
        %v8686 = vunpack.c.l.b16 %v6827
        %v8687 = vunpack.c.h.b16 %v6827
        %v8688 = vunpack.c.l.b16 %v6828
        %v8689 = vunpack.c.h.b16 %v6828
        %v8690 = vunpack.c.l.b16 %v6829
        %v8691 = vunpack.c.h.b16 %v6829
        %v8692 = vunpack.c.l.b16 %v6830
        %v8693 = vunpack.c.h.b16 %v6830
        %v8694 = vunpack.c.l.b16 %v6831
        %v8695 = vunpack.c.h.b16 %v6831
        %v8696 = vunpack.c.l.b16 %v6832
        %v8697 = vunpack.c.h.b16 %v6832
        %v8698 = vunpack.c.l.b16 %v6833
        %v8699 = vunpack.c.h.b16 %v6833
        %v8700 = vunpack.c.l.b16 %v6834
        %v8701 = vunpack.c.h.b16 %v6834
        %v8702 = vunpack.c.l.b16 %v6835
        %v8703 = vunpack.c.h.b16 %v6835
        %v8704 = vunpack.c.l.b16 %v6836
        %v8705 = vunpack.c.h.b16 %v6836
        %v8706 = vunpack.c.l.b16 %v6837
        %v8707 = vunpack.c.h.b16 %v6837
        %v8708 = vunpack.c.l.b16 %v6838
        %v8709 = vunpack.c.l.b16 %v6839
        %v8710 = vunpack.c.h.b16 %v6839
        %v8711 = vunpack.c.l.b16 %v6840
        %v8712 = vunpack.c.h.b16 %v6840
        %v8713 = vunpack.c.l.b16 %v6841
        %v8714 = vunpack.c.h.b16 %v6841
        %v8715 = vunpack.c.l.b16 %v6842
        %v8716 = vunpack.c.h.b16 %v6842
        %v8717 = vunpack.c.l.b16 %v6843
        %v8718 = vunpack.c.h.b16 %v6843
        %v8719 = vunpack.c.l.b16 %v6844
        %v8720 = vunpack.c.h.b16 %v6844
        %v8721 = vunpack.c.l.b16 %v6845
        %v8722 = vunpack.c.h.b16 %v6845
        %v8723 = vunpack.c.l.b16 %v6846
        %v8724 = vunpack.c.h.b16 %v6846
        %v8725 = vunpack.c.l.b16 %v6847
        %v8726 = vunpack.c.h.b16 %v6847
        %v8727 = vunpack.c.l.b16 %v6848
        %v8728 = vunpack.c.h.b16 %v6848
        %v8729 = vunpack.c.l.b16 %v6849
        %v8730 = vunpack.c.h.b16 %v6849
        %v8731 = vunpack.c.l.b16 %v6850
        %v8732 = vunpack.c.h.b16 %v6850
        %v8733 = vunpack.c.l.b16 %v6851
        %v8734 = vunpack.c.h.b16 %v6851
        %v8735 = vunpack.c.l.b16 %v6852
        %v8736 = vunpack.c.h.b16 %v6852
        %v8737 = vunpack.c.l.b16 %v6853
        %v8738 = vunpack.c.h.b16 %v6853
        %v8739 = vunpack.c.l.b16 %v6854
        %v8740 = vunpack.c.h.b16 %v6854
        %v8741 = vunpack.c.l.b16 %v6855
        %v8742 = vunpack.c.h.b16 %v6855
        %v8743 = vunpack.c.l.b16 %v6856
        %v8744 = vunpack.c.h.b16 %v6856
        %v8745 = vunpack.c.l.b16 %v6857
        %v8746 = vunpack.c.h.b16 %v6857
        %v8747 = vunpack.c.l.b16 %v6858
        %v8748 = vunpack.c.h.b16 %v6858
        %v8749 = vunpack.c.l.b16 %v6859
        %v8750 = vunpack.c.h.b16 %v6859
        %v8751 = vunpack.c.l.b16 %v6860
        %v8752 = vunpack.c.h.b16 %v6860
        %v8753 = vunpack.c.l.b16 %v6861
        %v8754 = vunpack.c.h.b16 %v6861
        %v8755 = vunpack.c.l.b16 %v6862
        %v8756 = vunpack.c.h.b16 %v6862
        %v8757 = vunpack.c.l.b16 %v6863
        %v8758 = vunpack.c.h.b16 %v6863
        %v8759 = vunpack.c.l.b16 %v6864
        %v8760 = vunpack.c.h.b16 %v6864
        %v8761 = vunpack.c.l.b16 %v6865
        %v8762 = vunpack.c.h.b16 %v6865
        %v8763 = vunpack.c.l.b16 %v6866
        %v8764 = vunpack.c.h.b16 %v6866
        %v8765 = vunpack.c.l.b16 %v6867
        %v8766 = vunpack.c.h.b16 %v6867
        %v8767 = vunpack.c.l.b16 %v6868
        %v8768 = vunpack.c.h.b16 %v6868
        %v8769 = vunpack.c.l.b16 %v6869
        %v8770 = vunpack.c.h.b16 %v6869
        %v8771 = vunpack.c.l.b16 %v6870
        %v8772 = vunpack.c.h.b16 %v6870
        %v8773 = vunpack.c.l.b16 %v6871
        %v8774 = vunpack.c.h.b16 %v6871
        %v8775 = vunpack.c.l.b16 %v6872
        %v8776 = vunpack.c.l.b16 %v6873
        %v8777 = vunpack.c.h.b16 %v6873
        %v8778 = vunpack.c.l.b16 %v6874
        %v8779 = vunpack.c.h.b16 %v6874
        %v8780 = vunpack.c.l.b16 %v6875
        %v8781 = vunpack.c.h.b16 %v6875
        %v8782 = vunpack.c.l.b16 %v6876
        %v8783 = vunpack.c.h.b16 %v6876
        %v8784 = vunpack.c.l.b16 %v6877
        %v8785 = vunpack.c.h.b16 %v6877
        %v8786 = vunpack.c.l.b16 %v6878
        %v8787 = vunpack.c.h.b16 %v6878
        %v8788 = vunpack.c.l.b16 %v6879
        %v8789 = vunpack.c.h.b16 %v6879
        %v8790 = vunpack.c.l.b16 %v6880
        %v8791 = vunpack.c.h.b16 %v6880
        %v8792 = vunpack.c.l.b16 %v6881
        %v8793 = vunpack.c.h.b16 %v6881
        %v8794 = vunpack.c.l.b16 %v6882
        %v8795 = vunpack.c.h.b16 %v6882
        %v8796 = vunpack.c.l.b16 %v6883
        %v8797 = vunpack.c.h.b16 %v6883
        %v8798 = vunpack.c.l.b16 %v6884
        %v8799 = vunpack.c.h.b16 %v6884
        %v8800 = vunpack.c.l.b16 %v6885
        %v8801 = vunpack.c.h.b16 %v6885
        %v8802 = vunpack.c.l.b16 %v6886
        %v8803 = vunpack.c.h.b16 %v6886
        %v8804 = vunpack.c.l.b16 %v6887
        %v8805 = vunpack.c.h.b16 %v6887
        %v8806 = vunpack.c.l.b16 %v6888
        %v8807 = vunpack.c.h.b16 %v6888
        %v8808 = vunpack.c.l.b16 %v6889
        %v8809 = vunpack.c.h.b16 %v6889
        %v8810 = vunpack.c.l.b16 %v6890
        %v8811 = vunpack.c.h.b16 %v6890
        %v8812 = vunpack.c.l.b16 %v6891
        %v8813 = vunpack.c.h.b16 %v6891
        %v8814 = vunpack.c.l.b16 %v6892
        %v8815 = vunpack.c.h.b16 %v6892
        %v8816 = vunpack.c.l.b16 %v6893
        %v8817 = vunpack.c.h.b16 %v6893
        %v8818 = vunpack.c.l.b16 %v6894
        %v8819 = vunpack.c.h.b16 %v6894
        %v8820 = vunpack.c.l.b16 %v6895
        %v8821 = vunpack.c.h.b16 %v6895
        %v8822 = vunpack.c.l.b16 %v6896
        %v8823 = vunpack.c.h.b16 %v6896
        %v8824 = vunpack.c.l.b16 %v6897
        %v8825 = vunpack.c.h.b16 %v6897
        %v8826 = vunpack.c.l.b16 %v6898
        %v8827 = vunpack.c.h.b16 %v6898
        %v8828 = vunpack.c.l.b16 %v6899
        %v8829 = vunpack.c.h.b16 %v6899
        %v8830 = vunpack.c.l.b16 %v6900
        %v8831 = vunpack.c.h.b16 %v6900
        %v8832 = vunpack.c.l.b16 %v6901
        %v8833 = vunpack.c.h.b16 %v6901
        %v8834 = vunpack.c.l.b16 %v6902
        %v8835 = vunpack.c.h.b16 %v6902
        %v8836 = vunpack.c.l.b16 %v6903
        %v8837 = vunpack.c.h.b16 %v6903
        %v8838 = vunpack.c.l.b16 %v6904
        %v8839 = vunpack.c.h.b16 %v6904
        %v8840 = vunpack.c.l.b16 %v6905
        %v8841 = vunpack.c.h.b16 %v6905
        %v8842 = vunpack.c.l.b16 %v6906
        %v8843 = vunpack.c.l.b16 %v6907
        %v8844 = vunpack.c.h.b16 %v6907
        %v8845 = vunpack.c.l.b16 %v6908
        %v8846 = vunpack.c.h.b16 %v6908
        %v8847 = vunpack.c.l.b16 %v6909
        %v8848 = vunpack.c.h.b16 %v6909
        %v8849 = vunpack.c.l.b16 %v6910
        %v8850 = vunpack.c.h.b16 %v6910
        %v8851 = vunpack.c.l.b16 %v6911
        %v8852 = vunpack.c.h.b16 %v6911
        %v8853 = vunpack.c.l.b16 %v6912
        %v8854 = vunpack.c.h.b16 %v6912
        %v8855 = vunpack.c.l.b16 %v6913
        %v8856 = vunpack.c.h.b16 %v6913
        %v8857 = vunpack.c.l.b16 %v6914
        %v8858 = vunpack.c.h.b16 %v6914
        %v8859 = vunpack.c.l.b16 %v6915
        %v8860 = vunpack.c.h.b16 %v6915
        %v8861 = vunpack.c.l.b16 %v6916
        %v8862 = vunpack.c.h.b16 %v6916
        %v8863 = vunpack.c.l.b16 %v6917
        %v8864 = vunpack.c.h.b16 %v6917
        %v8865 = vunpack.c.l.b16 %v6918
        %v8866 = vunpack.c.h.b16 %v6918
        %v8867 = vunpack.c.l.b16 %v6919
        %v8868 = vunpack.c.h.b16 %v6919
        %v8869 = vunpack.c.l.b16 %v6920
        %v8870 = vunpack.c.h.b16 %v6920
        %v8871 = vunpack.c.l.b16 %v6921
        %v8872 = vunpack.c.h.b16 %v6921
        %v8873 = vunpack.c.l.b16 %v6922
        %v8874 = vunpack.c.h.b16 %v6922
        %v8875 = vunpack.c.l.b16 %v6923
        %v8876 = vunpack.c.h.b16 %v6923
        %v8877 = vunpack.c.l.b16 %v6924
        %v8878 = vunpack.c.h.b16 %v6924
        %v8879 = vunpack.c.l.b16 %v6925
        %v8880 = vunpack.c.h.b16 %v6925
        %v8881 = vunpack.c.l.b16 %v6926
        %v8882 = vunpack.c.h.b16 %v6926
        %v8883 = vunpack.c.l.b16 %v6927
        %v8884 = vunpack.c.h.b16 %v6927
        %v8885 = vunpack.c.l.b16 %v6928
        %v8886 = vunpack.c.h.b16 %v6928
        %v8887 = vunpack.c.l.b16 %v6929
        %v8888 = vunpack.c.h.b16 %v6929
        %v8889 = vunpack.c.l.b16 %v6930
        %v8890 = vunpack.c.h.b16 %v6930
        %v8891 = vunpack.c.l.b16 %v6931
        %v8892 = vunpack.c.h.b16 %v6931
        %v8893 = vunpack.c.l.b16 %v6932
        %v8894 = vunpack.c.h.b16 %v6932
        %v8895 = vunpack.c.l.b16 %v6933
        %v8896 = vunpack.c.h.b16 %v6933
        %v8897 = vunpack.c.l.b16 %v6934
        %v8898 = vunpack.c.h.b16 %v6934
        %v8899 = vunpack.c.l.b16 %v6935
        %v8900 = vunpack.c.h.b16 %v6935
        %v8901 = vunpack.c.l.b16 %v6936
        %v8902 = vunpack.c.h.b16 %v6936
        %v8903 = vunpack.c.l.b16 %v6937
        %v8904 = vunpack.c.h.b16 %v6937
        %v8905 = vunpack.c.l.b16 %v6938
        %v8906 = vunpack.c.h.b16 %v6938
        %v8907 = vunpack.c.l.b16 %v6939
        %v8908 = vunpack.c.h.b16 %v6939
        %v8909 = vunpack.c.l.b16 %v6940
        %v8910 = vpack.c.b16 %v7905, %v7838
        %v8911 = vpack.c.b16 %v7906, %v7839
        %v8912 = vpack.c.b16 %v7907, %v7840
        %v8913 = vpack.c.b16 %v7908, %v7841
        %v8914 = vpack.c.b16 %v7909, %v7842
        %v8915 = vpack.c.b16 %v7910, %v7843
        %v8916 = vpack.c.b16 %v7911, %v7844
        %v8917 = vpack.c.b16 %v7912, %v7845
        %v8918 = vpack.c.b16 %v7913, %v7846
        %v8919 = vpack.c.b16 %v7914, %v7847
        %v8920 = vpack.c.b16 %v7915, %v7848
        %v8921 = vpack.c.b16 %v7916, %v7849
        %v8922 = vpack.c.b16 %v7917, %v7850
        %v8923 = vpack.c.b16 %v7918, %v7851
        %v8924 = vpack.c.b16 %v7919, %v7852
        %v8925 = vpack.c.b16 %v7920, %v7853
        %v8926 = vpack.c.b16 %v7921, %v7854
        %v8927 = vpack.c.b16 %v7922, %v7855
        %v8928 = vpack.c.b16 %v7923, %v7856
        %v8929 = vpack.c.b16 %v7924, %v7857
        %v8930 = vpack.c.b16 %v7925, %v7858
        %v8931 = vpack.c.b16 %v7926, %v7859
        %v8932 = vpack.c.b16 %v7927, %v7860
        %v8933 = vpack.c.b16 %v7928, %v7861
        %v8934 = vpack.c.b16 %v7929, %v7862
        %v8935 = vpack.c.b16 %v7930, %v7863
        %v8936 = vpack.c.b16 %v7931, %v7864
        %v8937 = vpack.c.b16 %v7932, %v7865
        %v8938 = vpack.c.b16 %v7933, %v7866
        %v8939 = vpack.c.b16 %v7934, %v7867
        %v8940 = vpack.c.b16 %v7935, %v7868
        %v8941 = vpack.c.b16 %v7936, %v7869
        %v8942 = vpack.c.b16 %v7937, %v7870
        %v8943 = vpack.c.b16 %v7938, %v7871
        %v8944 = vpack.c.b16 %v7939, %v7872
        %v8945 = vpack.c.b16 %v7940, %v7873
        %v8946 = vpack.c.b16 %v7941, %v7874
        %v8947 = vpack.c.b16 %v7942, %v7875
        %v8948 = vpack.c.b16 %v7943, %v7876
        %v8949 = vpack.c.b16 %v7944, %v7877
        %v8950 = vpack.c.b16 %v7945, %v7878
        %v8951 = vpack.c.b16 %v7946, %v7879
        %v8952 = vpack.c.b16 %v7947, %v7880
        %v8953 = vpack.c.b16 %v7948, %v7881
        %v8954 = vpack.c.b16 %v7949, %v7882
        %v8955 = vpack.c.b16 %v7950, %v7883
        %v8956 = vpack.c.b16 %v7951, %v7884
        %v8957 = vpack.c.b16 %v7952, %v7885
        %v8958 = vpack.c.b16 %v7953, %v7886
        %v8959 = vpack.c.b16 %v7954, %v7887
        %v8960 = vpack.c.b16 %v7955, %v7888
        %v8961 = vpack.c.b16 %v7956, %v7889
        %v8962 = vpack.c.b16 %v7957, %v7890
        %v8963 = vpack.c.b16 %v7958, %v7891
        %v8964 = vpack.c.b16 %v7959, %v7892
        %v8965 = vpack.c.b16 %v7960, %v7893
        %v8966 = vpack.c.b16 %v7961, %v7894
        %v8967 = vpack.c.b16 %v7962, %v7895
        %v8968 = vpack.c.b16 %v7963, %v7896
        %v8969 = vpack.c.b16 %v7964, %v7897
        %v8970 = vpack.c.b16 %v7965, %v7898
        %v8971 = vpack.c.b16 %v7966, %v7899
        %v8972 = vpack.c.b16 %v7967, %v7900
        %v8973 = vpack.c.b16 %v7968, %v7901
        %v8974 = vpack.c.b16 %v7969, %v7902
        %v8975 = vpack.c.b16 %v7970, %v7903
        %v8976 = vpack.c.b16 %v7971, %v7904
        %v8977 = vpack.c.b16 %v8039, %v7972
        %v8978 = vpack.c.b16 %v8040, %v7973
        %v8979 = vpack.c.b16 %v8041, %v7974
        %v8980 = vpack.c.b16 %v8042, %v7975
        %v8981 = vpack.c.b16 %v8043, %v7976
        %v8982 = vpack.c.b16 %v8044, %v7977
        %v8983 = vpack.c.b16 %v8045, %v7978
        %v8984 = vpack.c.b16 %v8046, %v7979
        %v8985 = vpack.c.b16 %v8047, %v7980
        %v8986 = vpack.c.b16 %v8048, %v7981
        %v8987 = vpack.c.b16 %v8049, %v7982
        %v8988 = vpack.c.b16 %v8050, %v7983
        %v8989 = vpack.c.b16 %v8051, %v7984
        %v8990 = vpack.c.b16 %v8052, %v7985
        %v8991 = vpack.c.b16 %v8053, %v7986
        %v8992 = vpack.c.b16 %v8054, %v7987
        %v8993 = vpack.c.b16 %v8055, %v7988
        %v8994 = vpack.c.b16 %v8056, %v7989
        %v8995 = vpack.c.b16 %v8057, %v7990
        %v8996 = vpack.c.b16 %v8058, %v7991
        %v8997 = vpack.c.b16 %v8059, %v7992
        %v8998 = vpack.c.b16 %v8060, %v7993
        %v8999 = vpack.c.b16 %v8061, %v7994
        %v9000 = vpack.c.b16 %v8062, %v7995
        %v9001 = vpack.c.b16 %v8063, %v7996
        %v9002 = vpack.c.b16 %v8064, %v7997
        %v9003 = vpack.c.b16 %v8065, %v7998
        %v9004 = vpack.c.b16 %v8066, %v7999
        %v9005 = vpack.c.b16 %v8067, %v8000
        %v9006 = vpack.c.b16 %v8068, %v8001
        %v9007 = vpack.c.b16 %v8069, %v8002
        %v9008 = vpack.c.b16 %v8070, %v8003
        %v9009 = vpack.c.b16 %v8071, %v8004
        %v9010 = vpack.c.b16 %v8072, %v8005
        %v9011 = vpack.c.b16 %v8073, %v8006
        %v9012 = vpack.c.b16 %v8074, %v8007
        %v9013 = vpack.c.b16 %v8075, %v8008
        %v9014 = vpack.c.b16 %v8076, %v8009
        %v9015 = vpack.c.b16 %v8077, %v8010
        %v9016 = vpack.c.b16 %v8078, %v8011
        %v9017 = vpack.c.b16 %v8079, %v8012
        %v9018 = vpack.c.b16 %v8080, %v8013
        %v9019 = vpack.c.b16 %v8081, %v8014
        %v9020 = vpack.c.b16 %v8082, %v8015
        %v9021 = vpack.c.b16 %v8083, %v8016
        %v9022 = vpack.c.b16 %v8084, %v8017
        %v9023 = vpack.c.b16 %v8085, %v8018
        %v9024 = vpack.c.b16 %v8086, %v8019
        %v9025 = vpack.c.b16 %v8087, %v8020
        %v9026 = vpack.c.b16 %v8088, %v8021
        %v9027 = vpack.c.b16 %v8089, %v8022
        %v9028 = vpack.c.b16 %v8090, %v8023
        %v9029 = vpack.c.b16 %v8091, %v8024
        %v9030 = vpack.c.b16 %v8092, %v8025
        %v9031 = vpack.c.b16 %v8093, %v8026
        %v9032 = vpack.c.b16 %v8094, %v8027
        %v9033 = vpack.c.b16 %v8095, %v8028
        %v9034 = vpack.c.b16 %v8096, %v8029
        %v9035 = vpack.c.b16 %v8097, %v8030
        %v9036 = vpack.c.b16 %v8098, %v8031
        %v9037 = vpack.c.b16 %v8099, %v8032
        %v9038 = vpack.c.b16 %v8100, %v8033
        %v9039 = vpack.c.b16 %v8101, %v8034
        %v9040 = vpack.c.b16 %v8102, %v8035
        %v9041 = vpack.c.b16 %v8103, %v8036
        %v9042 = vpack.c.b16 %v8104, %v8037
        %v9043 = vpack.c.b16 %v8105, %v8038
        %v9044 = vpack.c.b16 %v8173, %v8106
        %v9045 = vpack.c.b16 %v8174, %v8107
        %v9046 = vpack.c.b16 %v8175, %v8108
        %v9047 = vpack.c.b16 %v8176, %v8109
        %v9048 = vpack.c.b16 %v8177, %v8110
        %v9049 = vpack.c.b16 %v8178, %v8111
        %v9050 = vpack.c.b16 %v8179, %v8112
        %v9051 = vpack.c.b16 %v8180, %v8113
        %v9052 = vpack.c.b16 %v8181, %v8114
        %v9053 = vpack.c.b16 %v8182, %v8115
        %v9054 = vpack.c.b16 %v8183, %v8116
        %v9055 = vpack.c.b16 %v8184, %v8117
        %v9056 = vpack.c.b16 %v8185, %v8118
        %v9057 = vpack.c.b16 %v8186, %v8119
        %v9058 = vpack.c.b16 %v8187, %v8120
        %v9059 = vpack.c.b16 %v8188, %v8121
        %v9060 = vpack.c.b16 %v8189, %v8122
        %v9061 = vpack.c.b16 %v8190, %v8123
        %v9062 = vpack.c.b16 %v8191, %v8124
        %v9063 = vpack.c.b16 %v8192, %v8125
        %v9064 = vpack.c.b16 %v8193, %v8126
        %v9065 = vpack.c.b16 %v8194, %v8127
        %v9066 = vpack.c.b16 %v8195, %v8128
        %v9067 = vpack.c.b16 %v8196, %v8129
        %v9068 = vpack.c.b16 %v8197, %v8130
        %v9069 = vpack.c.b16 %v8198, %v8131
        %v9070 = vpack.c.b16 %v8199, %v8132
        %v9071 = vpack.c.b16 %v8200, %v8133
        %v9072 = vpack.c.b16 %v8201, %v8134
        %v9073 = vpack.c.b16 %v8202, %v8135
        %v9074 = vpack.c.b16 %v8203, %v8136
        %v9075 = vpack.c.b16 %v8204, %v8137
        %v9076 = vpack.c.b16 %v8205, %v8138
        %v9077 = vpack.c.b16 %v8206, %v8139
        %v9078 = vpack.c.b16 %v8207, %v8140
        %v9079 = vpack.c.b16 %v8208, %v8141
        %v9080 = vpack.c.b16 %v8209, %v8142
        %v9081 = vpack.c.b16 %v8210, %v8143
        %v9082 = vpack.c.b16 %v8211, %v8144
        %v9083 = vpack.c.b16 %v8212, %v8145
        %v9084 = vpack.c.b16 %v8213, %v8146
        %v9085 = vpack.c.b16 %v8214, %v8147
        %v9086 = vpack.c.b16 %v8215, %v8148
        %v9087 = vpack.c.b16 %v8216, %v8149
        %v9088 = vpack.c.b16 %v8217, %v8150
        %v9089 = vpack.c.b16 %v8218, %v8151
        %v9090 = vpack.c.b16 %v8219, %v8152
        %v9091 = vpack.c.b16 %v8220, %v8153
        %v9092 = vpack.c.b16 %v8221, %v8154
        %v9093 = vpack.c.b16 %v8222, %v8155
        %v9094 = vpack.c.b16 %v8223, %v8156
        %v9095 = vpack.c.b16 %v8224, %v8157
        %v9096 = vpack.c.b16 %v8225, %v8158
        %v9097 = vpack.c.b16 %v8226, %v8159
        %v9098 = vpack.c.b16 %v8227, %v8160
        %v9099 = vpack.c.b16 %v8228, %v8161
        %v9100 = vpack.c.b16 %v8229, %v8162
        %v9101 = vpack.c.b16 %v8230, %v8163
        %v9102 = vpack.c.b16 %v8231, %v8164
        %v9103 = vpack.c.b16 %v8232, %v8165
        %v9104 = vpack.c.b16 %v8233, %v8166
        %v9105 = vpack.c.b16 %v8234, %v8167
        %v9106 = vpack.c.b16 %v8235, %v8168
        %v9107 = vpack.c.b16 %v8236, %v8169
        %v9108 = vpack.c.b16 %v8237, %v8170
        %v9109 = vpack.c.b16 %v8238, %v8171
        %v9110 = vpack.c.b16 %v8239, %v8172
        %v9111 = vpack.c.b16 %v8307, %v8240
        %v9112 = vpack.c.b16 %v8308, %v8241
        %v9113 = vpack.c.b16 %v8309, %v8242
        %v9114 = vpack.c.b16 %v8310, %v8243
        %v9115 = vpack.c.b16 %v8311, %v8244
        %v9116 = vpack.c.b16 %v8312, %v8245
        %v9117 = vpack.c.b16 %v8313, %v8246
        %v9118 = vpack.c.b16 %v8314, %v8247
        %v9119 = vpack.c.b16 %v8315, %v8248
        %v9120 = vpack.c.b16 %v8316, %v8249
        %v9121 = vpack.c.b16 %v8317, %v8250
        %v9122 = vpack.c.b16 %v8318, %v8251
        %v9123 = vpack.c.b16 %v8319, %v8252
        %v9124 = vpack.c.b16 %v8320, %v8253
        %v9125 = vpack.c.b16 %v8321, %v8254
        %v9126 = vpack.c.b16 %v8322, %v8255
        %v9127 = vpack.c.b16 %v8323, %v8256
        %v9128 = vpack.c.b16 %v8324, %v8257
        %v9129 = vpack.c.b16 %v8325, %v8258
        %v9130 = vpack.c.b16 %v8326, %v8259
        %v9131 = vpack.c.b16 %v8327, %v8260
        %v9132 = vpack.c.b16 %v8328, %v8261
        %v9133 = vpack.c.b16 %v8329, %v8262
        %v9134 = vpack.c.b16 %v8330, %v8263
        %v9135 = vpack.c.b16 %v8331, %v8264
        %v9136 = vpack.c.b16 %v8332, %v8265
        %v9137 = vpack.c.b16 %v8333, %v8266
        %v9138 = vpack.c.b16 %v8334, %v8267
        %v9139 = vpack.c.b16 %v8335, %v8268
        %v9140 = vpack.c.b16 %v8336, %v8269
        %v9141 = vpack.c.b16 %v8337, %v8270
        %v9142 = vpack.c.b16 %v8338, %v8271
        %v9143 = vpack.c.b16 %v8339, %v8272
        %v9144 = vpack.c.b16 %v8340, %v8273
        %v9145 = vpack.c.b16 %v8341, %v8274
        %v9146 = vpack.c.b16 %v8342, %v8275
        %v9147 = vpack.c.b16 %v8343, %v8276
        %v9148 = vpack.c.b16 %v8344, %v8277
        %v9149 = vpack.c.b16 %v8345, %v8278
        %v9150 = vpack.c.b16 %v8346, %v8279
        %v9151 = vpack.c.b16 %v8347, %v8280
        %v9152 = vpack.c.b16 %v8348, %v8281
        %v9153 = vpack.c.b16 %v8349, %v8282
        %v9154 = vpack.c.b16 %v8350, %v8283
        %v9155 = vpack.c.b16 %v8351, %v8284
        %v9156 = vpack.c.b16 %v8352, %v8285
        %v9157 = vpack.c.b16 %v8353, %v8286
        %v9158 = vpack.c.b16 %v8354, %v8287
        %v9159 = vpack.c.b16 %v8355, %v8288
        %v9160 = vpack.c.b16 %v8356, %v8289
        %v9161 = vpack.c.b16 %v8357, %v8290
        %v9162 = vpack.c.b16 %v8358, %v8291
        %v9163 = vpack.c.b16 %v8359, %v8292
        %v9164 = vpack.c.b16 %v8360, %v8293
        %v9165 = vpack.c.b16 %v8361, %v8294
        %v9166 = vpack.c.b16 %v8362, %v8295
        %v9167 = vpack.c.b16 %v8363, %v8296
        %v9168 = vpack.c.b16 %v8364, %v8297
        %v9169 = vpack.c.b16 %v8365, %v8298
        %v9170 = vpack.c.b16 %v8366, %v8299
        %v9171 = vpack.c.b16 %v8367, %v8300
        %v9172 = vpack.c.b16 %v8368, %v8301
        %v9173 = vpack.c.b16 %v8369, %v8302
        %v9174 = vpack.c.b16 %v8370, %v8303
        %v9175 = vpack.c.b16 %v8371, %v8304
        %v9176 = vpack.c.b16 %v8372, %v8305
        %v9177 = vpack.c.b16 %v8373, %v8306
        %v9178 = vpack.c.b16 %v8441, %v8374
        %v9179 = vpack.c.b16 %v8442, %v8375
        %v9180 = vpack.c.b16 %v8443, %v8376
        %v9181 = vpack.c.b16 %v8444, %v8377
        %v9182 = vpack.c.b16 %v8445, %v8378
        %v9183 = vpack.c.b16 %v8446, %v8379
        %v9184 = vpack.c.b16 %v8447, %v8380
        %v9185 = vpack.c.b16 %v8448, %v8381
        %v9186 = vpack.c.b16 %v8449, %v8382
        %v9187 = vpack.c.b16 %v8450, %v8383
        %v9188 = vpack.c.b16 %v8451, %v8384
        %v9189 = vpack.c.b16 %v8452, %v8385
        %v9190 = vpack.c.b16 %v8453, %v8386
        %v9191 = vpack.c.b16 %v8454, %v8387
        %v9192 = vpack.c.b16 %v8455, %v8388
        %v9193 = vpack.c.b16 %v8456, %v8389
        %v9194 = vpack.c.b16 %v8457, %v8390
        %v9195 = vpack.c.b16 %v8458, %v8391
        %v9196 = vpack.c.b16 %v8459, %v8392
        %v9197 = vpack.c.b16 %v8460, %v8393
        %v9198 = vpack.c.b16 %v8461, %v8394
        %v9199 = vpack.c.b16 %v8462, %v8395
        %v9200 = vpack.c.b16 %v8463, %v8396
        %v9201 = vpack.c.b16 %v8464, %v8397
        %v9202 = vpack.c.b16 %v8465, %v8398
        %v9203 = vpack.c.b16 %v8466, %v8399
        %v9204 = vpack.c.b16 %v8467, %v8400
        %v9205 = vpack.c.b16 %v8468, %v8401
        %v9206 = vpack.c.b16 %v8469, %v8402
        %v9207 = vpack.c.b16 %v8470, %v8403
        %v9208 = vpack.c.b16 %v8471, %v8404
        %v9209 = vpack.c.b16 %v8472, %v8405
        %v9210 = vpack.c.b16 %v8473, %v8406
        %v9211 = vpack.c.b16 %v8474, %v8407
        %v9212 = vpack.c.b16 %v8475, %v8408
        %v9213 = vpack.c.b16 %v8476, %v8409
        %v9214 = vpack.c.b16 %v8477, %v8410
        %v9215 = vpack.c.b16 %v8478, %v8411
        %v9216 = vpack.c.b16 %v8479, %v8412
        %v9217 = vpack.c.b16 %v8480, %v8413
        %v9218 = vpack.c.b16 %v8481, %v8414
        %v9219 = vpack.c.b16 %v8482, %v8415
        %v9220 = vpack.c.b16 %v8483, %v8416
        %v9221 = vpack.c.b16 %v8484, %v8417
        %v9222 = vpack.c.b16 %v8485, %v8418
        %v9223 = vpack.c.b16 %v8486, %v8419
        %v9224 = vpack.c.b16 %v8487, %v8420
        %v9225 = vpack.c.b16 %v8488, %v8421
        %v9226 = vpack.c.b16 %v8489, %v8422
        %v9227 = vpack.c.b16 %v8490, %v8423
        %v9228 = vpack.c.b16 %v8491, %v8424
        %v9229 = vpack.c.b16 %v8492, %v8425
        %v9230 = vpack.c.b16 %v8493, %v8426
        %v9231 = vpack.c.b16 %v8494, %v8427
        %v9232 = vpack.c.b16 %v8495, %v8428
        %v9233 = vpack.c.b16 %v8496, %v8429
        %v9234 = vpack.c.b16 %v8497, %v8430
        %v9235 = vpack.c.b16 %v8498, %v8431
        %v9236 = vpack.c.b16 %v8499, %v8432
        %v9237 = vpack.c.b16 %v8500, %v8433
        %v9238 = vpack.c.b16 %v8501, %v8434
        %v9239 = vpack.c.b16 %v8502, %v8435
        %v9240 = vpack.c.b16 %v8503, %v8436
        %v9241 = vpack.c.b16 %v8504, %v8437
        %v9242 = vpack.c.b16 %v8505, %v8438
        %v9243 = vpack.c.b16 %v8506, %v8439
        %v9244 = vpack.c.b16 %v8507, %v8440
        %v9245 = vpack.c.b16 %v8575, %v8508
        %v9246 = vpack.c.b16 %v8576, %v8509
        %v9247 = vpack.c.b16 %v8577, %v8510
        %v9248 = vpack.c.b16 %v8578, %v8511
        %v9249 = vpack.c.b16 %v8579, %v8512
        %v9250 = vpack.c.b16 %v8580, %v8513
        %v9251 = vpack.c.b16 %v8581, %v8514
        %v9252 = vpack.c.b16 %v8582, %v8515
        %v9253 = vpack.c.b16 %v8583, %v8516
        %v9254 = vpack.c.b16 %v8584, %v8517
        %v9255 = vpack.c.b16 %v8585, %v8518
        %v9256 = vpack.c.b16 %v8586, %v8519
        %v9257 = vpack.c.b16 %v8587, %v8520
        %v9258 = vpack.c.b16 %v8588, %v8521
        %v9259 = vpack.c.b16 %v8589, %v8522
        %v9260 = vpack.c.b16 %v8590, %v8523
        %v9261 = vpack.c.b16 %v8591, %v8524
        %v9262 = vpack.c.b16 %v8592, %v8525
        %v9263 = vpack.c.b16 %v8593, %v8526
        %v9264 = vpack.c.b16 %v8594, %v8527
        %v9265 = vpack.c.b16 %v8595, %v8528
        %v9266 = vpack.c.b16 %v8596, %v8529
        %v9267 = vpack.c.b16 %v8597, %v8530
        %v9268 = vpack.c.b16 %v8598, %v8531
        %v9269 = vpack.c.b16 %v8599, %v8532
        %v9270 = vpack.c.b16 %v8600, %v8533
        %v9271 = vpack.c.b16 %v8601, %v8534
        %v9272 = vpack.c.b16 %v8602, %v8535
        %v9273 = vpack.c.b16 %v8603, %v8536
        %v9274 = vpack.c.b16 %v8604, %v8537
        %v9275 = vpack.c.b16 %v8605, %v8538
        %v9276 = vpack.c.b16 %v8606, %v8539
        %v9277 = vpack.c.b16 %v8607, %v8540
        %v9278 = vpack.c.b16 %v8608, %v8541
        %v9279 = vpack.c.b16 %v8609, %v8542
        %v9280 = vpack.c.b16 %v8610, %v8543
        %v9281 = vpack.c.b16 %v8611, %v8544
        %v9282 = vpack.c.b16 %v8612, %v8545
        %v9283 = vpack.c.b16 %v8613, %v8546
        %v9284 = vpack.c.b16 %v8614, %v8547
        %v9285 = vpack.c.b16 %v8615, %v8548
        %v9286 = vpack.c.b16 %v8616, %v8549
        %v9287 = vpack.c.b16 %v8617, %v8550
        %v9288 = vpack.c.b16 %v8618, %v8551
        %v9289 = vpack.c.b16 %v8619, %v8552
        %v9290 = vpack.c.b16 %v8620, %v8553
        %v9291 = vpack.c.b16 %v8621, %v8554
        %v9292 = vpack.c.b16 %v8622, %v8555
        %v9293 = vpack.c.b16 %v8623, %v8556
        %v9294 = vpack.c.b16 %v8624, %v8557
        %v9295 = vpack.c.b16 %v8625, %v8558
        %v9296 = vpack.c.b16 %v8626, %v8559
        %v9297 = vpack.c.b16 %v8627, %v8560
        %v9298 = vpack.c.b16 %v8628, %v8561
        %v9299 = vpack.c.b16 %v8629, %v8562
        %v9300 = vpack.c.b16 %v8630, %v8563
        %v9301 = vpack.c.b16 %v8631, %v8564
        %v9302 = vpack.c.b16 %v8632, %v8565
        %v9303 = vpack.c.b16 %v8633, %v8566
        %v9304 = vpack.c.b16 %v8634, %v8567
        %v9305 = vpack.c.b16 %v8635, %v8568
        %v9306 = vpack.c.b16 %v8636, %v8569
        %v9307 = vpack.c.b16 %v8637, %v8570
        %v9308 = vpack.c.b16 %v8638, %v8571
        %v9309 = vpack.c.b16 %v8639, %v8572
        %v9310 = vpack.c.b16 %v8640, %v8573
        %v9311 = vpack.c.b16 %v8641, %v8574
        %v9312 = vpack.c.b16 %v8709, %v8642
        %v9313 = vpack.c.b16 %v8710, %v8643
        %v9314 = vpack.c.b16 %v8711, %v8644
        %v9315 = vpack.c.b16 %v8712, %v8645
        %v9316 = vpack.c.b16 %v8713, %v8646
        %v9317 = vpack.c.b16 %v8714, %v8647
        %v9318 = vpack.c.b16 %v8715, %v8648
        %v9319 = vpack.c.b16 %v8716, %v8649
        %v9320 = vpack.c.b16 %v8717, %v8650
        %v9321 = vpack.c.b16 %v8718, %v8651
        %v9322 = vpack.c.b16 %v8719, %v8652
        %v9323 = vpack.c.b16 %v8720, %v8653
        %v9324 = vpack.c.b16 %v8721, %v8654
        %v9325 = vpack.c.b16 %v8722, %v8655
        %v9326 = vpack.c.b16 %v8723, %v8656
        %v9327 = vpack.c.b16 %v8724, %v8657
        %v9328 = vpack.c.b16 %v8725, %v8658
        %v9329 = vpack.c.b16 %v8726, %v8659
        %v9330 = vpack.c.b16 %v8727, %v8660
        %v9331 = vpack.c.b16 %v8728, %v8661
        %v9332 = vpack.c.b16 %v8729, %v8662
        %v9333 = vpack.c.b16 %v8730, %v8663
        %v9334 = vpack.c.b16 %v8731, %v8664
        %v9335 = vpack.c.b16 %v8732, %v8665
        %v9336 = vpack.c.b16 %v8733, %v8666
        %v9337 = vpack.c.b16 %v8734, %v8667
        %v9338 = vpack.c.b16 %v8735, %v8668
        %v9339 = vpack.c.b16 %v8736, %v8669
        %v9340 = vpack.c.b16 %v8737, %v8670
        %v9341 = vpack.c.b16 %v8738, %v8671
        %v9342 = vpack.c.b16 %v8739, %v8672
        %v9343 = vpack.c.b16 %v8740, %v8673
        %v9344 = vpack.c.b16 %v8741, %v8674
        %v9345 = vpack.c.b16 %v8742, %v8675
        %v9346 = vpack.c.b16 %v8743, %v8676
        %v9347 = vpack.c.b16 %v8744, %v8677
        %v9348 = vpack.c.b16 %v8745, %v8678
        %v9349 = vpack.c.b16 %v8746, %v8679
        %v9350 = vpack.c.b16 %v8747, %v8680
        %v9351 = vpack.c.b16 %v8748, %v8681
        %v9352 = vpack.c.b16 %v8749, %v8682
        %v9353 = vpack.c.b16 %v8750, %v8683
        %v9354 = vpack.c.b16 %v8751, %v8684
        %v9355 = vpack.c.b16 %v8752, %v8685
        %v9356 = vpack.c.b16 %v8753, %v8686
        %v9357 = vpack.c.b16 %v8754, %v8687
        %v9358 = vpack.c.b16 %v8755, %v8688
        %v9359 = vpack.c.b16 %v8756, %v8689
        %v9360 = vpack.c.b16 %v8757, %v8690
        %v9361 = vpack.c.b16 %v8758, %v8691
        %v9362 = vpack.c.b16 %v8759, %v8692
        %v9363 = vpack.c.b16 %v8760, %v8693
        %v9364 = vpack.c.b16 %v8761, %v8694
        %v9365 = vpack.c.b16 %v8762, %v8695
        %v9366 = vpack.c.b16 %v8763, %v8696
        %v9367 = vpack.c.b16 %v8764, %v8697
        %v9368 = vpack.c.b16 %v8765, %v8698
        %v9369 = vpack.c.b16 %v8766, %v8699
        %v9370 = vpack.c.b16 %v8767, %v8700
        %v9371 = vpack.c.b16 %v8768, %v8701
        %v9372 = vpack.c.b16 %v8769, %v8702
        %v9373 = vpack.c.b16 %v8770, %v8703
        %v9374 = vpack.c.b16 %v8771, %v8704
        %v9375 = vpack.c.b16 %v8772, %v8705
        %v9376 = vpack.c.b16 %v8773, %v8706
        %v9377 = vpack.c.b16 %v8774, %v8707
        %v9378 = vpack.c.b16 %v8775, %v8708
        %v9379 = vpack.c.b16 %v8843, %v8776
        %v9380 = vpack.c.b16 %v8844, %v8777
        %v9381 = vpack.c.b16 %v8845, %v8778
        %v9382 = vpack.c.b16 %v8846, %v8779
        %v9383 = vpack.c.b16 %v8847, %v8780
        %v9384 = vpack.c.b16 %v8848, %v8781
        %v9385 = vpack.c.b16 %v8849, %v8782
        %v9386 = vpack.c.b16 %v8850, %v8783
        %v9387 = vpack.c.b16 %v8851, %v8784
        %v9388 = vpack.c.b16 %v8852, %v8785
        %v9389 = vpack.c.b16 %v8853, %v8786
        %v9390 = vpack.c.b16 %v8854, %v8787
        %v9391 = vpack.c.b16 %v8855, %v8788
        %v9392 = vpack.c.b16 %v8856, %v8789
        %v9393 = vpack.c.b16 %v8857, %v8790
        %v9394 = vpack.c.b16 %v8858, %v8791
        %v9395 = vpack.c.b16 %v8859, %v8792
        %v9396 = vpack.c.b16 %v8860, %v8793
        %v9397 = vpack.c.b16 %v8861, %v8794
        %v9398 = vpack.c.b16 %v8862, %v8795
        %v9399 = vpack.c.b16 %v8863, %v8796
        %v9400 = vpack.c.b16 %v8864, %v8797
        %v9401 = vpack.c.b16 %v8865, %v8798
        %v9402 = vpack.c.b16 %v8866, %v8799
        %v9403 = vpack.c.b16 %v8867, %v8800
        %v9404 = vpack.c.b16 %v8868, %v8801
        %v9405 = vpack.c.b16 %v8869, %v8802
        %v9406 = vpack.c.b16 %v8870, %v8803
        %v9407 = vpack.c.b16 %v8871, %v8804
        %v9408 = vpack.c.b16 %v8872, %v8805
        %v9409 = vpack.c.b16 %v8873, %v8806
        %v9410 = vpack.c.b16 %v8874, %v8807
        %v9411 = vpack.c.b16 %v8875, %v8808
        %v9412 = vpack.c.b16 %v8876, %v8809
        %v9413 = vpack.c.b16 %v8877, %v8810
        %v9414 = vpack.c.b16 %v8878, %v8811
        %v9415 = vpack.c.b16 %v8879, %v8812
        %v9416 = vpack.c.b16 %v8880, %v8813
        %v9417 = vpack.c.b16 %v8881, %v8814
        %v9418 = vpack.c.b16 %v8882, %v8815
        %v9419 = vpack.c.b16 %v8883, %v8816
        %v9420 = vpack.c.b16 %v8884, %v8817
        %v9421 = vpack.c.b16 %v8885, %v8818
        %v9422 = vpack.c.b16 %v8886, %v8819
        %v9423 = vpack.c.b16 %v8887, %v8820
        %v9424 = vpack.c.b16 %v8888, %v8821
        %v9425 = vpack.c.b16 %v8889, %v8822
        %v9426 = vpack.c.b16 %v8890, %v8823
        %v9427 = vpack.c.b16 %v8891, %v8824
        %v9428 = vpack.c.b16 %v8892, %v8825
        %v9429 = vpack.c.b16 %v8893, %v8826
        %v9430 = vpack.c.b16 %v8894, %v8827
        %v9431 = vpack.c.b16 %v8895, %v8828
        %v9432 = vpack.c.b16 %v8896, %v8829
        %v9433 = vpack.c.b16 %v8897, %v8830
        %v9434 = vpack.c.b16 %v8898, %v8831
        %v9435 = vpack.c.b16 %v8899, %v8832
        %v9436 = vpack.c.b16 %v8900, %v8833
        %v9437 = vpack.c.b16 %v8901, %v8834
        %v9438 = vpack.c.b16 %v8902, %v8835
        %v9439 = vpack.c.b16 %v8903, %v8836
        %v9440 = vpack.c.b16 %v8904, %v8837
        %v9441 = vpack.c.b16 %v8905, %v8838
        %v9442 = vpack.c.b16 %v8906, %v8839
        %v9443 = vpack.c.b16 %v8907, %v8840
        %v9444 = vpack.c.b16 %v8908, %v8841
        %v9445 = vpack.c.b16 %v8909, %v8842
        %9982 = vmatprep.subr.bf16.mxu0 %v8911
        %9983 = vmatpush1.bf16.msra.mxu0 %v8910
        %9984 = vmatprep.subr.bf16.mxu0 %v8978
        %9985 = vmatpush1.bf16.msra.mxu0 %v8977
        %9986 = vmatprep.subr.bf16.mxu0 %v9045
        %9987 = vmatpush1.bf16.msra.mxu0 %v9044
        %9988 = vmatprep.subr.bf16.mxu0 %v9112
        %9989 = vmatpush1.bf16.msra.mxu0 %v9111
        %9990 = vmatprep.subr.bf16.mxu0 %v9179
        %9991 = vmatpush1.bf16.msra.mxu0 %v9178
        %9992 = vmatprep.subr.bf16.mxu0 %v9246
        %9993 = vmatpush1.bf16.msra.mxu0 %v9245
        %9994 = vmatprep.subr.bf16.mxu0 %v9313
        %9995 = vmatpush1.bf16.msra.mxu0 %v9312
        %9996 = vmatprep.subr.bf16.mxu0 %v9380
        %9997 = vmatpush1.bf16.msra.mxu0 %v9379
        %9998 = vmatprep.subr.bf16.mxu0 0
        %9999 = vmatpush1.bf16.msra.mxu0 0
        %10000 = vmatprep.subr.bf16.mxu0 0
        %10001 = vmatpush1.bf16.msra.mxu0 0
        %10002 = vmatprep.subr.bf16.mxu0 0
        %10003 = vmatpush1.bf16.msra.mxu0 0
        %10004 = vmatprep.subr.bf16.mxu0 0
        %10005 = vmatpush1.bf16.msra.mxu0 0
        %10006 = vmatprep.subr.bf16.mxu0 0
        %10007 = vmatpush1.bf16.msra.mxu0 0
        %10008 = vmatprep.subr.bf16.mxu0 0
        %10009 = vmatpush1.bf16.msra.mxu0 0
        %10010 = vmatprep.subr.bf16.mxu0 0
        %10011 = vmatpush1.bf16.msra.mxu0 0
        %10012 = vmatprep.subr.bf16.mxu0 0
        %10013 = vmatpush1.bf16.msra.mxu0 0
        %10014 = vmatprep.mubr.bf16.mxu0 0
        %10015 = vmatmul.mubr.bf16.gmra.mrb[0].mxu0 %v6396
        %v10016 = vpop.f32.mrb[0].mxu0
        %v10017 = vadd.f32 %v6962, %v10016
        %v10018 = vpop.f32.mrb[0].mxu0
        %v10019 = vadd.f32 %v6966, %v10018
        %v10020 = vpop.f32.mrb[0].mxu0
        %v10021 = vpop.f32.mrb[0].mxu0
        %10022 = vdwg.mxu0
        %10023 = vmatprep.subr.bf16.mxu0 %v8913
        %10024 = vmatpush1.bf16.msra.mxu0 %v8912
        %10025 = vmatprep.subr.bf16.mxu0 %v8980
        %10026 = vmatpush1.bf16.msra.mxu0 %v8979
        %10027 = vmatprep.subr.bf16.mxu0 %v9047
        %10028 = vmatpush1.bf16.msra.mxu0 %v9046
        %10029 = vmatprep.subr.bf16.mxu0 %v9114
        %10030 = vmatpush1.bf16.msra.mxu0 %v9113
        %10031 = vmatprep.subr.bf16.mxu0 %v9181
        %10032 = vmatpush1.bf16.msra.mxu0 %v9180
        %10033 = vmatprep.subr.bf16.mxu0 %v9248
        %10034 = vmatpush1.bf16.msra.mxu0 %v9247
        %10035 = vmatprep.subr.bf16.mxu0 %v9315
        %10036 = vmatpush1.bf16.msra.mxu0 %v9314
        %10037 = vmatprep.subr.bf16.mxu0 %v9382
        %10038 = vmatpush1.bf16.msra.mxu0 %v9381
        %10039 = vmatprep.subr.bf16.mxu0 0
        %10040 = vmatpush1.bf16.msra.mxu0 0
        %10041 = vmatprep.subr.bf16.mxu0 0
        %10042 = vmatpush1.bf16.msra.mxu0 0
        %10043 = vmatprep.subr.bf16.mxu0 0
        %10044 = vmatpush1.bf16.msra.mxu0 0
        %10045 = vmatprep.subr.bf16.mxu0 0
        %10046 = vmatpush1.bf16.msra.mxu0 0
        %10047 = vmatprep.subr.bf16.mxu0 0
        %10048 = vmatpush1.bf16.msra.mxu0 0
        %10049 = vmatprep.subr.bf16.mxu0 0
        %10050 = vmatpush1.bf16.msra.mxu0 0
        %10051 = vmatprep.subr.bf16.mxu0 0
        %10052 = vmatpush1.bf16.msra.mxu0 0
        %10053 = vmatprep.subr.bf16.mxu0 0
        %10054 = vmatpush1.bf16.msra.mxu0 0
        %10055 = vmatprep.mubr.bf16.mxu0 0
        %10056 = vmatmul.mubr.bf16.gmra.mrb[0].mxu0 %v6396
        %v10057 = vpop.f32.mrb[0].mxu0
        %v10058 = vadd.f32 %v6970, %v10057
        %v10059 = vpop.f32.mrb[0].mxu0
        %v10060 = vadd.f32 %v6974, %v10059
        %v10061 = vpop.f32.mrb[0].mxu0
        %v10062 = vpop.f32.mrb[0].mxu0
        %10063 = vdwg.mxu0
        %10064 = vmatprep.subr.bf16.mxu0 %v8915
        %10065 = vmatpush1.bf16.msra.mxu0 %v8914
        %10066 = vmatprep.subr.bf16.mxu0 %v8982
        %10067 = vmatpush1.bf16.msra.mxu0 %v8981
        %10068 = vmatprep.subr.bf16.mxu0 %v9049
        %10069 = vmatpush1.bf16.msra.mxu0 %v9048
        %10070 = vmatprep.subr.bf16.mxu0 %v9116
        %10071 = vmatpush1.bf16.msra.mxu0 %v9115
        %10072 = vmatprep.subr.bf16.mxu0 %v9183
        %10073 = vmatpush1.bf16.msra.mxu0 %v9182
        %10074 = vmatprep.subr.bf16.mxu0 %v9250
        %10075 = vmatpush1.bf16.msra.mxu0 %v9249
        %10076 = vmatprep.subr.bf16.mxu0 %v9317
        %10077 = vmatpush1.bf16.msra.mxu0 %v9316
        %10078 = vmatprep.subr.bf16.mxu0 %v9384
        %10079 = vmatpush1.bf16.msra.mxu0 %v9383
        %10080 = vmatprep.subr.bf16.mxu0 0
        %10081 = vmatpush1.bf16.msra.mxu0 0
        %10082 = vmatprep.subr.bf16.mxu0 0
        %10083 = vmatpush1.bf16.msra.mxu0 0
        %10084 = vmatprep.subr.bf16.mxu0 0
        %10085 = vmatpush1.bf16.msra.mxu0 0
        %10086 = vmatprep.subr.bf16.mxu0 0
        %10087 = vmatpush1.bf16.msra.mxu0 0
        %10088 = vmatprep.subr.bf16.mxu0 0
        %10089 = vmatpush1.bf16.msra.mxu0 0
        %10090 = vmatprep.subr.bf16.mxu0 0
        %10091 = vmatpush1.bf16.msra.mxu0 0
        %10092 = vmatprep.subr.bf16.mxu0 0
        %10093 = vmatpush1.bf16.msra.mxu0 0
        %10094 = vmatprep.subr.bf16.mxu0 0
        %10095 = vmatpush1.bf16.msra.mxu0 0
        %10096 = vmatprep.mubr.bf16.mxu0 0
        %10097 = vmatmul.mubr.bf16.gmra.mrb[0].mxu0 %v6396
        %v10098 = vpop.f32.mrb[0].mxu0
        %v10099 = vadd.f32 %v6978, %v10098
        %v10100 = vpop.f32.mrb[0].mxu0
        %v10101 = vadd.f32 %v6982, %v10100
        %v10102 = vpop.f32.mrb[0].mxu0
        %v10103 = vpop.f32.mrb[0].mxu0
        %10104 = vdwg.mxu0
        %10105 = vmatprep.subr.bf16.mxu0 %v8917
        %10106 = vmatpush1.bf16.msra.mxu0 %v8916
        %10107 = vmatprep.subr.bf16.mxu0 %v8984
        %10108 = vmatpush1.bf16.msra.mxu0 %v8983
        %10109 = vmatprep.subr.bf16.mxu0 %v9051
        %10110 = vmatpush1.bf16.msra.mxu0 %v9050
        %10111 = vmatprep.subr.bf16.mxu0 %v9118
        %10112 = vmatpush1.bf16.msra.mxu0 %v9117
        %10113 = vmatprep.subr.bf16.mxu0 %v9185
        %10114 = vmatpush1.bf16.msra.mxu0 %v9184
        %10115 = vmatprep.subr.bf16.mxu0 %v9252
        %10116 = vmatpush1.bf16.msra.mxu0 %v9251
        %10117 = vmatprep.subr.bf16.mxu0 %v9319
        %10118 = vmatpush1.bf16.msra.mxu0 %v9318
        %10119 = vmatprep.subr.bf16.mxu0 %v9386
        %10120 = vmatpush1.bf16.msra.mxu0 %v9385
        %10121 = vmatprep.subr.bf16.mxu0 0
        %10122 = vmatpush1.bf16.msra.mxu0 0
        %10123 = vmatprep.subr.bf16.mxu0 0
        %10124 = vmatpush1.bf16.msra.mxu0 0
        %10125 = vmatprep.subr.bf16.mxu0 0
        %10126 = vmatpush1.bf16.msra.mxu0 0
        %10127 = vmatprep.subr.bf16.mxu0 0
        %10128 = vmatpush1.bf16.msra.mxu0 0
        %10129 = vmatprep.subr.bf16.mxu0 0
        %10130 = vmatpush1.bf16.msra.mxu0 0
        %10131 = vmatprep.subr.bf16.mxu0 0
        %10132 = vmatpush1.bf16.msra.mxu0 0
        %10133 = vmatprep.subr.bf16.mxu0 0
        %10134 = vmatpush1.bf16.msra.mxu0 0
        %10135 = vmatprep.subr.bf16.mxu0 0
        %10136 = vmatpush1.bf16.msra.mxu0 0
        %10137 = vmatprep.mubr.bf16.mxu0 0
        %10138 = vmatmul.mubr.bf16.gmra.mrb[0].mxu0 %v6396
        %v10139 = vpop.f32.mrb[0].mxu0
        %v10140 = vadd.f32 %v6986, %v10139
        %v10141 = vpop.f32.mrb[0].mxu0
        %v10142 = vadd.f32 %v6990, %v10141
        %v10143 = vpop.f32.mrb[0].mxu0
        %v10144 = vpop.f32.mrb[0].mxu0
        %10145 = vdwg.mxu0
        %10146 = vmatprep.subr.bf16.mxu0 %v8919
        %10147 = vmatpush1.bf16.msra.mxu0 %v8918
        %10148 = vmatprep.subr.bf16.mxu0 %v8986
        %10149 = vmatpush1.bf16.msra.mxu0 %v8985
        %10150 = vmatprep.subr.bf16.mxu0 %v9053
        %10151 = vmatpush1.bf16.msra.mxu0 %v9052
        %10152 = vmatprep.subr.bf16.mxu0 %v9120
        %10153 = vmatpush1.bf16.msra.mxu0 %v9119
        %10154 = vmatprep.subr.bf16.mxu0 %v9187
        %10155 = vmatpush1.bf16.msra.mxu0 %v9186
        %10156 = vmatprep.subr.bf16.mxu0 %v9254
        %10157 = vmatpush1.bf16.msra.mxu0 %v9253
        %10158 = vmatprep.subr.bf16.mxu0 %v9321
        %10159 = vmatpush1.bf16.msra.mxu0 %v9320
        %10160 = vmatprep.subr.bf16.mxu0 %v9388
        %10161 = vmatpush1.bf16.msra.mxu0 %v9387
        %10162 = vmatprep.subr.bf16.mxu0 0
        %10163 = vmatpush1.bf16.msra.mxu0 0
        %10164 = vmatprep.subr.bf16.mxu0 0
        %10165 = vmatpush1.bf16.msra.mxu0 0
        %10166 = vmatprep.subr.bf16.mxu0 0
        %10167 = vmatpush1.bf16.msra.mxu0 0
        %10168 = vmatprep.subr.bf16.mxu0 0
        %10169 = vmatpush1.bf16.msra.mxu0 0
        %10170 = vmatprep.subr.bf16.mxu0 0
        %10171 = vmatpush1.bf16.msra.mxu0 0
        %10172 = vmatprep.subr.bf16.mxu0 0
        %10173 = vmatpush1.bf16.msra.mxu0 0
        %10174 = vmatprep.subr.bf16.mxu0 0
        %10175 = vmatpush1.bf16.msra.mxu0 0
        %10176 = vmatprep.subr.bf16.mxu0 0
        %10177 = vmatpush1.bf16.msra.mxu0 0
        %10178 = vmatprep.mubr.bf16.mxu0 0
        %10179 = vmatmul.mubr.bf16.gmra.mrb[0].mxu0 %v6396
        %v10180 = vpop.f32.mrb[0].mxu0
        %v10181 = vadd.f32 %v6994, %v10180
        %v10182 = vpop.f32.mrb[0].mxu0
        %v10183 = vadd.f32 %v6998, %v10182
        %v10184 = vpop.f32.mrb[0].mxu0
        %v10185 = vpop.f32.mrb[0].mxu0
        %10186 = vdwg.mxu0
        %10187 = vmatprep.subr.bf16.mxu0 %v8921
        %10188 = vmatpush1.bf16.msra.mxu0 %v8920
        %10189 = vmatprep.subr.bf16.mxu0 %v8988
        %10190 = vmatpush1.bf16.msra.mxu0 %v8987
        %10191 = vmatprep.subr.bf16.mxu0 %v9055
        %10192 = vmatpush1.bf16.msra.mxu0 %v9054
        %10193 = vmatprep.subr.bf16.mxu0 %v9122
        %10194 = vmatpush1.bf16.msra.mxu0 %v9121
        %10195 = vmatprep.subr.bf16.mxu0 %v9189
        %10196 = vmatpush1.bf16.msra.mxu0 %v9188
        %10197 = vmatprep.subr.bf16.mxu0 %v9256
        %10198 = vmatpush1.bf16.msra.mxu0 %v9255
        %10199 = vmatprep.subr.bf16.mxu0 %v9323
        %10200 = vmatpush1.bf16.msra.mxu0 %v9322
        %10201 = vmatprep.subr.bf16.mxu0 %v9390
        %10202 = vmatpush1.bf16.msra.mxu0 %v9389
        %10203 = vmatprep.subr.bf16.mxu0 0
        %10204 = vmatpush1.bf16.msra.mxu0 0
        %10205 = vmatprep.subr.bf16.mxu0 0
        %10206 = vmatpush1.bf16.msra.mxu0 0
        %10207 = vmatprep.subr.bf16.mxu0 0
        %10208 = vmatpush1.bf16.msra.mxu0 0
        %10209 = vmatprep.subr.bf16.mxu0 0
        %10210 = vmatpush1.bf16.msra.mxu0 0
        %10211 = vmatprep.subr.bf16.mxu0 0
        %10212 = vmatpush1.bf16.msra.mxu0 0
        %10213 = vmatprep.subr.bf16.mxu0 0
        %10214 = vmatpush1.bf16.msra.mxu0 0
        %10215 = vmatprep.subr.bf16.mxu0 0
        %10216 = vmatpush1.bf16.msra.mxu0 0
        %10217 = vmatprep.subr.bf16.mxu0 0
        %10218 = vmatpush1.bf16.msra.mxu0 0
        %10219 = vmatprep.mubr.bf16.mxu0 0
        %10220 = vmatmul.mubr.bf16.gmra.mrb[0].mxu0 %v6396
        %v10221 = vpop.f32.mrb[0].mxu0
        %v10222 = vadd.f32 %v7002, %v10221
        %v10223 = vpop.f32.mrb[0].mxu0
        %v10224 = vadd.f32 %v7006, %v10223
        %v10225 = vpop.f32.mrb[0].mxu0
        %v10226 = vpop.f32.mrb[0].mxu0
        %10227 = vdwg.mxu0
        %10228 = vmatprep.subr.bf16.mxu0 %v8923
        %10229 = vmatpush1.bf16.msra.mxu0 %v8922
        %10230 = vmatprep.subr.bf16.mxu0 %v8990
        %10231 = vmatpush1.bf16.msra.mxu0 %v8989
        %10232 = vmatprep.subr.bf16.mxu0 %v9057
        %10233 = vmatpush1.bf16.msra.mxu0 %v9056
        %10234 = vmatprep.subr.bf16.mxu0 %v9124
        %10235 = vmatpush1.bf16.msra.mxu0 %v9123
        %10236 = vmatprep.subr.bf16.mxu0 %v9191
        %10237 = vmatpush1.bf16.msra.mxu0 %v9190
        %10238 = vmatprep.subr.bf16.mxu0 %v9258
        %10239 = vmatpush1.bf16.msra.mxu0 %v9257
        %10240 = vmatprep.subr.bf16.mxu0 %v9325
        %10241 = vmatpush1.bf16.msra.mxu0 %v9324
        %10242 = vmatprep.subr.bf16.mxu0 %v9392
        %10243 = vmatpush1.bf16.msra.mxu0 %v9391
        %10244 = vmatprep.subr.bf16.mxu0 0
        %10245 = vmatpush1.bf16.msra.mxu0 0
        %10246 = vmatprep.subr.bf16.mxu0 0
        %10247 = vmatpush1.bf16.msra.mxu0 0
        %10248 = vmatprep.subr.bf16.mxu0 0
        %10249 = vmatpush1.bf16.msra.mxu0 0
        %10250 = vmatprep.subr.bf16.mxu0 0
        %10251 = vmatpush1.bf16.msra.mxu0 0
        %10252 = vmatprep.subr.bf16.mxu0 0
        %10253 = vmatpush1.bf16.msra.mxu0 0
        %10254 = vmatprep.subr.bf16.mxu0 0
        %10255 = vmatpush1.bf16.msra.mxu0 0
        %10256 = vmatprep.subr.bf16.mxu0 0
        %10257 = vmatpush1.bf16.msra.mxu0 0
        %10258 = vmatprep.subr.bf16.mxu0 0
        %10259 = vmatpush1.bf16.msra.mxu0 0
        %10260 = vmatprep.mubr.bf16.mxu0 0
        %10261 = vmatmul.mubr.bf16.gmra.mrb[0].mxu0 %v6396
        %v10262 = vpop.f32.mrb[0].mxu0
        %v10263 = vadd.f32 %v7010, %v10262
        %v10264 = vpop.f32.mrb[0].mxu0
        %v10265 = vadd.f32 %v7014, %v10264
        %v10266 = vpop.f32.mrb[0].mxu0
        %v10267 = vpop.f32.mrb[0].mxu0
        %10268 = vdwg.mxu0
        %10269 = vmatprep.subr.bf16.mxu0 %v8925
        %10270 = vmatpush1.bf16.msra.mxu0 %v8924
        %10271 = vmatprep.subr.bf16.mxu0 %v8992
        %10272 = vmatpush1.bf16.msra.mxu0 %v8991
        %10273 = vmatprep.subr.bf16.mxu0 %v9059
        %10274 = vmatpush1.bf16.msra.mxu0 %v9058
        %10275 = vmatprep.subr.bf16.mxu0 %v9126
        %10276 = vmatpush1.bf16.msra.mxu0 %v9125
        %10277 = vmatprep.subr.bf16.mxu0 %v9193
        %10278 = vmatpush1.bf16.msra.mxu0 %v9192
        %10279 = vmatprep.subr.bf16.mxu0 %v9260
        %10280 = vmatpush1.bf16.msra.mxu0 %v9259
        %10281 = vmatprep.subr.bf16.mxu0 %v9327
        %10282 = vmatpush1.bf16.msra.mxu0 %v9326
        %10283 = vmatprep.subr.bf16.mxu0 %v9394
        %10284 = vmatpush1.bf16.msra.mxu0 %v9393
        %10285 = vmatprep.subr.bf16.mxu0 0
        %10286 = vmatpush1.bf16.msra.mxu0 0
        %10287 = vmatprep.subr.bf16.mxu0 0
        %10288 = vmatpush1.bf16.msra.mxu0 0
        %10289 = vmatprep.subr.bf16.mxu0 0
        %10290 = vmatpush1.bf16.msra.mxu0 0
        %10291 = vmatprep.subr.bf16.mxu0 0
        %10292 = vmatpush1.bf16.msra.mxu0 0
        %10293 = vmatprep.subr.bf16.mxu0 0
        %10294 = vmatpush1.bf16.msra.mxu0 0
        %10295 = vmatprep.subr.bf16.mxu0 0
        %10296 = vmatpush1.bf16.msra.mxu0 0
        %10297 = vmatprep.subr.bf16.mxu0 0
        %10298 = vmatpush1.bf16.msra.mxu0 0
        %10299 = vmatprep.subr.bf16.mxu0 0
        %10300 = vmatpush1.bf16.msra.mxu0 0
        %10301 = vmatprep.mubr.bf16.mxu0 0
        %10302 = vmatmul.mubr.bf16.gmra.mrb[0].mxu0 %v6396
        %v10303 = vpop.f32.mrb[0].mxu0
        %v10304 = vadd.f32 %v7018, %v10303
        %v10305 = vpop.f32.mrb[0].mxu0
        %v10306 = vadd.f32 %v7022, %v10305
        %v10307 = vpop.f32.mrb[0].mxu0
        %v10308 = vpop.f32.mrb[0].mxu0
        %10309 = vdwg.mxu0
        %10310 = vmatprep.subr.bf16.mxu0 %v8927
        %10311 = vmatpush1.bf16.msra.mxu0 %v8926
        %10312 = vmatprep.subr.bf16.mxu0 %v8994
        %10313 = vmatpush1.bf16.msra.mxu0 %v8993
        %10314 = vmatprep.subr.bf16.mxu0 %v9061
        %10315 = vmatpush1.bf16.msra.mxu0 %v9060
        %10316 = vmatprep.subr.bf16.mxu0 %v9128
        %10317 = vmatpush1.bf16.msra.mxu0 %v9127
        %10318 = vmatprep.subr.bf16.mxu0 %v9195
        %10319 = vmatpush1.bf16.msra.mxu0 %v9194
        %10320 = vmatprep.subr.bf16.mxu0 %v9262
        %10321 = vmatpush1.bf16.msra.mxu0 %v9261
        %10322 = vmatprep.subr.bf16.mxu0 %v9329
        %10323 = vmatpush1.bf16.msra.mxu0 %v9328
        %10324 = vmatprep.subr.bf16.mxu0 %v9396
        %10325 = vmatpush1.bf16.msra.mxu0 %v9395
        %10326 = vmatprep.subr.bf16.mxu0 0
        %10327 = vmatpush1.bf16.msra.mxu0 0
        %10328 = vmatprep.subr.bf16.mxu0 0
        %10329 = vmatpush1.bf16.msra.mxu0 0
        %10330 = vmatprep.subr.bf16.mxu0 0
        %10331 = vmatpush1.bf16.msra.mxu0 0
        %10332 = vmatprep.subr.bf16.mxu0 0
        %10333 = vmatpush1.bf16.msra.mxu0 0
        %10334 = vmatprep.subr.bf16.mxu0 0
        %10335 = vmatpush1.bf16.msra.mxu0 0
        %10336 = vmatprep.subr.bf16.mxu0 0
        %10337 = vmatpush1.bf16.msra.mxu0 0
        %10338 = vmatprep.subr.bf16.mxu0 0
        %10339 = vmatpush1.bf16.msra.mxu0 0
        %10340 = vmatprep.subr.bf16.mxu0 0
        %10341 = vmatpush1.bf16.msra.mxu0 0
        %10342 = vmatprep.mubr.bf16.mxu0 0
        %10343 = vmatmul.mubr.bf16.gmra.mrb[0].mxu0 %v6396
        %v10344 = vpop.f32.mrb[0].mxu0
        %v10345 = vadd.f32 %v7026, %v10344
        %v10346 = vpop.f32.mrb[0].mxu0
        %v10347 = vadd.f32 %v7030, %v10346
        %v10348 = vpop.f32.mrb[0].mxu0
        %v10349 = vpop.f32.mrb[0].mxu0
        %10350 = vdwg.mxu0
        %10351 = vmatprep.subr.bf16.mxu0 %v8929
        %10352 = vmatpush1.bf16.msra.mxu0 %v8928
        %10353 = vmatprep.subr.bf16.mxu0 %v8996
        %10354 = vmatpush1.bf16.msra.mxu0 %v8995
        %10355 = vmatprep.subr.bf16.mxu0 %v9063
        %10356 = vmatpush1.bf16.msra.mxu0 %v9062
        %10357 = vmatprep.subr.bf16.mxu0 %v9130
        %10358 = vmatpush1.bf16.msra.mxu0 %v9129
        %10359 = vmatprep.subr.bf16.mxu0 %v9197
        %10360 = vmatpush1.bf16.msra.mxu0 %v9196
        %10361 = vmatprep.subr.bf16.mxu0 %v9264
        %10362 = vmatpush1.bf16.msra.mxu0 %v9263
        %10363 = vmatprep.subr.bf16.mxu0 %v9331
        %10364 = vmatpush1.bf16.msra.mxu0 %v9330
        %10365 = vmatprep.subr.bf16.mxu0 %v9398
        %10366 = vmatpush1.bf16.msra.mxu0 %v9397
        %10367 = vmatprep.subr.bf16.mxu0 0
        %10368 = vmatpush1.bf16.msra.mxu0 0
        %10369 = vmatprep.subr.bf16.mxu0 0
        %10370 = vmatpush1.bf16.msra.mxu0 0
        %10371 = vmatprep.subr.bf16.mxu0 0
        %10372 = vmatpush1.bf16.msra.mxu0 0
        %10373 = vmatprep.subr.bf16.mxu0 0
        %10374 = vmatpush1.bf16.msra.mxu0 0
        %10375 = vmatprep.subr.bf16.mxu0 0
        %10376 = vmatpush1.bf16.msra.mxu0 0
        %10377 = vmatprep.subr.bf16.mxu0 0
        %10378 = vmatpush1.bf16.msra.mxu0 0
        %10379 = vmatprep.subr.bf16.mxu0 0
        %10380 = vmatpush1.bf16.msra.mxu0 0
        %10381 = vmatprep.subr.bf16.mxu0 0
        %10382 = vmatpush1.bf16.msra.mxu0 0
        %10383 = vmatprep.mubr.bf16.mxu0 0
        %10384 = vmatmul.mubr.bf16.gmra.mrb[0].mxu0 %v6396
        %v10385 = vpop.f32.mrb[0].mxu0
        %v10386 = vadd.f32 %v7034, %v10385
        %v10387 = vpop.f32.mrb[0].mxu0
        %v10388 = vadd.f32 %v7038, %v10387
        %v10389 = vpop.f32.mrb[0].mxu0
        %v10390 = vpop.f32.mrb[0].mxu0
        %10391 = vdwg.mxu0
        %10392 = vmatprep.subr.bf16.mxu0 %v8931
        %10393 = vmatpush1.bf16.msra.mxu0 %v8930
        %10394 = vmatprep.subr.bf16.mxu0 %v8998
        %10395 = vmatpush1.bf16.msra.mxu0 %v8997
        %10396 = vmatprep.subr.bf16.mxu0 %v9065
        %10397 = vmatpush1.bf16.msra.mxu0 %v9064
        %10398 = vmatprep.subr.bf16.mxu0 %v9132
        %10399 = vmatpush1.bf16.msra.mxu0 %v9131
        %10400 = vmatprep.subr.bf16.mxu0 %v9199
        %10401 = vmatpush1.bf16.msra.mxu0 %v9198
        %10402 = vmatprep.subr.bf16.mxu0 %v9266
        %10403 = vmatpush1.bf16.msra.mxu0 %v9265
        %10404 = vmatprep.subr.bf16.mxu0 %v9333
        %10405 = vmatpush1.bf16.msra.mxu0 %v9332
        %10406 = vmatprep.subr.bf16.mxu0 %v9400
        %10407 = vmatpush1.bf16.msra.mxu0 %v9399
        %10408 = vmatprep.subr.bf16.mxu0 0
        %10409 = vmatpush1.bf16.msra.mxu0 0
        %10410 = vmatprep.subr.bf16.mxu0 0
        %10411 = vmatpush1.bf16.msra.mxu0 0
        %10412 = vmatprep.subr.bf16.mxu0 0
        %10413 = vmatpush1.bf16.msra.mxu0 0
        %10414 = vmatprep.subr.bf16.mxu0 0
        %10415 = vmatpush1.bf16.msra.mxu0 0
        %10416 = vmatprep.subr.bf16.mxu0 0
        %10417 = vmatpush1.bf16.msra.mxu0 0
        %10418 = vmatprep.subr.bf16.mxu0 0
        %10419 = vmatpush1.bf16.msra.mxu0 0
        %10420 = vmatprep.subr.bf16.mxu0 0
        %10421 = vmatpush1.bf16.msra.mxu0 0
        %10422 = vmatprep.subr.bf16.mxu0 0
        %10423 = vmatpush1.bf16.msra.mxu0 0
        %10424 = vmatprep.mubr.bf16.mxu0 0
        %10425 = vmatmul.mubr.bf16.gmra.mrb[0].mxu0 %v6396
        %v10426 = vpop.f32.mrb[0].mxu0
        %v10427 = vadd.f32 %v7042, %v10426
        %v10428 = vpop.f32.mrb[0].mxu0
        %v10429 = vadd.f32 %v7046, %v10428
        %v10430 = vpop.f32.mrb[0].mxu0
        %v10431 = vpop.f32.mrb[0].mxu0
        %10432 = vdwg.mxu0
        %10433 = vmatprep.subr.bf16.mxu0 %v8933
        %10434 = vmatpush1.bf16.msra.mxu0 %v8932
        %10435 = vmatprep.subr.bf16.mxu0 %v9000
        %10436 = vmatpush1.bf16.msra.mxu0 %v8999
        %10437 = vmatprep.subr.bf16.mxu0 %v9067
        %10438 = vmatpush1.bf16.msra.mxu0 %v9066
        %10439 = vmatprep.subr.bf16.mxu0 %v9134
        %10440 = vmatpush1.bf16.msra.mxu0 %v9133
        %10441 = vmatprep.subr.bf16.mxu0 %v9201
        %10442 = vmatpush1.bf16.msra.mxu0 %v9200
        %10443 = vmatprep.subr.bf16.mxu0 %v9268
        %10444 = vmatpush1.bf16.msra.mxu0 %v9267
        %10445 = vmatprep.subr.bf16.mxu0 %v9335
        %10446 = vmatpush1.bf16.msra.mxu0 %v9334
        %10447 = vmatprep.subr.bf16.mxu0 %v9402
        %10448 = vmatpush1.bf16.msra.mxu0 %v9401
        %10449 = vmatprep.subr.bf16.mxu0 0
        %10450 = vmatpush1.bf16.msra.mxu0 0
        %10451 = vmatprep.subr.bf16.mxu0 0
        %10452 = vmatpush1.bf16.msra.mxu0 0
        %10453 = vmatprep.subr.bf16.mxu0 0
        %10454 = vmatpush1.bf16.msra.mxu0 0
        %10455 = vmatprep.subr.bf16.mxu0 0
        %10456 = vmatpush1.bf16.msra.mxu0 0
        %10457 = vmatprep.subr.bf16.mxu0 0
        %10458 = vmatpush1.bf16.msra.mxu0 0
        %10459 = vmatprep.subr.bf16.mxu0 0
        %10460 = vmatpush1.bf16.msra.mxu0 0
        %10461 = vmatprep.subr.bf16.mxu0 0
        %10462 = vmatpush1.bf16.msra.mxu0 0
        %10463 = vmatprep.subr.bf16.mxu0 0
        %10464 = vmatpush1.bf16.msra.mxu0 0
        %10465 = vmatprep.mubr.bf16.mxu0 0
        %10466 = vmatmul.mubr.bf16.gmra.mrb[0].mxu0 %v6396
        %v10467 = vpop.f32.mrb[0].mxu0
        %v10468 = vadd.f32 %v7050, %v10467
        %v10469 = vpop.f32.mrb[0].mxu0
        %v10470 = vadd.f32 %v7054, %v10469
        %v10471 = vpop.f32.mrb[0].mxu0
        %v10472 = vpop.f32.mrb[0].mxu0
        %10473 = vdwg.mxu0
        %10474 = vmatprep.subr.bf16.mxu0 %v8935
        %10475 = vmatpush1.bf16.msra.mxu0 %v8934
        %10476 = vmatprep.subr.bf16.mxu0 %v9002
        %10477 = vmatpush1.bf16.msra.mxu0 %v9001
        %10478 = vmatprep.subr.bf16.mxu0 %v9069
        %10479 = vmatpush1.bf16.msra.mxu0 %v9068
        %10480 = vmatprep.subr.bf16.mxu0 %v9136
        %10481 = vmatpush1.bf16.msra.mxu0 %v9135
        %10482 = vmatprep.subr.bf16.mxu0 %v9203
        %10483 = vmatpush1.bf16.msra.mxu0 %v9202
        %10484 = vmatprep.subr.bf16.mxu0 %v9270
        %10485 = vmatpush1.bf16.msra.mxu0 %v9269
        %10486 = vmatprep.subr.bf16.mxu0 %v9337
        %10487 = vmatpush1.bf16.msra.mxu0 %v9336
        %10488 = vmatprep.subr.bf16.mxu0 %v9404
        %10489 = vmatpush1.bf16.msra.mxu0 %v9403
        %10490 = vmatprep.subr.bf16.mxu0 0
        %10491 = vmatpush1.bf16.msra.mxu0 0
        %10492 = vmatprep.subr.bf16.mxu0 0
        %10493 = vmatpush1.bf16.msra.mxu0 0
        %10494 = vmatprep.subr.bf16.mxu0 0
        %10495 = vmatpush1.bf16.msra.mxu0 0
        %10496 = vmatprep.subr.bf16.mxu0 0
        %10497 = vmatpush1.bf16.msra.mxu0 0
        %10498 = vmatprep.subr.bf16.mxu0 0
        %10499 = vmatpush1.bf16.msra.mxu0 0
        %10500 = vmatprep.subr.bf16.mxu0 0
        %10501 = vmatpush1.bf16.msra.mxu0 0
        %10502 = vmatprep.subr.bf16.mxu0 0
        %10503 = vmatpush1.bf16.msra.mxu0 0
        %10504 = vmatprep.subr.bf16.mxu0 0
        %10505 = vmatpush1.bf16.msra.mxu0 0
        %10506 = vmatprep.mubr.bf16.mxu0 0
        %10507 = vmatmul.mubr.bf16.gmra.mrb[0].mxu0 %v6396
        %v10508 = vpop.f32.mrb[0].mxu0
        %v10509 = vadd.f32 %v7058, %v10508
        %v10510 = vpop.f32.mrb[0].mxu0
        %v10511 = vadd.f32 %v7062, %v10510
        %v10512 = vpop.f32.mrb[0].mxu0
        %v10513 = vpop.f32.mrb[0].mxu0
        %10514 = vdwg.mxu0
        %10515 = vmatprep.subr.bf16.mxu0 %v8937
        %10516 = vmatpush1.bf16.msra.mxu0 %v8936
        %10517 = vmatprep.subr.bf16.mxu0 %v9004
        %10518 = vmatpush1.bf16.msra.mxu0 %v9003
        %10519 = vmatprep.subr.bf16.mxu0 %v9071
        %10520 = vmatpush1.bf16.msra.mxu0 %v9070
        %10521 = vmatprep.subr.bf16.mxu0 %v9138
        %10522 = vmatpush1.bf16.msra.mxu0 %v9137
        %10523 = vmatprep.subr.bf16.mxu0 %v9205
        %10524 = vmatpush1.bf16.msra.mxu0 %v9204
        %10525 = vmatprep.subr.bf16.mxu0 %v9272
        %10526 = vmatpush1.bf16.msra.mxu0 %v9271
        %10527 = vmatprep.subr.bf16.mxu0 %v9339
        %10528 = vmatpush1.bf16.msra.mxu0 %v9338
        %10529 = vmatprep.subr.bf16.mxu0 %v9406
        %10530 = vmatpush1.bf16.msra.mxu0 %v9405
        %10531 = vmatprep.subr.bf16.mxu0 0
        %10532 = vmatpush1.bf16.msra.mxu0 0
        %10533 = vmatprep.subr.bf16.mxu0 0
        %10534 = vmatpush1.bf16.msra.mxu0 0
        %10535 = vmatprep.subr.bf16.mxu0 0
        %10536 = vmatpush1.bf16.msra.mxu0 0
        %10537 = vmatprep.subr.bf16.mxu0 0
        %10538 = vmatpush1.bf16.msra.mxu0 0
        %10539 = vmatprep.subr.bf16.mxu0 0
        %10540 = vmatpush1.bf16.msra.mxu0 0
        %10541 = vmatprep.subr.bf16.mxu0 0
        %10542 = vmatpush1.bf16.msra.mxu0 0
        %10543 = vmatprep.subr.bf16.mxu0 0
        %10544 = vmatpush1.bf16.msra.mxu0 0
        %10545 = vmatprep.subr.bf16.mxu0 0
        %10546 = vmatpush1.bf16.msra.mxu0 0
        %10547 = vmatprep.mubr.bf16.mxu0 0
        %10548 = vmatmul.mubr.bf16.gmra.mrb[0].mxu0 %v6396
        %v10549 = vpop.f32.mrb[0].mxu0
        %v10550 = vadd.f32 %v7066, %v10549
        %v10551 = vpop.f32.mrb[0].mxu0
        %v10552 = vadd.f32 %v7070, %v10551
        %v10553 = vpop.f32.mrb[0].mxu0
        %v10554 = vpop.f32.mrb[0].mxu0
        %10555 = vdwg.mxu0
        %10556 = vmatprep.subr.bf16.mxu0 %v8939
        %10557 = vmatpush1.bf16.msra.mxu0 %v8938
        %10558 = vmatprep.subr.bf16.mxu0 %v9006
        %10559 = vmatpush1.bf16.msra.mxu0 %v9005
        %10560 = vmatprep.subr.bf16.mxu0 %v9073
        %10561 = vmatpush1.bf16.msra.mxu0 %v9072
        %10562 = vmatprep.subr.bf16.mxu0 %v9140
        %10563 = vmatpush1.bf16.msra.mxu0 %v9139
        %10564 = vmatprep.subr.bf16.mxu0 %v9207
        %10565 = vmatpush1.bf16.msra.mxu0 %v9206
        %10566 = vmatprep.subr.bf16.mxu0 %v9274
        %10567 = vmatpush1.bf16.msra.mxu0 %v9273
        %10568 = vmatprep.subr.bf16.mxu0 %v9341
        %10569 = vmatpush1.bf16.msra.mxu0 %v9340
        %10570 = vmatprep.subr.bf16.mxu0 %v9408
        %10571 = vmatpush1.bf16.msra.mxu0 %v9407
        %10572 = vmatprep.subr.bf16.mxu0 0
        %10573 = vmatpush1.bf16.msra.mxu0 0
        %10574 = vmatprep.subr.bf16.mxu0 0
        %10575 = vmatpush1.bf16.msra.mxu0 0
        %10576 = vmatprep.subr.bf16.mxu0 0
        %10577 = vmatpush1.bf16.msra.mxu0 0
        %10578 = vmatprep.subr.bf16.mxu0 0
        %10579 = vmatpush1.bf16.msra.mxu0 0
        %10580 = vmatprep.subr.bf16.mxu0 0
        %10581 = vmatpush1.bf16.msra.mxu0 0
        %10582 = vmatprep.subr.bf16.mxu0 0
        %10583 = vmatpush1.bf16.msra.mxu0 0
        %10584 = vmatprep.subr.bf16.mxu0 0
        %10585 = vmatpush1.bf16.msra.mxu0 0
        %10586 = vmatprep.subr.bf16.mxu0 0
        %10587 = vmatpush1.bf16.msra.mxu0 0
        %10588 = vmatprep.mubr.bf16.mxu0 0
        %10589 = vmatmul.mubr.bf16.gmra.mrb[0].mxu0 %v6396
        %v10590 = vpop.f32.mrb[0].mxu0
        %v10591 = vadd.f32 %v7074, %v10590
        %v10592 = vpop.f32.mrb[0].mxu0
        %v10593 = vadd.f32 %v7078, %v10592
        %v10594 = vpop.f32.mrb[0].mxu0
        %v10595 = vpop.f32.mrb[0].mxu0
        %10596 = vdwg.mxu0
        %10597 = vmatprep.subr.bf16.mxu0 %v8941
        %10598 = vmatpush1.bf16.msra.mxu0 %v8940
        %10599 = vmatprep.subr.bf16.mxu0 %v9008
        %10600 = vmatpush1.bf16.msra.mxu0 %v9007
        %10601 = vmatprep.subr.bf16.mxu0 %v9075
        %10602 = vmatpush1.bf16.msra.mxu0 %v9074
        %10603 = vmatprep.subr.bf16.mxu0 %v9142
        %10604 = vmatpush1.bf16.msra.mxu0 %v9141
        %10605 = vmatprep.subr.bf16.mxu0 %v9209
        %10606 = vmatpush1.bf16.msra.mxu0 %v9208
        %10607 = vmatprep.subr.bf16.mxu0 %v9276
        %10608 = vmatpush1.bf16.msra.mxu0 %v9275
        %10609 = vmatprep.subr.bf16.mxu0 %v9343
        %10610 = vmatpush1.bf16.msra.mxu0 %v9342
        %10611 = vmatprep.subr.bf16.mxu0 %v9410
        %10612 = vmatpush1.bf16.msra.mxu0 %v9409
        %10613 = vmatprep.subr.bf16.mxu0 0
        %10614 = vmatpush1.bf16.msra.mxu0 0
        %10615 = vmatprep.subr.bf16.mxu0 0
        %10616 = vmatpush1.bf16.msra.mxu0 0
        %10617 = vmatprep.subr.bf16.mxu0 0
        %10618 = vmatpush1.bf16.msra.mxu0 0
        %10619 = vmatprep.subr.bf16.mxu0 0
        %10620 = vmatpush1.bf16.msra.mxu0 0
        %10621 = vmatprep.subr.bf16.mxu0 0
        %10622 = vmatpush1.bf16.msra.mxu0 0
        %10623 = vmatprep.subr.bf16.mxu0 0
        %10624 = vmatpush1.bf16.msra.mxu0 0
        %10625 = vmatprep.subr.bf16.mxu0 0
        %10626 = vmatpush1.bf16.msra.mxu0 0
        %10627 = vmatprep.subr.bf16.mxu0 0
        %10628 = vmatpush1.bf16.msra.mxu0 0
        %10629 = vmatprep.mubr.bf16.mxu0 0
        %10630 = vmatmul.mubr.bf16.gmra.mrb[0].mxu0 %v6396
        %v10631 = vpop.f32.mrb[0].mxu0
        %v10632 = vadd.f32 %v7082, %v10631
        %v10633 = vpop.f32.mrb[0].mxu0
        %v10634 = vadd.f32 %v7086, %v10633
        %v10635 = vpop.f32.mrb[0].mxu0
        %v10636 = vpop.f32.mrb[0].mxu0
        %10637 = vdwg.mxu0
        %10638 = vmatprep.subr.bf16.mxu0 %v8943
        %10639 = vmatpush1.bf16.msra.mxu0 %v8942
        %10640 = vmatprep.subr.bf16.mxu0 %v9010
        %10641 = vmatpush1.bf16.msra.mxu0 %v9009
        %10642 = vmatprep.subr.bf16.mxu0 %v9077
        %10643 = vmatpush1.bf16.msra.mxu0 %v9076
        %10644 = vmatprep.subr.bf16.mxu0 %v9144
        %10645 = vmatpush1.bf16.msra.mxu0 %v9143
        %10646 = vmatprep.subr.bf16.mxu0 %v9211
        %10647 = vmatpush1.bf16.msra.mxu0 %v9210
        %10648 = vmatprep.subr.bf16.mxu0 %v9278
        %10649 = vmatpush1.bf16.msra.mxu0 %v9277
        %10650 = vmatprep.subr.bf16.mxu0 %v9345
        %10651 = vmatpush1.bf16.msra.mxu0 %v9344
        %10652 = vmatprep.subr.bf16.mxu0 %v9412
        %10653 = vmatpush1.bf16.msra.mxu0 %v9411
        %10654 = vmatprep.subr.bf16.mxu0 0
        %10655 = vmatpush1.bf16.msra.mxu0 0
        %10656 = vmatprep.subr.bf16.mxu0 0
        %10657 = vmatpush1.bf16.msra.mxu0 0
        %10658 = vmatprep.subr.bf16.mxu0 0
        %10659 = vmatpush1.bf16.msra.mxu0 0
        %10660 = vmatprep.subr.bf16.mxu0 0
        %10661 = vmatpush1.bf16.msra.mxu0 0
        %10662 = vmatprep.subr.bf16.mxu0 0
        %10663 = vmatpush1.bf16.msra.mxu0 0
        %10664 = vmatprep.subr.bf16.mxu0 0
        %10665 = vmatpush1.bf16.msra.mxu0 0
        %10666 = vmatprep.subr.bf16.mxu0 0
        %10667 = vmatpush1.bf16.msra.mxu0 0
        %10668 = vmatprep.subr.bf16.mxu0 0
        %10669 = vmatpush1.bf16.msra.mxu0 0
        %10670 = vmatprep.mubr.bf16.mxu0 0
        %10671 = vmatmul.mubr.bf16.gmra.mrb[0].mxu0 %v6396
        %v10672 = vpop.f32.mrb[0].mxu0
        %v10673 = vadd.f32 %v7090, %v10672
        %v10674 = vpop.f32.mrb[0].mxu0
        %v10675 = vadd.f32 %v7094, %v10674
        %v10676 = vpop.f32.mrb[0].mxu0
        %v10677 = vpop.f32.mrb[0].mxu0
        %10678 = vdwg.mxu0
        %10679 = vmatprep.subr.bf16.mxu0 %v8945
        %10680 = vmatpush1.bf16.msra.mxu0 %v8944
        %10681 = vmatprep.subr.bf16.mxu0 %v9012
        %10682 = vmatpush1.bf16.msra.mxu0 %v9011
        %10683 = vmatprep.subr.bf16.mxu0 %v9079
        %10684 = vmatpush1.bf16.msra.mxu0 %v9078
        %10685 = vmatprep.subr.bf16.mxu0 %v9146
        %10686 = vmatpush1.bf16.msra.mxu0 %v9145
        %10687 = vmatprep.subr.bf16.mxu0 %v9213
        %10688 = vmatpush1.bf16.msra.mxu0 %v9212
        %10689 = vmatprep.subr.bf16.mxu0 %v9280
        %10690 = vmatpush1.bf16.msra.mxu0 %v9279
        %10691 = vmatprep.subr.bf16.mxu0 %v9347
        %10692 = vmatpush1.bf16.msra.mxu0 %v9346
        %10693 = vmatprep.subr.bf16.mxu0 %v9414
        %10694 = vmatpush1.bf16.msra.mxu0 %v9413
        %10695 = vmatprep.subr.bf16.mxu0 0
        %10696 = vmatpush1.bf16.msra.mxu0 0
        %10697 = vmatprep.subr.bf16.mxu0 0
        %10698 = vmatpush1.bf16.msra.mxu0 0
        %10699 = vmatprep.subr.bf16.mxu0 0
        %10700 = vmatpush1.bf16.msra.mxu0 0
        %10701 = vmatprep.subr.bf16.mxu0 0
        %10702 = vmatpush1.bf16.msra.mxu0 0
        %10703 = vmatprep.subr.bf16.mxu0 0
        %10704 = vmatpush1.bf16.msra.mxu0 0
        %10705 = vmatprep.subr.bf16.mxu0 0
        %10706 = vmatpush1.bf16.msra.mxu0 0
        %10707 = vmatprep.subr.bf16.mxu0 0
        %10708 = vmatpush1.bf16.msra.mxu0 0
        %10709 = vmatprep.subr.bf16.mxu0 0
        %10710 = vmatpush1.bf16.msra.mxu0 0
        %10711 = vmatprep.mubr.bf16.mxu0 0
        %10712 = vmatmul.mubr.bf16.gmra.mrb[0].mxu0 %v6396
        %v10713 = vpop.f32.mrb[0].mxu0
        %v10714 = vadd.f32 %v7098, %v10713
        %v10715 = vpop.f32.mrb[0].mxu0
        %v10716 = vadd.f32 %v7102, %v10715
        %v10717 = vpop.f32.mrb[0].mxu0
        %v10718 = vpop.f32.mrb[0].mxu0
        %10719 = vdwg.mxu0
        %10720 = vmatprep.subr.bf16.mxu0 %v8947
        %10721 = vmatpush1.bf16.msra.mxu0 %v8946
        %10722 = vmatprep.subr.bf16.mxu0 %v9014
        %10723 = vmatpush1.bf16.msra.mxu0 %v9013
        %10724 = vmatprep.subr.bf16.mxu0 %v9081
        %10725 = vmatpush1.bf16.msra.mxu0 %v9080
        %10726 = vmatprep.subr.bf16.mxu0 %v9148
        %10727 = vmatpush1.bf16.msra.mxu0 %v9147
        %10728 = vmatprep.subr.bf16.mxu0 %v9215
        %10729 = vmatpush1.bf16.msra.mxu0 %v9214
        %10730 = vmatprep.subr.bf16.mxu0 %v9282
        %10731 = vmatpush1.bf16.msra.mxu0 %v9281
        %10732 = vmatprep.subr.bf16.mxu0 %v9349
        %10733 = vmatpush1.bf16.msra.mxu0 %v9348
        %10734 = vmatprep.subr.bf16.mxu0 %v9416
        %10735 = vmatpush1.bf16.msra.mxu0 %v9415
        %10736 = vmatprep.subr.bf16.mxu0 0
        %10737 = vmatpush1.bf16.msra.mxu0 0
        %10738 = vmatprep.subr.bf16.mxu0 0
        %10739 = vmatpush1.bf16.msra.mxu0 0
        %10740 = vmatprep.subr.bf16.mxu0 0
        %10741 = vmatpush1.bf16.msra.mxu0 0
        %10742 = vmatprep.subr.bf16.mxu0 0
        %10743 = vmatpush1.bf16.msra.mxu0 0
        %10744 = vmatprep.subr.bf16.mxu0 0
        %10745 = vmatpush1.bf16.msra.mxu0 0
        %10746 = vmatprep.subr.bf16.mxu0 0
        %10747 = vmatpush1.bf16.msra.mxu0 0
        %10748 = vmatprep.subr.bf16.mxu0 0
        %10749 = vmatpush1.bf16.msra.mxu0 0
        %10750 = vmatprep.subr.bf16.mxu0 0
        %10751 = vmatpush1.bf16.msra.mxu0 0
        %10752 = vmatprep.mubr.bf16.mxu0 0
        %10753 = vmatmul.mubr.bf16.gmra.mrb[0].mxu0 %v6396
        %v10754 = vpop.f32.mrb[0].mxu0
        %v10755 = vadd.f32 %v7106, %v10754
        %v10756 = vpop.f32.mrb[0].mxu0
        %v10757 = vadd.f32 %v7110, %v10756
        %v10758 = vpop.f32.mrb[0].mxu0
        %v10759 = vpop.f32.mrb[0].mxu0
        %10760 = vdwg.mxu0
        %10761 = vmatprep.subr.bf16.mxu0 %v8949
        %10762 = vmatpush1.bf16.msra.mxu0 %v8948
        %10763 = vmatprep.subr.bf16.mxu0 %v9016
        %10764 = vmatpush1.bf16.msra.mxu0 %v9015
        %10765 = vmatprep.subr.bf16.mxu0 %v9083
        %10766 = vmatpush1.bf16.msra.mxu0 %v9082
        %10767 = vmatprep.subr.bf16.mxu0 %v9150
        %10768 = vmatpush1.bf16.msra.mxu0 %v9149
        %10769 = vmatprep.subr.bf16.mxu0 %v9217
        %10770 = vmatpush1.bf16.msra.mxu0 %v9216
        %10771 = vmatprep.subr.bf16.mxu0 %v9284
        %10772 = vmatpush1.bf16.msra.mxu0 %v9283
        %10773 = vmatprep.subr.bf16.mxu0 %v9351
        %10774 = vmatpush1.bf16.msra.mxu0 %v9350
        %10775 = vmatprep.subr.bf16.mxu0 %v9418
        %10776 = vmatpush1.bf16.msra.mxu0 %v9417
        %10777 = vmatprep.subr.bf16.mxu0 0
        %10778 = vmatpush1.bf16.msra.mxu0 0
        %10779 = vmatprep.subr.bf16.mxu0 0
        %10780 = vmatpush1.bf16.msra.mxu0 0
        %10781 = vmatprep.subr.bf16.mxu0 0
        %10782 = vmatpush1.bf16.msra.mxu0 0
        %10783 = vmatprep.subr.bf16.mxu0 0
        %10784 = vmatpush1.bf16.msra.mxu0 0
        %10785 = vmatprep.subr.bf16.mxu0 0
        %10786 = vmatpush1.bf16.msra.mxu0 0
        %10787 = vmatprep.subr.bf16.mxu0 0
        %10788 = vmatpush1.bf16.msra.mxu0 0
        %10789 = vmatprep.subr.bf16.mxu0 0
        %10790 = vmatpush1.bf16.msra.mxu0 0
        %10791 = vmatprep.subr.bf16.mxu0 0
        %10792 = vmatpush1.bf16.msra.mxu0 0
        %10793 = vmatprep.mubr.bf16.mxu0 0
        %10794 = vmatmul.mubr.bf16.gmra.mrb[0].mxu0 %v6396
        %v10795 = vpop.f32.mrb[0].mxu0
        %v10796 = vadd.f32 %v7114, %v10795
        %v10797 = vpop.f32.mrb[0].mxu0
        %v10798 = vadd.f32 %v7118, %v10797
        %v10799 = vpop.f32.mrb[0].mxu0
        %v10800 = vpop.f32.mrb[0].mxu0
        %10801 = vdwg.mxu0
        %10802 = vmatprep.subr.bf16.mxu0 %v8951
        %10803 = vmatpush1.bf16.msra.mxu0 %v8950
        %10804 = vmatprep.subr.bf16.mxu0 %v9018
        %10805 = vmatpush1.bf16.msra.mxu0 %v9017
        %10806 = vmatprep.subr.bf16.mxu0 %v9085
        %10807 = vmatpush1.bf16.msra.mxu0 %v9084
        %10808 = vmatprep.subr.bf16.mxu0 %v9152
        %10809 = vmatpush1.bf16.msra.mxu0 %v9151
        %10810 = vmatprep.subr.bf16.mxu0 %v9219
        %10811 = vmatpush1.bf16.msra.mxu0 %v9218
        %10812 = vmatprep.subr.bf16.mxu0 %v9286
        %10813 = vmatpush1.bf16.msra.mxu0 %v9285
        %10814 = vmatprep.subr.bf16.mxu0 %v9353
        %10815 = vmatpush1.bf16.msra.mxu0 %v9352
        %10816 = vmatprep.subr.bf16.mxu0 %v9420
        %10817 = vmatpush1.bf16.msra.mxu0 %v9419
        %10818 = vmatprep.subr.bf16.mxu0 0
        %10819 = vmatpush1.bf16.msra.mxu0 0
        %10820 = vmatprep.subr.bf16.mxu0 0
        %10821 = vmatpush1.bf16.msra.mxu0 0
        %10822 = vmatprep.subr.bf16.mxu0 0
        %10823 = vmatpush1.bf16.msra.mxu0 0
        %10824 = vmatprep.subr.bf16.mxu0 0
        %10825 = vmatpush1.bf16.msra.mxu0 0
        %10826 = vmatprep.subr.bf16.mxu0 0
        %10827 = vmatpush1.bf16.msra.mxu0 0
        %10828 = vmatprep.subr.bf16.mxu0 0
        %10829 = vmatpush1.bf16.msra.mxu0 0
        %10830 = vmatprep.subr.bf16.mxu0 0
        %10831 = vmatpush1.bf16.msra.mxu0 0
        %10832 = vmatprep.subr.bf16.mxu0 0
        %10833 = vmatpush1.bf16.msra.mxu0 0
        %10834 = vmatprep.mubr.bf16.mxu0 0
        %10835 = vmatmul.mubr.bf16.gmra.mrb[0].mxu0 %v6396
        %v10836 = vpop.f32.mrb[0].mxu0
        %v10837 = vadd.f32 %v7122, %v10836
        %v10838 = vpop.f32.mrb[0].mxu0
        %v10839 = vadd.f32 %v7126, %v10838
        %v10840 = vpop.f32.mrb[0].mxu0
        %v10841 = vpop.f32.mrb[0].mxu0
        %10842 = vdwg.mxu0
        %10843 = vmatprep.subr.bf16.mxu0 %v8953
        %10844 = vmatpush1.bf16.msra.mxu0 %v8952
        %10845 = vmatprep.subr.bf16.mxu0 %v9020
        %10846 = vmatpush1.bf16.msra.mxu0 %v9019
        %10847 = vmatprep.subr.bf16.mxu0 %v9087
        %10848 = vmatpush1.bf16.msra.mxu0 %v9086
        %10849 = vmatprep.subr.bf16.mxu0 %v9154
        %10850 = vmatpush1.bf16.msra.mxu0 %v9153
        %10851 = vmatprep.subr.bf16.mxu0 %v9221
        %10852 = vmatpush1.bf16.msra.mxu0 %v9220
        %10853 = vmatprep.subr.bf16.mxu0 %v9288
        %10854 = vmatpush1.bf16.msra.mxu0 %v9287
        %10855 = vmatprep.subr.bf16.mxu0 %v9355
        %10856 = vmatpush1.bf16.msra.mxu0 %v9354
        %10857 = vmatprep.subr.bf16.mxu0 %v9422
        %10858 = vmatpush1.bf16.msra.mxu0 %v9421
        %10859 = vmatprep.subr.bf16.mxu0 0
        %10860 = vmatpush1.bf16.msra.mxu0 0
        %10861 = vmatprep.subr.bf16.mxu0 0
        %10862 = vmatpush1.bf16.msra.mxu0 0
        %10863 = vmatprep.subr.bf16.mxu0 0
        %10864 = vmatpush1.bf16.msra.mxu0 0
        %10865 = vmatprep.subr.bf16.mxu0 0
        %10866 = vmatpush1.bf16.msra.mxu0 0
        %10867 = vmatprep.subr.bf16.mxu0 0
        %10868 = vmatpush1.bf16.msra.mxu0 0
        %10869 = vmatprep.subr.bf16.mxu0 0
        %10870 = vmatpush1.bf16.msra.mxu0 0
        %10871 = vmatprep.subr.bf16.mxu0 0
        %10872 = vmatpush1.bf16.msra.mxu0 0
        %10873 = vmatprep.subr.bf16.mxu0 0
        %10874 = vmatpush1.bf16.msra.mxu0 0
        %10875 = vmatprep.mubr.bf16.mxu0 0
        %10876 = vmatmul.mubr.bf16.gmra.mrb[0].mxu0 %v6396
        %v10877 = vpop.f32.mrb[0].mxu0
        %v10878 = vadd.f32 %v7130, %v10877
        %v10879 = vpop.f32.mrb[0].mxu0
        %v10880 = vadd.f32 %v7134, %v10879
        %v10881 = vpop.f32.mrb[0].mxu0
        %v10882 = vpop.f32.mrb[0].mxu0
        %10883 = vdwg.mxu0
        %10884 = vmatprep.subr.bf16.mxu0 %v8955
        %10885 = vmatpush1.bf16.msra.mxu0 %v8954
        %10886 = vmatprep.subr.bf16.mxu0 %v9022
        %10887 = vmatpush1.bf16.msra.mxu0 %v9021
        %10888 = vmatprep.subr.bf16.mxu0 %v9089
        %10889 = vmatpush1.bf16.msra.mxu0 %v9088
        %10890 = vmatprep.subr.bf16.mxu0 %v9156
        %10891 = vmatpush1.bf16.msra.mxu0 %v9155
        %10892 = vmatprep.subr.bf16.mxu0 %v9223
        %10893 = vmatpush1.bf16.msra.mxu0 %v9222
        %10894 = vmatprep.subr.bf16.mxu0 %v9290
        %10895 = vmatpush1.bf16.msra.mxu0 %v9289
        %10896 = vmatprep.subr.bf16.mxu0 %v9357
        %10897 = vmatpush1.bf16.msra.mxu0 %v9356
        %10898 = vmatprep.subr.bf16.mxu0 %v9424
        %10899 = vmatpush1.bf16.msra.mxu0 %v9423
        %10900 = vmatprep.subr.bf16.mxu0 0
        %10901 = vmatpush1.bf16.msra.mxu0 0
        %10902 = vmatprep.subr.bf16.mxu0 0
        %10903 = vmatpush1.bf16.msra.mxu0 0
        %10904 = vmatprep.subr.bf16.mxu0 0
        %10905 = vmatpush1.bf16.msra.mxu0 0
        %10906 = vmatprep.subr.bf16.mxu0 0
        %10907 = vmatpush1.bf16.msra.mxu0 0
        %10908 = vmatprep.subr.bf16.mxu0 0
        %10909 = vmatpush1.bf16.msra.mxu0 0
        %10910 = vmatprep.subr.bf16.mxu0 0
        %10911 = vmatpush1.bf16.msra.mxu0 0
        %10912 = vmatprep.subr.bf16.mxu0 0
        %10913 = vmatpush1.bf16.msra.mxu0 0
        %10914 = vmatprep.subr.bf16.mxu0 0
        %10915 = vmatpush1.bf16.msra.mxu0 0
        %10916 = vmatprep.mubr.bf16.mxu0 0
        %10917 = vmatmul.mubr.bf16.gmra.mrb[0].mxu0 %v6396
        %v10918 = vpop.f32.mrb[0].mxu0
        %v10919 = vadd.f32 %v7138, %v10918
        %v10920 = vpop.f32.mrb[0].mxu0
        %v10921 = vadd.f32 %v7142, %v10920
        %v10922 = vpop.f32.mrb[0].mxu0
        %v10923 = vpop.f32.mrb[0].mxu0
        %10924 = vdwg.mxu0
        %10925 = vmatprep.subr.bf16.mxu0 %v8957
        %10926 = vmatpush1.bf16.msra.mxu0 %v8956
        %10927 = vmatprep.subr.bf16.mxu0 %v9024
        %10928 = vmatpush1.bf16.msra.mxu0 %v9023
        %10929 = vmatprep.subr.bf16.mxu0 %v9091
        %10930 = vmatpush1.bf16.msra.mxu0 %v9090
        %10931 = vmatprep.subr.bf16.mxu0 %v9158
        %10932 = vmatpush1.bf16.msra.mxu0 %v9157
        %10933 = vmatprep.subr.bf16.mxu0 %v9225
        %10934 = vmatpush1.bf16.msra.mxu0 %v9224
        %10935 = vmatprep.subr.bf16.mxu0 %v9292
        %10936 = vmatpush1.bf16.msra.mxu0 %v9291
        %10937 = vmatprep.subr.bf16.mxu0 %v9359
        %10938 = vmatpush1.bf16.msra.mxu0 %v9358
        %10939 = vmatprep.subr.bf16.mxu0 %v9426
        %10940 = vmatpush1.bf16.msra.mxu0 %v9425
        %10941 = vmatprep.subr.bf16.mxu0 0
        %10942 = vmatpush1.bf16.msra.mxu0 0
        %10943 = vmatprep.subr.bf16.mxu0 0
        %10944 = vmatpush1.bf16.msra.mxu0 0
        %10945 = vmatprep.subr.bf16.mxu0 0
        %10946 = vmatpush1.bf16.msra.mxu0 0
        %10947 = vmatprep.subr.bf16.mxu0 0
        %10948 = vmatpush1.bf16.msra.mxu0 0
        %10949 = vmatprep.subr.bf16.mxu0 0
        %10950 = vmatpush1.bf16.msra.mxu0 0
        %10951 = vmatprep.subr.bf16.mxu0 0
        %10952 = vmatpush1.bf16.msra.mxu0 0
        %10953 = vmatprep.subr.bf16.mxu0 0
        %10954 = vmatpush1.bf16.msra.mxu0 0
        %10955 = vmatprep.subr.bf16.mxu0 0
        %10956 = vmatpush1.bf16.msra.mxu0 0
        %10957 = vmatprep.mubr.bf16.mxu0 0
        %10958 = vmatmul.mubr.bf16.gmra.mrb[0].mxu0 %v6396
        %v10959 = vpop.f32.mrb[0].mxu0
        %v10960 = vadd.f32 %v7146, %v10959
        %v10961 = vpop.f32.mrb[0].mxu0
        %v10962 = vadd.f32 %v7150, %v10961
        %v10963 = vpop.f32.mrb[0].mxu0
        %v10964 = vpop.f32.mrb[0].mxu0
        %10965 = vdwg.mxu0
        %10966 = vmatprep.subr.bf16.mxu0 %v8959
        %10967 = vmatpush1.bf16.msra.mxu0 %v8958
        %10968 = vmatprep.subr.bf16.mxu0 %v9026
        %10969 = vmatpush1.bf16.msra.mxu0 %v9025
        %10970 = vmatprep.subr.bf16.mxu0 %v9093
        %10971 = vmatpush1.bf16.msra.mxu0 %v9092
        %10972 = vmatprep.subr.bf16.mxu0 %v9160
        %10973 = vmatpush1.bf16.msra.mxu0 %v9159
        %10974 = vmatprep.subr.bf16.mxu0 %v9227
        %10975 = vmatpush1.bf16.msra.mxu0 %v9226
        %10976 = vmatprep.subr.bf16.mxu0 %v9294
        %10977 = vmatpush1.bf16.msra.mxu0 %v9293
        %10978 = vmatprep.subr.bf16.mxu0 %v9361
        %10979 = vmatpush1.bf16.msra.mxu0 %v9360
        %10980 = vmatprep.subr.bf16.mxu0 %v9428
        %10981 = vmatpush1.bf16.msra.mxu0 %v9427
        %10982 = vmatprep.subr.bf16.mxu0 0
        %10983 = vmatpush1.bf16.msra.mxu0 0
        %10984 = vmatprep.subr.bf16.mxu0 0
        %10985 = vmatpush1.bf16.msra.mxu0 0
        %10986 = vmatprep.subr.bf16.mxu0 0
        %10987 = vmatpush1.bf16.msra.mxu0 0
        %10988 = vmatprep.subr.bf16.mxu0 0
        %10989 = vmatpush1.bf16.msra.mxu0 0
        %10990 = vmatprep.subr.bf16.mxu0 0
        %10991 = vmatpush1.bf16.msra.mxu0 0
        %10992 = vmatprep.subr.bf16.mxu0 0
        %10993 = vmatpush1.bf16.msra.mxu0 0
        %10994 = vmatprep.subr.bf16.mxu0 0
        %10995 = vmatpush1.bf16.msra.mxu0 0
        %10996 = vmatprep.subr.bf16.mxu0 0
        %10997 = vmatpush1.bf16.msra.mxu0 0
        %10998 = vmatprep.mubr.bf16.mxu0 0
        %10999 = vmatmul.mubr.bf16.gmra.mrb[0].mxu0 %v6396
        %v11000 = vpop.f32.mrb[0].mxu0
        %v11001 = vadd.f32 %v7154, %v11000
        %v11002 = vpop.f32.mrb[0].mxu0
        %v11003 = vadd.f32 %v7158, %v11002
        %v11004 = vpop.f32.mrb[0].mxu0
        %v11005 = vpop.f32.mrb[0].mxu0
        %11006 = vdwg.mxu0
        %11007 = vmatprep.subr.bf16.mxu0 %v8961
        %11008 = vmatpush1.bf16.msra.mxu0 %v8960
        %11009 = vmatprep.subr.bf16.mxu0 %v9028
        %11010 = vmatpush1.bf16.msra.mxu0 %v9027
        %11011 = vmatprep.subr.bf16.mxu0 %v9095
        %11012 = vmatpush1.bf16.msra.mxu0 %v9094
        %11013 = vmatprep.subr.bf16.mxu0 %v9162
        %11014 = vmatpush1.bf16.msra.mxu0 %v9161
        %11015 = vmatprep.subr.bf16.mxu0 %v9229
        %11016 = vmatpush1.bf16.msra.mxu0 %v9228
        %11017 = vmatprep.subr.bf16.mxu0 %v9296
        %11018 = vmatpush1.bf16.msra.mxu0 %v9295
        %11019 = vmatprep.subr.bf16.mxu0 %v9363
        %11020 = vmatpush1.bf16.msra.mxu0 %v9362
        %11021 = vmatprep.subr.bf16.mxu0 %v9430
        %11022 = vmatpush1.bf16.msra.mxu0 %v9429
        %11023 = vmatprep.subr.bf16.mxu0 0
        %11024 = vmatpush1.bf16.msra.mxu0 0
        %11025 = vmatprep.subr.bf16.mxu0 0
        %11026 = vmatpush1.bf16.msra.mxu0 0
        %11027 = vmatprep.subr.bf16.mxu0 0
        %11028 = vmatpush1.bf16.msra.mxu0 0
        %11029 = vmatprep.subr.bf16.mxu0 0
        %11030 = vmatpush1.bf16.msra.mxu0 0
        %11031 = vmatprep.subr.bf16.mxu0 0
        %11032 = vmatpush1.bf16.msra.mxu0 0
        %11033 = vmatprep.subr.bf16.mxu0 0
        %11034 = vmatpush1.bf16.msra.mxu0 0
        %11035 = vmatprep.subr.bf16.mxu0 0
        %11036 = vmatpush1.bf16.msra.mxu0 0
        %11037 = vmatprep.subr.bf16.mxu0 0
        %11038 = vmatpush1.bf16.msra.mxu0 0
        %11039 = vmatprep.mubr.bf16.mxu0 0
        %11040 = vmatmul.mubr.bf16.gmra.mrb[0].mxu0 %v6396
        %v11041 = vpop.f32.mrb[0].mxu0
        %v11042 = vadd.f32 %v7162, %v11041
        %v11043 = vpop.f32.mrb[0].mxu0
        %v11044 = vadd.f32 %v7166, %v11043
        %v11045 = vpop.f32.mrb[0].mxu0
        %v11046 = vpop.f32.mrb[0].mxu0
        %11047 = vdwg.mxu0
        %11048 = vmatprep.subr.bf16.mxu0 %v8963
        %11049 = vmatpush1.bf16.msra.mxu0 %v8962
        %11050 = vmatprep.subr.bf16.mxu0 %v9030
        %11051 = vmatpush1.bf16.msra.mxu0 %v9029
        %11052 = vmatprep.subr.bf16.mxu0 %v9097
        %11053 = vmatpush1.bf16.msra.mxu0 %v9096
        %11054 = vmatprep.subr.bf16.mxu0 %v9164
        %11055 = vmatpush1.bf16.msra.mxu0 %v9163
        %11056 = vmatprep.subr.bf16.mxu0 %v9231
        %11057 = vmatpush1.bf16.msra.mxu0 %v9230
        %11058 = vmatprep.subr.bf16.mxu0 %v9298
        %11059 = vmatpush1.bf16.msra.mxu0 %v9297
        %11060 = vmatprep.subr.bf16.mxu0 %v9365
        %11061 = vmatpush1.bf16.msra.mxu0 %v9364
        %11062 = vmatprep.subr.bf16.mxu0 %v9432
        %11063 = vmatpush1.bf16.msra.mxu0 %v9431
        %11064 = vmatprep.subr.bf16.mxu0 0
        %11065 = vmatpush1.bf16.msra.mxu0 0
        %11066 = vmatprep.subr.bf16.mxu0 0
        %11067 = vmatpush1.bf16.msra.mxu0 0
        %11068 = vmatprep.subr.bf16.mxu0 0
        %11069 = vmatpush1.bf16.msra.mxu0 0
        %11070 = vmatprep.subr.bf16.mxu0 0
        %11071 = vmatpush1.bf16.msra.mxu0 0
        %11072 = vmatprep.subr.bf16.mxu0 0
        %11073 = vmatpush1.bf16.msra.mxu0 0
        %11074 = vmatprep.subr.bf16.mxu0 0
        %11075 = vmatpush1.bf16.msra.mxu0 0
        %11076 = vmatprep.subr.bf16.mxu0 0
        %11077 = vmatpush1.bf16.msra.mxu0 0
        %11078 = vmatprep.subr.bf16.mxu0 0
        %11079 = vmatpush1.bf16.msra.mxu0 0
        %11080 = vmatprep.mubr.bf16.mxu0 0
        %11081 = vmatmul.mubr.bf16.gmra.mrb[0].mxu0 %v6396
        %v11082 = vpop.f32.mrb[0].mxu0
        %v11083 = vadd.f32 %v7170, %v11082
        %v11084 = vpop.f32.mrb[0].mxu0
        %v11085 = vadd.f32 %v7174, %v11084
        %v11086 = vpop.f32.mrb[0].mxu0
        %v11087 = vpop.f32.mrb[0].mxu0
        %11088 = vdwg.mxu0
        %11089 = vmatprep.subr.bf16.mxu0 %v8965
        %11090 = vmatpush1.bf16.msra.mxu0 %v8964
        %11091 = vmatprep.subr.bf16.mxu0 %v9032
        %11092 = vmatpush1.bf16.msra.mxu0 %v9031
        %11093 = vmatprep.subr.bf16.mxu0 %v9099
        %11094 = vmatpush1.bf16.msra.mxu0 %v9098
        %11095 = vmatprep.subr.bf16.mxu0 %v9166
        %11096 = vmatpush1.bf16.msra.mxu0 %v9165
        %11097 = vmatprep.subr.bf16.mxu0 %v9233
        %11098 = vmatpush1.bf16.msra.mxu0 %v9232
        %11099 = vmatprep.subr.bf16.mxu0 %v9300
        %11100 = vmatpush1.bf16.msra.mxu0 %v9299
        %11101 = vmatprep.subr.bf16.mxu0 %v9367
        %11102 = vmatpush1.bf16.msra.mxu0 %v9366
        %11103 = vmatprep.subr.bf16.mxu0 %v9434
        %11104 = vmatpush1.bf16.msra.mxu0 %v9433
        %11105 = vmatprep.subr.bf16.mxu0 0
        %11106 = vmatpush1.bf16.msra.mxu0 0
        %11107 = vmatprep.subr.bf16.mxu0 0
        %11108 = vmatpush1.bf16.msra.mxu0 0
        %11109 = vmatprep.subr.bf16.mxu0 0
        %11110 = vmatpush1.bf16.msra.mxu0 0
        %11111 = vmatprep.subr.bf16.mxu0 0
        %11112 = vmatpush1.bf16.msra.mxu0 0
        %11113 = vmatprep.subr.bf16.mxu0 0
        %11114 = vmatpush1.bf16.msra.mxu0 0
        %11115 = vmatprep.subr.bf16.mxu0 0
        %11116 = vmatpush1.bf16.msra.mxu0 0
        %11117 = vmatprep.subr.bf16.mxu0 0
        %11118 = vmatpush1.bf16.msra.mxu0 0
        %11119 = vmatprep.subr.bf16.mxu0 0
        %11120 = vmatpush1.bf16.msra.mxu0 0
        %11121 = vmatprep.mubr.bf16.mxu0 0
        %11122 = vmatmul.mubr.bf16.gmra.mrb[0].mxu0 %v6396
        %v11123 = vpop.f32.mrb[0].mxu0
        %v11124 = vadd.f32 %v7178, %v11123
        %v11125 = vpop.f32.mrb[0].mxu0
        %v11126 = vadd.f32 %v7182, %v11125
        %v11127 = vpop.f32.mrb[0].mxu0
        %v11128 = vpop.f32.mrb[0].mxu0
        %11129 = vdwg.mxu0
        %11130 = vmatprep.subr.bf16.mxu0 %v8967
        %11131 = vmatpush1.bf16.msra.mxu0 %v8966
        %11132 = vmatprep.subr.bf16.mxu0 %v9034
        %11133 = vmatpush1.bf16.msra.mxu0 %v9033
        %11134 = vmatprep.subr.bf16.mxu0 %v9101
        %11135 = vmatpush1.bf16.msra.mxu0 %v9100
        %11136 = vmatprep.subr.bf16.mxu0 %v9168
        %11137 = vmatpush1.bf16.msra.mxu0 %v9167
        %11138 = vmatprep.subr.bf16.mxu0 %v9235
        %11139 = vmatpush1.bf16.msra.mxu0 %v9234
        %11140 = vmatprep.subr.bf16.mxu0 %v9302
        %11141 = vmatpush1.bf16.msra.mxu0 %v9301
        %11142 = vmatprep.subr.bf16.mxu0 %v9369
        %11143 = vmatpush1.bf16.msra.mxu0 %v9368
        %11144 = vmatprep.subr.bf16.mxu0 %v9436
        %11145 = vmatpush1.bf16.msra.mxu0 %v9435
        %11146 = vmatprep.subr.bf16.mxu0 0
        %11147 = vmatpush1.bf16.msra.mxu0 0
        %11148 = vmatprep.subr.bf16.mxu0 0
        %11149 = vmatpush1.bf16.msra.mxu0 0
        %11150 = vmatprep.subr.bf16.mxu0 0
        %11151 = vmatpush1.bf16.msra.mxu0 0
        %11152 = vmatprep.subr.bf16.mxu0 0
        %11153 = vmatpush1.bf16.msra.mxu0 0
        %11154 = vmatprep.subr.bf16.mxu0 0
        %11155 = vmatpush1.bf16.msra.mxu0 0
        %11156 = vmatprep.subr.bf16.mxu0 0
        %11157 = vmatpush1.bf16.msra.mxu0 0
        %11158 = vmatprep.subr.bf16.mxu0 0
        %11159 = vmatpush1.bf16.msra.mxu0 0
        %11160 = vmatprep.subr.bf16.mxu0 0
        %11161 = vmatpush1.bf16.msra.mxu0 0
        %11162 = vmatprep.mubr.bf16.mxu0 0
        %11163 = vmatmul.mubr.bf16.gmra.mrb[0].mxu0 %v6396
        %v11164 = vpop.f32.mrb[0].mxu0
        %v11165 = vadd.f32 %v7186, %v11164
        %v11166 = vpop.f32.mrb[0].mxu0
        %v11167 = vadd.f32 %v7190, %v11166
        %v11168 = vpop.f32.mrb[0].mxu0
        %v11169 = vpop.f32.mrb[0].mxu0
        %11170 = vdwg.mxu0
        %11171 = vmatprep.subr.bf16.mxu0 %v8969
        %11172 = vmatpush1.bf16.msra.mxu0 %v8968
        %11173 = vmatprep.subr.bf16.mxu0 %v9036
        %11174 = vmatpush1.bf16.msra.mxu0 %v9035
        %11175 = vmatprep.subr.bf16.mxu0 %v9103
        %11176 = vmatpush1.bf16.msra.mxu0 %v9102
        %11177 = vmatprep.subr.bf16.mxu0 %v9170
        %11178 = vmatpush1.bf16.msra.mxu0 %v9169
        %11179 = vmatprep.subr.bf16.mxu0 %v9237
        %11180 = vmatpush1.bf16.msra.mxu0 %v9236
        %11181 = vmatprep.subr.bf16.mxu0 %v9304
        %11182 = vmatpush1.bf16.msra.mxu0 %v9303
        %11183 = vmatprep.subr.bf16.mxu0 %v9371
        %11184 = vmatpush1.bf16.msra.mxu0 %v9370
        %11185 = vmatprep.subr.bf16.mxu0 %v9438
        %11186 = vmatpush1.bf16.msra.mxu0 %v9437
        %11187 = vmatprep.subr.bf16.mxu0 0
        %11188 = vmatpush1.bf16.msra.mxu0 0
        %11189 = vmatprep.subr.bf16.mxu0 0
        %11190 = vmatpush1.bf16.msra.mxu0 0
        %11191 = vmatprep.subr.bf16.mxu0 0
        %11192 = vmatpush1.bf16.msra.mxu0 0
        %11193 = vmatprep.subr.bf16.mxu0 0
        %11194 = vmatpush1.bf16.msra.mxu0 0
        %11195 = vmatprep.subr.bf16.mxu0 0
        %11196 = vmatpush1.bf16.msra.mxu0 0
        %11197 = vmatprep.subr.bf16.mxu0 0
        %11198 = vmatpush1.bf16.msra.mxu0 0
        %11199 = vmatprep.subr.bf16.mxu0 0
        %11200 = vmatpush1.bf16.msra.mxu0 0
        %11201 = vmatprep.subr.bf16.mxu0 0
        %11202 = vmatpush1.bf16.msra.mxu0 0
        %11203 = vmatprep.mubr.bf16.mxu0 0
        %11204 = vmatmul.mubr.bf16.gmra.mrb[0].mxu0 %v6396
        %v11205 = vpop.f32.mrb[0].mxu0
        %v11206 = vadd.f32 %v7194, %v11205
        %v11207 = vpop.f32.mrb[0].mxu0
        %v11208 = vadd.f32 %v7198, %v11207
        %v11209 = vpop.f32.mrb[0].mxu0
        %v11210 = vpop.f32.mrb[0].mxu0
        %11211 = vdwg.mxu0
        %11212 = vmatprep.subr.bf16.mxu0 %v8971
        %11213 = vmatpush1.bf16.msra.mxu0 %v8970
        %11214 = vmatprep.subr.bf16.mxu0 %v9038
        %11215 = vmatpush1.bf16.msra.mxu0 %v9037
        %11216 = vmatprep.subr.bf16.mxu0 %v9105
        %11217 = vmatpush1.bf16.msra.mxu0 %v9104
        %11218 = vmatprep.subr.bf16.mxu0 %v9172
        %11219 = vmatpush1.bf16.msra.mxu0 %v9171
        %11220 = vmatprep.subr.bf16.mxu0 %v9239
        %11221 = vmatpush1.bf16.msra.mxu0 %v9238
        %11222 = vmatprep.subr.bf16.mxu0 %v9306
        %11223 = vmatpush1.bf16.msra.mxu0 %v9305
        %11224 = vmatprep.subr.bf16.mxu0 %v9373
        %11225 = vmatpush1.bf16.msra.mxu0 %v9372
        %11226 = vmatprep.subr.bf16.mxu0 %v9440
        %11227 = vmatpush1.bf16.msra.mxu0 %v9439
        %11228 = vmatprep.subr.bf16.mxu0 0
        %11229 = vmatpush1.bf16.msra.mxu0 0
        %11230 = vmatprep.subr.bf16.mxu0 0
        %11231 = vmatpush1.bf16.msra.mxu0 0
        %11232 = vmatprep.subr.bf16.mxu0 0
        %11233 = vmatpush1.bf16.msra.mxu0 0
        %11234 = vmatprep.subr.bf16.mxu0 0
        %11235 = vmatpush1.bf16.msra.mxu0 0
        %11236 = vmatprep.subr.bf16.mxu0 0
        %11237 = vmatpush1.bf16.msra.mxu0 0
        %11238 = vmatprep.subr.bf16.mxu0 0
        %11239 = vmatpush1.bf16.msra.mxu0 0
        %11240 = vmatprep.subr.bf16.mxu0 0
        %11241 = vmatpush1.bf16.msra.mxu0 0
        %11242 = vmatprep.subr.bf16.mxu0 0
        %11243 = vmatpush1.bf16.msra.mxu0 0
        %11244 = vmatprep.mubr.bf16.mxu0 0
        %11245 = vmatmul.mubr.bf16.gmra.mrb[0].mxu0 %v6396
        %v11246 = vpop.f32.mrb[0].mxu0
        %v11247 = vadd.f32 %v7202, %v11246
        %v11248 = vpop.f32.mrb[0].mxu0
        %v11249 = vadd.f32 %v7206, %v11248
        %v11250 = vpop.f32.mrb[0].mxu0
        %v11251 = vpop.f32.mrb[0].mxu0
        %11252 = vdwg.mxu0
        %11253 = vmatprep.subr.bf16.mxu0 %v8973
        %11254 = vmatpush1.bf16.msra.mxu0 %v8972
        %11255 = vmatprep.subr.bf16.mxu0 %v9040
        %11256 = vmatpush1.bf16.msra.mxu0 %v9039
        %11257 = vmatprep.subr.bf16.mxu0 %v9107
        %11258 = vmatpush1.bf16.msra.mxu0 %v9106
        %11259 = vmatprep.subr.bf16.mxu0 %v9174
        %11260 = vmatpush1.bf16.msra.mxu0 %v9173
        %11261 = vmatprep.subr.bf16.mxu0 %v9241
        %11262 = vmatpush1.bf16.msra.mxu0 %v9240
        %11263 = vmatprep.subr.bf16.mxu0 %v9308
        %11264 = vmatpush1.bf16.msra.mxu0 %v9307
        %11265 = vmatprep.subr.bf16.mxu0 %v9375
        %11266 = vmatpush1.bf16.msra.mxu0 %v9374
        %11267 = vmatprep.subr.bf16.mxu0 %v9442
        %11268 = vmatpush1.bf16.msra.mxu0 %v9441
        %11269 = vmatprep.subr.bf16.mxu0 0
        %11270 = vmatpush1.bf16.msra.mxu0 0
        %11271 = vmatprep.subr.bf16.mxu0 0
        %11272 = vmatpush1.bf16.msra.mxu0 0
        %11273 = vmatprep.subr.bf16.mxu0 0
        %11274 = vmatpush1.bf16.msra.mxu0 0
        %11275 = vmatprep.subr.bf16.mxu0 0
        %11276 = vmatpush1.bf16.msra.mxu0 0
        %11277 = vmatprep.subr.bf16.mxu0 0
        %11278 = vmatpush1.bf16.msra.mxu0 0
        %11279 = vmatprep.subr.bf16.mxu0 0
        %11280 = vmatpush1.bf16.msra.mxu0 0
        %11281 = vmatprep.subr.bf16.mxu0 0
        %11282 = vmatpush1.bf16.msra.mxu0 0
        %11283 = vmatprep.subr.bf16.mxu0 0
        %11284 = vmatpush1.bf16.msra.mxu0 0
        %11285 = vmatprep.mubr.bf16.mxu0 0
        %11286 = vmatmul.mubr.bf16.gmra.mrb[0].mxu0 %v6396
        %v11287 = vpop.f32.mrb[0].mxu0
        %v11288 = vadd.f32 %v7210, %v11287
        %v11289 = vpop.f32.mrb[0].mxu0
        %v11290 = vadd.f32 %v7214, %v11289
        %v11291 = vpop.f32.mrb[0].mxu0
        %v11292 = vpop.f32.mrb[0].mxu0
        %11293 = vdwg.mxu0
        %11294 = vmatprep.subr.bf16.mxu0 %v8975
        %11295 = vmatpush1.bf16.msra.mxu0 %v8974
        %11296 = vmatprep.subr.bf16.mxu0 %v9042
        %11297 = vmatpush1.bf16.msra.mxu0 %v9041
        %11298 = vmatprep.subr.bf16.mxu0 %v9109
        %11299 = vmatpush1.bf16.msra.mxu0 %v9108
        %11300 = vmatprep.subr.bf16.mxu0 %v9176
        %11301 = vmatpush1.bf16.msra.mxu0 %v9175
        %11302 = vmatprep.subr.bf16.mxu0 %v9243
        %11303 = vmatpush1.bf16.msra.mxu0 %v9242
        %11304 = vmatprep.subr.bf16.mxu0 %v9310
        %11305 = vmatpush1.bf16.msra.mxu0 %v9309
        %11306 = vmatprep.subr.bf16.mxu0 %v9377
        %11307 = vmatpush1.bf16.msra.mxu0 %v9376
        %11308 = vmatprep.subr.bf16.mxu0 %v9444
        %11309 = vmatpush1.bf16.msra.mxu0 %v9443
        %11310 = vmatprep.subr.bf16.mxu0 0
        %11311 = vmatpush1.bf16.msra.mxu0 0
        %11312 = vmatprep.subr.bf16.mxu0 0
        %11313 = vmatpush1.bf16.msra.mxu0 0
        %11314 = vmatprep.subr.bf16.mxu0 0
        %11315 = vmatpush1.bf16.msra.mxu0 0
        %11316 = vmatprep.subr.bf16.mxu0 0
        %11317 = vmatpush1.bf16.msra.mxu0 0
        %11318 = vmatprep.subr.bf16.mxu0 0
        %11319 = vmatpush1.bf16.msra.mxu0 0
        %11320 = vmatprep.subr.bf16.mxu0 0
        %11321 = vmatpush1.bf16.msra.mxu0 0
        %11322 = vmatprep.subr.bf16.mxu0 0
        %11323 = vmatpush1.bf16.msra.mxu0 0
        %11324 = vmatprep.subr.bf16.mxu0 0
        %11325 = vmatpush1.bf16.msra.mxu0 0
        %11326 = vmatprep.mubr.bf16.mxu0 0
        %11327 = vmatmul.mubr.bf16.gmra.mrb[0].mxu0 %v6396
        %v11328 = vpop.f32.mrb[0].mxu0
        %v11329 = vadd.f32 %v7218, %v11328
        %v11330 = vpop.f32.mrb[0].mxu0
        %v11331 = vadd.f32 %v7222, %v11330
        %v11332 = vpop.f32.mrb[0].mxu0
        %v11333 = vpop.f32.mrb[0].mxu0
        %11334 = vdwg.mxu0
        %11335 = vmatprep.subr.bf16.mxu0 0
        %11336 = vmatpush1.bf16.msra.mxu0 %v8976
        %11337 = vmatprep.subr.bf16.mxu0 0
        %11338 = vmatpush1.bf16.msra.mxu0 %v9043
        %11339 = vmatprep.subr.bf16.mxu0 0
        %11340 = vmatpush1.bf16.msra.mxu0 %v9110
        %11341 = vmatprep.subr.bf16.mxu0 0
        %11342 = vmatpush1.bf16.msra.mxu0 %v9177
        %11343 = vmatprep.subr.bf16.mxu0 0
        %11344 = vmatpush1.bf16.msra.mxu0 %v9244
        %11345 = vmatprep.subr.bf16.mxu0 0
        %11346 = vmatpush1.bf16.msra.mxu0 %v9311
        %11347 = vmatprep.subr.bf16.mxu0 0
        %11348 = vmatpush1.bf16.msra.mxu0 %v9378
        %11349 = vmatprep.subr.bf16.mxu0 0
        %11350 = vmatpush1.bf16.msra.mxu0 %v9445
        %11351 = vmatprep.subr.bf16.mxu0 0
        %11352 = vmatpush1.bf16.msra.mxu0 0
        %11353 = vmatprep.subr.bf16.mxu0 0
        %11354 = vmatpush1.bf16.msra.mxu0 0
        %11355 = vmatprep.subr.bf16.mxu0 0
        %11356 = vmatpush1.bf16.msra.mxu0 0
        %11357 = vmatprep.subr.bf16.mxu0 0
        %11358 = vmatpush1.bf16.msra.mxu0 0
        %11359 = vmatprep.subr.bf16.mxu0 0
        %11360 = vmatpush1.bf16.msra.mxu0 0
        %11361 = vmatprep.subr.bf16.mxu0 0
        %11362 = vmatpush1.bf16.msra.mxu0 0
        %11363 = vmatprep.subr.bf16.mxu0 0
        %11364 = vmatpush1.bf16.msra.mxu0 0
        %11365 = vmatprep.subr.bf16.mxu0 0
        %11366 = vmatpush1.bf16.msra.mxu0 0
        %11367 = vmatprep.mubr.bf16.mxu0 0
        %11368 = vmatmul.mubr.bf16.gmra.mrb[0].mxu0 %v6396
        %v11369 = vpop.f32.mrb[0].mxu0
        %v11370 = vadd.f32 %v7226, %v11369
        %v11371 = vpop.f32.mrb[0].mxu0
        %v11372 = vpop.f32.mrb[0].mxu0
        %v11373 = vpop.f32.mrb[0].mxu0
        %11374 = vdwg.mxu0
        %v11375 = vmax.f32 %v10017, 0.0
        %v11376 = vmax.f32 %v10019, 0.0
        %v11377 = vmax.f32 %v10058, 0.0
        %v11378 = vmax.f32 %v10060, 0.0
        %v11379 = vmax.f32 %v10099, 0.0
        %v11380 = vmax.f32 %v10101, 0.0
        %v11381 = vmax.f32 %v10140, 0.0
        %v11382 = vmax.f32 %v10142, 0.0
        %v11383 = vmax.f32 %v10181, 0.0
        %v11384 = vmax.f32 %v10183, 0.0
        %v11385 = vmax.f32 %v10222, 0.0
        %v11386 = vmax.f32 %v10224, 0.0
        %v11387 = vmax.f32 %v10263, 0.0
        %v11388 = vmax.f32 %v10265, 0.0
        %v11389 = vmax.f32 %v10304, 0.0
        %v11390 = vmax.f32 %v10306, 0.0
        %v11391 = vmax.f32 %v10345, 0.0
        %v11392 = vmax.f32 %v10347, 0.0
        %v11393 = vmax.f32 %v10386, 0.0
        %v11394 = vmax.f32 %v10388, 0.0
        %v11395 = vmax.f32 %v10427, 0.0
        %v11396 = vmax.f32 %v10429, 0.0
        %v11397 = vmax.f32 %v10468, 0.0
        %v11398 = vmax.f32 %v10470, 0.0
        %v11399 = vmax.f32 %v10509, 0.0
        %v11400 = vmax.f32 %v10511, 0.0
        %v11401 = vmax.f32 %v10550, 0.0
        %v11402 = vmax.f32 %v10552, 0.0
        %v11403 = vmax.f32 %v10591, 0.0
        %v11404 = vmax.f32 %v10593, 0.0
        %v11405 = vmax.f32 %v10632, 0.0
        %v11406 = vmax.f32 %v10634, 0.0
        %v11407 = vmax.f32 %v10673, 0.0
        %v11408 = vmax.f32 %v10675, 0.0
        %v11409 = vmax.f32 %v10714, 0.0
        %v11410 = vmax.f32 %v10716, 0.0
        %v11411 = vmax.f32 %v10755, 0.0
        %v11412 = vmax.f32 %v10757, 0.0
        %v11413 = vmax.f32 %v10796, 0.0
        %v11414 = vmax.f32 %v10798, 0.0
        %v11415 = vmax.f32 %v10837, 0.0
        %v11416 = vmax.f32 %v10839, 0.0
        %v11417 = vmax.f32 %v10878, 0.0
        %v11418 = vmax.f32 %v10880, 0.0
        %v11419 = vmax.f32 %v10919, 0.0
        %v11420 = vmax.f32 %v10921, 0.0
        %v11421 = vmax.f32 %v10960, 0.0
        %v11422 = vmax.f32 %v10962, 0.0
        %v11423 = vmax.f32 %v11001, 0.0
        %v11424 = vmax.f32 %v11003, 0.0
        %v11425 = vmax.f32 %v11042, 0.0
        %v11426 = vmax.f32 %v11044, 0.0
        %v11427 = vmax.f32 %v11083, 0.0
        %v11428 = vmax.f32 %v11085, 0.0
        %v11429 = vmax.f32 %v11124, 0.0
        %v11430 = vmax.f32 %v11126, 0.0
        %v11431 = vmax.f32 %v11165, 0.0
        %v11432 = vmax.f32 %v11167, 0.0
        %v11433 = vmax.f32 %v11206, 0.0
        %v11434 = vmax.f32 %v11208, 0.0
        %v11435 = vmax.f32 %v11247, 0.0
        %v11436 = vmax.f32 %v11249, 0.0
        %v11437 = vmax.f32 %v11288, 0.0
        %v11438 = vmax.f32 %v11290, 0.0
        %v11439 = vmax.f32 %v11329, 0.0
        %v11440 = vmax.f32 %v11331, 0.0
        %v11441 = vmax.f32 %v11370, 0.0
        %s11442 = sshra.s32 %s398, 7
        %s11443 = sand.u32 %s398, 127
        %s11444 = smul.addr %s11442, 8
        %s11445 = scalar_lea.vmem %s7, %s11444
        %v11446 = vld [vmem:[%s11445] sm:$0xff]
        %v11447 = vld [vmem:[%s11445 + $0x8] sm:$0xff]
        %v11448 = vld [vmem:[%s11445 + $0x10] sm:$0xff]
        %v11449 = vld [vmem:[%s11445 + $0x18] sm:$0xff]
        %v11450 = vld [vmem:[%s11445 + $0x20] sm:$0xff]
        %v11451 = vld [vmem:[%s11445 + $0x28] sm:$0xff]
        %v11452 = vld [vmem:[%s11445 + $0x30] sm:$0xff]
        %v11453 = vld [vmem:[%s11445 + $0x38] sm:$0xff]
        %v11454 = vld [vmem:[%s11445 + $0x40] sm:$0xff]
        %v11455 = vld [vmem:[%s11445 + $0x48] sm:$0xff]
        %v11456 = vld [vmem:[%s11445 + $0x50] sm:$0xff]
        %v11457 = vld [vmem:[%s11445 + $0x58] sm:$0xff]
        %v11458 = vld [vmem:[%s11445 + $0x60] sm:$0xff]
        %v11459 = vld [vmem:[%s11445 + $0x68] sm:$0xff]
        %v11460 = vld [vmem:[%s11445 + $0x70] sm:$0xff]
        %v11461 = vld [vmem:[%s11445 + $0x78] sm:$0xff]
        %v11462 = vld [vmem:[%s11445 + $0x80] sm:$0xff]
        %v11463 = vld [vmem:[%s11445 + $0x88] sm:$0xff]
        %v11464 = vld [vmem:[%s11445 + $0x90] sm:$0xff]
        %v11465 = vld [vmem:[%s11445 + $0x98] sm:$0xff]
        %v11466 = vld [vmem:[%s11445 + $0xa0] sm:$0xff]
        %v11467 = vld [vmem:[%s11445 + $0xa8] sm:$0xff]
        %v11468 = vld [vmem:[%s11445 + $0xb0] sm:$0xff]
        %v11469 = vld [vmem:[%s11445 + $0xb8] sm:$0xff]
        %v11470 = vld [vmem:[%s11445 + $0xc0] sm:$0xff]
        %v11471 = vld [vmem:[%s11445 + $0xc8] sm:$0xff]
        %v11472 = vld [vmem:[%s11445 + $0xd0] sm:$0xff]
        %v11473 = vld [vmem:[%s11445 + $0xd8] sm:$0xff]
        %v11474 = vld [vmem:[%s11445 + $0xe0] sm:$0xff]
        %v11475 = vld [vmem:[%s11445 + $0xe8] sm:$0xff]
        %v11476 = vld [vmem:[%s11445 + $0xf0] sm:$0xff]
        %v11477 = vld [vmem:[%s11445 + $0xf8] sm:$0xff]
        %v11478 = vld [vmem:[%s11445 + $0x100] sm:$0xff]
        %v11479 = vld [vmem:[%s11445 + $0x108] sm:$0xff]
        %v11480 = vld [vmem:[%s11445 + $0x110] sm:$0xff]
        %v11481 = vld [vmem:[%s11445 + $0x118] sm:$0xff]
        %v11482 = vld [vmem:[%s11445 + $0x120] sm:$0xff]
        %v11483 = vld [vmem:[%s11445 + $0x128] sm:$0xff]
        %v11484 = vld [vmem:[%s11445 + $0x130] sm:$0xff]
        %v11485 = vld [vmem:[%s11445 + $0x138] sm:$0xff]
        %v11486 = vld [vmem:[%s11445 + $0x140] sm:$0xff]
        %v11487 = vld [vmem:[%s11445 + $0x148] sm:$0xff]
        %v11488 = vld [vmem:[%s11445 + $0x150] sm:$0xff]
        %v11489 = vld [vmem:[%s11445 + $0x158] sm:$0xff]
        %v11490 = vld [vmem:[%s11445 + $0x160] sm:$0xff]
        %v11491 = vld [vmem:[%s11445 + $0x168] sm:$0xff]
        %v11492 = vld [vmem:[%s11445 + $0x170] sm:$0xff]
        %v11493 = vld [vmem:[%s11445 + $0x178] sm:$0xff]
        %v11494 = vld [vmem:[%s11445 + $0x180] sm:$0xff]
        %v11495 = vld [vmem:[%s11445 + $0x188] sm:$0xff]
        %v11496 = vld [vmem:[%s11445 + $0x190] sm:$0xff]
        %v11497 = vld [vmem:[%s11445 + $0x198] sm:$0xff]
        %v11498 = vld [vmem:[%s11445 + $0x1a0] sm:$0xff]
        %v11499 = vld [vmem:[%s11445 + $0x1a8] sm:$0xff]
        %v11500 = vld [vmem:[%s11445 + $0x1b0] sm:$0xff]
        %v11501 = vld [vmem:[%s11445 + $0x1b8] sm:$0xff]
        %v11502 = vld [vmem:[%s11445 + $0x1c0] sm:$0xff]
        %v11503 = vld [vmem:[%s11445 + $0x1c8] sm:$0xff]
        %v11504 = vld [vmem:[%s11445 + $0x1d0] sm:$0xff]
        %v11505 = vld [vmem:[%s11445 + $0x1d8] sm:$0xff]
        %v11506 = vld [vmem:[%s11445 + $0x1e0] sm:$0xff]
        %v11507 = vld [vmem:[%s11445 + $0x1e8] sm:$0xff]
        %v11508 = vld [vmem:[%s11445 + $0x1f0] sm:$0xff]
        %v11509 = vld [vmem:[%s11445 + $0x1f8] sm:$0xff]
        %v11510 = vld [vmem:[%s11445 + $0x200] sm:$0xff]
        %v11511 = vld [vmem:[%s11445 + $0x208] sm:$0xff]
        %v11512 = vld [vmem:[%s11445 + $0x210] sm:$0xff]
        %v11513 = vadd.f32 %v11375, %v11446
        %v11514 = vadd.f32 %v11376, %v11447
        %v11515 = vadd.f32 %v11377, %v11448
        %v11516 = vadd.f32 %v11378, %v11449
        %v11517 = vadd.f32 %v11379, %v11450
        %v11518 = vadd.f32 %v11380, %v11451
        %v11519 = vadd.f32 %v11381, %v11452
        %v11520 = vadd.f32 %v11382, %v11453
        %v11521 = vadd.f32 %v11383, %v11454
        %v11522 = vadd.f32 %v11384, %v11455
        %v11523 = vadd.f32 %v11385, %v11456
        %v11524 = vadd.f32 %v11386, %v11457
        %v11525 = vadd.f32 %v11387, %v11458
        %v11526 = vadd.f32 %v11388, %v11459
        %v11527 = vadd.f32 %v11389, %v11460
        %v11528 = vadd.f32 %v11390, %v11461
        %v11529 = vadd.f32 %v11391, %v11462
        %v11530 = vadd.f32 %v11392, %v11463
        %v11531 = vadd.f32 %v11393, %v11464
        %v11532 = vadd.f32 %v11394, %v11465
        %v11533 = vadd.f32 %v11395, %v11466
        %v11534 = vadd.f32 %v11396, %v11467
        %v11535 = vadd.f32 %v11397, %v11468
        %v11536 = vadd.f32 %v11398, %v11469
        %v11537 = vadd.f32 %v11399, %v11470
        %v11538 = vadd.f32 %v11400, %v11471
        %v11539 = vadd.f32 %v11401, %v11472
        %v11540 = vadd.f32 %v11402, %v11473
        %v11541 = vadd.f32 %v11403, %v11474
        %v11542 = vadd.f32 %v11404, %v11475
        %v11543 = vadd.f32 %v11405, %v11476
        %v11544 = vadd.f32 %v11406, %v11477
        %v11545 = vadd.f32 %v11407, %v11478
        %v11546 = vadd.f32 %v11408, %v11479
        %v11547 = vadd.f32 %v11409, %v11480
        %v11548 = vadd.f32 %v11410, %v11481
        %v11549 = vadd.f32 %v11411, %v11482
        %v11550 = vadd.f32 %v11412, %v11483
        %v11551 = vadd.f32 %v11413, %v11484
        %v11552 = vadd.f32 %v11414, %v11485
        %v11553 = vadd.f32 %v11415, %v11486
        %v11554 = vadd.f32 %v11416, %v11487
        %v11555 = vadd.f32 %v11417, %v11488
        %v11556 = vadd.f32 %v11418, %v11489
        %v11557 = vadd.f32 %v11419, %v11490
        %v11558 = vadd.f32 %v11420, %v11491
        %v11559 = vadd.f32 %v11421, %v11492
        %v11560 = vadd.f32 %v11422, %v11493
        %v11561 = vadd.f32 %v11423, %v11494
        %v11562 = vadd.f32 %v11424, %v11495
        %v11563 = vadd.f32 %v11425, %v11496
        %v11564 = vadd.f32 %v11426, %v11497
        %v11565 = vadd.f32 %v11427, %v11498
        %v11566 = vadd.f32 %v11428, %v11499
        %v11567 = vadd.f32 %v11429, %v11500
        %v11568 = vadd.f32 %v11430, %v11501
        %v11569 = vadd.f32 %v11431, %v11502
        %v11570 = vadd.f32 %v11432, %v11503
        %v11571 = vadd.f32 %v11433, %v11504
        %v11572 = vadd.f32 %v11434, %v11505
        %v11573 = vadd.f32 %v11435, %v11506
        %v11574 = vadd.f32 %v11436, %v11507
        %v11575 = vadd.f32 %v11437, %v11508
        %v11576 = vadd.f32 %v11438, %v11509
        %v11577 = vadd.f32 %v11439, %v11510
        %v11578 = vadd.f32 %v11440, %v11511
        %v11579 = vadd.f32 %v11441, %v11512
        %11580 = vst [vmem:[%s11445] sm:$0xff] %v11513
        %11581 = vst [vmem:[%s11445 + $0x8] sm:$0xff] %v11514
        %11582 = vst [vmem:[%s11445 + $0x10] sm:$0xff] %v11515
        %11583 = vst [vmem:[%s11445 + $0x18] sm:$0xff] %v11516
        %11584 = vst [vmem:[%s11445 + $0x20] sm:$0xff] %v11517
        %11585 = vst [vmem:[%s11445 + $0x28] sm:$0xff] %v11518
        %11586 = vst [vmem:[%s11445 + $0x30] sm:$0xff] %v11519
        %11587 = vst [vmem:[%s11445 + $0x38] sm:$0xff] %v11520
        %11588 = vst [vmem:[%s11445 + $0x40] sm:$0xff] %v11521
        %11589 = vst [vmem:[%s11445 + $0x48] sm:$0xff] %v11522
        %11590 = vst [vmem:[%s11445 + $0x50] sm:$0xff] %v11523
        %11591 = vst [vmem:[%s11445 + $0x58] sm:$0xff] %v11524
        %11592 = vst [vmem:[%s11445 + $0x60] sm:$0xff] %v11525
        %11593 = vst [vmem:[%s11445 + $0x68] sm:$0xff] %v11526
        %11594 = vst [vmem:[%s11445 + $0x70] sm:$0xff] %v11527
        %11595 = vst [vmem:[%s11445 + $0x78] sm:$0xff] %v11528
        %11596 = vst [vmem:[%s11445 + $0x80] sm:$0xff] %v11529
        %11597 = vst [vmem:[%s11445 + $0x88] sm:$0xff] %v11530
        %11598 = vst [vmem:[%s11445 + $0x90] sm:$0xff] %v11531
        %11599 = vst [vmem:[%s11445 + $0x98] sm:$0xff] %v11532
        %11600 = vst [vmem:[%s11445 + $0xa0] sm:$0xff] %v11533
        %11601 = vst [vmem:[%s11445 + $0xa8] sm:$0xff] %v11534
        %11602 = vst [vmem:[%s11445 + $0xb0] sm:$0xff] %v11535
        %11603 = vst [vmem:[%s11445 + $0xb8] sm:$0xff] %v11536
        %11604 = vst [vmem:[%s11445 + $0xc0] sm:$0xff] %v11537
        %11605 = vst [vmem:[%s11445 + $0xc8] sm:$0xff] %v11538
        %11606 = vst [vmem:[%s11445 + $0xd0] sm:$0xff] %v11539
        %11607 = vst [vmem:[%s11445 + $0xd8] sm:$0xff] %v11540
        %11608 = vst [vmem:[%s11445 + $0xe0] sm:$0xff] %v11541
        %11609 = vst [vmem:[%s11445 + $0xe8] sm:$0xff] %v11542
        %11610 = vst [vmem:[%s11445 + $0xf0] sm:$0xff] %v11543
        %11611 = vst [vmem:[%s11445 + $0xf8] sm:$0xff] %v11544
        %11612 = vst [vmem:[%s11445 + $0x100] sm:$0xff] %v11545
        %11613 = vst [vmem:[%s11445 + $0x108] sm:$0xff] %v11546
        %11614 = vst [vmem:[%s11445 + $0x110] sm:$0xff] %v11547
        %11615 = vst [vmem:[%s11445 + $0x118] sm:$0xff] %v11548
        %11616 = vst [vmem:[%s11445 + $0x120] sm:$0xff] %v11549
        %11617 = vst [vmem:[%s11445 + $0x128] sm:$0xff] %v11550
        %11618 = vst [vmem:[%s11445 + $0x130] sm:$0xff] %v11551
        %11619 = vst [vmem:[%s11445 + $0x138] sm:$0xff] %v11552
        %11620 = vst [vmem:[%s11445 + $0x140] sm:$0xff] %v11553
        %11621 = vst [vmem:[%s11445 + $0x148] sm:$0xff] %v11554
        %11622 = vst [vmem:[%s11445 + $0x150] sm:$0xff] %v11555
        %11623 = vst [vmem:[%s11445 + $0x158] sm:$0xff] %v11556
        %11624 = vst [vmem:[%s11445 + $0x160] sm:$0xff] %v11557
        %11625 = vst [vmem:[%s11445 + $0x168] sm:$0xff] %v11558
        %11626 = vst [vmem:[%s11445 + $0x170] sm:$0xff] %v11559
        %11627 = vst [vmem:[%s11445 + $0x178] sm:$0xff] %v11560
        %11628 = vst [vmem:[%s11445 + $0x180] sm:$0xff] %v11561
        %11629 = vst [vmem:[%s11445 + $0x188] sm:$0xff] %v11562
        %11630 = vst [vmem:[%s11445 + $0x190] sm:$0xff] %v11563
        %11631 = vst [vmem:[%s11445 + $0x198] sm:$0xff] %v11564
        %11632 = vst [vmem:[%s11445 + $0x1a0] sm:$0xff] %v11565
        %11633 = vst [vmem:[%s11445 + $0x1a8] sm:$0xff] %v11566
        %11634 = vst [vmem:[%s11445 + $0x1b0] sm:$0xff] %v11567
        %11635 = vst [vmem:[%s11445 + $0x1b8] sm:$0xff] %v11568
        %11636 = vst [vmem:[%s11445 + $0x1c0] sm:$0xff] %v11569
        %11637 = vst [vmem:[%s11445 + $0x1c8] sm:$0xff] %v11570
        %11638 = vst [vmem:[%s11445 + $0x1d0] sm:$0xff] %v11571
        %11639 = vst [vmem:[%s11445 + $0x1d8] sm:$0xff] %v11572
        %11640 = vst [vmem:[%s11445 + $0x1e0] sm:$0xff] %v11573
        %11641 = vst [vmem:[%s11445 + $0x1e8] sm:$0xff] %v11574
        %11642 = vst [vmem:[%s11445 + $0x1f0] sm:$0xff] %v11575
        %11643 = vst [vmem:[%s11445 + $0x1f8] sm:$0xff] %v11576
        %11644 = vst [vmem:[%s11445 + $0x200] sm:$0xff] %v11577
        %11645 = vst [vmem:[%s11445 + $0x208] sm:$0xff] %v11578
        %11646 = vst [vmem:[%s11445 + $0x210] sm:$0xff] %v11579
      $region64: #{prn_forward.1} parent=47 // pred_fallthru
        _
      %p11647 = pnand %p6391, %p400
      %p11648 = pneg %p11647
      // Predicated region
      $region65: #{prn_forward.1} parent=47 // pred_check
        _
      $region66: #{prn_forward.1} parent=47 // pred_check_branch
        %11650 = sbr.rel (%p11647) target = $region68
      $region67: #{prn_forward.1} parent=47 // pred_region
        %v11651 = vld [vmem:[%s7] sm:$0xff]
        %v11652 = vld [vmem:[%s7 + $0x8] sm:$0xff]
        %v11653 = vld [vmem:[%s7 + $0x10] sm:$0xff]
        %v11654 = vld [vmem:[%s7 + $0x18] sm:$0xff]
        %v11655 = vld [vmem:[%s7 + $0x20] sm:$0xff]
        %v11656 = vld [vmem:[%s7 + $0x28] sm:$0xff]
        %v11657 = vld [vmem:[%s7 + $0x30] sm:$0xff]
        %v11658 = vld [vmem:[%s7 + $0x38] sm:$0xff]
        %v11659 = vld [vmem:[%s7 + $0x40] sm:$0xff]
        %v11660 = vld [vmem:[%s7 + $0x48] sm:$0xff]
        %v11661 = vld [vmem:[%s7 + $0x50] sm:$0xff]
        %v11662 = vld [vmem:[%s7 + $0x58] sm:$0xff]
        %v11663 = vld [vmem:[%s7 + $0x60] sm:$0xff]
        %v11664 = vld [vmem:[%s7 + $0x68] sm:$0xff]
        %v11665 = vld [vmem:[%s7 + $0x70] sm:$0xff]
        %v11666 = vld [vmem:[%s7 + $0x78] sm:$0xff]
        %v11667 = vld [vmem:[%s7 + $0x80] sm:$0xff]
        %v11668 = vld [vmem:[%s7 + $0x88] sm:$0xff]
        %v11669 = vld [vmem:[%s7 + $0x90] sm:$0xff]
        %v11670 = vld [vmem:[%s7 + $0x98] sm:$0xff]
        %v11671 = vld [vmem:[%s7 + $0xa0] sm:$0xff]
        %v11672 = vld [vmem:[%s7 + $0xa8] sm:$0xff]
        %v11673 = vld [vmem:[%s7 + $0xb0] sm:$0xff]
        %v11674 = vld [vmem:[%s7 + $0xb8] sm:$0xff]
        %v11675 = vld [vmem:[%s7 + $0xc0] sm:$0xff]
        %v11676 = vld [vmem:[%s7 + $0xc8] sm:$0xff]
        %v11677 = vld [vmem:[%s7 + $0xd0] sm:$0xff]
        %v11678 = vld [vmem:[%s7 + $0xd8] sm:$0xff]
        %v11679 = vld [vmem:[%s7 + $0xe0] sm:$0xff]
        %v11680 = vld [vmem:[%s7 + $0xe8] sm:$0xff]
        %v11681 = vld [vmem:[%s7 + $0xf0] sm:$0xff]
        %v11682 = vld [vmem:[%s7 + $0xf8] sm:$0xff]
        %v11683 = vld [vmem:[%s7 + $0x100] sm:$0xff]
        %v11684 = vld [vmem:[%s7 + $0x108] sm:$0xff]
        %v11685 = vld [vmem:[%s7 + $0x110] sm:$0xff]
        %v11686 = vld [vmem:[%s7 + $0x118] sm:$0xff]
        %v11687 = vld [vmem:[%s7 + $0x120] sm:$0xff]
        %v11688 = vld [vmem:[%s7 + $0x128] sm:$0xff]
        %v11689 = vld [vmem:[%s7 + $0x130] sm:$0xff]
        %v11690 = vld [vmem:[%s7 + $0x138] sm:$0xff]
        %v11691 = vld [vmem:[%s7 + $0x140] sm:$0xff]
        %v11692 = vld [vmem:[%s7 + $0x148] sm:$0xff]
        %v11693 = vld [vmem:[%s7 + $0x150] sm:$0xff]
        %v11694 = vld [vmem:[%s7 + $0x158] sm:$0xff]
        %v11695 = vld [vmem:[%s7 + $0x160] sm:$0xff]
        %v11696 = vld [vmem:[%s7 + $0x168] sm:$0xff]
        %v11697 = vld [vmem:[%s7 + $0x170] sm:$0xff]
        %v11698 = vld [vmem:[%s7 + $0x178] sm:$0xff]
        %v11699 = vld [vmem:[%s7 + $0x180] sm:$0xff]
        %v11700 = vld [vmem:[%s7 + $0x188] sm:$0xff]
        %v11701 = vld [vmem:[%s7 + $0x190] sm:$0xff]
        %v11702 = vld [vmem:[%s7 + $0x198] sm:$0xff]
        %v11703 = vld [vmem:[%s7 + $0x1a0] sm:$0xff]
        %v11704 = vld [vmem:[%s7 + $0x1a8] sm:$0xff]
        %v11705 = vld [vmem:[%s7 + $0x1b0] sm:$0xff]
        %v11706 = vld [vmem:[%s7 + $0x1b8] sm:$0xff]
        %v11707 = vld [vmem:[%s7 + $0x1c0] sm:$0xff]
        %v11708 = vld [vmem:[%s7 + $0x1c8] sm:$0xff]
        %v11709 = vld [vmem:[%s7 + $0x1d0] sm:$0xff]
        %v11710 = vld [vmem:[%s7 + $0x1d8] sm:$0xff]
        %v11711 = vld [vmem:[%s7 + $0x1e0] sm:$0xff]
        %v11712 = vld [vmem:[%s7 + $0x1e8] sm:$0xff]
        %v11713 = vld [vmem:[%s7 + $0x1f0] sm:$0xff]
        %v11714 = vld [vmem:[%s7 + $0x1f8] sm:$0xff]
        %v11715 = vld [vmem:[%s7 + $0x200] sm:$0xff]
        %v11716 = vld [vmem:[%s7 + $0x208] sm:$0xff]
        %v11717 = vld [vmem:[%s7 + $0x210] sm:$0xff]
        %v11718 = vmax.f32 %v11651, %v11655
        %v11719 = vmax.f32 %v11652, %v11656
        %v11720 = vmax.f32 %v11653, %v11657
        %v11721 = vmax.f32 %v11654, %v11658
        %v11722 = vmax.f32 %v11718, %v11659
        %v11723 = vmax.f32 %v11719, %v11660
        %v11724 = vmax.f32 %v11720, %v11661
        %v11725 = vmax.f32 %v11721, %v11662
        %v11726 = vmax.f32 %v11722, %v11663
        %v11727 = vmax.f32 %v11723, %v11664
        %v11728 = vmax.f32 %v11724, %v11665
        %v11729 = vmax.f32 %v11725, %v11666
        %v11730 = vmax.f32 %v11726, %v11667
        %v11731 = vmax.f32 %v11727, %v11668
        %v11732 = vmax.f32 %v11728, %v11669
        %v11733 = vmax.f32 %v11729, %v11670
        %v11734 = vmax.f32 %v11730, %v11671
        %v11735 = vmax.f32 %v11731, %v11672
        %v11736 = vmax.f32 %v11732, %v11673
        %v11737 = vmax.f32 %v11733, %v11674
        %v11738 = vmax.f32 %v11734, %v11675
        %v11739 = vmax.f32 %v11735, %v11676
        %v11740 = vmax.f32 %v11736, %v11677
        %v11741 = vmax.f32 %v11737, %v11678
        %v11742 = vmax.f32 %v11738, %v11679
        %v11743 = vmax.f32 %v11739, %v11680
        %v11744 = vmax.f32 %v11740, %v11681
        %v11745 = vmax.f32 %v11741, %v11682
        %v11746 = vmax.f32 %v11742, %v11683
        %v11747 = vmax.f32 %v11743, %v11684
        %v11748 = vmax.f32 %v11744, %v11685
        %v11749 = vmax.f32 %v11745, %v11686
        %v11750 = vmax.f32 %v11746, %v11687
        %v11751 = vmax.f32 %v11747, %v11688
        %v11752 = vmax.f32 %v11748, %v11689
        %v11753 = vmax.f32 %v11749, %v11690
        %v11754 = vmax.f32 %v11750, %v11691
        %v11755 = vmax.f32 %v11751, %v11692
        %v11756 = vmax.f32 %v11752, %v11693
        %v11757 = vmax.f32 %v11753, %v11694
        %v11758 = vmax.f32 %v11754, %v11695
        %v11759 = vmax.f32 %v11755, %v11696
        %v11760 = vmax.f32 %v11756, %v11697
        %v11761 = vmax.f32 %v11757, %v11698
        %v11762 = vmax.f32 %v11758, %v11699
        %v11763 = vmax.f32 %v11759, %v11700
        %v11764 = vmax.f32 %v11760, %v11701
        %v11765 = vmax.f32 %v11761, %v11702
        %v11766 = vmax.f32 %v11762, %v11703
        %v11767 = vmax.f32 %v11763, %v11704
        %v11768 = vmax.f32 %v11764, %v11705
        %v11769 = vmax.f32 %v11765, %v11706
        %v11770 = vmax.f32 %v11766, %v11707
        %v11771 = vmax.f32 %v11767, %v11708
        %v11772 = vmax.f32 %v11768, %v11709
        %v11773 = vmax.f32 %v11769, %v11710
        %v11774 = vmax.f32 %v11770, %v11711
        %v11775 = vmax.f32 %v11771, %v11712
        %v11776 = vmax.f32 %v11772, %v11713
        %v11777 = vmax.f32 %v11773, %v11714
        %v11778 = vmax.f32 %v11774, %v11715
        %v11779 = vmax.f32 %v11775, %v11716
        %v11780 = vmax.f32 %v11776, %v11717
        %v11781 = vmax.f32 %v11778, %v11779
        %v11782 = vmax.f32 %v11780, %v11777
        %v11783 = vmax.f32 %v11781, %v11782
        %11784 = vmax.xlane.f32.xlu0 %v11783
        %v11785 = vpop.xlane.xlu0 %11784
        %v11786 = vsub.f32 %v11651, %v11785
        %v11787 = vsub.f32 %v11652, %v11785
        %v11788 = vsub.f32 %v11653, %v11785
        %v11789 = vsub.f32 %v11654, %v11785
        %v11790 = vsub.f32 %v11655, %v11785
        %v11791 = vsub.f32 %v11656, %v11785
        %v11792 = vsub.f32 %v11657, %v11785
        %v11793 = vsub.f32 %v11658, %v11785
        %v11794 = vsub.f32 %v11659, %v11785
        %v11795 = vsub.f32 %v11660, %v11785
        %v11796 = vsub.f32 %v11661, %v11785
        %v11797 = vsub.f32 %v11662, %v11785
        %v11798 = vsub.f32 %v11663, %v11785
        %v11799 = vsub.f32 %v11664, %v11785
        %v11800 = vsub.f32 %v11665, %v11785
        %v11801 = vsub.f32 %v11666, %v11785
        %v11802 = vsub.f32 %v11667, %v11785
        %v11803 = vsub.f32 %v11668, %v11785
        %v11804 = vsub.f32 %v11669, %v11785
        %v11805 = vsub.f32 %v11670, %v11785
        %v11806 = vsub.f32 %v11671, %v11785
        %v11807 = vsub.f32 %v11672, %v11785
        %v11808 = vsub.f32 %v11673, %v11785
        %v11809 = vsub.f32 %v11674, %v11785
        %v11810 = vsub.f32 %v11675, %v11785
        %v11811 = vsub.f32 %v11676, %v11785
        %v11812 = vsub.f32 %v11677, %v11785
        %v11813 = vsub.f32 %v11678, %v11785
        %v11814 = vsub.f32 %v11679, %v11785
        %v11815 = vsub.f32 %v11680, %v11785
        %v11816 = vsub.f32 %v11681, %v11785
        %v11817 = vsub.f32 %v11682, %v11785
        %v11818 = vsub.f32 %v11683, %v11785
        %v11819 = vsub.f32 %v11684, %v11785
        %v11820 = vsub.f32 %v11685, %v11785
        %v11821 = vsub.f32 %v11686, %v11785
        %v11822 = vsub.f32 %v11687, %v11785
        %v11823 = vsub.f32 %v11688, %v11785
        %v11824 = vsub.f32 %v11689, %v11785
        %v11825 = vsub.f32 %v11690, %v11785
        %v11826 = vsub.f32 %v11691, %v11785
        %v11827 = vsub.f32 %v11692, %v11785
        %v11828 = vsub.f32 %v11693, %v11785
        %v11829 = vsub.f32 %v11694, %v11785
        %v11830 = vsub.f32 %v11695, %v11785
        %v11831 = vsub.f32 %v11696, %v11785
        %v11832 = vsub.f32 %v11697, %v11785
        %v11833 = vsub.f32 %v11698, %v11785
        %v11834 = vsub.f32 %v11699, %v11785
        %v11835 = vsub.f32 %v11700, %v11785
        %v11836 = vsub.f32 %v11701, %v11785
        %v11837 = vsub.f32 %v11702, %v11785
        %v11838 = vsub.f32 %v11703, %v11785
        %v11839 = vsub.f32 %v11704, %v11785
        %v11840 = vsub.f32 %v11705, %v11785
        %v11841 = vsub.f32 %v11706, %v11785
        %v11842 = vsub.f32 %v11707, %v11785
        %v11843 = vsub.f32 %v11708, %v11785
        %v11844 = vsub.f32 %v11709, %v11785
        %v11845 = vsub.f32 %v11710, %v11785
        %v11846 = vsub.f32 %v11711, %v11785
        %v11847 = vsub.f32 %v11712, %v11785
        %v11848 = vsub.f32 %v11713, %v11785
        %v11849 = vsub.f32 %v11714, %v11785
        %v11850 = vsub.f32 %v11715, %v11785
        %v11851 = vsub.f32 %v11716, %v11785
        %v11852 = vsub.f32 %v11717, %v11785
        %v11853 = vmul.f32 %v11786, 1.442695
        %v11854 = vpow.pop %v11853
        %v11855 = vmul.f32 %v11787, 1.442695
        %v11856 = vpow.pop %v11855
        %v11857 = vmul.f32 %v11788, 1.442695
        %v11858 = vpow.pop %v11857
        %v11859 = vmul.f32 %v11789, 1.442695
        %v11860 = vpow.pop %v11859
        %v11861 = vmul.f32 %v11790, 1.442695
        %v11862 = vpow.pop %v11861
        %v11863 = vmul.f32 %v11791, 1.442695
        %v11864 = vpow.pop %v11863
        %v11865 = vmul.f32 %v11792, 1.442695
        %v11866 = vpow.pop %v11865
        %v11867 = vmul.f32 %v11793, 1.442695
        %v11868 = vpow.pop %v11867
        %v11869 = vmul.f32 %v11794, 1.442695
        %v11870 = vpow.pop %v11869
        %v11871 = vmul.f32 %v11795, 1.442695
        %v11872 = vpow.pop %v11871
        %v11873 = vmul.f32 %v11796, 1.442695
        %v11874 = vpow.pop %v11873
        %v11875 = vmul.f32 %v11797, 1.442695
        %v11876 = vpow.pop %v11875
        %v11877 = vmul.f32 %v11798, 1.442695
        %v11878 = vpow.pop %v11877
        %v11879 = vmul.f32 %v11799, 1.442695
        %v11880 = vpow.pop %v11879
        %v11881 = vmul.f32 %v11800, 1.442695
        %v11882 = vpow.pop %v11881
        %v11883 = vmul.f32 %v11801, 1.442695
        %v11884 = vpow.pop %v11883
        %v11885 = vmul.f32 %v11802, 1.442695
        %v11886 = vpow.pop %v11885
        %v11887 = vmul.f32 %v11803, 1.442695
        %v11888 = vpow.pop %v11887
        %v11889 = vmul.f32 %v11804, 1.442695
        %v11890 = vpow.pop %v11889
        %v11891 = vmul.f32 %v11805, 1.442695
        %v11892 = vpow.pop %v11891
        %v11893 = vmul.f32 %v11806, 1.442695
        %v11894 = vpow.pop %v11893
        %v11895 = vmul.f32 %v11807, 1.442695
        %v11896 = vpow.pop %v11895
        %v11897 = vmul.f32 %v11808, 1.442695
        %v11898 = vpow.pop %v11897
        %v11899 = vmul.f32 %v11809, 1.442695
        %v11900 = vpow.pop %v11899
        %v11901 = vmul.f32 %v11810, 1.442695
        %v11902 = vpow.pop %v11901
        %v11903 = vmul.f32 %v11811, 1.442695
        %v11904 = vpow.pop %v11903
        %v11905 = vmul.f32 %v11812, 1.442695
        %v11906 = vpow.pop %v11905
        %v11907 = vmul.f32 %v11813, 1.442695
        %v11908 = vpow.pop %v11907
        %v11909 = vmul.f32 %v11814, 1.442695
        %v11910 = vpow.pop %v11909
        %v11911 = vmul.f32 %v11815, 1.442695
        %v11912 = vpow.pop %v11911
        %v11913 = vmul.f32 %v11816, 1.442695
        %v11914 = vpow.pop %v11913
        %v11915 = vmul.f32 %v11817, 1.442695
        %v11916 = vpow.pop %v11915
        %v11917 = vmul.f32 %v11818, 1.442695
        %v11918 = vpow.pop %v11917
        %v11919 = vmul.f32 %v11819, 1.442695
        %v11920 = vpow.pop %v11919
        %v11921 = vmul.f32 %v11820, 1.442695
        %v11922 = vpow.pop %v11921
        %v11923 = vmul.f32 %v11821, 1.442695
        %v11924 = vpow.pop %v11923
        %v11925 = vmul.f32 %v11822, 1.442695
        %v11926 = vpow.pop %v11925
        %v11927 = vmul.f32 %v11823, 1.442695
        %v11928 = vpow.pop %v11927
        %v11929 = vmul.f32 %v11824, 1.442695
        %v11930 = vpow.pop %v11929
        %v11931 = vmul.f32 %v11825, 1.442695
        %v11932 = vpow.pop %v11931
        %v11933 = vmul.f32 %v11826, 1.442695
        %v11934 = vpow.pop %v11933
        %v11935 = vmul.f32 %v11827, 1.442695
        %v11936 = vpow.pop %v11935
        %v11937 = vmul.f32 %v11828, 1.442695
        %v11938 = vpow.pop %v11937
        %v11939 = vmul.f32 %v11829, 1.442695
        %v11940 = vpow.pop %v11939
        %v11941 = vmul.f32 %v11830, 1.442695
        %v11942 = vpow.pop %v11941
        %v11943 = vmul.f32 %v11831, 1.442695
        %v11944 = vpow.pop %v11943
        %v11945 = vmul.f32 %v11832, 1.442695
        %v11946 = vpow.pop %v11945
        %v11947 = vmul.f32 %v11833, 1.442695
        %v11948 = vpow.pop %v11947
        %v11949 = vmul.f32 %v11834, 1.442695
        %v11950 = vpow.pop %v11949
        %v11951 = vmul.f32 %v11835, 1.442695
        %v11952 = vpow.pop %v11951
        %v11953 = vmul.f32 %v11836, 1.442695
        %v11954 = vpow.pop %v11953
        %v11955 = vmul.f32 %v11837, 1.442695
        %v11956 = vpow.pop %v11955
        %v11957 = vmul.f32 %v11838, 1.442695
        %v11958 = vpow.pop %v11957
        %v11959 = vmul.f32 %v11839, 1.442695
        %v11960 = vpow.pop %v11959
        %v11961 = vmul.f32 %v11840, 1.442695
        %v11962 = vpow.pop %v11961
        %v11963 = vmul.f32 %v11841, 1.442695
        %v11964 = vpow.pop %v11963
        %v11965 = vmul.f32 %v11842, 1.442695
        %v11966 = vpow.pop %v11965
        %v11967 = vmul.f32 %v11843, 1.442695
        %v11968 = vpow.pop %v11967
        %v11969 = vmul.f32 %v11844, 1.442695
        %v11970 = vpow.pop %v11969
        %v11971 = vmul.f32 %v11845, 1.442695
        %v11972 = vpow.pop %v11971
        %v11973 = vmul.f32 %v11846, 1.442695
        %v11974 = vpow.pop %v11973
        %v11975 = vmul.f32 %v11847, 1.442695
        %v11976 = vpow.pop %v11975
        %v11977 = vmul.f32 %v11848, 1.442695
        %v11978 = vpow.pop %v11977
        %v11979 = vmul.f32 %v11849, 1.442695
        %v11980 = vpow.pop %v11979
        %v11981 = vmul.f32 %v11850, 1.442695
        %v11982 = vpow.pop %v11981
        %v11983 = vmul.f32 %v11851, 1.442695
        %v11984 = vpow.pop %v11983
        %v11985 = vmul.f32 %v11852, 1.442695
        %v11986 = vpow.pop %v11985
        %v11987 = vadd.f32 %v11854, %v11856
        %v11988 = vadd.f32 %v11987, %v11858
        %v11989 = vadd.f32 %v11988, %v11860
        %v11990 = vadd.f32 %v11989, %v11862
        %v11991 = vadd.f32 %v11990, %v11864
        %v11992 = vadd.f32 %v11991, %v11866
        %v11993 = vadd.f32 %v11992, %v11868
        %v11994 = vadd.f32 %v11993, %v11870
        %v11995 = vadd.f32 %v11994, %v11872
        %v11996 = vadd.f32 %v11995, %v11874
        %v11997 = vadd.f32 %v11996, %v11876
        %v11998 = vadd.f32 %v11997, %v11878
        %v11999 = vadd.f32 %v11998, %v11880
        %v12000 = vadd.f32 %v11999, %v11882
        %v12001 = vadd.f32 %v12000, %v11884
        %v12002 = vadd.f32 %v12001, %v11886
        %v12003 = vadd.f32 %v12002, %v11888
        %v12004 = vadd.f32 %v12003, %v11890
        %v12005 = vadd.f32 %v12004, %v11892
        %v12006 = vadd.f32 %v12005, %v11894
        %v12007 = vadd.f32 %v12006, %v11896
        %v12008 = vadd.f32 %v12007, %v11898
        %v12009 = vadd.f32 %v12008, %v11900
        %v12010 = vadd.f32 %v12009, %v11902
        %v12011 = vadd.f32 %v12010, %v11904
        %v12012 = vadd.f32 %v12011, %v11906
        %v12013 = vadd.f32 %v12012, %v11908
        %v12014 = vadd.f32 %v12013, %v11910
        %v12015 = vadd.f32 %v12014, %v11912
        %v12016 = vadd.f32 %v12015, %v11914
        %v12017 = vadd.f32 %v12016, %v11916
        %v12018 = vadd.f32 %v12017, %v11918
        %v12019 = vadd.f32 %v12018, %v11920
        %v12020 = vadd.f32 %v12019, %v11922
        %v12021 = vadd.f32 %v12020, %v11924
        %v12022 = vadd.f32 %v12021, %v11926
        %v12023 = vadd.f32 %v12022, %v11928
        %v12024 = vadd.f32 %v12023, %v11930
        %v12025 = vadd.f32 %v12024, %v11932
        %v12026 = vadd.f32 %v12025, %v11934
        %v12027 = vadd.f32 %v12026, %v11936
        %v12028 = vadd.f32 %v12027, %v11938
        %v12029 = vadd.f32 %v12028, %v11940
        %v12030 = vadd.f32 %v12029, %v11942
        %v12031 = vadd.f32 %v12030, %v11944
        %v12032 = vadd.f32 %v12031, %v11946
        %v12033 = vadd.f32 %v12032, %v11948
        %v12034 = vadd.f32 %v12033, %v11950
        %v12035 = vadd.f32 %v12034, %v11952
        %v12036 = vadd.f32 %v12035, %v11954
        %v12037 = vadd.f32 %v12036, %v11956
        %v12038 = vadd.f32 %v12037, %v11958
        %v12039 = vadd.f32 %v12038, %v11960
        %v12040 = vadd.f32 %v12039, %v11962
        %v12041 = vadd.f32 %v12040, %v11964
        %v12042 = vadd.f32 %v12041, %v11966
        %v12043 = vadd.f32 %v12042, %v11968
        %v12044 = vadd.f32 %v12043, %v11970
        %v12045 = vadd.f32 %v12044, %v11972
        %v12046 = vadd.f32 %v12045, %v11974
        %v12047 = vadd.f32 %v12046, %v11976
        %v12048 = vadd.f32 %v12047, %v11978
        %v12049 = vadd.f32 %v12048, %v11980
        %v12050 = vadd.f32 %v12049, %v11982
        %v12051 = vadd.f32 %v12050, %v11984
        %v12052 = vadd.f32 %v12051, %v11986
        %12053 = vadd.xlane.f32.xlu0 %v12052
        %v12054 = vpop.xlane.xlu0 %12053
        %v12055 = vrcp.pop %v12054
        %v12056 = vmul.f32 1.0, %v12055
        %v12057 = vmul.f32 %v11854, %v12056
        %v12058 = vmul.f32 %v11856, %v12056
        %v12059 = vmul.f32 %v11858, %v12056
        %v12060 = vmul.f32 %v11860, %v12056
        %v12061 = vmul.f32 %v11862, %v12056
        %v12062 = vmul.f32 %v11864, %v12056
        %v12063 = vmul.f32 %v11866, %v12056
        %v12064 = vmul.f32 %v11868, %v12056
        %v12065 = vmul.f32 %v11870, %v12056
        %v12066 = vmul.f32 %v11872, %v12056
        %v12067 = vmul.f32 %v11874, %v12056
        %v12068 = vmul.f32 %v11876, %v12056
        %v12069 = vmul.f32 %v11878, %v12056
        %v12070 = vmul.f32 %v11880, %v12056
        %v12071 = vmul.f32 %v11882, %v12056
        %v12072 = vmul.f32 %v11884, %v12056
        %v12073 = vmul.f32 %v11886, %v12056
        %v12074 = vmul.f32 %v11888, %v12056
        %v12075 = vmul.f32 %v11890, %v12056
        %v12076 = vmul.f32 %v11892, %v12056
        %v12077 = vmul.f32 %v11894, %v12056
        %v12078 = vmul.f32 %v11896, %v12056
        %v12079 = vmul.f32 %v11898, %v12056
        %v12080 = vmul.f32 %v11900, %v12056
        %v12081 = vmul.f32 %v11902, %v12056
        %v12082 = vmul.f32 %v11904, %v12056
        %v12083 = vmul.f32 %v11906, %v12056
        %v12084 = vmul.f32 %v11908, %v12056
        %v12085 = vmul.f32 %v11910, %v12056
        %v12086 = vmul.f32 %v11912, %v12056
        %v12087 = vmul.f32 %v11914, %v12056
        %v12088 = vmul.f32 %v11916, %v12056
        %v12089 = vmul.f32 %v11918, %v12056
        %v12090 = vmul.f32 %v11920, %v12056
        %v12091 = vmul.f32 %v11922, %v12056
        %v12092 = vmul.f32 %v11924, %v12056
        %v12093 = vmul.f32 %v11926, %v12056
        %v12094 = vmul.f32 %v11928, %v12056
        %v12095 = vmul.f32 %v11930, %v12056
        %v12096 = vmul.f32 %v11932, %v12056
        %v12097 = vmul.f32 %v11934, %v12056
        %v12098 = vmul.f32 %v11936, %v12056
        %v12099 = vmul.f32 %v11938, %v12056
        %v12100 = vmul.f32 %v11940, %v12056
        %v12101 = vmul.f32 %v11942, %v12056
        %v12102 = vmul.f32 %v11944, %v12056
        %v12103 = vmul.f32 %v11946, %v12056
        %v12104 = vmul.f32 %v11948, %v12056
        %v12105 = vmul.f32 %v11950, %v12056
        %v12106 = vmul.f32 %v11952, %v12056
        %v12107 = vmul.f32 %v11954, %v12056
        %v12108 = vmul.f32 %v11956, %v12056
        %v12109 = vmul.f32 %v11958, %v12056
        %v12110 = vmul.f32 %v11960, %v12056
        %v12111 = vmul.f32 %v11962, %v12056
        %v12112 = vmul.f32 %v11964, %v12056
        %v12113 = vmul.f32 %v11966, %v12056
        %v12114 = vmul.f32 %v11968, %v12056
        %v12115 = vmul.f32 %v11970, %v12056
        %v12116 = vmul.f32 %v11972, %v12056
        %v12117 = vmul.f32 %v11974, %v12056
        %v12118 = vmul.f32 %v11976, %v12056
        %v12119 = vmul.f32 %v11978, %v12056
        %v12120 = vmul.f32 %v11980, %v12056
        %v12121 = vmul.f32 %v11982, %v12056
        %v12122 = vmul.f32 %v11984, %v12056
        %v12123 = vmul.f32 %v11986, %v12056
        %12124 = vst [vmem:[%s7] sm:$0xff] %v12057
        %12125 = vst [vmem:[%s7 + $0x8] sm:$0xff] %v12058
        %12126 = vst [vmem:[%s7 + $0x10] sm:$0xff] %v12059
        %12127 = vst [vmem:[%s7 + $0x18] sm:$0xff] %v12060
        %12128 = vst [vmem:[%s7 + $0x20] sm:$0xff] %v12061
        %12129 = vst [vmem:[%s7 + $0x28] sm:$0xff] %v12062
        %12130 = vst [vmem:[%s7 + $0x30] sm:$0xff] %v12063
        %12131 = vst [vmem:[%s7 + $0x38] sm:$0xff] %v12064
        %12132 = vst [vmem:[%s7 + $0x40] sm:$0xff] %v12065
        %12133 = vst [vmem:[%s7 + $0x48] sm:$0xff] %v12066
        %12134 = vst [vmem:[%s7 + $0x50] sm:$0xff] %v12067
        %12135 = vst [vmem:[%s7 + $0x58] sm:$0xff] %v12068
        %12136 = vst [vmem:[%s7 + $0x60] sm:$0xff] %v12069
        %12137 = vst [vmem:[%s7 + $0x68] sm:$0xff] %v12070
        %12138 = vst [vmem:[%s7 + $0x70] sm:$0xff] %v12071
        %12139 = vst [vmem:[%s7 + $0x78] sm:$0xff] %v12072
        %12140 = vst [vmem:[%s7 + $0x80] sm:$0xff] %v12073
        %12141 = vst [vmem:[%s7 + $0x88] sm:$0xff] %v12074
        %12142 = vst [vmem:[%s7 + $0x90] sm:$0xff] %v12075
        %12143 = vst [vmem:[%s7 + $0x98] sm:$0xff] %v12076
        %12144 = vst [vmem:[%s7 + $0xa0] sm:$0xff] %v12077
        %12145 = vst [vmem:[%s7 + $0xa8] sm:$0xff] %v12078
        %12146 = vst [vmem:[%s7 + $0xb0] sm:$0xff] %v12079
        %12147 = vst [vmem:[%s7 + $0xb8] sm:$0xff] %v12080
        %12148 = vst [vmem:[%s7 + $0xc0] sm:$0xff] %v12081
        %12149 = vst [vmem:[%s7 + $0xc8] sm:$0xff] %v12082
        %12150 = vst [vmem:[%s7 + $0xd0] sm:$0xff] %v12083
        %12151 = vst [vmem:[%s7 + $0xd8] sm:$0xff] %v12084
        %12152 = vst [vmem:[%s7 + $0xe0] sm:$0xff] %v12085
        %12153 = vst [vmem:[%s7 + $0xe8] sm:$0xff] %v12086
        %12154 = vst [vmem:[%s7 + $0xf0] sm:$0xff] %v12087
        %12155 = vst [vmem:[%s7 + $0xf8] sm:$0xff] %v12088
        %12156 = vst [vmem:[%s7 + $0x100] sm:$0xff] %v12089
        %12157 = vst [vmem:[%s7 + $0x108] sm:$0xff] %v12090
        %12158 = vst [vmem:[%s7 + $0x110] sm:$0xff] %v12091
        %12159 = vst [vmem:[%s7 + $0x118] sm:$0xff] %v12092
        %12160 = vst [vmem:[%s7 + $0x120] sm:$0xff] %v12093
        %12161 = vst [vmem:[%s7 + $0x128] sm:$0xff] %v12094
        %12162 = vst [vmem:[%s7 + $0x130] sm:$0xff] %v12095
        %12163 = vst [vmem:[%s7 + $0x138] sm:$0xff] %v12096
        %12164 = vst [vmem:[%s7 + $0x140] sm:$0xff] %v12097
        %12165 = vst [vmem:[%s7 + $0x148] sm:$0xff] %v12098
        %12166 = vst [vmem:[%s7 + $0x150] sm:$0xff] %v12099
        %12167 = vst [vmem:[%s7 + $0x158] sm:$0xff] %v12100
        %12168 = vst [vmem:[%s7 + $0x160] sm:$0xff] %v12101
        %12169 = vst [vmem:[%s7 + $0x168] sm:$0xff] %v12102
        %12170 = vst [vmem:[%s7 + $0x170] sm:$0xff] %v12103
        %12171 = vst [vmem:[%s7 + $0x178] sm:$0xff] %v12104
        %12172 = vst [vmem:[%s7 + $0x180] sm:$0xff] %v12105
        %12173 = vst [vmem:[%s7 + $0x188] sm:$0xff] %v12106
        %12174 = vst [vmem:[%s7 + $0x190] sm:$0xff] %v12107
        %12175 = vst [vmem:[%s7 + $0x198] sm:$0xff] %v12108
        %12176 = vst [vmem:[%s7 + $0x1a0] sm:$0xff] %v12109
        %12177 = vst [vmem:[%s7 + $0x1a8] sm:$0xff] %v12110
        %12178 = vst [vmem:[%s7 + $0x1b0] sm:$0xff] %v12111
        %12179 = vst [vmem:[%s7 + $0x1b8] sm:$0xff] %v12112
        %12180 = vst [vmem:[%s7 + $0x1c0] sm:$0xff] %v12113
        %12181 = vst [vmem:[%s7 + $0x1c8] sm:$0xff] %v12114
        %12182 = vst [vmem:[%s7 + $0x1d0] sm:$0xff] %v12115
        %12183 = vst [vmem:[%s7 + $0x1d8] sm:$0xff] %v12116
        %12184 = vst [vmem:[%s7 + $0x1e0] sm:$0xff] %v12117
        %12185 = vst [vmem:[%s7 + $0x1e8] sm:$0xff] %v12118
        %12186 = vst [vmem:[%s7 + $0x1f0] sm:$0xff] %v12119
        %12187 = vst [vmem:[%s7 + $0x1f8] sm:$0xff] %v12120
        %12188 = vst [vmem:[%s7 + $0x200] sm:$0xff] %v12121
        %12189 = vst [vmem:[%s7 + $0x208] sm:$0xff] %v12122
        %12190 = vst [vmem:[%s7 + $0x210] sm:$0xff] %v12123
      $region68: #{prn_forward.1} parent=47 // pred_fallthru
        _
      // Predicated region
      $region69: #{prn_forward.1} parent=47 // pred_check
        %p12191 = pneg %p226
      $region70: #{prn_forward.1} parent=47 // pred_check_branch
        %12193 = sbr.rel (%p12191) target = $region72
      $region71: #{prn_forward.1} parent=47 // pred_region
        _
      $region72: #{prn_forward.1} parent=47 // pred_fallthru
        _
      // Predicated region
      $region73: #{prn_forward.1} parent=47 // pred_check
        %p12194 = pneg %p226
      $region74: #{prn_forward.1} parent=47 // pred_check_branch
        %12196 = sbr.rel (%p12194) target = $region76
      $region75: #{prn_forward.1} parent=47 // pred_region
        _
      $region76: #{prn_forward.1} parent=47 // pred_fallthru
        _
    $region48: #{prn_forward.1} parent=5 // pred_fallthru
      _
    %p12197 = scmp.le.s32.totalorder 2, %s13
    // Predicated region
    $region77: #{prn_forward.1} parent=5 // pred_check
      %p12198 = pneg %p12197
    $region78: #{prn_forward.1} parent=5 // pred_check_branch
      %12200 = sbr.rel (%p12198) target = $region80
    $region79: #{prn_forward.1} parent=5 // pred_region
      %s12201 = ssub.s32 %s13, 2
    $region80: #{prn_forward.1} parent=5 // pred_fallthru
      _
  $region6: #{prn_forward.1} parent=0 // loop_footer
    %s17 = sadd.s32 1, %s13
  $region7: #{prn_forward.1} parent=0 // loop_footer_branch
    %12 = sbr.rel target = $region3
  $region8: #{prn_forward.1} parent=0 // loop_exit
    _

</llo_original>
